<compile_context>
chip_gen: v7x
topology: tpu7x:2x2x1
jax: 0.10.0
libtpu: 0.0.40
codegen_flags: <defaults>
</compile_context>

<pallas_src>
import functools

import jax
import jax.numpy as jnp
from jax.experimental import pallas as pl
from jax.experimental.pallas import tpu as pltpu

COUT_PAD = 128   # lane-dense padded conv output channels
CIN_PAD1 = 8     # sublane-friendly padded input channels for conv1


# ---------------------------------------------------------------------------
# Pallas kernel: fused im2col conv + bias + ReLU (one batch element per step)
# ---------------------------------------------------------------------------
def _conv_tap_kernel(*refs, kh, kw, stride, oh, ow):
    n_phase = stride * stride
    phase_refs = refs[:n_phase]
    w_ref, b_ref, o_ref = refs[n_phase], refs[n_phase + 1], refs[n_phase + 2]
    cin = phase_refs[0].shape[-1]
    cout = o_ref.shape[-1]

    acc = jnp.zeros((oh * ow, cout), jnp.float32)
    for i in range(kh):
        for j in range(kw):
            pi, ri = i % stride, i // stride
            pj, rj = j % stride, j // stride
            # Shifted im2col window read straight from the VMEM-resident phase
            # tile (unit-stride slices only; the stride lives in the phase split).
            win = phase_refs[pi * stride + pj][0, ri:ri + oh, rj:rj + ow, :]
            lhs = win.reshape(oh * ow, cin).astype(jnp.bfloat16)
            acc = acc + jnp.dot(lhs, w_ref[i * kw + j],
                                preferred_element_type=jnp.float32)
    acc = jnp.maximum(acc + b_ref[...], 0.0)           # f32 epilogue
    o_ref[...] = acc.reshape(1, oh * ow, cout)


def pallas_conv_relu(x_nhwc, w_folded, b_row, *, stride, pad):
    """NHWC 3x3 Conv2d + ReLU with lane-dense (channel-padded) output.

    w_folded : (kh*kw, cin_pad, cout_pad) bf16
    b_row    : (1, cout_pad)              f32
    returns  : (B, OH, OW, cout_pad)      f32
    """
    B, H, W, C = x_nhwc.shape
    kk, cin_pad, cout = w_folded.shape
    kh = kw = 3
    assert kk == kh * kw and C <= cin_pad
    OH = (H + 2 * pad - kh) // stride + 1
    OW = (W + 2 * pad - kw) // stride + 1
    PH = OH + (kh - 1) // stride          # rows per stride-phase
    PW = OW + (kw - 1) // stride
    pad_h_hi = stride * PH - (H + pad)
    pad_w_hi = stride * PW - (W + pad)
    assert pad_h_hi >= 0 and pad_w_hi >= 0

    # conv zero-padding + channel padding + bottom/right padding so every phase
    # is exactly (PH, PW).  Total bytes == input bytes (no 9x im2col expansion).
    xp = jnp.pad(x_nhwc.astype(jnp.float32),
                 ((0, 0), (pad, pad_h_hi), (pad, pad_w_hi), (0, cin_pad - C)))
    phases = [xp[:, pi::stride, pj::stride, :]
              for pi in range(stride) for pj in range(stride)]

    kern = functools.partial(_conv_tap_kernel, kh=kh, kw=kw,
                             stride=stride, oh=OH, ow=OW)
    phase_spec = pl.BlockSpec((1, PH, PW, cin_pad), lambda b: (b, 0, 0, 0))
    y = pl.pallas_call(
        kern,
        out_shape=jax.ShapeDtypeStruct((B, OH * OW, cout), jnp.float32),
        grid=(B,),
        in_specs=[phase_spec] * (stride * stride) + [
            pl.BlockSpec((kk, cin_pad, cout), lambda b: (0, 0, 0)),   # resident W
            pl.BlockSpec((1, cout), lambda b: (0, 0)),                # resident b
        ],
        out_specs=pl.BlockSpec((1, OH * OW, cout), lambda b: (b, 0, 0)),
        compiler_params=pltpu.CompilerParams(
            dimension_semantics=("parallel",),
            vmem_limit_bytes=32 * 1024 * 1024),
    )(*phases, w_folded, b_row)
    return y.reshape(B, OH, OW, cout)


# ---------------------------------------------------------------------------
# Pallas kernel: fused dense head  Linear(inp,512)+ReLU -> Linear(512,256)+ReLU
# K-grid over fc1's reduction dim, f32 accumulator in VMEM scratch.
# ---------------------------------------------------------------------------
def _dense_head_kernel(x_ref, w1_ref, b1_ref, w2_ref, b2_ref, o_ref, acc_ref):
    k = pl.program_id(0)

    @pl.when(k == 0)
    def _init():
        acc_ref[...] = jnp.zeros_like(acc_ref)

    acc_ref[...] += jnp.dot(x_ref[...], w1_ref[...],
                            preferred_element_type=jnp.float32)

    @pl.when(k == pl.num_programs(0) - 1)
    def _finalize():
        h = jnp.maximum(acc_ref[...] + b1_ref[...], 0.0)        # f32 epilogue
        out = jnp.dot(h.astype(jnp.bfloat16), w2_ref[...],
                      preferred_element_type=jnp.float32)
        o_ref[...] = jnp.maximum(out + b2_ref[...], 0.0)


def pallas_dense_head(feats, w1, b1, w2, b2, *, tk=2048):
    B, K = feats.shape
    N1, N2 = w1.shape[1], w2.shape[1]
    tk = min(tk, K)
    assert K % tk == 0
    nk = K // tk
    return pl.pallas_call(
        _dense_head_kernel,
        out_shape=jax.ShapeDtypeStruct((B, N2), jnp.float32),
        grid=(nk,),
        in_specs=[
            pl.BlockSpec((B, tk), lambda k: (0, k)),        # activations (K-tiled)
            pl.BlockSpec((tk, N1), lambda k: (k, 0)),       # fc1 weight (K-tiled)
            pl.BlockSpec((1, N1), lambda k: (0, 0)),        # fc1 bias (resident)
            pl.BlockSpec((N1, N2), lambda k: (0, 0)),       # fc2 weight (resident)
            pl.BlockSpec((1, N2), lambda k: (0, 0)),        # fc2 bias (resident)
        ],
        out_specs=pl.BlockSpec((B, N2), lambda k: (0, 0)),  # resident output
        scratch_shapes=[pltpu.VMEM((B, N1), jnp.float32)],
        compiler_params=pltpu.CompilerParams(
            dimension_semantics=("arbitrary",),
            vmem_limit_bytes=32 * 1024 * 1024),
        cost_estimate=pl.CostEstimate(
            flops=2 * B * K * N1 + 2 * B * N1 * N2,
            transcendentals=0,
            bytes_accessed=2 * (B * K + K * N1 + N1 * N2 + N1 + N2) + 4 * B * N2),
    )(feats, w1, b1, w2, b2)


# ---------------------------------------------------------------------------
# Parameter init + one-time folding (layout/permutation baked into weights)
# ---------------------------------------------------------------------------
def init_params(key, cin=3, c1=8, c2=16, hout=8, wout=8):
    inp = c2 * hout * wout
    ks = jax.random.split(key, 8)
    s = 0.05
    return {
        "conv1_w": s * jax.random.normal(ks[0], (c1, cin, 3, 3), jnp.float32),
        "conv1_b": s * jax.random.normal(ks[1], (c1,), jnp.float32),
        "conv2_w": s * jax.random.normal(ks[2], (c2, c1, 3, 3), jnp.float32),
        "conv2_b": s * jax.random.normal(ks[3], (c2,), jnp.float32),
        "fc1_w":   s * jax.random.normal(ks[4], (inp, 512), jnp.float32),
        "fc1_b":   s * jax.random.normal(ks[5], (512,), jnp.float32),
        "fc2_w":   s * jax.random.normal(ks[6], (512, 256), jnp.float32),
        "fc2_b":   s * jax.random.normal(ks[7], (256,), jnp.float32),
    }


def _fold_conv_weight(w_oihw, cin_pad, cout_pad):
    cout, cin, kh, kw = w_oihw.shape
    w = jnp.transpose(w_oihw, (2, 3, 1, 0)).reshape(kh * kw, cin, cout)
    w = jnp.pad(w, ((0, 0), (0, cin_pad - cin), (0, cout_pad - cout)))
    return w.astype(jnp.bfloat16)


def _fold_fc1_weight(fc1_w, c2, oh, ow, cpad):
    # PyTorch flattens NCHW as (c, h, w); our feats are NHWC-flattened with
    # channels zero-padded to cpad: row = h*ow*cpad + w*cpad + c.
    n = fc1_w.shape[1]
    w = fc1_w.reshape(c2, oh, ow, n).transpose(1, 2, 0, 3)   # (h, w, c, n)
    w = jnp.pad(w, ((0, 0), (0, 0), (0, cpad - c2), (0, 0)))
    return w.reshape(oh * ow * cpad, n).astype(jnp.bfloat16)


def prepare_params(p, *, c1, c2, hout, wout):
    return {
        "conv1_w": _fold_conv_weight(p["conv1_w"], CIN_PAD1, COUT_PAD),
        "conv1_b": jnp.pad(p["conv1_b"], (0, COUT_PAD - c1)).reshape(1, COUT_PAD).astype(jnp.float32),
        "conv2_w": _fold_conv_weight(p["conv2_w"], COUT_PAD, COUT_PAD),
        "conv2_b": jnp.pad(p["conv2_b"], (0, COUT_PAD - c2)).reshape(1, COUT_PAD).astype(jnp.float32),
        "fc1_w": _fold_fc1_weight(p["fc1_w"], c2, hout, wout, COUT_PAD),
        "fc1_b": p["fc1_b"].reshape(1, -1).astype(jnp.float32),
        "fc2_w": p["fc2_w"].astype(jnp.bfloat16),
        "fc2_b": p["fc2_b"].reshape(1, -1).astype(jnp.float32),
    }


# ---------------------------------------------------------------------------
# CustomCNN forward (attention=False branch): cnn(image) -> flatten -> dense
# ---------------------------------------------------------------------------
def custom_cnn_forward(image_nchw, prep):
    # One-time NCHW -> NHWC; the network stays NHWC from here on.
    x = jnp.transpose(image_nchw, (0, 2, 3, 1))
    h = pallas_conv_relu(x, prep["conv1_w"], prep["conv1_b"], stride=1, pad=1)
    h = pallas_conv_relu(h, prep["conv2_w"], prep["conv2_b"], stride=2, pad=1)
    B = h.shape[0]
    # feats = cnn_feats.view(-1, inp): the NCHW (c*h*w) flatten permutation and
    # the channel padding are folded into fc1_w, so a plain NHWC flatten is enough.
    feats = h.reshape(B, -1).astype(jnp.bfloat16)
    return pallas_dense_head(feats, prep["fc1_w"], prep["fc1_b"],
                             prep["fc2_w"], prep["fc2_b"])


# ---------------------------------------------------------------------------
# Pure-JAX reference (f32) for a tolerance check
# ---------------------------------------------------------------------------
def reference_forward(image_nchw, params):
    def conv(x, w, b, stride, pad):
        y = jax.lax.conv_general_dilated(
            x, w, window_strides=(stride, stride),
            padding=[(pad, pad), (pad, pad)],
            dimension_numbers=("NCHW", "OIHW", "NCHW"))
        return jax.nn.relu(y + b[None, :, None, None])

    h = conv(image_nchw, params["conv1_w"], params["conv1_b"], 1, 1)
    h = conv(h, params["conv2_w"], params["conv2_b"], 2, 1)
    feats = h.reshape(h.shape[0], -1)
    h1 = jax.nn.relu(feats @ params["fc1_w"] + params["fc1_b"])
    return jax.nn.relu(h1 @ params["fc2_w"] + params["fc2_b"])


if __name__ == "__main__":
    key = jax.random.PRNGKey(0)
    k_img, k_par = jax.random.split(key)

    B, C, H, W = 2, 3, 16, 16                      # small NCHW image
    image = jax.random.normal(k_img, (B, C, H, W), jnp.float32)
    params = init_params(k_par, cin=C, c1=8, c2=16, hout=H // 2, wout=W // 2)
    prep = prepare_params(params, c1=8, c2=16, hout=H // 2, wout=W // 2)

    out = jax.jit(custom_cnn_forward)(image, prep)
    out = jax.block_until_ready(out)

    assert out.shape == (B, 256), out.shape
    assert out.dtype == jnp.float32
    assert bool(jnp.all(jnp.isfinite(out)))

    # Numerical check vs pure-JAX f32 reference (bf16 MXU inputs => tolerance).
    ref = reference_forward(image, params)
    assert bool(jnp.allclose(out, ref, atol=1e-2, rtol=5e-2)), (
        float(jnp.max(jnp.abs(out - ref))))
    print("KERNEL_OK")
</pallas_src>

<mosaic_0001>
module attributes {stable_mosaic.version = 11 : i64} {
  func.func @_conv_tap_kernel(%arg0: i32, %arg1: memref<1x18x18x8xf32, #tpu.memory_space<vmem>>, %arg2: memref<9x8x128xbf16, #tpu.memory_space<vmem>>, %arg3: memref<1x128xf32, #tpu.memory_space<vmem>>, %arg4: memref<1x256x128xf32, #tpu.memory_space<vmem>>) attributes {dimension_semantics = [#tpu.dimension_semantics<parallel>], iteration_bounds = array<i64: 2>, scalar_prefetch = 0 : i64, scratch_operands = 0 : i64, tpu.core_type = #tpu.core_type<tc>, window_params = [{transform_indices = @transform_0, window_bounds = array<i64: 1, 18, 18, 8>}, {pipeline_mode = #tpu.pipeline_mode<synchronous>, transform_indices = @transform_1, window_bounds = array<i64: 9, 8, 128>}, {pipeline_mode = #tpu.pipeline_mode<synchronous>, transform_indices = @transform_2, window_bounds = array<i64: 1, 128>}, {transform_indices = @transform_3, window_bounds = array<i64: 1, 256, 128>}]} {
    %cst = arith.constant 0.000000e+00 : f32
    %0 = vector.broadcast %cst : f32 to vector<256x128xf32>
    %c0 = arith.constant 0 : index
    %c0_0 = arith.constant 0 : index
    %c0_1 = arith.constant 0 : index
    %c0_2 = arith.constant 0 : index
    %1 = vector.load %arg1[%c0, %c0_0, %c0_1, %c0_2] : memref<1x18x18x8xf32, #tpu.memory_space<vmem>>, vector<1x16x16x8xf32>
    %2 = vector.shape_cast %1 : vector<1x16x16x8xf32> to vector<16x16x8xf32>
    %3 = vector.shape_cast %2 : vector<16x16x8xf32> to vector<256x8xf32>
    %4 = arith.truncf %3 : vector<256x8xf32> to vector<256x8xbf16>
    %c0_3 = arith.constant 0 : index
    %c0_4 = arith.constant 0 : index
    %c0_5 = arith.constant 0 : index
    %5 = vector.load %arg2[%c0_3, %c0_4, %c0_5] : memref<9x8x128xbf16, #tpu.memory_space<vmem>>, vector<1x8x128xbf16>
    %6 = vector.shape_cast %5 : vector<1x8x128xbf16> to vector<8x128xbf16>
    %cst_6 = arith.constant dense<0.000000e+00> : vector<256x128xf32>
    %7 = tpu.matmul %4, %6, %cst_6 {dimension_numbers = #tpu.dot_dimension_numbers<[1], [0], [0], [1], [0, 0, 1, 1], [], []>} : vector<256x8xbf16>, vector<8x128xbf16>, vector<256x128xf32> -> vector<256x128xf32>
    %8 = arith.addf %0, %7 : vector<256x128xf32>
    %c0_7 = arith.constant 0 : index
    %c0_8 = arith.constant 0 : index
    %c1 = arith.constant 1 : index
    %c0_9 = arith.constant 0 : index
    %9 = vector.load %arg1[%c0_7, %c0_8, %c1, %c0_9] : memref<1x18x18x8xf32, #tpu.memory_space<vmem>>, vector<1x16x16x8xf32>
    %10 = vector.shape_cast %9 : vector<1x16x16x8xf32> to vector<16x16x8xf32>
    %11 = vector.shape_cast %10 : vector<16x16x8xf32> to vector<256x8xf32>
    %12 = arith.truncf %11 : vector<256x8xf32> to vector<256x8xbf16>
    %c1_10 = arith.constant 1 : index
    %c0_11 = arith.constant 0 : index
    %c0_12 = arith.constant 0 : index
    %13 = vector.load %arg2[%c1_10, %c0_11, %c0_12] : memref<9x8x128xbf16, #tpu.memory_space<vmem>>, vector<1x8x128xbf16>
    %14 = vector.shape_cast %13 : vector<1x8x128xbf16> to vector<8x128xbf16>
    %cst_13 = arith.constant dense<0.000000e+00> : vector<256x128xf32>
    %15 = tpu.matmul %12, %14, %cst_13 {dimension_numbers = #tpu.dot_dimension_numbers<[1], [0], [0], [1], [0, 0, 1, 1], [], []>} : vector<256x8xbf16>, vector<8x128xbf16>, vector<256x128xf32> -> vector<256x128xf32>
    %16 = arith.addf %8, %15 : vector<256x128xf32>
    %c0_14 = arith.constant 0 : index
    %c0_15 = arith.constant 0 : index
    %c2 = arith.constant 2 : index
    %c0_16 = arith.constant 0 : index
    %17 = vector.load %arg1[%c0_14, %c0_15, %c2, %c0_16] : memref<1x18x18x8xf32, #tpu.memory_space<vmem>>, vector<1x16x16x8xf32>
    %18 = vector.shape_cast %17 : vector<1x16x16x8xf32> to vector<16x16x8xf32>
    %19 = vector.shape_cast %18 : vector<16x16x8xf32> to vector<256x8xf32>
    %20 = arith.truncf %19 : vector<256x8xf32> to vector<256x8xbf16>
    %c2_17 = arith.constant 2 : index
    %c0_18 = arith.constant 0 : index
    %c0_19 = arith.constant 0 : index
    %21 = vector.load %arg2[%c2_17, %c0_18, %c0_19] : memref<9x8x128xbf16, #tpu.memory_space<vmem>>, vector<1x8x128xbf16>
    %22 = vector.shape_cast %21 : vector<1x8x128xbf16> to vector<8x128xbf16>
    %cst_20 = arith.constant dense<0.000000e+00> : vector<256x128xf32>
    %23 = tpu.matmul %20, %22, %cst_20 {dimension_numbers = #tpu.dot_dimension_numbers<[1], [0], [0], [1], [0, 0, 1, 1], [], []>} : vector<256x8xbf16>, vector<8x128xbf16>, vector<256x128xf32> -> vector<256x128xf32>
    %24 = arith.addf %16, %23 : vector<256x128xf32>
    %c0_21 = arith.constant 0 : index
    %c1_22 = arith.constant 1 : index
    %c0_23 = arith.constant 0 : index
    %c0_24 = arith.constant 0 : index
    %25 = vector.load %arg1[%c0_21, %c1_22, %c0_23, %c0_24] : memref<1x18x18x8xf32, #tpu.memory_space<vmem>>, vector<1x16x16x8xf32>
    %26 = vector.shape_cast %25 : vector<1x16x16x8xf32> to vector<16x16x8xf32>
    %27 = vector.shape_cast %26 : vector<16x16x8xf32> to vector<256x8xf32>
    %28 = arith.truncf %27 : vector<256x8xf32> to vector<256x8xbf16>
    %c3 = arith.constant 3 : index
    %c0_25 = arith.constant 0 : index
    %c0_26 = arith.constant 0 : index
    %29 = vector.load %arg2[%c3, %c0_25, %c0_26] : memref<9x8x128xbf16, #tpu.memory_space<vmem>>, vector<1x8x128xbf16>
    %30 = vector.shape_cast %29 : vector<1x8x128xbf16> to vector<8x128xbf16>
    %cst_27 = arith.constant dense<0.000000e+00> : vector<256x128xf32>
    %31 = tpu.matmul %28, %30, %cst_27 {dimension_numbers = #tpu.dot_dimension_numbers<[1], [0], [0], [1], [0, 0, 1, 1], [], []>} : vector<256x8xbf16>, vector<8x128xbf16>, vector<256x128xf32> -> vector<256x128xf32>
    %32 = arith.addf %24, %31 : vector<256x128xf32>
    %c0_28 = arith.constant 0 : index
    %c1_29 = arith.constant 1 : index
    %c1_30 = arith.constant 1 : index
    %c0_31 = arith.constant 0 : index
    %33 = vector.load %arg1[%c0_28, %c1_29, %c1_30, %c0_31] : memref<1x18x18x8xf32, #tpu.memory_space<vmem>>, vector<1x16x16x8xf32>
    %34 = vector.shape_cast %33 : vector<1x16x16x8xf32> to vector<16x16x8xf32>
    %35 = vector.shape_cast %34 : vector<16x16x8xf32> to vector<256x8xf32>
    %36 = arith.truncf %35 : vector<256x8xf32> to vector<256x8xbf16>
    %c4 = arith.constant 4 : index
    %c0_32 = arith.constant 0 : index
    %c0_33 = arith.constant 0 : index
    %37 = vector.load %arg2[%c4, %c0_32, %c0_33] : memref<9x8x128xbf16, #tpu.memory_space<vmem>>, vector<1x8x128xbf16>
    %38 = vector.shape_cast %37 : vector<1x8x128xbf16> to vector<8x128xbf16>
    %cst_34 = arith.constant dense<0.000000e+00> : vector<256x128xf32>
    %39 = tpu.matmul %36, %38, %cst_34 {dimension_numbers = #tpu.dot_dimension_numbers<[1], [0], [0], [1], [0, 0, 1, 1], [], []>} : vector<256x8xbf16>, vector<8x128xbf16>, vector<256x128xf32> -> vector<256x128xf32>
    %40 = arith.addf %32, %39 : vector<256x128xf32>
    %c0_35 = arith.constant 0 : index
    %c1_36 = arith.constant 1 : index
    %c2_37 = arith.constant 2 : index
    %c0_38 = arith.constant 0 : index
    %41 = vector.load %arg1[%c0_35, %c1_36, %c2_37, %c0_38] : memref<1x18x18x8xf32, #tpu.memory_space<vmem>>, vector<1x16x16x8xf32>
    %42 = vector.shape_cast %41 : vector<1x16x16x8xf32> to vector<16x16x8xf32>
    %43 = vector.shape_cast %42 : vector<16x16x8xf32> to vector<256x8xf32>
    %44 = arith.truncf %43 : vector<256x8xf32> to vector<256x8xbf16>
    %c5 = arith.constant 5 : index
    %c0_39 = arith.constant 0 : index
    %c0_40 = arith.constant 0 : index
    %45 = vector.load %arg2[%c5, %c0_39, %c0_40] : memref<9x8x128xbf16, #tpu.memory_space<vmem>>, vector<1x8x128xbf16>
    %46 = vector.shape_cast %45 : vector<1x8x128xbf16> to vector<8x128xbf16>
    %cst_41 = arith.constant dense<0.000000e+00> : vector<256x128xf32>
    %47 = tpu.matmul %44, %46, %cst_41 {dimension_numbers = #tpu.dot_dimension_numbers<[1], [0], [0], [1], [0, 0, 1, 1], [], []>} : vector<256x8xbf16>, vector<8x128xbf16>, vector<256x128xf32> -> vector<256x128xf32>
    %48 = arith.addf %40, %47 : vector<256x128xf32>
    %c0_42 = arith.constant 0 : index
    %c2_43 = arith.constant 2 : index
    %c0_44 = arith.constant 0 : index
    %c0_45 = arith.constant 0 : index
    %49 = vector.load %arg1[%c0_42, %c2_43, %c0_44, %c0_45] : memref<1x18x18x8xf32, #tpu.memory_space<vmem>>, vector<1x16x16x8xf32>
    %50 = vector.shape_cast %49 : vector<1x16x16x8xf32> to vector<16x16x8xf32>
    %51 = vector.shape_cast %50 : vector<16x16x8xf32> to vector<256x8xf32>
    %52 = arith.truncf %51 : vector<256x8xf32> to vector<256x8xbf16>
    %c6 = arith.constant 6 : index
    %c0_46 = arith.constant 0 : index
    %c0_47 = arith.constant 0 : index
    %53 = vector.load %arg2[%c6, %c0_46, %c0_47] : memref<9x8x128xbf16, #tpu.memory_space<vmem>>, vector<1x8x128xbf16>
    %54 = vector.shape_cast %53 : vector<1x8x128xbf16> to vector<8x128xbf16>
    %cst_48 = arith.constant dense<0.000000e+00> : vector<256x128xf32>
    %55 = tpu.matmul %52, %54, %cst_48 {dimension_numbers = #tpu.dot_dimension_numbers<[1], [0], [0], [1], [0, 0, 1, 1], [], []>} : vector<256x8xbf16>, vector<8x128xbf16>, vector<256x128xf32> -> vector<256x128xf32>
    %56 = arith.addf %48, %55 : vector<256x128xf32>
    %c0_49 = arith.constant 0 : index
    %c2_50 = arith.constant 2 : index
    %c1_51 = arith.constant 1 : index
    %c0_52 = arith.constant 0 : index
    %57 = vector.load %arg1[%c0_49, %c2_50, %c1_51, %c0_52] : memref<1x18x18x8xf32, #tpu.memory_space<vmem>>, vector<1x16x16x8xf32>
    %58 = vector.shape_cast %57 : vector<1x16x16x8xf32> to vector<16x16x8xf32>
    %59 = vector.shape_cast %58 : vector<16x16x8xf32> to vector<256x8xf32>
    %60 = arith.truncf %59 : vector<256x8xf32> to vector<256x8xbf16>
    %c7 = arith.constant 7 : index
    %c0_53 = arith.constant 0 : index
    %c0_54 = arith.constant 0 : index
    %61 = vector.load %arg2[%c7, %c0_53, %c0_54] : memref<9x8x128xbf16, #tpu.memory_space<vmem>>, vector<1x8x128xbf16>
    %62 = vector.shape_cast %61 : vector<1x8x128xbf16> to vector<8x128xbf16>
    %cst_55 = arith.constant dense<0.000000e+00> : vector<256x128xf32>
    %63 = tpu.matmul %60, %62, %cst_55 {dimension_numbers = #tpu.dot_dimension_numbers<[1], [0], [0], [1], [0, 0, 1, 1], [], []>} : vector<256x8xbf16>, vector<8x128xbf16>, vector<256x128xf32> -> vector<256x128xf32>
    %64 = arith.addf %56, %63 : vector<256x128xf32>
    %c0_56 = arith.constant 0 : index
    %c2_57 = arith.constant 2 : index
    %c2_58 = arith.constant 2 : index
    %c0_59 = arith.constant 0 : index
    %65 = vector.load %arg1[%c0_56, %c2_57, %c2_58, %c0_59] : memref<1x18x18x8xf32, #tpu.memory_space<vmem>>, vector<1x16x16x8xf32>
    %66 = vector.shape_cast %65 : vector<1x16x16x8xf32> to vector<16x16x8xf32>
    %67 = vector.shape_cast %66 : vector<16x16x8xf32> to vector<256x8xf32>
    %68 = arith.truncf %67 : vector<256x8xf32> to vector<256x8xbf16>
    %c8 = arith.constant 8 : index
    %c0_60 = arith.constant 0 : index
    %c0_61 = arith.constant 0 : index
    %69 = vector.load %arg2[%c8, %c0_60, %c0_61] : memref<9x8x128xbf16, #tpu.memory_space<vmem>>, vector<1x8x128xbf16>
    %70 = vector.shape_cast %69 : vector<1x8x128xbf16> to vector<8x128xbf16>
    %cst_62 = arith.constant dense<0.000000e+00> : vector<256x128xf32>
    %71 = tpu.matmul %68, %70, %cst_62 {dimension_numbers = #tpu.dot_dimension_numbers<[1], [0], [0], [1], [0, 0, 1, 1], [], []>} : vector<256x8xbf16>, vector<8x128xbf16>, vector<256x128xf32> -> vector<256x128xf32>
    %72 = arith.addf %64, %71 : vector<256x128xf32>
    %c0_63 = arith.constant 0 : index
    %c0_64 = arith.constant 0 : index
    %73 = vector.load %arg3[%c0_63, %c0_64] : memref<1x128xf32, #tpu.memory_space<vmem>>, vector<1x128xf32>
    %74 = vector.broadcast %73 : vector<1x128xf32> to vector<256x128xf32>
    %75 = arith.addf %72, %74 : vector<256x128xf32>
    %cst_65 = arith.constant 0.000000e+00 : f32
    %76 = vector.broadcast %cst_65 : f32 to vector<256x128xf32>
    %77 = arith.maximumf %75, %76 : vector<256x128xf32>
    %78 = vector.shape_cast %77 : vector<256x128xf32> to vector<1x256x128xf32>
    %c0_66 = arith.constant 0 : index
    %c0_67 = arith.constant 0 : index
    %c0_68 = arith.constant 0 : index
    %79 = vector.load %arg4[%c0_66, %c0_67, %c0_68] : memref<1x256x128xf32, #tpu.memory_space<vmem>>, vector<1x256x128xf32>
    tpu.vector_store %arg4[%c0_66, %c0_67, %c0_68], %78 {strides = array<i32>} : memref<1x256x128xf32, #tpu.memory_space<vmem>>, vector<1x256x128xf32>,
    return
  }
  func.func @transform_0(%arg0: i32) -> (i32, i32, i32, i32) {
    %c0_i32 = arith.constant 0 : i32
    %c0_i32_0 = arith.constant 0 : i32
    %c0_i32_1 = arith.constant 0 : i32
    %c0_i32_2 = arith.constant 0 : i32
    return %arg0, %c0_i32, %c0_i32_0, %c0_i32_1 : i32, i32, i32, i32
  }
  func.func @transform_1(%arg0: i32) -> (i32, i32, i32) {
    %c0_i32 = arith.constant 0 : i32
    %c0_i32_0 = arith.constant 0 : i32
    %c0_i32_1 = arith.constant 0 : i32
    %c0_i32_2 = arith.constant 0 : i32
    return %c0_i32, %c0_i32_0, %c0_i32_1 : i32, i32, i32
  }
  func.func @transform_2(%arg0: i32) -> (i32, i32) {
    %c0_i32 = arith.constant 0 : i32
    %c0_i32_0 = arith.constant 0 : i32
    %c0_i32_1 = arith.constant 0 : i32
    return %c0_i32, %c0_i32_0 : i32, i32
  }
  func.func @transform_3(%arg0: i32) -> (i32, i32, i32) {
    %c0_i32 = arith.constant 0 : i32
    %c0_i32_0 = arith.constant 0 : i32
    %c0_i32_1 = arith.constant 0 : i32
    return %arg0, %c0_i32, %c0_i32_0 : i32, i32, i32
  }
}

module attributes {stable_mosaic.version = 11 : i64} {
  func.func @_conv_tap_kernel(%arg0: i32, %arg1: memref<1x9x9x128xf32, #tpu.memory_space<vmem>>, %arg2: memref<1x9x9x128xf32, #tpu.memory_space<vmem>>, %arg3: memref<1x9x9x128xf32, #tpu.memory_space<vmem>>, %arg4: memref<1x9x9x128xf32, #tpu.memory_space<vmem>>, %arg5: memref<9x128x128xbf16, #tpu.memory_space<vmem>>, %arg6: memref<1x128xf32, #tpu.memory_space<vmem>>, %arg7: memref<1x64x128xf32, #tpu.memory_space<vmem>>) attributes {dimension_semantics = [#tpu.dimension_semantics<parallel>], iteration_bounds = array<i64: 2>, scalar_prefetch = 0 : i64, scratch_operands = 0 : i64, tpu.core_type = #tpu.core_type<tc>, window_params = [{transform_indices = @transform_0, window_bounds = array<i64: 1, 9, 9, 128>}, {transform_indices = @transform_1, window_bounds = array<i64: 1, 9, 9, 128>}, {transform_indices = @transform_2, window_bounds = array<i64: 1, 9, 9, 128>}, {transform_indices = @transform_3, window_bounds = array<i64: 1, 9, 9, 128>}, {pipeline_mode = #tpu.pipeline_mode<synchronous>, transform_indices = @transform_4, window_bounds = array<i64: 9, 128, 128>}, {pipeline_mode = #tpu.pipeline_mode<synchronous>, transform_indices = @transform_5, window_bounds = array<i64: 1, 128>}, {transform_indices = @transform_6, window_bounds = array<i64: 1, 64, 128>}]} {
    %cst = arith.constant 0.000000e+00 : f32
    %0 = vector.broadcast %cst : f32 to vector<64x128xf32>
    %c0 = arith.constant 0 : index
    %c0_0 = arith.constant 0 : index
    %c0_1 = arith.constant 0 : index
    %c0_2 = arith.constant 0 : index
    %1 = vector.load %arg1[%c0, %c0_0, %c0_1, %c0_2] : memref<1x9x9x128xf32, #tpu.memory_space<vmem>>, vector<1x8x8x128xf32>
    %2 = vector.shape_cast %1 : vector<1x8x8x128xf32> to vector<8x8x128xf32>
    %3 = vector.shape_cast %2 : vector<8x8x128xf32> to vector<64x128xf32>
    %4 = arith.truncf %3 : vector<64x128xf32> to vector<64x128xbf16>
    %c0_3 = arith.constant 0 : index
    %c0_4 = arith.constant 0 : index
    %c0_5 = arith.constant 0 : index
    %5 = vector.load %arg5[%c0_3, %c0_4, %c0_5] : memref<9x128x128xbf16, #tpu.memory_space<vmem>>, vector<1x128x128xbf16>
    %6 = vector.shape_cast %5 : vector<1x128x128xbf16> to vector<128x128xbf16>
    %cst_6 = arith.constant dense<0.000000e+00> : vector<64x128xf32>
    %7 = tpu.matmul %4, %6, %cst_6 {dimension_numbers = #tpu.dot_dimension_numbers<[1], [0], [0], [1], [0, 0, 1, 1], [], []>} : vector<64x128xbf16>, vector<128x128xbf16>, vector<64x128xf32> -> vector<64x128xf32>
    %8 = arith.addf %0, %7 : vector<64x128xf32>
    %c0_7 = arith.constant 0 : index
    %c0_8 = arith.constant 0 : index
    %c0_9 = arith.constant 0 : index
    %c0_10 = arith.constant 0 : index
    %9 = vector.load %arg2[%c0_7, %c0_8, %c0_9, %c0_10] : memref<1x9x9x128xf32, #tpu.memory_space<vmem>>, vector<1x8x8x128xf32>
    %10 = vector.shape_cast %9 : vector<1x8x8x128xf32> to vector<8x8x128xf32>
    %11 = vector.shape_cast %10 : vector<8x8x128xf32> to vector<64x128xf32>
    %12 = arith.truncf %11 : vector<64x128xf32> to vector<64x128xbf16>
    %c1 = arith.constant 1 : index
    %c0_11 = arith.constant 0 : index
    %c0_12 = arith.constant 0 : index
    %13 = vector.load %arg5[%c1, %c0_11, %c0_12] : memref<9x128x128xbf16, #tpu.memory_space<vmem>>, vector<1x128x128xbf16>
    %14 = vector.shape_cast %13 : vector<1x128x128xbf16> to vector<128x128xbf16>
    %cst_13 = arith.constant dense<0.000000e+00> : vector<64x128xf32>
    %15 = tpu.matmul %12, %14, %cst_13 {dimension_numbers = #tpu.dot_dimension_numbers<[1], [0], [0], [1], [0, 0, 1, 1], [], []>} : vector<64x128xbf16>, vector<128x128xbf16>, vector<64x128xf32> -> vector<64x128xf32>
    %16 = arith.addf %8, %15 : vector<64x128xf32>
    %c0_14 = arith.constant 0 : index
    %c0_15 = arith.constant 0 : index
    %c1_16 = arith.constant 1 : index
    %c0_17 = arith.constant 0 : index
    %17 = vector.load %arg1[%c0_14, %c0_15, %c1_16, %c0_17] : memref<1x9x9x128xf32, #tpu.memory_space<vmem>>, vector<1x8x8x128xf32>
    %18 = vector.shape_cast %17 : vector<1x8x8x128xf32> to vector<8x8x128xf32>
    %19 = vector.shape_cast %18 : vector<8x8x128xf32> to vector<64x128xf32>
    %20 = arith.truncf %19 : vector<64x128xf32> to vector<64x128xbf16>
    %c2 = arith.constant 2 : index
    %c0_18 = arith.constant 0 : index
    %c0_19 = arith.constant 0 : index
    %21 = vector.load %arg5[%c2, %c0_18, %c0_19] : memref<9x128x128xbf16, #tpu.memory_space<vmem>>, vector<1x128x128xbf16>
    %22 = vector.shape_cast %21 : vector<1x128x128xbf16> to vector<128x128xbf16>
    %cst_20 = arith.constant dense<0.000000e+00> : vector<64x128xf32>
    %23 = tpu.matmul %20, %22, %cst_20 {dimension_numbers = #tpu.dot_dimension_numbers<[1], [0], [0], [1], [0, 0, 1, 1], [], []>} : vector<64x128xbf16>, vector<128x128xbf16>, vector<64x128xf32> -> vector<64x128xf32>
    %24 = arith.addf %16, %23 : vector<64x128xf32>
    %c0_21 = arith.constant 0 : index
    %c0_22 = arith.constant 0 : index
    %c0_23 = arith.constant 0 : index
    %c0_24 = arith.constant 0 : index
    %25 = vector.load %arg3[%c0_21, %c0_22, %c0_23, %c0_24] : memref<1x9x9x128xf32, #tpu.memory_space<vmem>>, vector<1x8x8x128xf32>
    %26 = vector.shape_cast %25 : vector<1x8x8x128xf32> to vector<8x8x128xf32>
    %27 = vector.shape_cast %26 : vector<8x8x128xf32> to vector<64x128xf32>
    %28 = arith.truncf %27 : vector<64x128xf32> to vector<64x128xbf16>
    %c3 = arith.constant 3 : index
    %c0_25 = arith.constant 0 : index
    %c0_26 = arith.constant 0 : index
    %29 = vector.load %arg5[%c3, %c0_25, %c0_26] : memref<9x128x128xbf16, #tpu.memory_space<vmem>>, vector<1x128x128xbf16>
    %30 = vector.shape_cast %29 : vector<1x128x128xbf16> to vector<128x128xbf16>
    %cst_27 = arith.constant dense<0.000000e+00> : vector<64x128xf32>
    %31 = tpu.matmul %28, %30, %cst_27 {dimension_numbers = #tpu.dot_dimension_numbers<[1], [0], [0], [1], [0, 0, 1, 1], [], []>} : vector<64x128xbf16>, vector<128x128xbf16>, vector<64x128xf32> -> vector<64x128xf32>
    %32 = arith.addf %24, %31 : vector<64x128xf32>
    %c0_28 = arith.constant 0 : index
    %c0_29 = arith.constant 0 : index
    %c0_30 = arith.constant 0 : index
    %c0_31 = arith.constant 0 : index
    %33 = vector.load %arg4[%c0_28, %c0_29, %c0_30, %c0_31] : memref<1x9x9x128xf32, #tpu.memory_space<vmem>>, vector<1x8x8x128xf32>
    %34 = vector.shape_cast %33 : vector<1x8x8x128xf32> to vector<8x8x128xf32>
    %35 = vector.shape_cast %34 : vector<8x8x128xf32> to vector<64x128xf32>
    %36 = arith.truncf %35 : vector<64x128xf32> to vector<64x128xbf16>
    %c4 = arith.constant 4 : index
    %c0_32 = arith.constant 0 : index
    %c0_33 = arith.constant 0 : index
    %37 = vector.load %arg5[%c4, %c0_32, %c0_33] : memref<9x128x128xbf16, #tpu.memory_space<vmem>>, vector<1x128x128xbf16>
    %38 = vector.shape_cast %37 : vector<1x128x128xbf16> to vector<128x128xbf16>
    %cst_34 = arith.constant dense<0.000000e+00> : vector<64x128xf32>
    %39 = tpu.matmul %36, %38, %cst_34 {dimension_numbers = #tpu.dot_dimension_numbers<[1], [0], [0], [1], [0, 0, 1, 1], [], []>} : vector<64x128xbf16>, vector<128x128xbf16>, vector<64x128xf32> -> vector<64x128xf32>
    %40 = arith.addf %32, %39 : vector<64x128xf32>
    %c0_35 = arith.constant 0 : index
    %c0_36 = arith.constant 0 : index
    %c1_37 = arith.constant 1 : index
    %c0_38 = arith.constant 0 : index
    %41 = vector.load %arg3[%c0_35, %c0_36, %c1_37, %c0_38] : memref<1x9x9x128xf32, #tpu.memory_space<vmem>>, vector<1x8x8x128xf32>
    %42 = vector.shape_cast %41 : vector<1x8x8x128xf32> to vector<8x8x128xf32>
    %43 = vector.shape_cast %42 : vector<8x8x128xf32> to vector<64x128xf32>
    %44 = arith.truncf %43 : vector<64x128xf32> to vector<64x128xbf16>
    %c5 = arith.constant 5 : index
    %c0_39 = arith.constant 0 : index
    %c0_40 = arith.constant 0 : index
    %45 = vector.load %arg5[%c5, %c0_39, %c0_40] : memref<9x128x128xbf16, #tpu.memory_space<vmem>>, vector<1x128x128xbf16>
    %46 = vector.shape_cast %45 : vector<1x128x128xbf16> to vector<128x128xbf16>
    %cst_41 = arith.constant dense<0.000000e+00> : vector<64x128xf32>
    %47 = tpu.matmul %44, %46, %cst_41 {dimension_numbers = #tpu.dot_dimension_numbers<[1], [0], [0], [1], [0, 0, 1, 1], [], []>} : vector<64x128xbf16>, vector<128x128xbf16>, vector<64x128xf32> -> vector<64x128xf32>
    %48 = arith.addf %40, %47 : vector<64x128xf32>
    %c0_42 = arith.constant 0 : index
    %c1_43 = arith.constant 1 : index
    %c0_44 = arith.constant 0 : index
    %c0_45 = arith.constant 0 : index
    %49 = vector.load %arg1[%c0_42, %c1_43, %c0_44, %c0_45] : memref<1x9x9x128xf32, #tpu.memory_space<vmem>>, vector<1x8x8x128xf32>
    %50 = vector.shape_cast %49 : vector<1x8x8x128xf32> to vector<8x8x128xf32>
    %51 = vector.shape_cast %50 : vector<8x8x128xf32> to vector<64x128xf32>
    %52 = arith.truncf %51 : vector<64x128xf32> to vector<64x128xbf16>
    %c6 = arith.constant 6 : index
    %c0_46 = arith.constant 0 : index
    %c0_47 = arith.constant 0 : index
    %53 = vector.load %arg5[%c6, %c0_46, %c0_47] : memref<9x128x128xbf16, #tpu.memory_space<vmem>>, vector<1x128x128xbf16>
    %54 = vector.shape_cast %53 : vector<1x128x128xbf16> to vector<128x128xbf16>
    %cst_48 = arith.constant dense<0.000000e+00> : vector<64x128xf32>
    %55 = tpu.matmul %52, %54, %cst_48 {dimension_numbers = #tpu.dot_dimension_numbers<[1], [0], [0], [1], [0, 0, 1, 1], [], []>} : vector<64x128xbf16>, vector<128x128xbf16>, vector<64x128xf32> -> vector<64x128xf32>
    %56 = arith.addf %48, %55 : vector<64x128xf32>
    %c0_49 = arith.constant 0 : index
    %c1_50 = arith.constant 1 : index
    %c0_51 = arith.constant 0 : index
    %c0_52 = arith.constant 0 : index
    %57 = vector.load %arg2[%c0_49, %c1_50, %c0_51, %c0_52] : memref<1x9x9x128xf32, #tpu.memory_space<vmem>>, vector<1x8x8x128xf32>
    %58 = vector.shape_cast %57 : vector<1x8x8x128xf32> to vector<8x8x128xf32>
    %59 = vector.shape_cast %58 : vector<8x8x128xf32> to vector<64x128xf32>
    %60 = arith.truncf %59 : vector<64x128xf32> to vector<64x128xbf16>
    %c7 = arith.constant 7 : index
    %c0_53 = arith.constant 0 : index
    %c0_54 = arith.constant 0 : index
    %61 = vector.load %arg5[%c7, %c0_53, %c0_54] : memref<9x128x128xbf16, #tpu.memory_space<vmem>>, vector<1x128x128xbf16>
    %62 = vector.shape_cast %61 : vector<1x128x128xbf16> to vector<128x128xbf16>
    %cst_55 = arith.constant dense<0.000000e+00> : vector<64x128xf32>
    %63 = tpu.matmul %60, %62, %cst_55 {dimension_numbers = #tpu.dot_dimension_numbers<[1], [0], [0], [1], [0, 0, 1, 1], [], []>} : vector<64x128xbf16>, vector<128x128xbf16>, vector<64x128xf32> -> vector<64x128xf32>
    %64 = arith.addf %56, %63 : vector<64x128xf32>
    %c0_56 = arith.constant 0 : index
    %c1_57 = arith.constant 1 : index
    %c1_58 = arith.constant 1 : index
    %c0_59 = arith.constant 0 : index
    %65 = vector.load %arg1[%c0_56, %c1_57, %c1_58, %c0_59] : memref<1x9x9x128xf32, #tpu.memory_space<vmem>>, vector<1x8x8x128xf32>
    %66 = vector.shape_cast %65 : vector<1x8x8x128xf32> to vector<8x8x128xf32>
    %67 = vector.shape_cast %66 : vector<8x8x128xf32> to vector<64x128xf32>
    %68 = arith.truncf %67 : vector<64x128xf32> to vector<64x128xbf16>
    %c8 = arith.constant 8 : index
    %c0_60 = arith.constant 0 : index
    %c0_61 = arith.constant 0 : index
    %69 = vector.load %arg5[%c8, %c0_60, %c0_61] : memref<9x128x128xbf16, #tpu.memory_space<vmem>>, vector<1x128x128xbf16>
    %70 = vector.shape_cast %69 : vector<1x128x128xbf16> to vector<128x128xbf16>
    %cst_62 = arith.constant dense<0.000000e+00> : vector<64x128xf32>
    %71 = tpu.matmul %68, %70, %cst_62 {dimension_numbers = #tpu.dot_dimension_numbers<[1], [0], [0], [1], [0, 0, 1, 1], [], []>} : vector<64x128xbf16>, vector<128x128xbf16>, vector<64x128xf32> -> vector<64x128xf32>
    %72 = arith.addf %64, %71 : vector<64x128xf32>
    %c0_63 = arith.constant 0 : index
    %c0_64 = arith.constant 0 : index
    %73 = vector.load %arg6[%c0_63, %c0_64] : memref<1x128xf32, #tpu.memory_space<vmem>>, vector<1x128xf32>
    %74 = vector.broadcast %73 : vector<1x128xf32> to vector<64x128xf32>
    %75 = arith.addf %72, %74 : vector<64x128xf32>
    %cst_65 = arith.constant 0.000000e+00 : f32
    %76 = vector.broadcast %cst_65 : f32 to vector<64x128xf32>
    %77 = arith.maximumf %75, %76 : vector<64x128xf32>
    %78 = vector.shape_cast %77 : vector<64x128xf32> to vector<1x64x128xf32>
    %c0_66 = arith.constant 0 : index
    %c0_67 = arith.constant 0 : index
    %c0_68 = arith.constant 0 : index
    %79 = vector.load %arg7[%c0_66, %c0_67, %c0_68] : memref<1x64x128xf32, #tpu.memory_space<vmem>>, vector<1x64x128xf32>
    tpu.vector_store %arg7[%c0_66, %c0_67, %c0_68], %78 {strides = array<i32>} : memref<1x64x128xf32, #tpu.memory_space<vmem>>, vector<1x64x128xf32>,
    return
  }
  func.func @transform_0(%arg0: i32) -> (i32, i32, i32, i32) {
    %c0_i32 = arith.constant 0 : i32
    %c0_i32_0 = arith.constant 0 : i32
    %c0_i32_1 = arith.constant 0 : i32
    %c0_i32_2 = arith.constant 0 : i32
    return %arg0, %c0_i32, %c0_i32_0, %c0_i32_1 : i32, i32, i32, i32
  }
  func.func @transform_1(%arg0: i32) -> (i32, i32, i32, i32) {
    %c0_i32 = arith.constant 0 : i32
    %c0_i32_0 = arith.constant 0 : i32
    %c0_i32_1 = arith.constant 0 : i32
    %c0_i32_2 = arith.constant 0 : i32
    return %arg0, %c0_i32, %c0_i32_0, %c0_i32_1 : i32, i32, i32, i32
  }
  func.func @transform_2(%arg0: i32) -> (i32, i32, i32, i32) {
    %c0_i32 = arith.constant 0 : i32
    %c0_i32_0 = arith.constant 0 : i32
    %c0_i32_1 = arith.constant 0 : i32
    %c0_i32_2 = arith.constant 0 : i32
    return %arg0, %c0_i32, %c0_i32_0, %c0_i32_1 : i32, i32, i32, i32
  }
  func.func @transform_3(%arg0: i32) -> (i32, i32, i32, i32) {
    %c0_i32 = arith.constant 0 : i32
    %c0_i32_0 = arith.constant 0 : i32
    %c0_i32_1 = arith.constant 0 : i32
    %c0_i32_2 = arith.constant 0 : i32
    return %arg0, %c0_i32, %c0_i32_0, %c0_i32_1 : i32, i32, i32, i32
  }
  func.func @transform_4(%arg0: i32) -> (i32, i32, i32) {
    %c0_i32 = arith.constant 0 : i32
    %c0_i32_0 = arith.constant 0 : i32
    %c0_i32_1 = arith.constant 0 : i32
    %c0_i32_2 = arith.constant 0 : i32
    return %c0_i32, %c0_i32_0, %c0_i32_1 : i32, i32, i32
  }
  func.func @transform_5(%arg0: i32) -> (i32, i32) {
    %c0_i32 = arith.constant 0 : i32
    %c0_i32_0 = arith.constant 0 : i32
    %c0_i32_1 = arith.constant 0 : i32
    return %c0_i32, %c0_i32_0 : i32, i32
  }
  func.func @transform_6(%arg0: i32) -> (i32, i32, i32) {
    %c0_i32 = arith.constant 0 : i32
    %c0_i32_0 = arith.constant 0 : i32
    %c0_i32_1 = arith.constant 0 : i32
    return %arg0, %c0_i32, %c0_i32_0 : i32, i32, i32
  }
}

module attributes {stable_mosaic.version = 11 : i64} {
  func.func @_dense_head_kernel(%arg0: i32, %arg1: memref<2x2048xbf16, #tpu.memory_space<vmem>>, %arg2: memref<2048x512xbf16, #tpu.memory_space<vmem>>, %arg3: memref<1x512xf32, #tpu.memory_space<vmem>>, %arg4: memref<512x256xbf16, #tpu.memory_space<vmem>>, %arg5: memref<1x256xf32, #tpu.memory_space<vmem>>, %arg6: memref<2x256xf32, #tpu.memory_space<vmem>>, %arg7: memref<2x512xf32, #tpu.memory_space<vmem>>) attributes {dimension_semantics = [#tpu.dimension_semantics<arbitrary>], iteration_bounds = array<i64: 4>, scalar_prefetch = 0 : i64, scratch_operands = 1 : i64, tpu.core_type = #tpu.core_type<tc>, window_params = [{transform_indices = @transform_0, window_bounds = array<i64: 2, 2048>}, {transform_indices = @transform_1, window_bounds = array<i64: 2048, 512>}, {pipeline_mode = #tpu.pipeline_mode<synchronous>, transform_indices = @transform_2, window_bounds = array<i64: 1, 512>}, {pipeline_mode = #tpu.pipeline_mode<synchronous>, transform_indices = @transform_3, window_bounds = array<i64: 512, 256>}, {pipeline_mode = #tpu.pipeline_mode<synchronous>, transform_indices = @transform_4, window_bounds = array<i64: 1, 256>}, {pipeline_mode = #tpu.pipeline_mode<synchronous>, transform_indices = @transform_5, window_bounds = array<i64: 2, 256>}]} {
    %c0_i32 = arith.constant 0 : i32
    %0 = arith.cmpi eq, %arg0, %c0_i32 : i32
    %1 = arith.extui %0 : i1 to i32
    %c0_i32_0 = arith.constant 0 : i32
    %2 = arith.cmpi ne, %1, %c0_i32_0 : i32
    scf.if %2 {
      %cst_9 = arith.constant 0.000000e+00 : f32
      %12 = vector.broadcast %cst_9 : f32 to vector<2x512xf32>
      %c0_10 = arith.constant 0 : index
      %c0_11 = arith.constant 0 : index
      %13 = vector.load %arg7[%c0_10, %c0_11] : memref<2x512xf32, #tpu.memory_space<vmem>>, vector<2x512xf32>
      tpu.vector_store %arg7[%c0_10, %c0_11], %12 {strides = array<i32>} : memref<2x512xf32, #tpu.memory_space<vmem>>, vector<2x512xf32>,
    } else {
    }
    %c0 = arith.constant 0 : index
    %c0_1 = arith.constant 0 : index
    %3 = vector.load %arg7[%c0, %c0_1] : memref<2x512xf32, #tpu.memory_space<vmem>>, vector<2x512xf32>
    %c0_2 = arith.constant 0 : index
    %c0_3 = arith.constant 0 : index
    %4 = vector.load %arg1[%c0_2, %c0_3] : memref<2x2048xbf16, #tpu.memory_space<vmem>>, vector<2x2048xbf16>
    %c0_4 = arith.constant 0 : index
    %c0_5 = arith.constant 0 : index
    %5 = vector.load %arg2[%c0_4, %c0_5] : memref<2048x512xbf16, #tpu.memory_space<vmem>>, vector<2048x512xbf16>
    %cst = arith.constant dense<0.000000e+00> : vector<2x512xf32>
    %6 = tpu.matmul %4, %5, %cst {dimension_numbers = #tpu.dot_dimension_numbers<[1], [0], [0], [1], [0, 0, 1, 1], [], []>} : vector<2x2048xbf16>, vector<2048x512xbf16>, vector<2x512xf32> -> vector<2x512xf32>
    %7 = arith.addf %3, %6 : vector<2x512xf32>
    %c0_6 = arith.constant 0 : index
    %c0_7 = arith.constant 0 : index
    %8 = vector.load %arg7[%c0_6, %c0_7] : memref<2x512xf32, #tpu.memory_space<vmem>>, vector<2x512xf32>
    tpu.vector_store %arg7[%c0_6, %c0_7], %7 {strides = array<i32>} : memref<2x512xf32, #tpu.memory_space<vmem>>, vector<2x512xf32>,
    %c3_i32 = arith.constant 3 : i32
    %9 = arith.cmpi eq, %arg0, %c3_i32 : i32
    %10 = arith.extui %9 : i1 to i32
    %c0_i32_8 = arith.constant 0 : i32
    %11 = arith.cmpi ne, %10, %c0_i32_8 : i32
    scf.if %11 {
      %c0_9 = arith.constant 0 : index
      %c0_10 = arith.constant 0 : index
      %12 = vector.load %arg7[%c0_9, %c0_10] : memref<2x512xf32, #tpu.memory_space<vmem>>, vector<2x512xf32>
      %c0_11 = arith.constant 0 : index
      %c0_12 = arith.constant 0 : index
      %13 = vector.load %arg3[%c0_11, %c0_12] : memref<1x512xf32, #tpu.memory_space<vmem>>, vector<1x512xf32>
      %14 = vector.broadcast %13 : vector<1x512xf32> to vector<2x512xf32>
      %15 = arith.addf %12, %14 : vector<2x512xf32>
      %cst_13 = arith.constant 0.000000e+00 : f32
      %16 = vector.broadcast %cst_13 : f32 to vector<2x512xf32>
      %17 = arith.maximumf %15, %16 : vector<2x512xf32>
      %18 = arith.truncf %17 : vector<2x512xf32> to vector<2x512xbf16>
      %c0_14 = arith.constant 0 : index
      %c0_15 = arith.constant 0 : index
      %19 = vector.load %arg4[%c0_14, %c0_15] : memref<512x256xbf16, #tpu.memory_space<vmem>>, vector<512x256xbf16>
      %cst_16 = arith.constant dense<0.000000e+00> : vector<2x256xf32>
      %20 = tpu.matmul %18, %19, %cst_16 {dimension_numbers = #tpu.dot_dimension_numbers<[1], [0], [0], [1], [0, 0, 1, 1], [], []>} : vector<2x512xbf16>, vector<512x256xbf16>, vector<2x256xf32> -> vector<2x256xf32>
      %c0_17 = arith.constant 0 : index
      %c0_18 = arith.constant 0 : index
      %21 = vector.load %arg5[%c0_17, %c0_18] : memref<1x256xf32, #tpu.memory_space<vmem>>, vector<1x256xf32>
      %22 = vector.broadcast %21 : vector<1x256xf32> to vector<2x256xf32>
      %23 = arith.addf %20, %22 : vector<2x256xf32>
      %cst_19 = arith.constant 0.000000e+00 : f32
      %24 = vector.broadcast %cst_19 : f32 to vector<2x256xf32>
      %25 = arith.maximumf %23, %24 : vector<2x256xf32>
      %c0_20 = arith.constant 0 : index
      %c0_21 = arith.constant 0 : index
      %26 = vector.load %arg6[%c0_20, %c0_21] : memref<2x256xf32, #tpu.memory_space<vmem>>, vector<2x256xf32>
      tpu.vector_store %arg6[%c0_20, %c0_21], %25 {strides = array<i32>} : memref<2x256xf32, #tpu.memory_space<vmem>>, vector<2x256xf32>,
    } else {
    }
    return
  }
  func.func @transform_0(%arg0: i32) -> (i32, i32) {
    %c0_i32 = arith.constant 0 : i32
    %c0_i32_0 = arith.constant 0 : i32
    return %c0_i32, %arg0 : i32, i32
  }
  func.func @transform_1(%arg0: i32) -> (i32, i32) {
    %c0_i32 = arith.constant 0 : i32
    %c0_i32_0 = arith.constant 0 : i32
    return %arg0, %c0_i32 : i32, i32
  }
  func.func @transform_2(%arg0: i32) -> (i32, i32) {
    %c0_i32 = arith.constant 0 : i32
    %c0_i32_0 = arith.constant 0 : i32
    %c0_i32_1 = arith.constant 0 : i32
    return %c0_i32, %c0_i32_0 : i32, i32
  }
  func.func @transform_3(%arg0: i32) -> (i32, i32) {
    %c0_i32 = arith.constant 0 : i32
    %c0_i32_0 = arith.constant 0 : i32
    %c0_i32_1 = arith.constant 0 : i32
    return %c0_i32, %c0_i32_0 : i32, i32
  }
  func.func @transform_4(%arg0: i32) -> (i32, i32) {
    %c0_i32 = arith.constant 0 : i32
    %c0_i32_0 = arith.constant 0 : i32
    %c0_i32_1 = arith.constant 0 : i32
    return %c0_i32, %c0_i32_0 : i32, i32
  }
  func.func @transform_5(%arg0: i32) -> (i32, i32) {
    %c0_i32 = arith.constant 0 : i32
    %c0_i32_0 = arith.constant 0 : i32
    %c0_i32_1 = arith.constant 0 : i32
    return %c0_i32, %c0_i32_0 : i32, i32
  }
}

</mosaic_0001>

<llo_original>
// kernel: custom_cnn_forward.4
$region0: #{custom_cnn_forward.4}
  #allocation0 [shape = 'u32[]', space=smem, size = 0x4, offset = 0x4, fixed_abs, tag = 'smem constant byte address 0x4 - core index']
  #allocation1 [shape = 'u32[144,128]{1,0:T(1,128)}', space=vmem, size = 0x12000, scoped, tag = 'internal scratch']
  %s0 = inlined_call_operand.vmem [shape: f32[2,9,9,128], index: 0, kind: input, shape index: {}]
  %s1 = inlined_call_operand.vmem [shape: f32[2,9,9,128], index: 1, kind: input, shape index: {}]
  %s2 = inlined_call_operand.vmem [shape: f32[2,9,9,128], index: 2, kind: input, shape index: {}]
  %s3 = inlined_call_operand.vmem [shape: f32[2,9,9,128], index: 3, kind: input, shape index: {}]
  %s4 = inlined_call_operand.hbm [shape: bf16[9,128,128], index: 4, kind: input, shape index: {}]
  %s5 = inlined_call_operand.hbm [shape: f32[1,128], index: 5, kind: input, shape index: {}]
  %s6 = inlined_call_operand.vmem [shape: f32[2,64,128], index: 6, kind: output, shape index: {}]
  %s7 = sld [smem:[#allocation0]]
  $region65: #{custom_cnn_forward.4} parent=0
    _
  %s9 = ssub.s32 1, %s7
  %s10 = scalar_select 0, %s9, %s7
  $region1: #{custom_cnn_forward.4} parent=0
    #allocation2 [shape = 'u8[294912]{0}', space=vmem, size = 0x48000, scoped, tag = 'input window, operand 4, single buffered']
    #allocation3 [shape = 's32[2]{0}', space=sflag, size = 0x8, scoped, tag = 'scoped memory for custom_cnn_forward.4']
    #allocation4 [shape = 'u8[512]{0}', space=vmem, size = 0x400, scoped, tag = 'input window, operand 5, single buffered']
    #allocation5 [shape = 's32[1]{0}', space=sflag, size = 0x4, scoped, tag = 'scoped memory for custom_cnn_forward.4']
    %11 = vsyncpa [#allocation3], 0
    %12 = vsyncpa [#allocation5], 0
    loop: start=0, step=1, limit=4
    $region2: #{custom_cnn_forward.4} parent=1 // loop_pre_header
      _
    $region3: #{custom_cnn_forward.4} parent=1 // loop_header
      %s14 = sphi 0, %s18
      %p15 = scmp.ge.s32.totalorder %s14, 4
      %s24 = sphi 0, %s26
      %s27 = sphi 0, %s24
      %s28 = sphi 0, %s27
      %s44 = sphi 0, %s28
      %s50 = sphi 0, %s52
      %s53 = sphi 0, %s50
      %s54 = sphi 0, %s53
      %s70 = sphi 0, %s54
      %s76 = sphi 0, %s78
      %s79 = sphi 0, %s76
      %s80 = sphi 0, %s79
      %s96 = sphi 0, %s80
      %s102 = sphi 0, %s104
      %s105 = sphi 0, %s102
      %s106 = sphi 0, %s105
      %s122 = sphi 0, %s106
      %s126 = sphi 0, %s126
      %s128 = sphi 0, %s126
      %s129 = sphi 0, %s128
      %s143 = sphi 0, %s129
      %s147 = sphi 0, %s147
      %s149 = sphi 0, %s147
      %s150 = sphi 0, %s149
      %s164 = sphi 0, %s150
      %s170 = sphi 0, %s172
      %s173 = sphi 0, %s170
      %s174 = sphi 0, %s173
      %s190 = sphi 0, %s174
    $region4: #{custom_cnn_forward.4} parent=1 // loop_header_branch
      %17 = sbr.rel (%p15) target = $region8
    $region5: #{custom_cnn_forward.4} parent=1 // loop_body
      %s19 = ssub.s32 %s14, 1
      %s20 = ssub.s32 %s14, 2
      %s21 = sadd.s32 %s14, 1
      %s22 = ssub.s32 %s14, %s21
      %p23 = scmp.eq.s32.totalorder %s22, 0
      %s25 = sadd.s32 %s24, 1
      %s26 = scalar_select %p23, %s24, %s25
      %p29 = pneg %p23
      %p30 = scmp.eq.s32.totalorder %s14, 1
      %p31 = por %p29, %p30
      %p32 = scmp.ne.s32.totalorder %s24, %s27
      %p33 = scmp.eq.s32.totalorder %s14, 0
      %p34 = por %p32, %p33
      %p35 = scmp.ne.s32.totalorder %s24, %s27
      %p36 = scmp.eq.s32.totalorder %s19, 1
      %p37 = por %p35, %p36
      %p38 = scmp.ne.s32.totalorder %s27, %s28
      %p39 = scmp.eq.s32.totalorder %s19, 0
      %p40 = por %p38, %p39
      %p41 = scmp.ne.s32.totalorder %s27, %s28
      %p42 = scmp.eq.s32.totalorder %s20, 1
      %p43 = por %p41, %p42
      %p45 = scmp.ne.s32.totalorder %s28, %s44
      %p46 = scmp.eq.s32.totalorder %s20, 0
      %p47 = por %p45, %p46
      %s48 = ssub.s32 %s14, %s21
      %p49 = scmp.eq.s32.totalorder %s48, 0
      %s51 = sadd.s32 %s50, 1
      %s52 = scalar_select %p49, %s50, %s51
      %p55 = pneg %p49
      %p56 = scmp.eq.s32.totalorder %s14, 1
      %p57 = por %p55, %p56
      %p58 = scmp.ne.s32.totalorder %s50, %s53
      %p59 = scmp.eq.s32.totalorder %s14, 0
      %p60 = por %p58, %p59
      %p61 = scmp.ne.s32.totalorder %s50, %s53
      %p62 = scmp.eq.s32.totalorder %s19, 1
      %p63 = por %p61, %p62
      %p64 = scmp.ne.s32.totalorder %s53, %s54
      %p65 = scmp.eq.s32.totalorder %s19, 0
      %p66 = por %p64, %p65
      %p67 = scmp.ne.s32.totalorder %s53, %s54
      %p68 = scmp.eq.s32.totalorder %s20, 1
      %p69 = por %p67, %p68
      %p71 = scmp.ne.s32.totalorder %s54, %s70
      %p72 = scmp.eq.s32.totalorder %s20, 0
      %p73 = por %p71, %p72
      %s74 = ssub.s32 %s14, %s21
      %p75 = scmp.eq.s32.totalorder %s74, 0
      %s77 = sadd.s32 %s76, 1
      %s78 = scalar_select %p75, %s76, %s77
      %p81 = pneg %p75
      %p82 = scmp.eq.s32.totalorder %s14, 1
      %p83 = por %p81, %p82
      %p84 = scmp.ne.s32.totalorder %s76, %s79
      %p85 = scmp.eq.s32.totalorder %s14, 0
      %p86 = por %p84, %p85
      %p87 = scmp.ne.s32.totalorder %s76, %s79
      %p88 = scmp.eq.s32.totalorder %s19, 1
      %p89 = por %p87, %p88
      %p90 = scmp.ne.s32.totalorder %s79, %s80
      %p91 = scmp.eq.s32.totalorder %s19, 0
      %p92 = por %p90, %p91
      %p93 = scmp.ne.s32.totalorder %s79, %s80
      %p94 = scmp.eq.s32.totalorder %s20, 1
      %p95 = por %p93, %p94
      %p97 = scmp.ne.s32.totalorder %s80, %s96
      %p98 = scmp.eq.s32.totalorder %s20, 0
      %p99 = por %p97, %p98
      %s100 = ssub.s32 %s14, %s21
      %p101 = scmp.eq.s32.totalorder %s100, 0
      %s103 = sadd.s32 %s102, 1
      %s104 = scalar_select %p101, %s102, %s103
      %p107 = pneg %p101
      %p108 = scmp.eq.s32.totalorder %s14, 1
      %p109 = por %p107, %p108
      %p110 = scmp.ne.s32.totalorder %s102, %s105
      %p111 = scmp.eq.s32.totalorder %s14, 0
      %p112 = por %p110, %p111
      %p113 = scmp.ne.s32.totalorder %s102, %s105
      %p114 = scmp.eq.s32.totalorder %s19, 1
      %p115 = por %p113, %p114
      %p116 = scmp.ne.s32.totalorder %s105, %s106
      %p117 = scmp.eq.s32.totalorder %s19, 0
      %p118 = por %p116, %p117
      %p119 = scmp.ne.s32.totalorder %s105, %s106
      %p120 = scmp.eq.s32.totalorder %s20, 1
      %p121 = por %p119, %p120
      %p123 = scmp.ne.s32.totalorder %s106, %s122
      %p124 = scmp.eq.s32.totalorder %s20, 0
      %p125 = por %p123, %p124
      %s127 = sadd.s32 %s126, 1
      %p130 = scmp.eq.s32.totalorder %s14, 1
      %p131 = scmp.ne.s32.totalorder %s126, %s128
      %p132 = scmp.eq.s32.totalorder %s14, 0
      %p133 = por %p131, %p132
      %p134 = scmp.ne.s32.totalorder %s126, %s128
      %p135 = scmp.eq.s32.totalorder %s19, 1
      %p136 = por %p134, %p135
      %p137 = scmp.ne.s32.totalorder %s128, %s129
      %p138 = scmp.eq.s32.totalorder %s19, 0
      %p139 = por %p137, %p138
      %p140 = scmp.ne.s32.totalorder %s128, %s129
      %p141 = scmp.eq.s32.totalorder %s20, 1
      %p142 = por %p140, %p141
      %p144 = scmp.ne.s32.totalorder %s129, %s143
      %p145 = scmp.eq.s32.totalorder %s20, 0
      %p146 = por %p144, %p145
      %s148 = sadd.s32 %s147, 1
      %p151 = scmp.eq.s32.totalorder %s14, 1
      %p152 = scmp.ne.s32.totalorder %s147, %s149
      %p153 = scmp.eq.s32.totalorder %s14, 0
      %p154 = por %p152, %p153
      %p155 = scmp.ne.s32.totalorder %s147, %s149
      %p156 = scmp.eq.s32.totalorder %s19, 1
      %p157 = por %p155, %p156
      %p158 = scmp.ne.s32.totalorder %s149, %s150
      %p159 = scmp.eq.s32.totalorder %s19, 0
      %p160 = por %p158, %p159
      %p161 = scmp.ne.s32.totalorder %s149, %s150
      %p162 = scmp.eq.s32.totalorder %s20, 1
      %p163 = por %p161, %p162
      %p165 = scmp.ne.s32.totalorder %s150, %s164
      %p166 = scmp.eq.s32.totalorder %s20, 0
      %p167 = por %p165, %p166
      %s168 = ssub.s32 %s14, %s21
      %p169 = scmp.eq.s32.totalorder %s168, 0
      %s171 = sadd.s32 %s170, 1
      %s172 = scalar_select %p169, %s170, %s171
      %p175 = pneg %p169
      %p176 = scmp.eq.s32.totalorder %s14, 1
      %p177 = por %p175, %p176
      %p178 = scmp.ne.s32.totalorder %s170, %s173
      %p179 = scmp.eq.s32.totalorder %s14, 0
      %p180 = por %p178, %p179
      %p181 = scmp.ne.s32.totalorder %s170, %s173
      %p182 = scmp.eq.s32.totalorder %s19, 1
      %p183 = por %p181, %p182
      %p184 = scmp.ne.s32.totalorder %s173, %s174
      %p185 = scmp.eq.s32.totalorder %s19, 0
      %p186 = por %p184, %p185
      %p187 = scmp.ne.s32.totalorder %s173, %s174
      %p188 = scmp.eq.s32.totalorder %s20, 1
      %p189 = por %p187, %p188
      %p191 = scmp.ne.s32.totalorder %s174, %s190
      %p192 = scmp.eq.s32.totalorder %s20, 0
      %p193 = por %p191, %p192
      %p194 = scmp.le.s32.totalorder 1, %s14
      %p195 = scmp.lt.s32.totalorder %s14, 3
      %p196 = pnand %p194, %p195
      %p197 = pneg %p196
      // Predicated region
      $region9: #{custom_cnn_forward.4} parent=5 // pred_check
        _
      $region10: #{custom_cnn_forward.4} parent=5 // pred_check_branch
        %199 = sbr.rel (%p196) target = $region12
      $region11: #{custom_cnn_forward.4} parent=5 // pred_region
        %s200 = ssub.s32 %s14, 1
        // Predicated region
        $region13: #{custom_cnn_forward.4} parent=11 // pred_check
          %p201 = pneg %p139
        $region14: #{custom_cnn_forward.4} parent=11 // pred_check_branch
          %203 = sbr.rel (%p201) target = $region16
        $region15: #{custom_cnn_forward.4} parent=11 // pred_region
          %s205 = ssub.s32 9216, 9216
          %206 = vsyncadd [#allocation3], %s205
          %s207 = sshll.u32 [#allocation2], 4
          %s208 = int_to_ptr.vmem [resolvable:$true] %s207
          %213 = dma.hbm_to_vmem [thread:$0]  %s4, 9216, %s208, [#allocation3], 64, 64, 4
        $region16: #{custom_cnn_forward.4} parent=11 // pred_fallthru
          _
        // Predicated region
        $region17: #{custom_cnn_forward.4} parent=11 // pred_check
          %p214 = pneg %p160
        $region18: #{custom_cnn_forward.4} parent=11 // pred_check_branch
          %216 = sbr.rel (%p214) target = $region20
        $region19: #{custom_cnn_forward.4} parent=11 // pred_region
          %s218 = ssub.s32 16, 16
          %219 = vsyncadd [#allocation5], %s218
          %s221 = sshll.u32 [#allocation4], 4
          %s222 = int_to_ptr.vmem [resolvable:$true] %s221
          %224 = dma.hbm_to_vmem [thread:$0]  %s5, 16, %s222, [#allocation5]
        $region20: #{custom_cnn_forward.4} parent=11 // pred_fallthru
          _
      $region12: #{custom_cnn_forward.4} parent=5 // pred_fallthru
        _
      %p225 = scmp.lt.s32.totalorder %s14, 2
      // Predicated region
      $region21: #{custom_cnn_forward.4} parent=5 // pred_check
        %p226 = pneg %p225
      $region22: #{custom_cnn_forward.4} parent=5 // pred_check_branch
        %228 = sbr.rel (%p226) target = $region24
      $region23: #{custom_cnn_forward.4} parent=5 // pred_region
        // Predicated region
        $region25: #{custom_cnn_forward.4} parent=23 // pred_check
          %p229 = pneg %p34
        $region26: #{custom_cnn_forward.4} parent=23 // pred_check_branch
          %231 = sbr.rel (%p229) target = $region28
        $region27: #{custom_cnn_forward.4} parent=23 // pred_region
          %p232 = scmp.lt.s32.totalorder %s14, 1
          %s233 = scalar_select %p232, %s14, 1
          %s234 = smul.addr %s233, 18
          %s235 = smul.addr %s234, 8
          %s236 = scalar_lea.vmem %s0, %s235
        $region28: #{custom_cnn_forward.4} parent=23 // pred_fallthru
          _
        // Predicated region
        $region29: #{custom_cnn_forward.4} parent=23 // pred_check
          %p237 = pneg %p60
        $region30: #{custom_cnn_forward.4} parent=23 // pred_check_branch
          %239 = sbr.rel (%p237) target = $region32
        $region31: #{custom_cnn_forward.4} parent=23 // pred_region
          %p240 = scmp.lt.s32.totalorder %s14, 1
          %s241 = scalar_select %p240, %s14, 1
          %s242 = smul.addr %s241, 18
          %s243 = smul.addr %s242, 8
          %s244 = scalar_lea.vmem %s1, %s243
        $region32: #{custom_cnn_forward.4} parent=23 // pred_fallthru
          _
        // Predicated region
        $region33: #{custom_cnn_forward.4} parent=23 // pred_check
          %p245 = pneg %p86
        $region34: #{custom_cnn_forward.4} parent=23 // pred_check_branch
          %247 = sbr.rel (%p245) target = $region36
        $region35: #{custom_cnn_forward.4} parent=23 // pred_region
          %p248 = scmp.lt.s32.totalorder %s14, 1
          %s249 = scalar_select %p248, %s14, 1
          %s250 = smul.addr %s249, 18
          %s251 = smul.addr %s250, 8
          %s252 = scalar_lea.vmem %s2, %s251
        $region36: #{custom_cnn_forward.4} parent=23 // pred_fallthru
          _
        // Predicated region
        $region37: #{custom_cnn_forward.4} parent=23 // pred_check
          %p253 = pneg %p112
        $region38: #{custom_cnn_forward.4} parent=23 // pred_check_branch
          %255 = sbr.rel (%p253) target = $region40
        $region39: #{custom_cnn_forward.4} parent=23 // pred_region
          %p256 = scmp.lt.s32.totalorder %s14, 1
          %s257 = scalar_select %p256, %s14, 1
          %s258 = smul.addr %s257, 18
          %s259 = smul.addr %s258, 8
          %s260 = scalar_lea.vmem %s3, %s259
        $region40: #{custom_cnn_forward.4} parent=23 // pred_fallthru
          _
      $region24: #{custom_cnn_forward.4} parent=5 // pred_fallthru
        _
      %p261 = scmp.le.s32.totalorder 1, %s14
      %p262 = scmp.lt.s32.totalorder %s14, 3
      %p263 = pnand %p261, %p262
      %p264 = pneg %p263
      // Predicated region
      $region41: #{custom_cnn_forward.4} parent=5 // pred_check
        _
      $region42: #{custom_cnn_forward.4} parent=5 // pred_check_branch
        %266 = sbr.rel (%p263) target = $region44
      $region43: #{custom_cnn_forward.4} parent=5 // pred_region
        %s267 = ssub.s32 %s14, 1
        // Predicated region
        $region45: #{custom_cnn_forward.4} parent=43 // pred_check
          %p268 = pneg %p139
        $region46: #{custom_cnn_forward.4} parent=43 // pred_check_branch
          %270 = sbr.rel (%p268) target = $region48
        $region47: #{custom_cnn_forward.4} parent=43 // pred_region
          %271 = dma.done [#allocation3], 9216
        $region48: #{custom_cnn_forward.4} parent=43 // pred_fallthru
          _
        // Predicated region
        $region49: #{custom_cnn_forward.4} parent=43 // pred_check
          %p272 = pneg %p160
        $region50: #{custom_cnn_forward.4} parent=43 // pred_check_branch
          %274 = sbr.rel (%p272) target = $region52
        $region51: #{custom_cnn_forward.4} parent=43 // pred_region
          %275 = dma.done [#allocation5], 16
        $region52: #{custom_cnn_forward.4} parent=43 // pred_fallthru
          _
        %p276 = scmp.lt.s32.totalorder %s19, 1
        %s277 = scalar_select %p276, %s19, 1
        %s278 = smul.addr %s277, 18
        %s279 = smul.addr %s278, 8
        %s280 = scalar_lea.vmem %s0, %s279
        %p281 = pneg %p40
        %p282 = pneg %p37
        %p283 = scmp.lt.s32.totalorder %s19, 1
        %s284 = scalar_select %p283, %s19, 1
        %s285 = smul.addr %s284, 18
        %s286 = smul.addr %s285, 8
        %s287 = scalar_lea.vmem %s1, %s286
        %p288 = pneg %p66
        %p289 = pneg %p63
        %p290 = scmp.lt.s32.totalorder %s19, 1
        %s291 = scalar_select %p290, %s19, 1
        %s292 = smul.addr %s291, 18
        %s293 = smul.addr %s292, 8
        %s294 = scalar_lea.vmem %s2, %s293
        %p295 = pneg %p92
        %p296 = pneg %p89
        %p297 = scmp.lt.s32.totalorder %s19, 1
        %s298 = scalar_select %p297, %s19, 1
        %s299 = smul.addr %s298, 18
        %s300 = smul.addr %s299, 8
        %s301 = scalar_lea.vmem %s3, %s300
        %p302 = pneg %p118
        %p303 = pneg %p115
        %p304 = pneg %p139
        %p305 = pneg %p136
        %p306 = pneg %p160
        %p307 = pneg %p157
        %p308 = pneg %p186
        %p309 = pneg %p183
        %p310 = scmp.lt.s32.totalorder %s19, 1
        %s311 = scalar_select %p310, %s19, 1
        %s312 = smul.addr %s311, 8
        %s313 = smul.addr %s312, 8
        %s314 = scalar_lea.vmem %s6, %s313
        %p315 = scmp.lt.s32.totalorder %s19, 1
        %s316 = scalar_select %p315, %s19, 1
        %s317 = smul.addr %s316, 18
        %s318 = smul.addr %s317, 8
        %s319 = scalar_lea.vmem %s0, %s318
        %p320 = scmp.lt.s32.totalorder %s19, 1
        %s321 = scalar_select %p320, %s19, 1
        %s322 = smul.addr %s321, 18
        %s323 = smul.addr %s322, 8
        %s324 = scalar_lea.vmem %s1, %s323
        %p325 = scmp.lt.s32.totalorder %s19, 1
        %s326 = scalar_select %p325, %s19, 1
        %s327 = smul.addr %s326, 18
        %s328 = smul.addr %s327, 8
        %s329 = scalar_lea.vmem %s2, %s328
        %p330 = scmp.lt.s32.totalorder %s19, 1
        %s331 = scalar_select %p330, %s19, 1
        %s332 = smul.addr %s331, 18
        %s333 = smul.addr %s332, 8
        %s334 = scalar_lea.vmem %s3, %s333
        %p335 = scmp.lt.s32.totalorder %s19, 1
        %s336 = scalar_select %p335, %s19, 1
        %s337 = smul.addr %s336, 8
        %s338 = smul.addr %s337, 8
        %s339 = scalar_lea.vmem %s6, %s338
        %v341 = vld [vmem:[%s319] sm:$0xff]
        %v342 = vld [vmem:[%s319 + $0x10] sm:$0xff]
        %v343 = vld [vmem:[%s319 + $0x20] sm:$0xff]
        %v344 = vld [vmem:[%s319 + $0x30] sm:$0xff]
        %v345 = vld [vmem:[%s319 + $0x40] sm:$0xff]
        %v346 = vld [vmem:[%s319 + $0x50] sm:$0xff]
        %v347 = vld [vmem:[%s319 + $0x60] sm:$0xff]
        %v348 = vld [vmem:[%s319 + $0x70] sm:$0xff]
        %v349 = vpack.c.bf16 %v342, %v341
        %v350 = vpack.c.bf16 %v344, %v343
        %v351 = vpack.c.bf16 %v346, %v345
        %v352 = vpack.c.bf16 %v348, %v347
        %v353 = vld [vmem:[#allocation2] sm:$0xf]
        %v354 = vld [vmem:[#allocation2 + $0x4] sm:$0xf]
        %v355 = vld [vmem:[#allocation2 + $0x8] sm:$0xf]
        %v356 = vld [vmem:[#allocation2 + $0xc] sm:$0xf]
        %v357 = vld [vmem:[#allocation2 + $0x10] sm:$0xf]
        %v358 = vld [vmem:[#allocation2 + $0x14] sm:$0xf]
        %v359 = vld [vmem:[#allocation2 + $0x18] sm:$0xf]
        %v360 = vld [vmem:[#allocation2 + $0x1c] sm:$0xf]
        %v361 = vld [vmem:[#allocation2 + $0x20] sm:$0xf]
        %v362 = vld [vmem:[#allocation2 + $0x24] sm:$0xf]
        %v363 = vld [vmem:[#allocation2 + $0x28] sm:$0xf]
        %v364 = vld [vmem:[#allocation2 + $0x2c] sm:$0xf]
        %v365 = vld [vmem:[#allocation2 + $0x30] sm:$0xf]
        %v366 = vld [vmem:[#allocation2 + $0x34] sm:$0xf]
        %v367 = vld [vmem:[#allocation2 + $0x38] sm:$0xf]
        %v368 = vld [vmem:[#allocation2 + $0x3c] sm:$0xf]
        %v369 = vld [vmem:[%s324] sm:$0xff]
        %v370 = vld [vmem:[%s324 + $0x10] sm:$0xff]
        %v371 = vld [vmem:[%s324 + $0x20] sm:$0xff]
        %v372 = vld [vmem:[%s324 + $0x30] sm:$0xff]
        %v373 = vld [vmem:[%s324 + $0x40] sm:$0xff]
        %v374 = vld [vmem:[%s324 + $0x50] sm:$0xff]
        %v375 = vld [vmem:[%s324 + $0x60] sm:$0xff]
        %v376 = vld [vmem:[%s324 + $0x70] sm:$0xff]
        %v377 = vpack.c.bf16 %v370, %v369
        %v378 = vpack.c.bf16 %v372, %v371
        %v379 = vpack.c.bf16 %v374, %v373
        %v380 = vpack.c.bf16 %v376, %v375
        %s381 = scalar_lea.vmem [#allocation2], 64
        %v382 = vld [vmem:[%s381] sm:$0xf]
        %v383 = vld [vmem:[%s381 + $0x4] sm:$0xf]
        %v384 = vld [vmem:[%s381 + $0x8] sm:$0xf]
        %v385 = vld [vmem:[%s381 + $0xc] sm:$0xf]
        %v386 = vld [vmem:[%s381 + $0x10] sm:$0xf]
        %v387 = vld [vmem:[%s381 + $0x14] sm:$0xf]
        %v388 = vld [vmem:[%s381 + $0x18] sm:$0xf]
        %v389 = vld [vmem:[%s381 + $0x1c] sm:$0xf]
        %v390 = vld [vmem:[%s381 + $0x20] sm:$0xf]
        %v391 = vld [vmem:[%s381 + $0x24] sm:$0xf]
        %v392 = vld [vmem:[%s381 + $0x28] sm:$0xf]
        %v393 = vld [vmem:[%s381 + $0x2c] sm:$0xf]
        %v394 = vld [vmem:[%s381 + $0x30] sm:$0xf]
        %v395 = vld [vmem:[%s381 + $0x34] sm:$0xf]
        %v396 = vld [vmem:[%s381 + $0x38] sm:$0xf]
        %v397 = vld [vmem:[%s381 + $0x3c] sm:$0xf]
        %v414 = vunpack.c.l.b16 %v382
        %v415 = vunpack.c.l.b16 %v383
        %v416 = vunpack.c.l.b16 %v384
        %v417 = vunpack.c.l.b16 %v385
        %v418 = vunpack.c.l.b16 %v386
        %v419 = vunpack.c.l.b16 %v387
        %v420 = vunpack.c.l.b16 %v388
        %v421 = vunpack.c.l.b16 %v389
        %v422 = vunpack.c.l.b16 %v390
        %v423 = vunpack.c.l.b16 %v391
        %v424 = vunpack.c.l.b16 %v392
        %v425 = vunpack.c.l.b16 %v393
        %v426 = vunpack.c.l.b16 %v394
        %v427 = vunpack.c.l.b16 %v395
        %v428 = vunpack.c.l.b16 %v396
        %v429 = vunpack.c.l.b16 %v397
        %v430 = vpack.c.b16 %v415, %v414
        %v431 = vpack.c.b16 %v417, %v416
        %v432 = vpack.c.b16 %v419, %v418
        %v433 = vpack.c.b16 %v421, %v420
        %v434 = vpack.c.b16 %v423, %v422
        %v435 = vpack.c.b16 %v425, %v424
        %v436 = vpack.c.b16 %v427, %v426
        %v437 = vpack.c.b16 %v429, %v428
        %446 = vmatprep.subr.bf16.mxu0 0
        %447 = vmatpush1.bf16.msra.mxu0 %v430
        %448 = vmatprep.subr.bf16.mxu0 0
        %449 = vmatpush1.bf16.msra.mxu0 %v431
        %450 = vmatprep.subr.bf16.mxu0 0
        %451 = vmatpush1.bf16.msra.mxu0 %v432
        %452 = vmatprep.subr.bf16.mxu0 0
        %453 = vmatpush1.bf16.msra.mxu0 %v433
        %454 = vmatprep.subr.bf16.mxu0 0
        %455 = vmatpush1.bf16.msra.mxu0 %v434
        %456 = vmatprep.subr.bf16.mxu0 0
        %457 = vmatpush1.bf16.msra.mxu0 %v435
        %458 = vmatprep.subr.bf16.mxu0 0
        %459 = vmatpush1.bf16.msra.mxu0 %v436
        %460 = vmatprep.subr.bf16.mxu0 0
        %461 = vmatpush1.bf16.msra.mxu0 %v437
        %462 = vmatprep.subr.bf16.mxu0 0
        %463 = vmatpush1.bf16.msra.mxu0 0
        %464 = vmatprep.subr.bf16.mxu0 0
        %465 = vmatpush1.bf16.msra.mxu0 0
        %466 = vmatprep.subr.bf16.mxu0 0
        %467 = vmatpush1.bf16.msra.mxu0 0
        %468 = vmatprep.subr.bf16.mxu0 0
        %469 = vmatpush1.bf16.msra.mxu0 0
        %470 = vmatprep.subr.bf16.mxu0 0
        %471 = vmatpush1.bf16.msra.mxu0 0
        %472 = vmatprep.subr.bf16.mxu0 0
        %473 = vmatpush1.bf16.msra.mxu0 0
        %474 = vmatprep.subr.bf16.mxu0 0
        %475 = vmatpush1.bf16.msra.mxu0 0
        %476 = vmatprep.subr.bf16.mxu0 0
        %477 = vmatpush1.bf16.msra.mxu0 0
        %478 = vmatprep.mubr.bf16.mxu0 0
        %479 = vmatmul.mubr.bf16.gmra.mrb[0].mxu0 %v377
        %v480 = vpop.f32.mrb[0].mxu0
        %v481 = vadd.f32 0.0, %v480
        %v482 = vpop.f32.mrb[0].mxu0
        %v483 = vpop.f32.mrb[0].mxu0
        %v484 = vadd.f32 0.0, %v483
        %v485 = vpop.f32.mrb[0].mxu0
        %486 = vmatprep.mubr.bf16.mxu0 0
        %487 = vmatmul.mubr.bf16.gmra.mrb[0].mxu0 %v378
        %v488 = vpop.f32.mrb[0].mxu0
        %v489 = vadd.f32 0.0, %v488
        %v490 = vpop.f32.mrb[0].mxu0
        %v491 = vpop.f32.mrb[0].mxu0
        %v492 = vadd.f32 0.0, %v491
        %v493 = vpop.f32.mrb[0].mxu0
        %494 = vmatprep.mubr.bf16.mxu0 0
        %495 = vmatmul.mubr.bf16.gmra.mrb[0].mxu0 %v379
        %v496 = vpop.f32.mrb[0].mxu0
        %v497 = vadd.f32 0.0, %v496
        %v498 = vpop.f32.mrb[0].mxu0
        %v499 = vpop.f32.mrb[0].mxu0
        %v500 = vadd.f32 0.0, %v499
        %v501 = vpop.f32.mrb[0].mxu0
        %502 = vmatprep.mubr.bf16.mxu0 0
        %503 = vmatmul.mubr.bf16.gmra.mrb[0].mxu0 %v380
        %v504 = vpop.f32.mrb[0].mxu0
        %v505 = vadd.f32 0.0, %v504
        %v506 = vpop.f32.mrb[0].mxu0
        %v507 = vpop.f32.mrb[0].mxu0
        %v508 = vadd.f32 0.0, %v507
        %v509 = vpop.f32.mrb[0].mxu0
        %510 = vdwg.mxu0
        %v527 = vunpack.c.l.b16 %v353
        %v528 = vunpack.c.l.b16 %v354
        %v529 = vunpack.c.l.b16 %v355
        %v530 = vunpack.c.l.b16 %v356
        %v531 = vunpack.c.l.b16 %v357
        %v532 = vunpack.c.l.b16 %v358
        %v533 = vunpack.c.l.b16 %v359
        %v534 = vunpack.c.l.b16 %v360
        %v535 = vunpack.c.l.b16 %v361
        %v536 = vunpack.c.l.b16 %v362
        %v537 = vunpack.c.l.b16 %v363
        %v538 = vunpack.c.l.b16 %v364
        %v539 = vunpack.c.l.b16 %v365
        %v540 = vunpack.c.l.b16 %v366
        %v541 = vunpack.c.l.b16 %v367
        %v542 = vunpack.c.l.b16 %v368
        %v543 = vpack.c.b16 %v528, %v527
        %v544 = vpack.c.b16 %v530, %v529
        %v545 = vpack.c.b16 %v532, %v531
        %v546 = vpack.c.b16 %v534, %v533
        %v547 = vpack.c.b16 %v536, %v535
        %v548 = vpack.c.b16 %v538, %v537
        %v549 = vpack.c.b16 %v540, %v539
        %v550 = vpack.c.b16 %v542, %v541
        %559 = vmatprep.subr.bf16.mxu0 0
        %560 = vmatpush1.bf16.msra.mxu0 %v543
        %561 = vmatprep.subr.bf16.mxu0 0
        %562 = vmatpush1.bf16.msra.mxu0 %v544
        %563 = vmatprep.subr.bf16.mxu0 0
        %564 = vmatpush1.bf16.msra.mxu0 %v545
        %565 = vmatprep.subr.bf16.mxu0 0
        %566 = vmatpush1.bf16.msra.mxu0 %v546
        %567 = vmatprep.subr.bf16.mxu0 0
        %568 = vmatpush1.bf16.msra.mxu0 %v547
        %569 = vmatprep.subr.bf16.mxu0 0
        %570 = vmatpush1.bf16.msra.mxu0 %v548
        %571 = vmatprep.subr.bf16.mxu0 0
        %572 = vmatpush1.bf16.msra.mxu0 %v549
        %573 = vmatprep.subr.bf16.mxu0 0
        %574 = vmatpush1.bf16.msra.mxu0 %v550
        %575 = vmatprep.subr.bf16.mxu0 0
        %576 = vmatpush1.bf16.msra.mxu0 0
        %577 = vmatprep.subr.bf16.mxu0 0
        %578 = vmatpush1.bf16.msra.mxu0 0
        %579 = vmatprep.subr.bf16.mxu0 0
        %580 = vmatpush1.bf16.msra.mxu0 0
        %581 = vmatprep.subr.bf16.mxu0 0
        %582 = vmatpush1.bf16.msra.mxu0 0
        %583 = vmatprep.subr.bf16.mxu0 0
        %584 = vmatpush1.bf16.msra.mxu0 0
        %585 = vmatprep.subr.bf16.mxu0 0
        %586 = vmatpush1.bf16.msra.mxu0 0
        %587 = vmatprep.subr.bf16.mxu0 0
        %588 = vmatpush1.bf16.msra.mxu0 0
        %589 = vmatprep.subr.bf16.mxu0 0
        %590 = vmatpush1.bf16.msra.mxu0 0
        %591 = vmatprep.mubr.bf16.mxu0 0
        %592 = vmatmul.mubr.bf16.gmra.mrb[0].mxu0 %v349
        %v593 = vpop.f32.mrb[0].mxu0
        %v594 = vadd.f32 %v481, %v593
        %v595 = vpop.f32.mrb[0].mxu0
        %v596 = vpop.f32.mrb[0].mxu0
        %v597 = vadd.f32 %v484, %v596
        %v598 = vpop.f32.mrb[0].mxu0
        %599 = vmatprep.mubr.bf16.mxu0 0
        %600 = vmatmul.mubr.bf16.gmra.mrb[0].mxu0 %v350
        %v601 = vpop.f32.mrb[0].mxu0
        %v602 = vadd.f32 %v489, %v601
        %v603 = vpop.f32.mrb[0].mxu0
        %v604 = vpop.f32.mrb[0].mxu0
        %v605 = vadd.f32 %v492, %v604
        %v606 = vpop.f32.mrb[0].mxu0
        %607 = vmatprep.mubr.bf16.mxu0 0
        %608 = vmatmul.mubr.bf16.gmra.mrb[0].mxu0 %v351
        %v609 = vpop.f32.mrb[0].mxu0
        %v610 = vadd.f32 %v497, %v609
        %v611 = vpop.f32.mrb[0].mxu0
        %v612 = vpop.f32.mrb[0].mxu0
        %v613 = vadd.f32 %v500, %v612
        %v614 = vpop.f32.mrb[0].mxu0
        %615 = vmatprep.mubr.bf16.mxu0 0
        %616 = vmatmul.mubr.bf16.gmra.mrb[0].mxu0 %v352
        %v617 = vpop.f32.mrb[0].mxu0
        %v618 = vadd.f32 %v505, %v617
        %v619 = vpop.f32.mrb[0].mxu0
        %v620 = vpop.f32.mrb[0].mxu0
        %v621 = vadd.f32 %v508, %v620
        %v622 = vpop.f32.mrb[0].mxu0
        %623 = vdwg.mxu0
        %v624 = vld [vmem:[%s319 + $0x1] sm:$0xff]
        %v625 = vld [vmem:[%s319 + $0x11] sm:$0xff]
        %v626 = vld [vmem:[%s319 + $0x21] sm:$0xff]
        %v627 = vld [vmem:[%s319 + $0x31] sm:$0xff]
        %v628 = vld [vmem:[%s319 + $0x41] sm:$0xff]
        %v629 = vld [vmem:[%s319 + $0x51] sm:$0xff]
        %v630 = vld [vmem:[%s319 + $0x61] sm:$0xff]
        %v631 = vld [vmem:[%s319 + $0x71] sm:$0xff]
        %v632 = vpack.c.bf16 %v625, %v624
        %v633 = vpack.c.bf16 %v627, %v626
        %v634 = vpack.c.bf16 %v629, %v628
        %v635 = vpack.c.bf16 %v631, %v630
        %s636 = scalar_lea.vmem [#allocation2], 128
        %v637 = vld [vmem:[%s636] sm:$0xf]
        %v638 = vld [vmem:[%s636 + $0x4] sm:$0xf]
        %v639 = vld [vmem:[%s636 + $0x8] sm:$0xf]
        %v640 = vld [vmem:[%s636 + $0xc] sm:$0xf]
        %v641 = vld [vmem:[%s636 + $0x10] sm:$0xf]
        %v642 = vld [vmem:[%s636 + $0x14] sm:$0xf]
        %v643 = vld [vmem:[%s636 + $0x18] sm:$0xf]
        %v644 = vld [vmem:[%s636 + $0x1c] sm:$0xf]
        %v645 = vld [vmem:[%s636 + $0x20] sm:$0xf]
        %v646 = vld [vmem:[%s636 + $0x24] sm:$0xf]
        %v647 = vld [vmem:[%s636 + $0x28] sm:$0xf]
        %v648 = vld [vmem:[%s636 + $0x2c] sm:$0xf]
        %v649 = vld [vmem:[%s636 + $0x30] sm:$0xf]
        %v650 = vld [vmem:[%s636 + $0x34] sm:$0xf]
        %v651 = vld [vmem:[%s636 + $0x38] sm:$0xf]
        %v652 = vld [vmem:[%s636 + $0x3c] sm:$0xf]
        %v669 = vunpack.c.l.b16 %v637
        %v670 = vunpack.c.l.b16 %v638
        %v671 = vunpack.c.l.b16 %v639
        %v672 = vunpack.c.l.b16 %v640
        %v673 = vunpack.c.l.b16 %v641
        %v674 = vunpack.c.l.b16 %v642
        %v675 = vunpack.c.l.b16 %v643
        %v676 = vunpack.c.l.b16 %v644
        %v677 = vunpack.c.l.b16 %v645
        %v678 = vunpack.c.l.b16 %v646
        %v679 = vunpack.c.l.b16 %v647
        %v680 = vunpack.c.l.b16 %v648
        %v681 = vunpack.c.l.b16 %v649
        %v682 = vunpack.c.l.b16 %v650
        %v683 = vunpack.c.l.b16 %v651
        %v684 = vunpack.c.l.b16 %v652
        %v685 = vpack.c.b16 %v670, %v669
        %v686 = vpack.c.b16 %v672, %v671
        %v687 = vpack.c.b16 %v674, %v673
        %v688 = vpack.c.b16 %v676, %v675
        %v689 = vpack.c.b16 %v678, %v677
        %v690 = vpack.c.b16 %v680, %v679
        %v691 = vpack.c.b16 %v682, %v681
        %v692 = vpack.c.b16 %v684, %v683
        %701 = vmatprep.subr.bf16.mxu0 0
        %702 = vmatpush1.bf16.msra.mxu0 %v685
        %703 = vmatprep.subr.bf16.mxu0 0
        %704 = vmatpush1.bf16.msra.mxu0 %v686
        %705 = vmatprep.subr.bf16.mxu0 0
        %706 = vmatpush1.bf16.msra.mxu0 %v687
        %707 = vmatprep.subr.bf16.mxu0 0
        %708 = vmatpush1.bf16.msra.mxu0 %v688
        %709 = vmatprep.subr.bf16.mxu0 0
        %710 = vmatpush1.bf16.msra.mxu0 %v689
        %711 = vmatprep.subr.bf16.mxu0 0
        %712 = vmatpush1.bf16.msra.mxu0 %v690
        %713 = vmatprep.subr.bf16.mxu0 0
        %714 = vmatpush1.bf16.msra.mxu0 %v691
        %715 = vmatprep.subr.bf16.mxu0 0
        %716 = vmatpush1.bf16.msra.mxu0 %v692
        %717 = vmatprep.subr.bf16.mxu0 0
        %718 = vmatpush1.bf16.msra.mxu0 0
        %719 = vmatprep.subr.bf16.mxu0 0
        %720 = vmatpush1.bf16.msra.mxu0 0
        %721 = vmatprep.subr.bf16.mxu0 0
        %722 = vmatpush1.bf16.msra.mxu0 0
        %723 = vmatprep.subr.bf16.mxu0 0
        %724 = vmatpush1.bf16.msra.mxu0 0
        %725 = vmatprep.subr.bf16.mxu0 0
        %726 = vmatpush1.bf16.msra.mxu0 0
        %727 = vmatprep.subr.bf16.mxu0 0
        %728 = vmatpush1.bf16.msra.mxu0 0
        %729 = vmatprep.subr.bf16.mxu0 0
        %730 = vmatpush1.bf16.msra.mxu0 0
        %731 = vmatprep.subr.bf16.mxu0 0
        %732 = vmatpush1.bf16.msra.mxu0 0
        %733 = vmatprep.mubr.bf16.mxu0 0
        %734 = vmatmul.mubr.bf16.gmra.mrb[0].mxu0 %v632
        %v735 = vpop.f32.mrb[0].mxu0
        %v736 = vadd.f32 0.0, %v735
        %v737 = vpop.f32.mrb[0].mxu0
        %v738 = vpop.f32.mrb[0].mxu0
        %v739 = vadd.f32 0.0, %v738
        %v740 = vpop.f32.mrb[0].mxu0
        %741 = vmatprep.mubr.bf16.mxu0 0
        %742 = vmatmul.mubr.bf16.gmra.mrb[0].mxu0 %v633
        %v743 = vpop.f32.mrb[0].mxu0
        %v744 = vadd.f32 0.0, %v743
        %v745 = vpop.f32.mrb[0].mxu0
        %v746 = vpop.f32.mrb[0].mxu0
        %v747 = vadd.f32 0.0, %v746
        %v748 = vpop.f32.mrb[0].mxu0
        %749 = vmatprep.mubr.bf16.mxu0 0
        %750 = vmatmul.mubr.bf16.gmra.mrb[0].mxu0 %v634
        %v751 = vpop.f32.mrb[0].mxu0
        %v752 = vadd.f32 0.0, %v751
        %v753 = vpop.f32.mrb[0].mxu0
        %v754 = vpop.f32.mrb[0].mxu0
        %v755 = vadd.f32 0.0, %v754
        %v756 = vpop.f32.mrb[0].mxu0
        %757 = vmatprep.mubr.bf16.mxu0 0
        %758 = vmatmul.mubr.bf16.gmra.mrb[0].mxu0 %v635
        %v759 = vpop.f32.mrb[0].mxu0
        %v760 = vadd.f32 0.0, %v759
        %v761 = vpop.f32.mrb[0].mxu0
        %v762 = vpop.f32.mrb[0].mxu0
        %v763 = vadd.f32 0.0, %v762
        %v764 = vpop.f32.mrb[0].mxu0
        %765 = vdwg.mxu0
        %v766 = vadd.f32 %v594, %v736
        %v767 = vadd.f32 %v597, %v739
        %v768 = vadd.f32 %v602, %v744
        %v769 = vadd.f32 %v605, %v747
        %v770 = vadd.f32 %v610, %v752
        %v771 = vadd.f32 %v613, %v755
        %v772 = vadd.f32 %v618, %v760
        %v773 = vadd.f32 %v621, %v763
        %v774 = vld [vmem:[%s329] sm:$0xff]
        %v775 = vld [vmem:[%s329 + $0x10] sm:$0xff]
        %v776 = vld [vmem:[%s329 + $0x20] sm:$0xff]
        %v777 = vld [vmem:[%s329 + $0x30] sm:$0xff]
        %v778 = vld [vmem:[%s329 + $0x40] sm:$0xff]
        %v779 = vld [vmem:[%s329 + $0x50] sm:$0xff]
        %v780 = vld [vmem:[%s329 + $0x60] sm:$0xff]
        %v781 = vld [vmem:[%s329 + $0x70] sm:$0xff]
        %v782 = vpack.c.bf16 %v775, %v774
        %v783 = vpack.c.bf16 %v777, %v776
        %v784 = vpack.c.bf16 %v779, %v778
        %v785 = vpack.c.bf16 %v781, %v780
        %s786 = scalar_lea.vmem [#allocation2], 192
        %v787 = vld [vmem:[%s786] sm:$0xf]
        %v788 = vld [vmem:[%s786 + $0x4] sm:$0xf]
        %v789 = vld [vmem:[%s786 + $0x8] sm:$0xf]
        %v790 = vld [vmem:[%s786 + $0xc] sm:$0xf]
        %v791 = vld [vmem:[%s786 + $0x10] sm:$0xf]
        %v792 = vld [vmem:[%s786 + $0x14] sm:$0xf]
        %v793 = vld [vmem:[%s786 + $0x18] sm:$0xf]
        %v794 = vld [vmem:[%s786 + $0x1c] sm:$0xf]
        %v795 = vld [vmem:[%s786 + $0x20] sm:$0xf]
        %v796 = vld [vmem:[%s786 + $0x24] sm:$0xf]
        %v797 = vld [vmem:[%s786 + $0x28] sm:$0xf]
        %v798 = vld [vmem:[%s786 + $0x2c] sm:$0xf]
        %v799 = vld [vmem:[%s786 + $0x30] sm:$0xf]
        %v800 = vld [vmem:[%s786 + $0x34] sm:$0xf]
        %v801 = vld [vmem:[%s786 + $0x38] sm:$0xf]
        %v802 = vld [vmem:[%s786 + $0x3c] sm:$0xf]
        %v819 = vunpack.c.l.b16 %v787
        %v820 = vunpack.c.l.b16 %v788
        %v821 = vunpack.c.l.b16 %v789
        %v822 = vunpack.c.l.b16 %v790
        %v823 = vunpack.c.l.b16 %v791
        %v824 = vunpack.c.l.b16 %v792
        %v825 = vunpack.c.l.b16 %v793
        %v826 = vunpack.c.l.b16 %v794
        %v827 = vunpack.c.l.b16 %v795
        %v828 = vunpack.c.l.b16 %v796
        %v829 = vunpack.c.l.b16 %v797
        %v830 = vunpack.c.l.b16 %v798
        %v831 = vunpack.c.l.b16 %v799
        %v832 = vunpack.c.l.b16 %v800
        %v833 = vunpack.c.l.b16 %v801
        %v834 = vunpack.c.l.b16 %v802
        %v835 = vpack.c.b16 %v820, %v819
        %v836 = vpack.c.b16 %v822, %v821
        %v837 = vpack.c.b16 %v824, %v823
        %v838 = vpack.c.b16 %v826, %v825
        %v839 = vpack.c.b16 %v828, %v827
        %v840 = vpack.c.b16 %v830, %v829
        %v841 = vpack.c.b16 %v832, %v831
        %v842 = vpack.c.b16 %v834, %v833
        %851 = vmatprep.subr.bf16.mxu0 0
        %852 = vmatpush1.bf16.msra.mxu0 %v835
        %853 = vmatprep.subr.bf16.mxu0 0
        %854 = vmatpush1.bf16.msra.mxu0 %v836
        %855 = vmatprep.subr.bf16.mxu0 0
        %856 = vmatpush1.bf16.msra.mxu0 %v837
        %857 = vmatprep.subr.bf16.mxu0 0
        %858 = vmatpush1.bf16.msra.mxu0 %v838
        %859 = vmatprep.subr.bf16.mxu0 0
        %860 = vmatpush1.bf16.msra.mxu0 %v839
        %861 = vmatprep.subr.bf16.mxu0 0
        %862 = vmatpush1.bf16.msra.mxu0 %v840
        %863 = vmatprep.subr.bf16.mxu0 0
        %864 = vmatpush1.bf16.msra.mxu0 %v841
        %865 = vmatprep.subr.bf16.mxu0 0
        %866 = vmatpush1.bf16.msra.mxu0 %v842
        %867 = vmatprep.subr.bf16.mxu0 0
        %868 = vmatpush1.bf16.msra.mxu0 0
        %869 = vmatprep.subr.bf16.mxu0 0
        %870 = vmatpush1.bf16.msra.mxu0 0
        %871 = vmatprep.subr.bf16.mxu0 0
        %872 = vmatpush1.bf16.msra.mxu0 0
        %873 = vmatprep.subr.bf16.mxu0 0
        %874 = vmatpush1.bf16.msra.mxu0 0
        %875 = vmatprep.subr.bf16.mxu0 0
        %876 = vmatpush1.bf16.msra.mxu0 0
        %877 = vmatprep.subr.bf16.mxu0 0
        %878 = vmatpush1.bf16.msra.mxu0 0
        %879 = vmatprep.subr.bf16.mxu0 0
        %880 = vmatpush1.bf16.msra.mxu0 0
        %881 = vmatprep.subr.bf16.mxu0 0
        %882 = vmatpush1.bf16.msra.mxu0 0
        %883 = vmatprep.mubr.bf16.mxu0 0
        %884 = vmatmul.mubr.bf16.gmra.mrb[0].mxu0 %v782
        %v885 = vpop.f32.mrb[0].mxu0
        %v886 = vadd.f32 0.0, %v885
        %v887 = vpop.f32.mrb[0].mxu0
        %v888 = vpop.f32.mrb[0].mxu0
        %v889 = vadd.f32 0.0, %v888
        %v890 = vpop.f32.mrb[0].mxu0
        %891 = vmatprep.mubr.bf16.mxu0 0
        %892 = vmatmul.mubr.bf16.gmra.mrb[0].mxu0 %v783
        %v893 = vpop.f32.mrb[0].mxu0
        %v894 = vadd.f32 0.0, %v893
        %v895 = vpop.f32.mrb[0].mxu0
        %v896 = vpop.f32.mrb[0].mxu0
        %v897 = vadd.f32 0.0, %v896
        %v898 = vpop.f32.mrb[0].mxu0
        %899 = vmatprep.mubr.bf16.mxu0 0
        %900 = vmatmul.mubr.bf16.gmra.mrb[0].mxu0 %v784
        %v901 = vpop.f32.mrb[0].mxu0
        %v902 = vadd.f32 0.0, %v901
        %v903 = vpop.f32.mrb[0].mxu0
        %v904 = vpop.f32.mrb[0].mxu0
        %v905 = vadd.f32 0.0, %v904
        %v906 = vpop.f32.mrb[0].mxu0
        %907 = vmatprep.mubr.bf16.mxu0 0
        %908 = vmatmul.mubr.bf16.gmra.mrb[0].mxu0 %v785
        %v909 = vpop.f32.mrb[0].mxu0
        %v910 = vadd.f32 0.0, %v909
        %v911 = vpop.f32.mrb[0].mxu0
        %v912 = vpop.f32.mrb[0].mxu0
        %v913 = vadd.f32 0.0, %v912
        %v914 = vpop.f32.mrb[0].mxu0
        %915 = vdwg.mxu0
        %v916 = vadd.f32 %v766, %v886
        %v917 = vadd.f32 %v767, %v889
        %v918 = vadd.f32 %v768, %v894
        %v919 = vadd.f32 %v769, %v897
        %v920 = vadd.f32 %v770, %v902
        %v921 = vadd.f32 %v771, %v905
        %v922 = vadd.f32 %v772, %v910
        %v923 = vadd.f32 %v773, %v913
        %v924 = vld [vmem:[%s334] sm:$0xff]
        %v925 = vld [vmem:[%s334 + $0x10] sm:$0xff]
        %v926 = vld [vmem:[%s334 + $0x20] sm:$0xff]
        %v927 = vld [vmem:[%s334 + $0x30] sm:$0xff]
        %v928 = vld [vmem:[%s334 + $0x40] sm:$0xff]
        %v929 = vld [vmem:[%s334 + $0x50] sm:$0xff]
        %v930 = vld [vmem:[%s334 + $0x60] sm:$0xff]
        %v931 = vld [vmem:[%s334 + $0x70] sm:$0xff]
        %v932 = vpack.c.bf16 %v925, %v924
        %v933 = vpack.c.bf16 %v927, %v926
        %v934 = vpack.c.bf16 %v929, %v928
        %v935 = vpack.c.bf16 %v931, %v930
        %s936 = scalar_lea.vmem [#allocation2], 256
        %v937 = vld [vmem:[%s936] sm:$0xf]
        %v938 = vld [vmem:[%s936 + $0x4] sm:$0xf]
        %v939 = vld [vmem:[%s936 + $0x8] sm:$0xf]
        %v940 = vld [vmem:[%s936 + $0xc] sm:$0xf]
        %v941 = vld [vmem:[%s936 + $0x10] sm:$0xf]
        %v942 = vld [vmem:[%s936 + $0x14] sm:$0xf]
        %v943 = vld [vmem:[%s936 + $0x18] sm:$0xf]
        %v944 = vld [vmem:[%s936 + $0x1c] sm:$0xf]
        %v945 = vld [vmem:[%s936 + $0x20] sm:$0xf]
        %v946 = vld [vmem:[%s936 + $0x24] sm:$0xf]
        %v947 = vld [vmem:[%s936 + $0x28] sm:$0xf]
        %v948 = vld [vmem:[%s936 + $0x2c] sm:$0xf]
        %v949 = vld [vmem:[%s936 + $0x30] sm:$0xf]
        %v950 = vld [vmem:[%s936 + $0x34] sm:$0xf]
        %v951 = vld [vmem:[%s936 + $0x38] sm:$0xf]
        %v952 = vld [vmem:[%s936 + $0x3c] sm:$0xf]
        %v969 = vunpack.c.l.b16 %v937
        %v970 = vunpack.c.l.b16 %v938
        %v971 = vunpack.c.l.b16 %v939
        %v972 = vunpack.c.l.b16 %v940
        %v973 = vunpack.c.l.b16 %v941
        %v974 = vunpack.c.l.b16 %v942
        %v975 = vunpack.c.l.b16 %v943
        %v976 = vunpack.c.l.b16 %v944
        %v977 = vunpack.c.l.b16 %v945
        %v978 = vunpack.c.l.b16 %v946
        %v979 = vunpack.c.l.b16 %v947
        %v980 = vunpack.c.l.b16 %v948
        %v981 = vunpack.c.l.b16 %v949
        %v982 = vunpack.c.l.b16 %v950
        %v983 = vunpack.c.l.b16 %v951
        %v984 = vunpack.c.l.b16 %v952
        %v985 = vpack.c.b16 %v970, %v969
        %v986 = vpack.c.b16 %v972, %v971
        %v987 = vpack.c.b16 %v974, %v973
        %v988 = vpack.c.b16 %v976, %v975
        %v989 = vpack.c.b16 %v978, %v977
        %v990 = vpack.c.b16 %v980, %v979
        %v991 = vpack.c.b16 %v982, %v981
        %v992 = vpack.c.b16 %v984, %v983
        %1001 = vmatprep.subr.bf16.mxu0 0
        %1002 = vmatpush1.bf16.msra.mxu0 %v985
        %1003 = vmatprep.subr.bf16.mxu0 0
        %1004 = vmatpush1.bf16.msra.mxu0 %v986
        %1005 = vmatprep.subr.bf16.mxu0 0
        %1006 = vmatpush1.bf16.msra.mxu0 %v987
        %1007 = vmatprep.subr.bf16.mxu0 0
        %1008 = vmatpush1.bf16.msra.mxu0 %v988
        %1009 = vmatprep.subr.bf16.mxu0 0
        %1010 = vmatpush1.bf16.msra.mxu0 %v989
        %1011 = vmatprep.subr.bf16.mxu0 0
        %1012 = vmatpush1.bf16.msra.mxu0 %v990
        %1013 = vmatprep.subr.bf16.mxu0 0
        %1014 = vmatpush1.bf16.msra.mxu0 %v991
        %1015 = vmatprep.subr.bf16.mxu0 0
        %1016 = vmatpush1.bf16.msra.mxu0 %v992
        %1017 = vmatprep.subr.bf16.mxu0 0
        %1018 = vmatpush1.bf16.msra.mxu0 0
        %1019 = vmatprep.subr.bf16.mxu0 0
        %1020 = vmatpush1.bf16.msra.mxu0 0
        %1021 = vmatprep.subr.bf16.mxu0 0
        %1022 = vmatpush1.bf16.msra.mxu0 0
        %1023 = vmatprep.subr.bf16.mxu0 0
        %1024 = vmatpush1.bf16.msra.mxu0 0
        %1025 = vmatprep.subr.bf16.mxu0 0
        %1026 = vmatpush1.bf16.msra.mxu0 0
        %1027 = vmatprep.subr.bf16.mxu0 0
        %1028 = vmatpush1.bf16.msra.mxu0 0
        %1029 = vmatprep.subr.bf16.mxu0 0
        %1030 = vmatpush1.bf16.msra.mxu0 0
        %1031 = vmatprep.subr.bf16.mxu0 0
        %1032 = vmatpush1.bf16.msra.mxu0 0
        %1033 = vmatprep.mubr.bf16.mxu0 0
        %1034 = vmatmul.mubr.bf16.gmra.mrb[0].mxu0 %v932
        %v1035 = vpop.f32.mrb[0].mxu0
        %v1036 = vadd.f32 0.0, %v1035
        %v1037 = vpop.f32.mrb[0].mxu0
        %v1038 = vpop.f32.mrb[0].mxu0
        %v1039 = vadd.f32 0.0, %v1038
        %v1040 = vpop.f32.mrb[0].mxu0
        %1041 = vmatprep.mubr.bf16.mxu0 0
        %1042 = vmatmul.mubr.bf16.gmra.mrb[0].mxu0 %v933
        %v1043 = vpop.f32.mrb[0].mxu0
        %v1044 = vadd.f32 0.0, %v1043
        %v1045 = vpop.f32.mrb[0].mxu0
        %v1046 = vpop.f32.mrb[0].mxu0
        %v1047 = vadd.f32 0.0, %v1046
        %v1048 = vpop.f32.mrb[0].mxu0
        %1049 = vmatprep.mubr.bf16.mxu0 0
        %1050 = vmatmul.mubr.bf16.gmra.mrb[0].mxu0 %v934
        %v1051 = vpop.f32.mrb[0].mxu0
        %v1052 = vadd.f32 0.0, %v1051
        %v1053 = vpop.f32.mrb[0].mxu0
        %v1054 = vpop.f32.mrb[0].mxu0
        %v1055 = vadd.f32 0.0, %v1054
        %v1056 = vpop.f32.mrb[0].mxu0
        %1057 = vmatprep.mubr.bf16.mxu0 0
        %1058 = vmatmul.mubr.bf16.gmra.mrb[0].mxu0 %v935
        %v1059 = vpop.f32.mrb[0].mxu0
        %v1060 = vadd.f32 0.0, %v1059
        %v1061 = vpop.f32.mrb[0].mxu0
        %v1062 = vpop.f32.mrb[0].mxu0
        %v1063 = vadd.f32 0.0, %v1062
        %v1064 = vpop.f32.mrb[0].mxu0
        %1065 = vdwg.mxu0
        %v1066 = vadd.f32 %v916, %v1036
        %v1067 = vadd.f32 %v917, %v1039
        %v1068 = vadd.f32 %v918, %v1044
        %v1069 = vadd.f32 %v919, %v1047
        %v1070 = vadd.f32 %v920, %v1052
        %v1071 = vadd.f32 %v921, %v1055
        %v1072 = vadd.f32 %v922, %v1060
        %v1073 = vadd.f32 %v923, %v1063
        %v1074 = vld [vmem:[%s329 + $0x1] sm:$0xff]
        %v1075 = vld [vmem:[%s329 + $0x11] sm:$0xff]
        %v1076 = vld [vmem:[%s329 + $0x21] sm:$0xff]
        %v1077 = vld [vmem:[%s329 + $0x31] sm:$0xff]
        %v1078 = vld [vmem:[%s329 + $0x41] sm:$0xff]
        %v1079 = vld [vmem:[%s329 + $0x51] sm:$0xff]
        %v1080 = vld [vmem:[%s329 + $0x61] sm:$0xff]
        %v1081 = vld [vmem:[%s329 + $0x71] sm:$0xff]
        %v1082 = vpack.c.bf16 %v1075, %v1074
        %v1083 = vpack.c.bf16 %v1077, %v1076
        %v1084 = vpack.c.bf16 %v1079, %v1078
        %v1085 = vpack.c.bf16 %v1081, %v1080
        %s1086 = scalar_lea.vmem [#allocation2], 320
        %v1087 = vld [vmem:[%s1086] sm:$0xf]
        %v1088 = vld [vmem:[%s1086 + $0x4] sm:$0xf]
        %v1089 = vld [vmem:[%s1086 + $0x8] sm:$0xf]
        %v1090 = vld [vmem:[%s1086 + $0xc] sm:$0xf]
        %v1091 = vld [vmem:[%s1086 + $0x10] sm:$0xf]
        %v1092 = vld [vmem:[%s1086 + $0x14] sm:$0xf]
        %v1093 = vld [vmem:[%s1086 + $0x18] sm:$0xf]
        %v1094 = vld [vmem:[%s1086 + $0x1c] sm:$0xf]
        %v1095 = vld [vmem:[%s1086 + $0x20] sm:$0xf]
        %v1096 = vld [vmem:[%s1086 + $0x24] sm:$0xf]
        %v1097 = vld [vmem:[%s1086 + $0x28] sm:$0xf]
        %v1098 = vld [vmem:[%s1086 + $0x2c] sm:$0xf]
        %v1099 = vld [vmem:[%s1086 + $0x30] sm:$0xf]
        %v1100 = vld [vmem:[%s1086 + $0x34] sm:$0xf]
        %v1101 = vld [vmem:[%s1086 + $0x38] sm:$0xf]
        %v1102 = vld [vmem:[%s1086 + $0x3c] sm:$0xf]
        %v1119 = vunpack.c.l.b16 %v1087
        %v1120 = vunpack.c.l.b16 %v1088
        %v1121 = vunpack.c.l.b16 %v1089
        %v1122 = vunpack.c.l.b16 %v1090
        %v1123 = vunpack.c.l.b16 %v1091
        %v1124 = vunpack.c.l.b16 %v1092
        %v1125 = vunpack.c.l.b16 %v1093
        %v1126 = vunpack.c.l.b16 %v1094
        %v1127 = vunpack.c.l.b16 %v1095
        %v1128 = vunpack.c.l.b16 %v1096
        %v1129 = vunpack.c.l.b16 %v1097
        %v1130 = vunpack.c.l.b16 %v1098
        %v1131 = vunpack.c.l.b16 %v1099
        %v1132 = vunpack.c.l.b16 %v1100
        %v1133 = vunpack.c.l.b16 %v1101
        %v1134 = vunpack.c.l.b16 %v1102
        %v1135 = vpack.c.b16 %v1120, %v1119
        %v1136 = vpack.c.b16 %v1122, %v1121
        %v1137 = vpack.c.b16 %v1124, %v1123
        %v1138 = vpack.c.b16 %v1126, %v1125
        %v1139 = vpack.c.b16 %v1128, %v1127
        %v1140 = vpack.c.b16 %v1130, %v1129
        %v1141 = vpack.c.b16 %v1132, %v1131
        %v1142 = vpack.c.b16 %v1134, %v1133
        %1151 = vmatprep.subr.bf16.mxu0 0
        %1152 = vmatpush1.bf16.msra.mxu0 %v1135
        %1153 = vmatprep.subr.bf16.mxu0 0
        %1154 = vmatpush1.bf16.msra.mxu0 %v1136
        %1155 = vmatprep.subr.bf16.mxu0 0
        %1156 = vmatpush1.bf16.msra.mxu0 %v1137
        %1157 = vmatprep.subr.bf16.mxu0 0
        %1158 = vmatpush1.bf16.msra.mxu0 %v1138
        %1159 = vmatprep.subr.bf16.mxu0 0
        %1160 = vmatpush1.bf16.msra.mxu0 %v1139
        %1161 = vmatprep.subr.bf16.mxu0 0
        %1162 = vmatpush1.bf16.msra.mxu0 %v1140
        %1163 = vmatprep.subr.bf16.mxu0 0
        %1164 = vmatpush1.bf16.msra.mxu0 %v1141
        %1165 = vmatprep.subr.bf16.mxu0 0
        %1166 = vmatpush1.bf16.msra.mxu0 %v1142
        %1167 = vmatprep.subr.bf16.mxu0 0
        %1168 = vmatpush1.bf16.msra.mxu0 0
        %1169 = vmatprep.subr.bf16.mxu0 0
        %1170 = vmatpush1.bf16.msra.mxu0 0
        %1171 = vmatprep.subr.bf16.mxu0 0
        %1172 = vmatpush1.bf16.msra.mxu0 0
        %1173 = vmatprep.subr.bf16.mxu0 0
        %1174 = vmatpush1.bf16.msra.mxu0 0
        %1175 = vmatprep.subr.bf16.mxu0 0
        %1176 = vmatpush1.bf16.msra.mxu0 0
        %1177 = vmatprep.subr.bf16.mxu0 0
        %1178 = vmatpush1.bf16.msra.mxu0 0
        %1179 = vmatprep.subr.bf16.mxu0 0
        %1180 = vmatpush1.bf16.msra.mxu0 0
        %1181 = vmatprep.subr.bf16.mxu0 0
        %1182 = vmatpush1.bf16.msra.mxu0 0
        %1183 = vmatprep.mubr.bf16.mxu0 0
        %1184 = vmatmul.mubr.bf16.gmra.mrb[0].mxu0 %v1082
        %v1185 = vpop.f32.mrb[0].mxu0
        %v1186 = vadd.f32 0.0, %v1185
        %v1187 = vpop.f32.mrb[0].mxu0
        %v1188 = vpop.f32.mrb[0].mxu0
        %v1189 = vadd.f32 0.0, %v1188
        %v1190 = vpop.f32.mrb[0].mxu0
        %1191 = vmatprep.mubr.bf16.mxu0 0
        %1192 = vmatmul.mubr.bf16.gmra.mrb[0].mxu0 %v1083
        %v1193 = vpop.f32.mrb[0].mxu0
        %v1194 = vadd.f32 0.0, %v1193
        %v1195 = vpop.f32.mrb[0].mxu0
        %v1196 = vpop.f32.mrb[0].mxu0
        %v1197 = vadd.f32 0.0, %v1196
        %v1198 = vpop.f32.mrb[0].mxu0
        %1199 = vmatprep.mubr.bf16.mxu0 0
        %1200 = vmatmul.mubr.bf16.gmra.mrb[0].mxu0 %v1084
        %v1201 = vpop.f32.mrb[0].mxu0
        %v1202 = vadd.f32 0.0, %v1201
        %v1203 = vpop.f32.mrb[0].mxu0
        %v1204 = vpop.f32.mrb[0].mxu0
        %v1205 = vadd.f32 0.0, %v1204
        %v1206 = vpop.f32.mrb[0].mxu0
        %1207 = vmatprep.mubr.bf16.mxu0 0
        %1208 = vmatmul.mubr.bf16.gmra.mrb[0].mxu0 %v1085
        %v1209 = vpop.f32.mrb[0].mxu0
        %v1210 = vadd.f32 0.0, %v1209
        %v1211 = vpop.f32.mrb[0].mxu0
        %v1212 = vpop.f32.mrb[0].mxu0
        %v1213 = vadd.f32 0.0, %v1212
        %v1214 = vpop.f32.mrb[0].mxu0
        %1215 = vdwg.mxu0
        %v1216 = vadd.f32 %v1066, %v1186
        %v1217 = vadd.f32 %v1067, %v1189
        %v1218 = vadd.f32 %v1068, %v1194
        %v1219 = vadd.f32 %v1069, %v1197
        %v1220 = vadd.f32 %v1070, %v1202
        %v1221 = vadd.f32 %v1071, %v1205
        %v1222 = vadd.f32 %v1072, %v1210
        %v1223 = vadd.f32 %v1073, %v1213
        %s1224 = scalar_lea.vmem %s319, 16
        %v1225 = vld [vmem:[%s1224] sm:$0xff]
        %v1226 = vld [vmem:[%s1224 + $0x10] sm:$0xff]
        %v1227 = vld [vmem:[%s1224 + $0x20] sm:$0xff]
        %v1228 = vld [vmem:[%s1224 + $0x30] sm:$0xff]
        %v1229 = vld [vmem:[%s1224 + $0x40] sm:$0xff]
        %v1230 = vld [vmem:[%s1224 + $0x50] sm:$0xff]
        %v1231 = vld [vmem:[%s1224 + $0x60] sm:$0xff]
        %v1232 = vld [vmem:[%s1224 + $0x70] sm:$0xff]
        %v1233 = vpack.c.bf16 %v1226, %v1225
        %v1234 = vpack.c.bf16 %v1228, %v1227
        %v1235 = vpack.c.bf16 %v1230, %v1229
        %v1236 = vpack.c.bf16 %v1232, %v1231
        %s1237 = scalar_lea.vmem [#allocation2], 384
        %v1238 = vld [vmem:[%s1237] sm:$0xf]
        %v1239 = vld [vmem:[%s1237 + $0x4] sm:$0xf]
        %v1240 = vld [vmem:[%s1237 + $0x8] sm:$0xf]
        %v1241 = vld [vmem:[%s1237 + $0xc] sm:$0xf]
        %v1242 = vld [vmem:[%s1237 + $0x10] sm:$0xf]
        %v1243 = vld [vmem:[%s1237 + $0x14] sm:$0xf]
        %v1244 = vld [vmem:[%s1237 + $0x18] sm:$0xf]
        %v1245 = vld [vmem:[%s1237 + $0x1c] sm:$0xf]
        %v1246 = vld [vmem:[%s1237 + $0x20] sm:$0xf]
        %v1247 = vld [vmem:[%s1237 + $0x24] sm:$0xf]
        %v1248 = vld [vmem:[%s1237 + $0x28] sm:$0xf]
        %v1249 = vld [vmem:[%s1237 + $0x2c] sm:$0xf]
        %v1250 = vld [vmem:[%s1237 + $0x30] sm:$0xf]
        %v1251 = vld [vmem:[%s1237 + $0x34] sm:$0xf]
        %v1252 = vld [vmem:[%s1237 + $0x38] sm:$0xf]
        %v1253 = vld [vmem:[%s1237 + $0x3c] sm:$0xf]
        %v1270 = vunpack.c.l.b16 %v1238
        %v1271 = vunpack.c.l.b16 %v1239
        %v1272 = vunpack.c.l.b16 %v1240
        %v1273 = vunpack.c.l.b16 %v1241
        %v1274 = vunpack.c.l.b16 %v1242
        %v1275 = vunpack.c.l.b16 %v1243
        %v1276 = vunpack.c.l.b16 %v1244
        %v1277 = vunpack.c.l.b16 %v1245
        %v1278 = vunpack.c.l.b16 %v1246
        %v1279 = vunpack.c.l.b16 %v1247
        %v1280 = vunpack.c.l.b16 %v1248
        %v1281 = vunpack.c.l.b16 %v1249
        %v1282 = vunpack.c.l.b16 %v1250
        %v1283 = vunpack.c.l.b16 %v1251
        %v1284 = vunpack.c.l.b16 %v1252
        %v1285 = vunpack.c.l.b16 %v1253
        %v1286 = vpack.c.b16 %v1271, %v1270
        %v1287 = vpack.c.b16 %v1273, %v1272
        %v1288 = vpack.c.b16 %v1275, %v1274
        %v1289 = vpack.c.b16 %v1277, %v1276
        %v1290 = vpack.c.b16 %v1279, %v1278
        %v1291 = vpack.c.b16 %v1281, %v1280
        %v1292 = vpack.c.b16 %v1283, %v1282
        %v1293 = vpack.c.b16 %v1285, %v1284
        %1302 = vmatprep.subr.bf16.mxu0 0
        %1303 = vmatpush1.bf16.msra.mxu0 %v1286
        %1304 = vmatprep.subr.bf16.mxu0 0
        %1305 = vmatpush1.bf16.msra.mxu0 %v1287
        %1306 = vmatprep.subr.bf16.mxu0 0
        %1307 = vmatpush1.bf16.msra.mxu0 %v1288
        %1308 = vmatprep.subr.bf16.mxu0 0
        %1309 = vmatpush1.bf16.msra.mxu0 %v1289
        %1310 = vmatprep.subr.bf16.mxu0 0
        %1311 = vmatpush1.bf16.msra.mxu0 %v1290
        %1312 = vmatprep.subr.bf16.mxu0 0
        %1313 = vmatpush1.bf16.msra.mxu0 %v1291
        %1314 = vmatprep.subr.bf16.mxu0 0
        %1315 = vmatpush1.bf16.msra.mxu0 %v1292
        %1316 = vmatprep.subr.bf16.mxu0 0
        %1317 = vmatpush1.bf16.msra.mxu0 %v1293
        %1318 = vmatprep.subr.bf16.mxu0 0
        %1319 = vmatpush1.bf16.msra.mxu0 0
        %1320 = vmatprep.subr.bf16.mxu0 0
        %1321 = vmatpush1.bf16.msra.mxu0 0
        %1322 = vmatprep.subr.bf16.mxu0 0
        %1323 = vmatpush1.bf16.msra.mxu0 0
        %1324 = vmatprep.subr.bf16.mxu0 0
        %1325 = vmatpush1.bf16.msra.mxu0 0
        %1326 = vmatprep.subr.bf16.mxu0 0
        %1327 = vmatpush1.bf16.msra.mxu0 0
        %1328 = vmatprep.subr.bf16.mxu0 0
        %1329 = vmatpush1.bf16.msra.mxu0 0
        %1330 = vmatprep.subr.bf16.mxu0 0
        %1331 = vmatpush1.bf16.msra.mxu0 0
        %1332 = vmatprep.subr.bf16.mxu0 0
        %1333 = vmatpush1.bf16.msra.mxu0 0
        %1334 = vmatprep.mubr.bf16.mxu0 0
        %1335 = vmatmul.mubr.bf16.gmra.mrb[0].mxu0 %v1233
        %v1336 = vpop.f32.mrb[0].mxu0
        %v1337 = vadd.f32 0.0, %v1336
        %v1338 = vpop.f32.mrb[0].mxu0
        %v1339 = vpop.f32.mrb[0].mxu0
        %v1340 = vadd.f32 0.0, %v1339
        %v1341 = vpop.f32.mrb[0].mxu0
        %1342 = vmatprep.mubr.bf16.mxu0 0
        %1343 = vmatmul.mubr.bf16.gmra.mrb[0].mxu0 %v1234
        %v1344 = vpop.f32.mrb[0].mxu0
        %v1345 = vadd.f32 0.0, %v1344
        %v1346 = vpop.f32.mrb[0].mxu0
        %v1347 = vpop.f32.mrb[0].mxu0
        %v1348 = vadd.f32 0.0, %v1347
        %v1349 = vpop.f32.mrb[0].mxu0
        %1350 = vmatprep.mubr.bf16.mxu0 0
        %1351 = vmatmul.mubr.bf16.gmra.mrb[0].mxu0 %v1235
        %v1352 = vpop.f32.mrb[0].mxu0
        %v1353 = vadd.f32 0.0, %v1352
        %v1354 = vpop.f32.mrb[0].mxu0
        %v1355 = vpop.f32.mrb[0].mxu0
        %v1356 = vadd.f32 0.0, %v1355
        %v1357 = vpop.f32.mrb[0].mxu0
        %1358 = vmatprep.mubr.bf16.mxu0 0
        %1359 = vmatmul.mubr.bf16.gmra.mrb[0].mxu0 %v1236
        %v1360 = vpop.f32.mrb[0].mxu0
        %v1361 = vadd.f32 0.0, %v1360
        %v1362 = vpop.f32.mrb[0].mxu0
        %v1363 = vpop.f32.mrb[0].mxu0
        %v1364 = vadd.f32 0.0, %v1363
        %v1365 = vpop.f32.mrb[0].mxu0
        %1366 = vdwg.mxu0
        %v1367 = vadd.f32 %v1216, %v1337
        %v1368 = vadd.f32 %v1217, %v1340
        %v1369 = vadd.f32 %v1218, %v1345
        %v1370 = vadd.f32 %v1219, %v1348
        %v1371 = vadd.f32 %v1220, %v1353
        %v1372 = vadd.f32 %v1221, %v1356
        %v1373 = vadd.f32 %v1222, %v1361
        %v1374 = vadd.f32 %v1223, %v1364
        %s1375 = scalar_lea.vmem %s324, 16
        %v1376 = vld [vmem:[%s1375] sm:$0xff]
        %v1377 = vld [vmem:[%s1375 + $0x10] sm:$0xff]
        %v1378 = vld [vmem:[%s1375 + $0x20] sm:$0xff]
        %v1379 = vld [vmem:[%s1375 + $0x30] sm:$0xff]
        %v1380 = vld [vmem:[%s1375 + $0x40] sm:$0xff]
        %v1381 = vld [vmem:[%s1375 + $0x50] sm:$0xff]
        %v1382 = vld [vmem:[%s1375 + $0x60] sm:$0xff]
        %v1383 = vld [vmem:[%s1375 + $0x70] sm:$0xff]
        %v1384 = vpack.c.bf16 %v1377, %v1376
        %v1385 = vpack.c.bf16 %v1379, %v1378
        %v1386 = vpack.c.bf16 %v1381, %v1380
        %v1387 = vpack.c.bf16 %v1383, %v1382
        %s1388 = scalar_lea.vmem [#allocation2], 448
        %v1389 = vld [vmem:[%s1388] sm:$0xf]
        %v1390 = vld [vmem:[%s1388 + $0x4] sm:$0xf]
        %v1391 = vld [vmem:[%s1388 + $0x8] sm:$0xf]
        %v1392 = vld [vmem:[%s1388 + $0xc] sm:$0xf]
        %v1393 = vld [vmem:[%s1388 + $0x10] sm:$0xf]
        %v1394 = vld [vmem:[%s1388 + $0x14] sm:$0xf]
        %v1395 = vld [vmem:[%s1388 + $0x18] sm:$0xf]
        %v1396 = vld [vmem:[%s1388 + $0x1c] sm:$0xf]
        %v1397 = vld [vmem:[%s1388 + $0x20] sm:$0xf]
        %v1398 = vld [vmem:[%s1388 + $0x24] sm:$0xf]
        %v1399 = vld [vmem:[%s1388 + $0x28] sm:$0xf]
        %v1400 = vld [vmem:[%s1388 + $0x2c] sm:$0xf]
        %v1401 = vld [vmem:[%s1388 + $0x30] sm:$0xf]
        %v1402 = vld [vmem:[%s1388 + $0x34] sm:$0xf]
        %v1403 = vld [vmem:[%s1388 + $0x38] sm:$0xf]
        %v1404 = vld [vmem:[%s1388 + $0x3c] sm:$0xf]
        %v1421 = vunpack.c.l.b16 %v1389
        %v1422 = vunpack.c.l.b16 %v1390
        %v1423 = vunpack.c.l.b16 %v1391
        %v1424 = vunpack.c.l.b16 %v1392
        %v1425 = vunpack.c.l.b16 %v1393
        %v1426 = vunpack.c.l.b16 %v1394
        %v1427 = vunpack.c.l.b16 %v1395
        %v1428 = vunpack.c.l.b16 %v1396
        %v1429 = vunpack.c.l.b16 %v1397
        %v1430 = vunpack.c.l.b16 %v1398
        %v1431 = vunpack.c.l.b16 %v1399
        %v1432 = vunpack.c.l.b16 %v1400
        %v1433 = vunpack.c.l.b16 %v1401
        %v1434 = vunpack.c.l.b16 %v1402
        %v1435 = vunpack.c.l.b16 %v1403
        %v1436 = vunpack.c.l.b16 %v1404
        %v1437 = vpack.c.b16 %v1422, %v1421
        %v1438 = vpack.c.b16 %v1424, %v1423
        %v1439 = vpack.c.b16 %v1426, %v1425
        %v1440 = vpack.c.b16 %v1428, %v1427
        %v1441 = vpack.c.b16 %v1430, %v1429
        %v1442 = vpack.c.b16 %v1432, %v1431
        %v1443 = vpack.c.b16 %v1434, %v1433
        %v1444 = vpack.c.b16 %v1436, %v1435
        %1453 = vmatprep.subr.bf16.mxu0 0
        %1454 = vmatpush1.bf16.msra.mxu0 %v1437
        %1455 = vmatprep.subr.bf16.mxu0 0
        %1456 = vmatpush1.bf16.msra.mxu0 %v1438
        %1457 = vmatprep.subr.bf16.mxu0 0
        %1458 = vmatpush1.bf16.msra.mxu0 %v1439
        %1459 = vmatprep.subr.bf16.mxu0 0
        %1460 = vmatpush1.bf16.msra.mxu0 %v1440
        %1461 = vmatprep.subr.bf16.mxu0 0
        %1462 = vmatpush1.bf16.msra.mxu0 %v1441
        %1463 = vmatprep.subr.bf16.mxu0 0
        %1464 = vmatpush1.bf16.msra.mxu0 %v1442
        %1465 = vmatprep.subr.bf16.mxu0 0
        %1466 = vmatpush1.bf16.msra.mxu0 %v1443
        %1467 = vmatprep.subr.bf16.mxu0 0
        %1468 = vmatpush1.bf16.msra.mxu0 %v1444
        %1469 = vmatprep.subr.bf16.mxu0 0
        %1470 = vmatpush1.bf16.msra.mxu0 0
        %1471 = vmatprep.subr.bf16.mxu0 0
        %1472 = vmatpush1.bf16.msra.mxu0 0
        %1473 = vmatprep.subr.bf16.mxu0 0
        %1474 = vmatpush1.bf16.msra.mxu0 0
        %1475 = vmatprep.subr.bf16.mxu0 0
        %1476 = vmatpush1.bf16.msra.mxu0 0
        %1477 = vmatprep.subr.bf16.mxu0 0
        %1478 = vmatpush1.bf16.msra.mxu0 0
        %1479 = vmatprep.subr.bf16.mxu0 0
        %1480 = vmatpush1.bf16.msra.mxu0 0
        %1481 = vmatprep.subr.bf16.mxu0 0
        %1482 = vmatpush1.bf16.msra.mxu0 0
        %1483 = vmatprep.subr.bf16.mxu0 0
        %1484 = vmatpush1.bf16.msra.mxu0 0
        %1485 = vmatprep.mubr.bf16.mxu0 0
        %1486 = vmatmul.mubr.bf16.gmra.mrb[0].mxu0 %v1384
        %v1487 = vpop.f32.mrb[0].mxu0
        %v1488 = vadd.f32 0.0, %v1487
        %v1489 = vpop.f32.mrb[0].mxu0
        %v1490 = vpop.f32.mrb[0].mxu0
        %v1491 = vadd.f32 0.0, %v1490
        %v1492 = vpop.f32.mrb[0].mxu0
        %1493 = vmatprep.mubr.bf16.mxu0 0
        %1494 = vmatmul.mubr.bf16.gmra.mrb[0].mxu0 %v1385
        %v1495 = vpop.f32.mrb[0].mxu0
        %v1496 = vadd.f32 0.0, %v1495
        %v1497 = vpop.f32.mrb[0].mxu0
        %v1498 = vpop.f32.mrb[0].mxu0
        %v1499 = vadd.f32 0.0, %v1498
        %v1500 = vpop.f32.mrb[0].mxu0
        %1501 = vmatprep.mubr.bf16.mxu0 0
        %1502 = vmatmul.mubr.bf16.gmra.mrb[0].mxu0 %v1386
        %v1503 = vpop.f32.mrb[0].mxu0
        %v1504 = vadd.f32 0.0, %v1503
        %v1505 = vpop.f32.mrb[0].mxu0
        %v1506 = vpop.f32.mrb[0].mxu0
        %v1507 = vadd.f32 0.0, %v1506
        %v1508 = vpop.f32.mrb[0].mxu0
        %1509 = vmatprep.mubr.bf16.mxu0 0
        %1510 = vmatmul.mubr.bf16.gmra.mrb[0].mxu0 %v1387
        %v1511 = vpop.f32.mrb[0].mxu0
        %v1512 = vadd.f32 0.0, %v1511
        %v1513 = vpop.f32.mrb[0].mxu0
        %v1514 = vpop.f32.mrb[0].mxu0
        %v1515 = vadd.f32 0.0, %v1514
        %v1516 = vpop.f32.mrb[0].mxu0
        %1517 = vdwg.mxu0
        %v1518 = vadd.f32 %v1367, %v1488
        %v1519 = vadd.f32 %v1368, %v1491
        %v1520 = vadd.f32 %v1369, %v1496
        %v1521 = vadd.f32 %v1370, %v1499
        %v1522 = vadd.f32 %v1371, %v1504
        %v1523 = vadd.f32 %v1372, %v1507
        %v1524 = vadd.f32 %v1373, %v1512
        %v1525 = vadd.f32 %v1374, %v1515
        %v1526 = vld [vmem:[%s1224 + $0x1] sm:$0xff]
        %v1527 = vld [vmem:[%s1224 + $0x11] sm:$0xff]
        %v1528 = vld [vmem:[%s1224 + $0x21] sm:$0xff]
        %v1529 = vld [vmem:[%s1224 + $0x31] sm:$0xff]
        %v1530 = vld [vmem:[%s1224 + $0x41] sm:$0xff]
        %v1531 = vld [vmem:[%s1224 + $0x51] sm:$0xff]
        %v1532 = vld [vmem:[%s1224 + $0x61] sm:$0xff]
        %v1533 = vld [vmem:[%s1224 + $0x71] sm:$0xff]
        %v1534 = vpack.c.bf16 %v1527, %v1526
        %v1535 = vpack.c.bf16 %v1529, %v1528
        %v1536 = vpack.c.bf16 %v1531, %v1530
        %v1537 = vpack.c.bf16 %v1533, %v1532
        %s1538 = scalar_lea.vmem [#allocation2], 512
        %v1539 = vld [vmem:[%s1538] sm:$0xf]
        %v1540 = vld [vmem:[%s1538 + $0x4] sm:$0xf]
        %v1541 = vld [vmem:[%s1538 + $0x8] sm:$0xf]
        %v1542 = vld [vmem:[%s1538 + $0xc] sm:$0xf]
        %v1543 = vld [vmem:[%s1538 + $0x10] sm:$0xf]
        %v1544 = vld [vmem:[%s1538 + $0x14] sm:$0xf]
        %v1545 = vld [vmem:[%s1538 + $0x18] sm:$0xf]
        %v1546 = vld [vmem:[%s1538 + $0x1c] sm:$0xf]
        %v1547 = vld [vmem:[%s1538 + $0x20] sm:$0xf]
        %v1548 = vld [vmem:[%s1538 + $0x24] sm:$0xf]
        %v1549 = vld [vmem:[%s1538 + $0x28] sm:$0xf]
        %v1550 = vld [vmem:[%s1538 + $0x2c] sm:$0xf]
        %v1551 = vld [vmem:[%s1538 + $0x30] sm:$0xf]
        %v1552 = vld [vmem:[%s1538 + $0x34] sm:$0xf]
        %v1553 = vld [vmem:[%s1538 + $0x38] sm:$0xf]
        %v1554 = vld [vmem:[%s1538 + $0x3c] sm:$0xf]
        %v1571 = vunpack.c.l.b16 %v1539
        %v1572 = vunpack.c.l.b16 %v1540
        %v1573 = vunpack.c.l.b16 %v1541
        %v1574 = vunpack.c.l.b16 %v1542
        %v1575 = vunpack.c.l.b16 %v1543
        %v1576 = vunpack.c.l.b16 %v1544
        %v1577 = vunpack.c.l.b16 %v1545
        %v1578 = vunpack.c.l.b16 %v1546
        %v1579 = vunpack.c.l.b16 %v1547
        %v1580 = vunpack.c.l.b16 %v1548
        %v1581 = vunpack.c.l.b16 %v1549
        %v1582 = vunpack.c.l.b16 %v1550
        %v1583 = vunpack.c.l.b16 %v1551
        %v1584 = vunpack.c.l.b16 %v1552
        %v1585 = vunpack.c.l.b16 %v1553
        %v1586 = vunpack.c.l.b16 %v1554
        %v1587 = vpack.c.b16 %v1572, %v1571
        %v1588 = vpack.c.b16 %v1574, %v1573
        %v1589 = vpack.c.b16 %v1576, %v1575
        %v1590 = vpack.c.b16 %v1578, %v1577
        %v1591 = vpack.c.b16 %v1580, %v1579
        %v1592 = vpack.c.b16 %v1582, %v1581
        %v1593 = vpack.c.b16 %v1584, %v1583
        %v1594 = vpack.c.b16 %v1586, %v1585
        %1603 = vmatprep.subr.bf16.mxu0 0
        %1604 = vmatpush1.bf16.msra.mxu0 %v1587
        %1605 = vmatprep.subr.bf16.mxu0 0
        %1606 = vmatpush1.bf16.msra.mxu0 %v1588
        %1607 = vmatprep.subr.bf16.mxu0 0
        %1608 = vmatpush1.bf16.msra.mxu0 %v1589
        %1609 = vmatprep.subr.bf16.mxu0 0
        %1610 = vmatpush1.bf16.msra.mxu0 %v1590
        %1611 = vmatprep.subr.bf16.mxu0 0
        %1612 = vmatpush1.bf16.msra.mxu0 %v1591
        %1613 = vmatprep.subr.bf16.mxu0 0
        %1614 = vmatpush1.bf16.msra.mxu0 %v1592
        %1615 = vmatprep.subr.bf16.mxu0 0
        %1616 = vmatpush1.bf16.msra.mxu0 %v1593
        %1617 = vmatprep.subr.bf16.mxu0 0
        %1618 = vmatpush1.bf16.msra.mxu0 %v1594
        %1619 = vmatprep.subr.bf16.mxu0 0
        %1620 = vmatpush1.bf16.msra.mxu0 0
        %1621 = vmatprep.subr.bf16.mxu0 0
        %1622 = vmatpush1.bf16.msra.mxu0 0
        %1623 = vmatprep.subr.bf16.mxu0 0
        %1624 = vmatpush1.bf16.msra.mxu0 0
        %1625 = vmatprep.subr.bf16.mxu0 0
        %1626 = vmatpush1.bf16.msra.mxu0 0
        %1627 = vmatprep.subr.bf16.mxu0 0
        %1628 = vmatpush1.bf16.msra.mxu0 0
        %1629 = vmatprep.subr.bf16.mxu0 0
        %1630 = vmatpush1.bf16.msra.mxu0 0
        %1631 = vmatprep.subr.bf16.mxu0 0
        %1632 = vmatpush1.bf16.msra.mxu0 0
        %1633 = vmatprep.subr.bf16.mxu0 0
        %1634 = vmatpush1.bf16.msra.mxu0 0
        %1635 = vmatprep.mubr.bf16.mxu0 0
        %1636 = vmatmul.mubr.bf16.gmra.mrb[0].mxu0 %v1534
        %v1637 = vpop.f32.mrb[0].mxu0
        %v1638 = vadd.f32 0.0, %v1637
        %v1639 = vpop.f32.mrb[0].mxu0
        %v1640 = vpop.f32.mrb[0].mxu0
        %v1641 = vadd.f32 0.0, %v1640
        %v1642 = vpop.f32.mrb[0].mxu0
        %1643 = vmatprep.mubr.bf16.mxu0 0
        %1644 = vmatmul.mubr.bf16.gmra.mrb[0].mxu0 %v1535
        %v1645 = vpop.f32.mrb[0].mxu0
        %v1646 = vadd.f32 0.0, %v1645
        %v1647 = vpop.f32.mrb[0].mxu0
        %v1648 = vpop.f32.mrb[0].mxu0
        %v1649 = vadd.f32 0.0, %v1648
        %v1650 = vpop.f32.mrb[0].mxu0
        %1651 = vmatprep.mubr.bf16.mxu0 0
        %1652 = vmatmul.mubr.bf16.gmra.mrb[0].mxu0 %v1536
        %v1653 = vpop.f32.mrb[0].mxu0
        %v1654 = vadd.f32 0.0, %v1653
        %v1655 = vpop.f32.mrb[0].mxu0
        %v1656 = vpop.f32.mrb[0].mxu0
        %v1657 = vadd.f32 0.0, %v1656
        %v1658 = vpop.f32.mrb[0].mxu0
        %1659 = vmatprep.mubr.bf16.mxu0 0
        %1660 = vmatmul.mubr.bf16.gmra.mrb[0].mxu0 %v1537
        %v1661 = vpop.f32.mrb[0].mxu0
        %v1662 = vadd.f32 0.0, %v1661
        %v1663 = vpop.f32.mrb[0].mxu0
        %v1664 = vpop.f32.mrb[0].mxu0
        %v1665 = vadd.f32 0.0, %v1664
        %v1666 = vpop.f32.mrb[0].mxu0
        %1667 = vdwg.mxu0
        %v1668 = vadd.f32 %v1518, %v1638
        %v1669 = vadd.f32 %v1519, %v1641
        %v1670 = vadd.f32 %v1520, %v1646
        %v1671 = vadd.f32 %v1521, %v1649
        %v1672 = vadd.f32 %v1522, %v1654
        %v1673 = vadd.f32 %v1523, %v1657
        %v1674 = vadd.f32 %v1524, %v1662
        %v1675 = vadd.f32 %v1525, %v1665
        %v1676 = vld [vmem:[#allocation4] sm:$0x1]
        %v1678 = vlaneseq
        %v1679 = vshrl.u32 %v1678, 7
        %v1680 = vsub.s32 0, %v1679
        %v1681 = vrot.slane %v1676, %v1680
        %v1683 = vadd.f32 %v1668, %v1681
        %v1684 = vadd.f32 %v1669, %v1681
        %v1685 = vadd.f32 %v1670, %v1681
        %v1686 = vadd.f32 %v1671, %v1681
        %v1687 = vadd.f32 %v1672, %v1681
        %v1688 = vadd.f32 %v1673, %v1681
        %v1689 = vadd.f32 %v1674, %v1681
        %v1690 = vadd.f32 %v1675, %v1681
        %v1691 = vmax.f32 %v1683, 0.0
        %v1692 = vmax.f32 %v1684, 0.0
        %v1693 = vmax.f32 %v1685, 0.0
        %v1694 = vmax.f32 %v1686, 0.0
        %v1695 = vmax.f32 %v1687, 0.0
        %v1696 = vmax.f32 %v1688, 0.0
        %v1697 = vmax.f32 %v1689, 0.0
        %v1698 = vmax.f32 %v1690, 0.0
        %1699 = vst [vmem:[%s339] sm:$0xff] %v1691
        %1700 = vst [vmem:[%s339 + $0x8] sm:$0xff] %v1692
        %1701 = vst [vmem:[%s339 + $0x10] sm:$0xff] %v1693
        %1702 = vst [vmem:[%s339 + $0x18] sm:$0xff] %v1694
        %1703 = vst [vmem:[%s339 + $0x20] sm:$0xff] %v1695
        %1704 = vst [vmem:[%s339 + $0x28] sm:$0xff] %v1696
        %1705 = vst [vmem:[%s339 + $0x30] sm:$0xff] %v1697
        %1706 = vst [vmem:[%s339 + $0x38] sm:$0xff] %v1698
        %p1707 = scmp.lt.s32.totalorder %s19, 1
        %s1708 = scalar_select %p1707, %s19, 1
        %s1709 = smul.addr %s1708, 8
        %s1710 = smul.addr %s1709, 8
        %s1711 = scalar_lea.vmem %s6, %s1710
        // Predicated region
        $region53: #{custom_cnn_forward.4} parent=43 // pred_check
          %p1712 = pneg %p183
        $region54: #{custom_cnn_forward.4} parent=43 // pred_check_branch
          %1714 = sbr.rel (%p1712) target = $region56
        $region55: #{custom_cnn_forward.4} parent=43 // pred_region
          _
        $region56: #{custom_cnn_forward.4} parent=43 // pred_fallthru
          _
      $region44: #{custom_cnn_forward.4} parent=5 // pred_fallthru
        _
      %p1715 = scmp.le.s32.totalorder 2, %s14
      // Predicated region
      $region57: #{custom_cnn_forward.4} parent=5 // pred_check
        %p1716 = pneg %p1715
      $region58: #{custom_cnn_forward.4} parent=5 // pred_check_branch
        %1718 = sbr.rel (%p1716) target = $region60
      $region59: #{custom_cnn_forward.4} parent=5 // pred_region
        %s1719 = ssub.s32 %s14, 2
        // Predicated region
        $region61: #{custom_cnn_forward.4} parent=59 // pred_check
          %p1720 = pneg %p189
        $region62: #{custom_cnn_forward.4} parent=59 // pred_check_branch
          %1722 = sbr.rel (%p1720) target = $region64
        $region63: #{custom_cnn_forward.4} parent=59 // pred_region
          %p1723 = scmp.lt.s32.totalorder %s20, 1
          %s1724 = scalar_select %p1723, %s20, 1
          %s1725 = smul.addr %s1724, 8
          %s1726 = smul.addr %s1725, 8
          %s1727 = scalar_lea.vmem %s6, %s1726
        $region64: #{custom_cnn_forward.4} parent=59 // pred_fallthru
          _
      $region60: #{custom_cnn_forward.4} parent=5 // pred_fallthru
        _
    $region6: #{custom_cnn_forward.4} parent=1 // loop_footer
      %s18 = sadd.s32 1, %s14
    $region7: #{custom_cnn_forward.4} parent=1 // loop_footer_branch
      %13 = sbr.rel target = $region3
    $region8: #{custom_cnn_forward.4} parent=1 // loop_exit
      _
    %1728 = vsyncpa [#allocation3], 1
    %s1729 = scalar_lea.sflag [#allocation3], 1
    %1730 = vsyncpa %s1729, 1
    %1731 = vsyncpa [#allocation5], 1

// kernel: custom_cnn_forward.3
$region0: #{custom_cnn_forward.3}
  #allocation0 [shape = 'u32[]', space=smem, size = 0x4, offset = 0x4, fixed_abs, tag = 'smem constant byte address 0x4 - core index']
  #allocation1 [shape = 'u32[144,128]{1,0:T(1,128)}', space=vmem, size = 0x12000, scoped, tag = 'internal scratch']
  %s0 = inlined_call_operand.vmem [shape: f32[2,18,18,8], index: 0, kind: input, shape index: {}]
  %s1 = inlined_call_operand.hbm [shape: bf16[9,8,128], index: 1, kind: input, shape index: {}]
  %s2 = inlined_call_operand.hbm [shape: f32[1,128], index: 2, kind: input, shape index: {}]
  %s3 = inlined_call_operand.vmem [shape: f32[2,256,128], index: 3, kind: output, shape index: {}]
  %s4 = sld [smem:[#allocation0]]
  $region53: #{custom_cnn_forward.3} parent=0
    _
  %s6 = ssub.s32 1, %s4
  %s7 = scalar_select 0, %s6, %s4
  $region1: #{custom_cnn_forward.3} parent=0
    #allocation2 [shape = 'u8[18432]{0}', space=vmem, size = 0x4800, scoped, tag = 'input window, operand 1, single buffered']
    #allocation3 [shape = 's32[2]{0}', space=sflag, size = 0x8, scoped, tag = 'scoped memory for custom_cnn_forward.3']
    #allocation4 [shape = 'u8[512]{0}', space=vmem, size = 0x400, scoped, tag = 'input window, operand 2, single buffered']
    #allocation5 [shape = 's32[1]{0}', space=sflag, size = 0x4, scoped, tag = 'scoped memory for custom_cnn_forward.3']
    %8 = vsyncpa [#allocation3], 0
    %9 = vsyncpa [#allocation5], 0
    loop: start=0, step=1, limit=4
    $region2: #{custom_cnn_forward.3} parent=1 // loop_pre_header
      _
    $region3: #{custom_cnn_forward.3} parent=1 // loop_header
      %s11 = sphi 0, %s15
      %p12 = scmp.ge.s32.totalorder %s11, 4
      %s21 = sphi 0, %s23
      %s24 = sphi 0, %s21
      %s25 = sphi 0, %s24
      %s41 = sphi 0, %s25
      %s45 = sphi 0, %s45
      %s47 = sphi 0, %s45
      %s48 = sphi 0, %s47
      %s62 = sphi 0, %s48
      %s66 = sphi 0, %s66
      %s68 = sphi 0, %s66
      %s69 = sphi 0, %s68
      %s83 = sphi 0, %s69
      %s89 = sphi 0, %s91
      %s92 = sphi 0, %s89
      %s93 = sphi 0, %s92
      %s109 = sphi 0, %s93
    $region4: #{custom_cnn_forward.3} parent=1 // loop_header_branch
      %14 = sbr.rel (%p12) target = $region8
    $region5: #{custom_cnn_forward.3} parent=1 // loop_body
      %s16 = ssub.s32 %s11, 1
      %s17 = ssub.s32 %s11, 2
      %s18 = sadd.s32 %s11, 1
      %s19 = ssub.s32 %s11, %s18
      %p20 = scmp.eq.s32.totalorder %s19, 0
      %s22 = sadd.s32 %s21, 1
      %s23 = scalar_select %p20, %s21, %s22
      %p26 = pneg %p20
      %p27 = scmp.eq.s32.totalorder %s11, 1
      %p28 = por %p26, %p27
      %p29 = scmp.ne.s32.totalorder %s21, %s24
      %p30 = scmp.eq.s32.totalorder %s11, 0
      %p31 = por %p29, %p30
      %p32 = scmp.ne.s32.totalorder %s21, %s24
      %p33 = scmp.eq.s32.totalorder %s16, 1
      %p34 = por %p32, %p33
      %p35 = scmp.ne.s32.totalorder %s24, %s25
      %p36 = scmp.eq.s32.totalorder %s16, 0
      %p37 = por %p35, %p36
      %p38 = scmp.ne.s32.totalorder %s24, %s25
      %p39 = scmp.eq.s32.totalorder %s17, 1
      %p40 = por %p38, %p39
      %p42 = scmp.ne.s32.totalorder %s25, %s41
      %p43 = scmp.eq.s32.totalorder %s17, 0
      %p44 = por %p42, %p43
      %s46 = sadd.s32 %s45, 1
      %p49 = scmp.eq.s32.totalorder %s11, 1
      %p50 = scmp.ne.s32.totalorder %s45, %s47
      %p51 = scmp.eq.s32.totalorder %s11, 0
      %p52 = por %p50, %p51
      %p53 = scmp.ne.s32.totalorder %s45, %s47
      %p54 = scmp.eq.s32.totalorder %s16, 1
      %p55 = por %p53, %p54
      %p56 = scmp.ne.s32.totalorder %s47, %s48
      %p57 = scmp.eq.s32.totalorder %s16, 0
      %p58 = por %p56, %p57
      %p59 = scmp.ne.s32.totalorder %s47, %s48
      %p60 = scmp.eq.s32.totalorder %s17, 1
      %p61 = por %p59, %p60
      %p63 = scmp.ne.s32.totalorder %s48, %s62
      %p64 = scmp.eq.s32.totalorder %s17, 0
      %p65 = por %p63, %p64
      %s67 = sadd.s32 %s66, 1
      %p70 = scmp.eq.s32.totalorder %s11, 1
      %p71 = scmp.ne.s32.totalorder %s66, %s68
      %p72 = scmp.eq.s32.totalorder %s11, 0
      %p73 = por %p71, %p72
      %p74 = scmp.ne.s32.totalorder %s66, %s68
      %p75 = scmp.eq.s32.totalorder %s16, 1
      %p76 = por %p74, %p75
      %p77 = scmp.ne.s32.totalorder %s68, %s69
      %p78 = scmp.eq.s32.totalorder %s16, 0
      %p79 = por %p77, %p78
      %p80 = scmp.ne.s32.totalorder %s68, %s69
      %p81 = scmp.eq.s32.totalorder %s17, 1
      %p82 = por %p80, %p81
      %p84 = scmp.ne.s32.totalorder %s69, %s83
      %p85 = scmp.eq.s32.totalorder %s17, 0
      %p86 = por %p84, %p85
      %s87 = ssub.s32 %s11, %s18
      %p88 = scmp.eq.s32.totalorder %s87, 0
      %s90 = sadd.s32 %s89, 1
      %s91 = scalar_select %p88, %s89, %s90
      %p94 = pneg %p88
      %p95 = scmp.eq.s32.totalorder %s11, 1
      %p96 = por %p94, %p95
      %p97 = scmp.ne.s32.totalorder %s89, %s92
      %p98 = scmp.eq.s32.totalorder %s11, 0
      %p99 = por %p97, %p98
      %p100 = scmp.ne.s32.totalorder %s89, %s92
      %p101 = scmp.eq.s32.totalorder %s16, 1
      %p102 = por %p100, %p101
      %p103 = scmp.ne.s32.totalorder %s92, %s93
      %p104 = scmp.eq.s32.totalorder %s16, 0
      %p105 = por %p103, %p104
      %p106 = scmp.ne.s32.totalorder %s92, %s93
      %p107 = scmp.eq.s32.totalorder %s17, 1
      %p108 = por %p106, %p107
      %p110 = scmp.ne.s32.totalorder %s93, %s109
      %p111 = scmp.eq.s32.totalorder %s17, 0
      %p112 = por %p110, %p111
      %p113 = scmp.le.s32.totalorder 1, %s11
      %p114 = scmp.lt.s32.totalorder %s11, 3
      %p115 = pnand %p113, %p114
      %p116 = pneg %p115
      // Predicated region
      $region9: #{custom_cnn_forward.3} parent=5 // pred_check
        _
      $region10: #{custom_cnn_forward.3} parent=5 // pred_check_branch
        %118 = sbr.rel (%p115) target = $region12
      $region11: #{custom_cnn_forward.3} parent=5 // pred_region
        %s119 = ssub.s32 %s11, 1
        // Predicated region
        $region13: #{custom_cnn_forward.3} parent=11 // pred_check
          %p120 = pneg %p58
        $region14: #{custom_cnn_forward.3} parent=11 // pred_check_branch
          %122 = sbr.rel (%p120) target = $region16
        $region15: #{custom_cnn_forward.3} parent=11 // pred_region
          %s124 = ssub.s32 576, 576
          %125 = vsyncadd [#allocation3], %s124
          %s126 = sshll.u32 [#allocation2], 4
          %s127 = int_to_ptr.vmem [resolvable:$true] %s126
          %132 = dma.hbm_to_vmem [thread:$0]  %s1, 576, %s127, [#allocation3], 64, 64, 4
        $region16: #{custom_cnn_forward.3} parent=11 // pred_fallthru
          _
        // Predicated region
        $region17: #{custom_cnn_forward.3} parent=11 // pred_check
          %p133 = pneg %p79
        $region18: #{custom_cnn_forward.3} parent=11 // pred_check_branch
          %135 = sbr.rel (%p133) target = $region20
        $region19: #{custom_cnn_forward.3} parent=11 // pred_region
          %s137 = ssub.s32 16, 16
          %138 = vsyncadd [#allocation5], %s137
          %s140 = sshll.u32 [#allocation4], 4
          %s141 = int_to_ptr.vmem [resolvable:$true] %s140
          %143 = dma.hbm_to_vmem [thread:$0]  %s2, 16, %s141, [#allocation5]
        $region20: #{custom_cnn_forward.3} parent=11 // pred_fallthru
          _
      $region12: #{custom_cnn_forward.3} parent=5 // pred_fallthru
        _
      %p144 = scmp.lt.s32.totalorder %s11, 2
      // Predicated region
      $region21: #{custom_cnn_forward.3} parent=5 // pred_check
        %p145 = pneg %p144
      $region22: #{custom_cnn_forward.3} parent=5 // pred_check_branch
        %147 = sbr.rel (%p145) target = $region24
      $region23: #{custom_cnn_forward.3} parent=5 // pred_region
        // Predicated region
        $region25: #{custom_cnn_forward.3} parent=23 // pred_check
          %p148 = pneg %p31
        $region26: #{custom_cnn_forward.3} parent=23 // pred_check_branch
          %150 = sbr.rel (%p148) target = $region28
        $region27: #{custom_cnn_forward.3} parent=23 // pred_region
          %p151 = scmp.lt.s32.totalorder %s11, 1
          %s152 = scalar_select %p151, %s11, 1
          %s153 = smul.addr %s152, 54
          %s154 = smul.addr %s153, 8
          %s155 = scalar_lea.vmem %s0, %s154
        $region28: #{custom_cnn_forward.3} parent=23 // pred_fallthru
          _
      $region24: #{custom_cnn_forward.3} parent=5 // pred_fallthru
        _
      %p156 = scmp.le.s32.totalorder 1, %s11
      %p157 = scmp.lt.s32.totalorder %s11, 3
      %p158 = pnand %p156, %p157
      %p159 = pneg %p158
      // Predicated region
      $region29: #{custom_cnn_forward.3} parent=5 // pred_check
        _
      $region30: #{custom_cnn_forward.3} parent=5 // pred_check_branch
        %161 = sbr.rel (%p158) target = $region32
      $region31: #{custom_cnn_forward.3} parent=5 // pred_region
        %s162 = ssub.s32 %s11, 1
        // Predicated region
        $region33: #{custom_cnn_forward.3} parent=31 // pred_check
          %p163 = pneg %p58
        $region34: #{custom_cnn_forward.3} parent=31 // pred_check_branch
          %165 = sbr.rel (%p163) target = $region36
        $region35: #{custom_cnn_forward.3} parent=31 // pred_region
          %166 = dma.done [#allocation3], 576
        $region36: #{custom_cnn_forward.3} parent=31 // pred_fallthru
          _
        // Predicated region
        $region37: #{custom_cnn_forward.3} parent=31 // pred_check
          %p167 = pneg %p79
        $region38: #{custom_cnn_forward.3} parent=31 // pred_check_branch
          %169 = sbr.rel (%p167) target = $region40
        $region39: #{custom_cnn_forward.3} parent=31 // pred_region
          %170 = dma.done [#allocation5], 16
        $region40: #{custom_cnn_forward.3} parent=31 // pred_fallthru
          _
        %p171 = scmp.lt.s32.totalorder %s16, 1
        %s172 = scalar_select %p171, %s16, 1
        %s173 = smul.addr %s172, 54
        %s174 = smul.addr %s173, 8
        %s175 = scalar_lea.vmem %s0, %s174
        %p176 = pneg %p37
        %p177 = pneg %p34
        %p178 = pneg %p58
        %p179 = pneg %p55
        %p180 = pneg %p79
        %p181 = pneg %p76
        %p182 = pneg %p105
        %p183 = pneg %p102
        %p184 = scmp.lt.s32.totalorder %s16, 1
        %s185 = scalar_select %p184, %s16, 1
        %s186 = smul.addr %s185, 32
        %s187 = smul.addr %s186, 8
        %s188 = scalar_lea.vmem %s3, %s187
        %p189 = scmp.lt.s32.totalorder %s16, 1
        %s190 = scalar_select %p189, %s16, 1
        %s191 = smul.addr %s190, 54
        %s192 = smul.addr %s191, 8
        %s193 = scalar_lea.vmem %s0, %s192
        %p194 = scmp.lt.s32.totalorder %s16, 1
        %s195 = scalar_select %p194, %s16, 1
        %s196 = smul.addr %s195, 32
        %s197 = smul.addr %s196, 8
        %s198 = scalar_lea.vmem %s3, %s197
        %v200 = vld [vmem:[%s193] sm:$0xff]
        %v201 = vld [vmem:[%s193 + $0x8] sm:$0xff]
        %v202 = vld [vmem:[%s193 + $0x18] sm:$0xff]
        %v203 = vld [vmem:[%s193 + $0x20] sm:$0xff]
        %v204 = vld [vmem:[%s193 + $0x30] sm:$0xff]
        %v205 = vld [vmem:[%s193 + $0x38] sm:$0xff]
        %v206 = vld [vmem:[%s193 + $0x48] sm:$0xff]
        %v207 = vld [vmem:[%s193 + $0x50] sm:$0xff]
        %v208 = vld [vmem:[%s193 + $0x60] sm:$0xff]
        %v209 = vld [vmem:[%s193 + $0x68] sm:$0xff]
        %v210 = vld [vmem:[%s193 + $0x78] sm:$0xff]
        %v211 = vld [vmem:[%s193 + $0x80] sm:$0xff]
        %v212 = vld [vmem:[%s193 + $0x90] sm:$0xff]
        %v213 = vld [vmem:[%s193 + $0x98] sm:$0xff]
        %v214 = vld [vmem:[%s193 + $0xa8] sm:$0xff]
        %v215 = vld [vmem:[%s193 + $0xb0] sm:$0xff]
        %v216 = vld [vmem:[%s193 + $0xc0] sm:$0xff]
        %v217 = vld [vmem:[%s193 + $0xc8] sm:$0xff]
        %v218 = vld [vmem:[%s193 + $0xd8] sm:$0xff]
        %v219 = vld [vmem:[%s193 + $0xe0] sm:$0xff]
        %v220 = vld [vmem:[%s193 + $0xf0] sm:$0xff]
        %v221 = vld [vmem:[%s193 + $0xf8] sm:$0xff]
        %v222 = vld [vmem:[%s193 + $0x108] sm:$0xff]
        %v223 = vld [vmem:[%s193 + $0x110] sm:$0xff]
        %v224 = vld [vmem:[%s193 + $0x120] sm:$0xff]
        %v225 = vld [vmem:[%s193 + $0x128] sm:$0xff]
        %v226 = vld [vmem:[%s193 + $0x138] sm:$0xff]
        %v227 = vld [vmem:[%s193 + $0x140] sm:$0xff]
        %v228 = vld [vmem:[%s193 + $0x150] sm:$0xff]
        %v229 = vld [vmem:[%s193 + $0x158] sm:$0xff]
        %v230 = vld [vmem:[%s193 + $0x168] sm:$0xff]
        %v231 = vld [vmem:[%s193 + $0x170] sm:$0xff]
        %v232 = vpack.c.bf16 %v201, %v200
        %v233 = vpack.c.bf16 %v203, %v202
        %v234 = vpack.c.bf16 %v205, %v204
        %v235 = vpack.c.bf16 %v207, %v206
        %v236 = vpack.c.bf16 %v209, %v208
        %v237 = vpack.c.bf16 %v211, %v210
        %v238 = vpack.c.bf16 %v213, %v212
        %v239 = vpack.c.bf16 %v215, %v214
        %v240 = vpack.c.bf16 %v217, %v216
        %v241 = vpack.c.bf16 %v219, %v218
        %v242 = vpack.c.bf16 %v221, %v220
        %v243 = vpack.c.bf16 %v223, %v222
        %v244 = vpack.c.bf16 %v225, %v224
        %v245 = vpack.c.bf16 %v227, %v226
        %v246 = vpack.c.bf16 %v229, %v228
        %v247 = vpack.c.bf16 %v231, %v230
        %v248 = vld [vmem:[#allocation2] sm:$0xf]
        %v249 = vld [vmem:[%s193 + $0x1] sm:$0xff]
        %v250 = vld [vmem:[%s193 + $0x9] sm:$0xff]
        %v251 = vld [vmem:[%s193 + $0x19] sm:$0xff]
        %v252 = vld [vmem:[%s193 + $0x21] sm:$0xff]
        %v253 = vld [vmem:[%s193 + $0x31] sm:$0xff]
        %v254 = vld [vmem:[%s193 + $0x39] sm:$0xff]
        %v255 = vld [vmem:[%s193 + $0x49] sm:$0xff]
        %v256 = vld [vmem:[%s193 + $0x51] sm:$0xff]
        %v257 = vld [vmem:[%s193 + $0x61] sm:$0xff]
        %v258 = vld [vmem:[%s193 + $0x69] sm:$0xff]
        %v259 = vld [vmem:[%s193 + $0x79] sm:$0xff]
        %v260 = vld [vmem:[%s193 + $0x81] sm:$0xff]
        %v261 = vld [vmem:[%s193 + $0x91] sm:$0xff]
        %v262 = vld [vmem:[%s193 + $0x99] sm:$0xff]
        %v263 = vld [vmem:[%s193 + $0xa9] sm:$0xff]
        %v264 = vld [vmem:[%s193 + $0xb1] sm:$0xff]
        %v265 = vld [vmem:[%s193 + $0xc1] sm:$0xff]
        %v266 = vld [vmem:[%s193 + $0xc9] sm:$0xff]
        %v267 = vld [vmem:[%s193 + $0xd9] sm:$0xff]
        %v268 = vld [vmem:[%s193 + $0xe1] sm:$0xff]
        %v269 = vld [vmem:[%s193 + $0xf1] sm:$0xff]
        %v270 = vld [vmem:[%s193 + $0xf9] sm:$0xff]
        %v271 = vld [vmem:[%s193 + $0x109] sm:$0xff]
        %v272 = vld [vmem:[%s193 + $0x111] sm:$0xff]
        %v273 = vld [vmem:[%s193 + $0x121] sm:$0xff]
        %v274 = vld [vmem:[%s193 + $0x129] sm:$0xff]
        %v275 = vld [vmem:[%s193 + $0x139] sm:$0xff]
        %v276 = vld [vmem:[%s193 + $0x141] sm:$0xff]
        %v277 = vld [vmem:[%s193 + $0x151] sm:$0xff]
        %v278 = vld [vmem:[%s193 + $0x159] sm:$0xff]
        %v279 = vld [vmem:[%s193 + $0x169] sm:$0xff]
        %v280 = vld [vmem:[%s193 + $0x171] sm:$0xff]
        %v281 = vpack.c.bf16 %v250, %v249
        %v282 = vpack.c.bf16 %v252, %v251
        %v283 = vpack.c.bf16 %v254, %v253
        %v284 = vpack.c.bf16 %v256, %v255
        %v285 = vpack.c.bf16 %v258, %v257
        %v286 = vpack.c.bf16 %v260, %v259
        %v287 = vpack.c.bf16 %v262, %v261
        %v288 = vpack.c.bf16 %v264, %v263
        %v289 = vpack.c.bf16 %v266, %v265
        %v290 = vpack.c.bf16 %v268, %v267
        %v291 = vpack.c.bf16 %v270, %v269
        %v292 = vpack.c.bf16 %v272, %v271
        %v293 = vpack.c.bf16 %v274, %v273
        %v294 = vpack.c.bf16 %v276, %v275
        %v295 = vpack.c.bf16 %v278, %v277
        %v296 = vpack.c.bf16 %v280, %v279
        %s297 = scalar_lea.vmem [#allocation2], 4
        %v298 = vld [vmem:[%s297] sm:$0xf]
        %vm299 = vcmask 64512
        %v301 = vsel %vm299, %v281, 0
        %v304 = vsel %vm299, %v282, 0
        %v307 = vsel %vm299, %v283, 0
        %v310 = vsel %vm299, %v284, 0
        %v313 = vsel %vm299, %v285, 0
        %v316 = vsel %vm299, %v286, 0
        %v319 = vsel %vm299, %v287, 0
        %v322 = vsel %vm299, %v288, 0
        %v325 = vsel %vm299, %v289, 0
        %v328 = vsel %vm299, %v290, 0
        %v331 = vsel %vm299, %v291, 0
        %v334 = vsel %vm299, %v292, 0
        %v337 = vsel %vm299, %v293, 0
        %v340 = vsel %vm299, %v294, 0
        %v343 = vsel %vm299, %v295, 0
        %v346 = vsel %vm299, %v296, 0
        %vm348 = vcmask 1043456
        %v350 = vsel %vm348, %v298, 0
        %352 = vmatprep.subr.bf16.mxu0 0
        %353 = vmatpush1.bf16.msra.mxu0 %v350
        %354 = vmatprep.subr.bf16.mxu0 0
        %355 = vmatpush1.bf16.msra.mxu0 0
        %356 = vmatprep.subr.bf16.mxu0 0
        %357 = vmatpush1.bf16.msra.mxu0 0
        %358 = vmatprep.subr.bf16.mxu0 0
        %359 = vmatpush1.bf16.msra.mxu0 0
        %360 = vmatprep.subr.bf16.mxu0 0
        %361 = vmatpush1.bf16.msra.mxu0 0
        %362 = vmatprep.subr.bf16.mxu0 0
        %363 = vmatpush1.bf16.msra.mxu0 0
        %364 = vmatprep.subr.bf16.mxu0 0
        %365 = vmatpush1.bf16.msra.mxu0 0
        %366 = vmatprep.subr.bf16.mxu0 0
        %367 = vmatpush1.bf16.msra.mxu0 0
        %368 = vmatprep.subr.bf16.mxu0 0
        %369 = vmatpush1.bf16.msra.mxu0 0
        %370 = vmatprep.subr.bf16.mxu0 0
        %371 = vmatpush1.bf16.msra.mxu0 0
        %372 = vmatprep.subr.bf16.mxu0 0
        %373 = vmatpush1.bf16.msra.mxu0 0
        %374 = vmatprep.subr.bf16.mxu0 0
        %375 = vmatpush1.bf16.msra.mxu0 0
        %376 = vmatprep.subr.bf16.mxu0 0
        %377 = vmatpush1.bf16.msra.mxu0 0
        %378 = vmatprep.subr.bf16.mxu0 0
        %379 = vmatpush1.bf16.msra.mxu0 0
        %380 = vmatprep.subr.bf16.mxu0 0
        %381 = vmatpush1.bf16.msra.mxu0 0
        %382 = vmatprep.subr.bf16.mxu0 0
        %383 = vmatpush1.bf16.msra.mxu0 0
        %384 = vmatprep.mubr.bf16.mxu0 0
        %385 = vmatmul.mubr.bf16.gmra.mrb[0].mxu0 %v301
        %v386 = vpop.f32.mrb[0].mxu0
        %v387 = vadd.f32 0.0, %v386
        %v388 = vpop.f32.mrb[0].mxu0
        %v389 = vpop.f32.mrb[0].mxu0
        %v390 = vadd.f32 0.0, %v389
        %v391 = vpop.f32.mrb[0].mxu0
        %392 = vmatprep.mubr.bf16.mxu0 0
        %393 = vmatmul.mubr.bf16.gmra.mrb[0].mxu0 %v304
        %v394 = vpop.f32.mrb[0].mxu0
        %v395 = vadd.f32 0.0, %v394
        %v396 = vpop.f32.mrb[0].mxu0
        %v397 = vpop.f32.mrb[0].mxu0
        %v398 = vadd.f32 0.0, %v397
        %v399 = vpop.f32.mrb[0].mxu0
        %400 = vmatprep.mubr.bf16.mxu0 0
        %401 = vmatmul.mubr.bf16.gmra.mrb[0].mxu0 %v307
        %v402 = vpop.f32.mrb[0].mxu0
        %v403 = vadd.f32 0.0, %v402
        %v404 = vpop.f32.mrb[0].mxu0
        %v405 = vpop.f32.mrb[0].mxu0
        %v406 = vadd.f32 0.0, %v405
        %v407 = vpop.f32.mrb[0].mxu0
        %408 = vmatprep.mubr.bf16.mxu0 0
        %409 = vmatmul.mubr.bf16.gmra.mrb[0].mxu0 %v310
        %v410 = vpop.f32.mrb[0].mxu0
        %v411 = vadd.f32 0.0, %v410
        %v412 = vpop.f32.mrb[0].mxu0
        %v413 = vpop.f32.mrb[0].mxu0
        %v414 = vadd.f32 0.0, %v413
        %v415 = vpop.f32.mrb[0].mxu0
        %416 = vmatprep.mubr.bf16.mxu0 0
        %417 = vmatmul.mubr.bf16.gmra.mrb[0].mxu0 %v313
        %v418 = vpop.f32.mrb[0].mxu0
        %v419 = vadd.f32 0.0, %v418
        %v420 = vpop.f32.mrb[0].mxu0
        %v421 = vpop.f32.mrb[0].mxu0
        %v422 = vadd.f32 0.0, %v421
        %v423 = vpop.f32.mrb[0].mxu0
        %424 = vmatprep.mubr.bf16.mxu0 0
        %425 = vmatmul.mubr.bf16.gmra.mrb[0].mxu0 %v316
        %v426 = vpop.f32.mrb[0].mxu0
        %v427 = vadd.f32 0.0, %v426
        %v428 = vpop.f32.mrb[0].mxu0
        %v429 = vpop.f32.mrb[0].mxu0
        %v430 = vadd.f32 0.0, %v429
        %v431 = vpop.f32.mrb[0].mxu0
        %432 = vmatprep.mubr.bf16.mxu0 0
        %433 = vmatmul.mubr.bf16.gmra.mrb[0].mxu0 %v319
        %v434 = vpop.f32.mrb[0].mxu0
        %v435 = vadd.f32 0.0, %v434
        %v436 = vpop.f32.mrb[0].mxu0
        %v437 = vpop.f32.mrb[0].mxu0
        %v438 = vadd.f32 0.0, %v437
        %v439 = vpop.f32.mrb[0].mxu0
        %440 = vmatprep.mubr.bf16.mxu0 0
        %441 = vmatmul.mubr.bf16.gmra.mrb[0].mxu0 %v322
        %v442 = vpop.f32.mrb[0].mxu0
        %v443 = vadd.f32 0.0, %v442
        %v444 = vpop.f32.mrb[0].mxu0
        %v445 = vpop.f32.mrb[0].mxu0
        %v446 = vadd.f32 0.0, %v445
        %v447 = vpop.f32.mrb[0].mxu0
        %448 = vmatprep.mubr.bf16.mxu0 0
        %449 = vmatmul.mubr.bf16.gmra.mrb[0].mxu0 %v325
        %v450 = vpop.f32.mrb[0].mxu0
        %v451 = vadd.f32 0.0, %v450
        %v452 = vpop.f32.mrb[0].mxu0
        %v453 = vpop.f32.mrb[0].mxu0
        %v454 = vadd.f32 0.0, %v453
        %v455 = vpop.f32.mrb[0].mxu0
        %456 = vmatprep.mubr.bf16.mxu0 0
        %457 = vmatmul.mubr.bf16.gmra.mrb[0].mxu0 %v328
        %v458 = vpop.f32.mrb[0].mxu0
        %v459 = vadd.f32 0.0, %v458
        %v460 = vpop.f32.mrb[0].mxu0
        %v461 = vpop.f32.mrb[0].mxu0
        %v462 = vadd.f32 0.0, %v461
        %v463 = vpop.f32.mrb[0].mxu0
        %464 = vmatprep.mubr.bf16.mxu0 0
        %465 = vmatmul.mubr.bf16.gmra.mrb[0].mxu0 %v331
        %v466 = vpop.f32.mrb[0].mxu0
        %v467 = vadd.f32 0.0, %v466
        %v468 = vpop.f32.mrb[0].mxu0
        %v469 = vpop.f32.mrb[0].mxu0
        %v470 = vadd.f32 0.0, %v469
        %v471 = vpop.f32.mrb[0].mxu0
        %472 = vmatprep.mubr.bf16.mxu0 0
        %473 = vmatmul.mubr.bf16.gmra.mrb[0].mxu0 %v334
        %v474 = vpop.f32.mrb[0].mxu0
        %v475 = vadd.f32 0.0, %v474
        %v476 = vpop.f32.mrb[0].mxu0
        %v477 = vpop.f32.mrb[0].mxu0
        %v478 = vadd.f32 0.0, %v477
        %v479 = vpop.f32.mrb[0].mxu0
        %480 = vmatprep.mubr.bf16.mxu0 0
        %481 = vmatmul.mubr.bf16.gmra.mrb[0].mxu0 %v337
        %v482 = vpop.f32.mrb[0].mxu0
        %v483 = vadd.f32 0.0, %v482
        %v484 = vpop.f32.mrb[0].mxu0
        %v485 = vpop.f32.mrb[0].mxu0
        %v486 = vadd.f32 0.0, %v485
        %v487 = vpop.f32.mrb[0].mxu0
        %488 = vmatprep.mubr.bf16.mxu0 0
        %489 = vmatmul.mubr.bf16.gmra.mrb[0].mxu0 %v340
        %v490 = vpop.f32.mrb[0].mxu0
        %v491 = vadd.f32 0.0, %v490
        %v492 = vpop.f32.mrb[0].mxu0
        %v493 = vpop.f32.mrb[0].mxu0
        %v494 = vadd.f32 0.0, %v493
        %v495 = vpop.f32.mrb[0].mxu0
        %496 = vmatprep.mubr.bf16.mxu0 0
        %497 = vmatmul.mubr.bf16.gmra.mrb[0].mxu0 %v343
        %v498 = vpop.f32.mrb[0].mxu0
        %v499 = vadd.f32 0.0, %v498
        %v500 = vpop.f32.mrb[0].mxu0
        %v501 = vpop.f32.mrb[0].mxu0
        %v502 = vadd.f32 0.0, %v501
        %v503 = vpop.f32.mrb[0].mxu0
        %504 = vmatprep.mubr.bf16.mxu0 0
        %505 = vmatmul.mubr.bf16.gmra.mrb[0].mxu0 %v346
        %v506 = vpop.f32.mrb[0].mxu0
        %v507 = vadd.f32 0.0, %v506
        %v508 = vpop.f32.mrb[0].mxu0
        %v509 = vpop.f32.mrb[0].mxu0
        %v510 = vadd.f32 0.0, %v509
        %v511 = vpop.f32.mrb[0].mxu0
        %512 = vdwg.mxu0
        %v514 = vsel %vm299, %v232, 0
        %v517 = vsel %vm299, %v233, 0
        %v520 = vsel %vm299, %v234, 0
        %v523 = vsel %vm299, %v235, 0
        %v526 = vsel %vm299, %v236, 0
        %v529 = vsel %vm299, %v237, 0
        %v532 = vsel %vm299, %v238, 0
        %v535 = vsel %vm299, %v239, 0
        %v538 = vsel %vm299, %v240, 0
        %v541 = vsel %vm299, %v241, 0
        %v544 = vsel %vm299, %v242, 0
        %v547 = vsel %vm299, %v243, 0
        %v550 = vsel %vm299, %v244, 0
        %v553 = vsel %vm299, %v245, 0
        %v556 = vsel %vm299, %v246, 0
        %v559 = vsel %vm299, %v247, 0
        %v562 = vsel %vm348, %v248, 0
        %564 = vmatprep.subr.bf16.mxu0 0
        %565 = vmatpush1.bf16.msra.mxu0 %v562
        %566 = vmatprep.subr.bf16.mxu0 0
        %567 = vmatpush1.bf16.msra.mxu0 0
        %568 = vmatprep.subr.bf16.mxu0 0
        %569 = vmatpush1.bf16.msra.mxu0 0
        %570 = vmatprep.subr.bf16.mxu0 0
        %571 = vmatpush1.bf16.msra.mxu0 0
        %572 = vmatprep.subr.bf16.mxu0 0
        %573 = vmatpush1.bf16.msra.mxu0 0
        %574 = vmatprep.subr.bf16.mxu0 0
        %575 = vmatpush1.bf16.msra.mxu0 0
        %576 = vmatprep.subr.bf16.mxu0 0
        %577 = vmatpush1.bf16.msra.mxu0 0
        %578 = vmatprep.subr.bf16.mxu0 0
        %579 = vmatpush1.bf16.msra.mxu0 0
        %580 = vmatprep.subr.bf16.mxu0 0
        %581 = vmatpush1.bf16.msra.mxu0 0
        %582 = vmatprep.subr.bf16.mxu0 0
        %583 = vmatpush1.bf16.msra.mxu0 0
        %584 = vmatprep.subr.bf16.mxu0 0
        %585 = vmatpush1.bf16.msra.mxu0 0
        %586 = vmatprep.subr.bf16.mxu0 0
        %587 = vmatpush1.bf16.msra.mxu0 0
        %588 = vmatprep.subr.bf16.mxu0 0
        %589 = vmatpush1.bf16.msra.mxu0 0
        %590 = vmatprep.subr.bf16.mxu0 0
        %591 = vmatpush1.bf16.msra.mxu0 0
        %592 = vmatprep.subr.bf16.mxu0 0
        %593 = vmatpush1.bf16.msra.mxu0 0
        %594 = vmatprep.subr.bf16.mxu0 0
        %595 = vmatpush1.bf16.msra.mxu0 0
        %596 = vmatprep.mubr.bf16.mxu0 0
        %597 = vmatmul.mubr.bf16.gmra.mrb[0].mxu0 %v514
        %v598 = vpop.f32.mrb[0].mxu0
        %v599 = vadd.f32 %v387, %v598
        %v600 = vpop.f32.mrb[0].mxu0
        %v601 = vpop.f32.mrb[0].mxu0
        %v602 = vadd.f32 %v390, %v601
        %v603 = vpop.f32.mrb[0].mxu0
        %604 = vmatprep.mubr.bf16.mxu0 0
        %605 = vmatmul.mubr.bf16.gmra.mrb[0].mxu0 %v517
        %v606 = vpop.f32.mrb[0].mxu0
        %v607 = vadd.f32 %v395, %v606
        %v608 = vpop.f32.mrb[0].mxu0
        %v609 = vpop.f32.mrb[0].mxu0
        %v610 = vadd.f32 %v398, %v609
        %v611 = vpop.f32.mrb[0].mxu0
        %612 = vmatprep.mubr.bf16.mxu0 0
        %613 = vmatmul.mubr.bf16.gmra.mrb[0].mxu0 %v520
        %v614 = vpop.f32.mrb[0].mxu0
        %v615 = vadd.f32 %v403, %v614
        %v616 = vpop.f32.mrb[0].mxu0
        %v617 = vpop.f32.mrb[0].mxu0
        %v618 = vadd.f32 %v406, %v617
        %v619 = vpop.f32.mrb[0].mxu0
        %620 = vmatprep.mubr.bf16.mxu0 0
        %621 = vmatmul.mubr.bf16.gmra.mrb[0].mxu0 %v523
        %v622 = vpop.f32.mrb[0].mxu0
        %v623 = vadd.f32 %v411, %v622
        %v624 = vpop.f32.mrb[0].mxu0
        %v625 = vpop.f32.mrb[0].mxu0
        %v626 = vadd.f32 %v414, %v625
        %v627 = vpop.f32.mrb[0].mxu0
        %628 = vmatprep.mubr.bf16.mxu0 0
        %629 = vmatmul.mubr.bf16.gmra.mrb[0].mxu0 %v526
        %v630 = vpop.f32.mrb[0].mxu0
        %v631 = vadd.f32 %v419, %v630
        %v632 = vpop.f32.mrb[0].mxu0
        %v633 = vpop.f32.mrb[0].mxu0
        %v634 = vadd.f32 %v422, %v633
        %v635 = vpop.f32.mrb[0].mxu0
        %636 = vmatprep.mubr.bf16.mxu0 0
        %637 = vmatmul.mubr.bf16.gmra.mrb[0].mxu0 %v529
        %v638 = vpop.f32.mrb[0].mxu0
        %v639 = vadd.f32 %v427, %v638
        %v640 = vpop.f32.mrb[0].mxu0
        %v641 = vpop.f32.mrb[0].mxu0
        %v642 = vadd.f32 %v430, %v641
        %v643 = vpop.f32.mrb[0].mxu0
        %644 = vmatprep.mubr.bf16.mxu0 0
        %645 = vmatmul.mubr.bf16.gmra.mrb[0].mxu0 %v532
        %v646 = vpop.f32.mrb[0].mxu0
        %v647 = vadd.f32 %v435, %v646
        %v648 = vpop.f32.mrb[0].mxu0
        %v649 = vpop.f32.mrb[0].mxu0
        %v650 = vadd.f32 %v438, %v649
        %v651 = vpop.f32.mrb[0].mxu0
        %652 = vmatprep.mubr.bf16.mxu0 0
        %653 = vmatmul.mubr.bf16.gmra.mrb[0].mxu0 %v535
        %v654 = vpop.f32.mrb[0].mxu0
        %v655 = vadd.f32 %v443, %v654
        %v656 = vpop.f32.mrb[0].mxu0
        %v657 = vpop.f32.mrb[0].mxu0
        %v658 = vadd.f32 %v446, %v657
        %v659 = vpop.f32.mrb[0].mxu0
        %660 = vmatprep.mubr.bf16.mxu0 0
        %661 = vmatmul.mubr.bf16.gmra.mrb[0].mxu0 %v538
        %v662 = vpop.f32.mrb[0].mxu0
        %v663 = vadd.f32 %v451, %v662
        %v664 = vpop.f32.mrb[0].mxu0
        %v665 = vpop.f32.mrb[0].mxu0
        %v666 = vadd.f32 %v454, %v665
        %v667 = vpop.f32.mrb[0].mxu0
        %668 = vmatprep.mubr.bf16.mxu0 0
        %669 = vmatmul.mubr.bf16.gmra.mrb[0].mxu0 %v541
        %v670 = vpop.f32.mrb[0].mxu0
        %v671 = vadd.f32 %v459, %v670
        %v672 = vpop.f32.mrb[0].mxu0
        %v673 = vpop.f32.mrb[0].mxu0
        %v674 = vadd.f32 %v462, %v673
        %v675 = vpop.f32.mrb[0].mxu0
        %676 = vmatprep.mubr.bf16.mxu0 0
        %677 = vmatmul.mubr.bf16.gmra.mrb[0].mxu0 %v544
        %v678 = vpop.f32.mrb[0].mxu0
        %v679 = vadd.f32 %v467, %v678
        %v680 = vpop.f32.mrb[0].mxu0
        %v681 = vpop.f32.mrb[0].mxu0
        %v682 = vadd.f32 %v470, %v681
        %v683 = vpop.f32.mrb[0].mxu0
        %684 = vmatprep.mubr.bf16.mxu0 0
        %685 = vmatmul.mubr.bf16.gmra.mrb[0].mxu0 %v547
        %v686 = vpop.f32.mrb[0].mxu0
        %v687 = vadd.f32 %v475, %v686
        %v688 = vpop.f32.mrb[0].mxu0
        %v689 = vpop.f32.mrb[0].mxu0
        %v690 = vadd.f32 %v478, %v689
        %v691 = vpop.f32.mrb[0].mxu0
        %692 = vmatprep.mubr.bf16.mxu0 0
        %693 = vmatmul.mubr.bf16.gmra.mrb[0].mxu0 %v550
        %v694 = vpop.f32.mrb[0].mxu0
        %v695 = vadd.f32 %v483, %v694
        %v696 = vpop.f32.mrb[0].mxu0
        %v697 = vpop.f32.mrb[0].mxu0
        %v698 = vadd.f32 %v486, %v697
        %v699 = vpop.f32.mrb[0].mxu0
        %700 = vmatprep.mubr.bf16.mxu0 0
        %701 = vmatmul.mubr.bf16.gmra.mrb[0].mxu0 %v553
        %v702 = vpop.f32.mrb[0].mxu0
        %v703 = vadd.f32 %v491, %v702
        %v704 = vpop.f32.mrb[0].mxu0
        %v705 = vpop.f32.mrb[0].mxu0
        %v706 = vadd.f32 %v494, %v705
        %v707 = vpop.f32.mrb[0].mxu0
        %708 = vmatprep.mubr.bf16.mxu0 0
        %709 = vmatmul.mubr.bf16.gmra.mrb[0].mxu0 %v556
        %v710 = vpop.f32.mrb[0].mxu0
        %v711 = vadd.f32 %v499, %v710
        %v712 = vpop.f32.mrb[0].mxu0
        %v713 = vpop.f32.mrb[0].mxu0
        %v714 = vadd.f32 %v502, %v713
        %v715 = vpop.f32.mrb[0].mxu0
        %716 = vmatprep.mubr.bf16.mxu0 0
        %717 = vmatmul.mubr.bf16.gmra.mrb[0].mxu0 %v559
        %v718 = vpop.f32.mrb[0].mxu0
        %v719 = vadd.f32 %v507, %v718
        %v720 = vpop.f32.mrb[0].mxu0
        %v721 = vpop.f32.mrb[0].mxu0
        %v722 = vadd.f32 %v510, %v721
        %v723 = vpop.f32.mrb[0].mxu0
        %724 = vdwg.mxu0
        %v725 = vld [vmem:[%s193 + $0x2] sm:$0xff]
        %v726 = vld [vmem:[%s193 + $0xa] sm:$0xff]
        %v727 = vld [vmem:[%s193 + $0x1a] sm:$0xff]
        %v728 = vld [vmem:[%s193 + $0x22] sm:$0xff]
        %v729 = vld [vmem:[%s193 + $0x32] sm:$0xff]
        %v730 = vld [vmem:[%s193 + $0x3a] sm:$0xff]
        %v731 = vld [vmem:[%s193 + $0x4a] sm:$0xff]
        %v732 = vld [vmem:[%s193 + $0x52] sm:$0xff]
        %v733 = vld [vmem:[%s193 + $0x62] sm:$0xff]
        %v734 = vld [vmem:[%s193 + $0x6a] sm:$0xff]
        %v735 = vld [vmem:[%s193 + $0x7a] sm:$0xff]
        %v736 = vld [vmem:[%s193 + $0x82] sm:$0xff]
        %v737 = vld [vmem:[%s193 + $0x92] sm:$0xff]
        %v738 = vld [vmem:[%s193 + $0x9a] sm:$0xff]
        %v739 = vld [vmem:[%s193 + $0xaa] sm:$0xff]
        %v740 = vld [vmem:[%s193 + $0xb2] sm:$0xff]
        %v741 = vld [vmem:[%s193 + $0xc2] sm:$0xff]
        %v742 = vld [vmem:[%s193 + $0xca] sm:$0xff]
        %v743 = vld [vmem:[%s193 + $0xda] sm:$0xff]
        %v744 = vld [vmem:[%s193 + $0xe2] sm:$0xff]
        %v745 = vld [vmem:[%s193 + $0xf2] sm:$0xff]
        %v746 = vld [vmem:[%s193 + $0xfa] sm:$0xff]
        %v747 = vld [vmem:[%s193 + $0x10a] sm:$0xff]
        %v748 = vld [vmem:[%s193 + $0x112] sm:$0xff]
        %v749 = vld [vmem:[%s193 + $0x122] sm:$0xff]
        %v750 = vld [vmem:[%s193 + $0x12a] sm:$0xff]
        %v751 = vld [vmem:[%s193 + $0x13a] sm:$0xff]
        %v752 = vld [vmem:[%s193 + $0x142] sm:$0xff]
        %v753 = vld [vmem:[%s193 + $0x152] sm:$0xff]
        %v754 = vld [vmem:[%s193 + $0x15a] sm:$0xff]
        %v755 = vld [vmem:[%s193 + $0x16a] sm:$0xff]
        %v756 = vld [vmem:[%s193 + $0x172] sm:$0xff]
        %v757 = vpack.c.bf16 %v726, %v725
        %v758 = vpack.c.bf16 %v728, %v727
        %v759 = vpack.c.bf16 %v730, %v729
        %v760 = vpack.c.bf16 %v732, %v731
        %v761 = vpack.c.bf16 %v734, %v733
        %v762 = vpack.c.bf16 %v736, %v735
        %v763 = vpack.c.bf16 %v738, %v737
        %v764 = vpack.c.bf16 %v740, %v739
        %v765 = vpack.c.bf16 %v742, %v741
        %v766 = vpack.c.bf16 %v744, %v743
        %v767 = vpack.c.bf16 %v746, %v745
        %v768 = vpack.c.bf16 %v748, %v747
        %v769 = vpack.c.bf16 %v750, %v749
        %v770 = vpack.c.bf16 %v752, %v751
        %v771 = vpack.c.bf16 %v754, %v753
        %v772 = vpack.c.bf16 %v756, %v755
        %s773 = scalar_lea.vmem [#allocation2], 8
        %v774 = vld [vmem:[%s773] sm:$0xf]
        %v776 = vsel %vm299, %v757, 0
        %v779 = vsel %vm299, %v758, 0
        %v782 = vsel %vm299, %v759, 0
        %v785 = vsel %vm299, %v760, 0
        %v788 = vsel %vm299, %v761, 0
        %v791 = vsel %vm299, %v762, 0
        %v794 = vsel %vm299, %v763, 0
        %v797 = vsel %vm299, %v764, 0
        %v800 = vsel %vm299, %v765, 0
        %v803 = vsel %vm299, %v766, 0
        %v806 = vsel %vm299, %v767, 0
        %v809 = vsel %vm299, %v768, 0
        %v812 = vsel %vm299, %v769, 0
        %v815 = vsel %vm299, %v770, 0
        %v818 = vsel %vm299, %v771, 0
        %v821 = vsel %vm299, %v772, 0
        %v824 = vsel %vm348, %v774, 0
        %826 = vmatprep.subr.bf16.mxu0 0
        %827 = vmatpush1.bf16.msra.mxu0 %v824
        %828 = vmatprep.subr.bf16.mxu0 0
        %829 = vmatpush1.bf16.msra.mxu0 0
        %830 = vmatprep.subr.bf16.mxu0 0
        %831 = vmatpush1.bf16.msra.mxu0 0
        %832 = vmatprep.subr.bf16.mxu0 0
        %833 = vmatpush1.bf16.msra.mxu0 0
        %834 = vmatprep.subr.bf16.mxu0 0
        %835 = vmatpush1.bf16.msra.mxu0 0
        %836 = vmatprep.subr.bf16.mxu0 0
        %837 = vmatpush1.bf16.msra.mxu0 0
        %838 = vmatprep.subr.bf16.mxu0 0
        %839 = vmatpush1.bf16.msra.mxu0 0
        %840 = vmatprep.subr.bf16.mxu0 0
        %841 = vmatpush1.bf16.msra.mxu0 0
        %842 = vmatprep.subr.bf16.mxu0 0
        %843 = vmatpush1.bf16.msra.mxu0 0
        %844 = vmatprep.subr.bf16.mxu0 0
        %845 = vmatpush1.bf16.msra.mxu0 0
        %846 = vmatprep.subr.bf16.mxu0 0
        %847 = vmatpush1.bf16.msra.mxu0 0
        %848 = vmatprep.subr.bf16.mxu0 0
        %849 = vmatpush1.bf16.msra.mxu0 0
        %850 = vmatprep.subr.bf16.mxu0 0
        %851 = vmatpush1.bf16.msra.mxu0 0
        %852 = vmatprep.subr.bf16.mxu0 0
        %853 = vmatpush1.bf16.msra.mxu0 0
        %854 = vmatprep.subr.bf16.mxu0 0
        %855 = vmatpush1.bf16.msra.mxu0 0
        %856 = vmatprep.subr.bf16.mxu0 0
        %857 = vmatpush1.bf16.msra.mxu0 0
        %858 = vmatprep.mubr.bf16.mxu0 0
        %859 = vmatmul.mubr.bf16.gmra.mrb[0].mxu0 %v776
        %v860 = vpop.f32.mrb[0].mxu0
        %v861 = vadd.f32 0.0, %v860
        %v862 = vpop.f32.mrb[0].mxu0
        %v863 = vpop.f32.mrb[0].mxu0
        %v864 = vadd.f32 0.0, %v863
        %v865 = vpop.f32.mrb[0].mxu0
        %866 = vmatprep.mubr.bf16.mxu0 0
        %867 = vmatmul.mubr.bf16.gmra.mrb[0].mxu0 %v779
        %v868 = vpop.f32.mrb[0].mxu0
        %v869 = vadd.f32 0.0, %v868
        %v870 = vpop.f32.mrb[0].mxu0
        %v871 = vpop.f32.mrb[0].mxu0
        %v872 = vadd.f32 0.0, %v871
        %v873 = vpop.f32.mrb[0].mxu0
        %874 = vmatprep.mubr.bf16.mxu0 0
        %875 = vmatmul.mubr.bf16.gmra.mrb[0].mxu0 %v782
        %v876 = vpop.f32.mrb[0].mxu0
        %v877 = vadd.f32 0.0, %v876
        %v878 = vpop.f32.mrb[0].mxu0
        %v879 = vpop.f32.mrb[0].mxu0
        %v880 = vadd.f32 0.0, %v879
        %v881 = vpop.f32.mrb[0].mxu0
        %882 = vmatprep.mubr.bf16.mxu0 0
        %883 = vmatmul.mubr.bf16.gmra.mrb[0].mxu0 %v785
        %v884 = vpop.f32.mrb[0].mxu0
        %v885 = vadd.f32 0.0, %v884
        %v886 = vpop.f32.mrb[0].mxu0
        %v887 = vpop.f32.mrb[0].mxu0
        %v888 = vadd.f32 0.0, %v887
        %v889 = vpop.f32.mrb[0].mxu0
        %890 = vmatprep.mubr.bf16.mxu0 0
        %891 = vmatmul.mubr.bf16.gmra.mrb[0].mxu0 %v788
        %v892 = vpop.f32.mrb[0].mxu0
        %v893 = vadd.f32 0.0, %v892
        %v894 = vpop.f32.mrb[0].mxu0
        %v895 = vpop.f32.mrb[0].mxu0
        %v896 = vadd.f32 0.0, %v895
        %v897 = vpop.f32.mrb[0].mxu0
        %898 = vmatprep.mubr.bf16.mxu0 0
        %899 = vmatmul.mubr.bf16.gmra.mrb[0].mxu0 %v791
        %v900 = vpop.f32.mrb[0].mxu0
        %v901 = vadd.f32 0.0, %v900
        %v902 = vpop.f32.mrb[0].mxu0
        %v903 = vpop.f32.mrb[0].mxu0
        %v904 = vadd.f32 0.0, %v903
        %v905 = vpop.f32.mrb[0].mxu0
        %906 = vmatprep.mubr.bf16.mxu0 0
        %907 = vmatmul.mubr.bf16.gmra.mrb[0].mxu0 %v794
        %v908 = vpop.f32.mrb[0].mxu0
        %v909 = vadd.f32 0.0, %v908
        %v910 = vpop.f32.mrb[0].mxu0
        %v911 = vpop.f32.mrb[0].mxu0
        %v912 = vadd.f32 0.0, %v911
        %v913 = vpop.f32.mrb[0].mxu0
        %914 = vmatprep.mubr.bf16.mxu0 0
        %915 = vmatmul.mubr.bf16.gmra.mrb[0].mxu0 %v797
        %v916 = vpop.f32.mrb[0].mxu0
        %v917 = vadd.f32 0.0, %v916
        %v918 = vpop.f32.mrb[0].mxu0
        %v919 = vpop.f32.mrb[0].mxu0
        %v920 = vadd.f32 0.0, %v919
        %v921 = vpop.f32.mrb[0].mxu0
        %922 = vmatprep.mubr.bf16.mxu0 0
        %923 = vmatmul.mubr.bf16.gmra.mrb[0].mxu0 %v800
        %v924 = vpop.f32.mrb[0].mxu0
        %v925 = vadd.f32 0.0, %v924
        %v926 = vpop.f32.mrb[0].mxu0
        %v927 = vpop.f32.mrb[0].mxu0
        %v928 = vadd.f32 0.0, %v927
        %v929 = vpop.f32.mrb[0].mxu0
        %930 = vmatprep.mubr.bf16.mxu0 0
        %931 = vmatmul.mubr.bf16.gmra.mrb[0].mxu0 %v803
        %v932 = vpop.f32.mrb[0].mxu0
        %v933 = vadd.f32 0.0, %v932
        %v934 = vpop.f32.mrb[0].mxu0
        %v935 = vpop.f32.mrb[0].mxu0
        %v936 = vadd.f32 0.0, %v935
        %v937 = vpop.f32.mrb[0].mxu0
        %938 = vmatprep.mubr.bf16.mxu0 0
        %939 = vmatmul.mubr.bf16.gmra.mrb[0].mxu0 %v806
        %v940 = vpop.f32.mrb[0].mxu0
        %v941 = vadd.f32 0.0, %v940
        %v942 = vpop.f32.mrb[0].mxu0
        %v943 = vpop.f32.mrb[0].mxu0
        %v944 = vadd.f32 0.0, %v943
        %v945 = vpop.f32.mrb[0].mxu0
        %946 = vmatprep.mubr.bf16.mxu0 0
        %947 = vmatmul.mubr.bf16.gmra.mrb[0].mxu0 %v809
        %v948 = vpop.f32.mrb[0].mxu0
        %v949 = vadd.f32 0.0, %v948
        %v950 = vpop.f32.mrb[0].mxu0
        %v951 = vpop.f32.mrb[0].mxu0
        %v952 = vadd.f32 0.0, %v951
        %v953 = vpop.f32.mrb[0].mxu0
        %954 = vmatprep.mubr.bf16.mxu0 0
        %955 = vmatmul.mubr.bf16.gmra.mrb[0].mxu0 %v812
        %v956 = vpop.f32.mrb[0].mxu0
        %v957 = vadd.f32 0.0, %v956
        %v958 = vpop.f32.mrb[0].mxu0
        %v959 = vpop.f32.mrb[0].mxu0
        %v960 = vadd.f32 0.0, %v959
        %v961 = vpop.f32.mrb[0].mxu0
        %962 = vmatprep.mubr.bf16.mxu0 0
        %963 = vmatmul.mubr.bf16.gmra.mrb[0].mxu0 %v815
        %v964 = vpop.f32.mrb[0].mxu0
        %v965 = vadd.f32 0.0, %v964
        %v966 = vpop.f32.mrb[0].mxu0
        %v967 = vpop.f32.mrb[0].mxu0
        %v968 = vadd.f32 0.0, %v967
        %v969 = vpop.f32.mrb[0].mxu0
        %970 = vmatprep.mubr.bf16.mxu0 0
        %971 = vmatmul.mubr.bf16.gmra.mrb[0].mxu0 %v818
        %v972 = vpop.f32.mrb[0].mxu0
        %v973 = vadd.f32 0.0, %v972
        %v974 = vpop.f32.mrb[0].mxu0
        %v975 = vpop.f32.mrb[0].mxu0
        %v976 = vadd.f32 0.0, %v975
        %v977 = vpop.f32.mrb[0].mxu0
        %978 = vmatprep.mubr.bf16.mxu0 0
        %979 = vmatmul.mubr.bf16.gmra.mrb[0].mxu0 %v821
        %v980 = vpop.f32.mrb[0].mxu0
        %v981 = vadd.f32 0.0, %v980
        %v982 = vpop.f32.mrb[0].mxu0
        %v983 = vpop.f32.mrb[0].mxu0
        %v984 = vadd.f32 0.0, %v983
        %v985 = vpop.f32.mrb[0].mxu0
        %986 = vdwg.mxu0
        %v987 = vadd.f32 %v599, %v861
        %v988 = vadd.f32 %v602, %v864
        %v989 = vadd.f32 %v607, %v869
        %v990 = vadd.f32 %v610, %v872
        %v991 = vadd.f32 %v615, %v877
        %v992 = vadd.f32 %v618, %v880
        %v993 = vadd.f32 %v623, %v885
        %v994 = vadd.f32 %v626, %v888
        %v995 = vadd.f32 %v631, %v893
        %v996 = vadd.f32 %v634, %v896
        %v997 = vadd.f32 %v639, %v901
        %v998 = vadd.f32 %v642, %v904
        %v999 = vadd.f32 %v647, %v909
        %v1000 = vadd.f32 %v650, %v912
        %v1001 = vadd.f32 %v655, %v917
        %v1002 = vadd.f32 %v658, %v920
        %v1003 = vadd.f32 %v663, %v925
        %v1004 = vadd.f32 %v666, %v928
        %v1005 = vadd.f32 %v671, %v933
        %v1006 = vadd.f32 %v674, %v936
        %v1007 = vadd.f32 %v679, %v941
        %v1008 = vadd.f32 %v682, %v944
        %v1009 = vadd.f32 %v687, %v949
        %v1010 = vadd.f32 %v690, %v952
        %v1011 = vadd.f32 %v695, %v957
        %v1012 = vadd.f32 %v698, %v960
        %v1013 = vadd.f32 %v703, %v965
        %v1014 = vadd.f32 %v706, %v968
        %v1015 = vadd.f32 %v711, %v973
        %v1016 = vadd.f32 %v714, %v976
        %v1017 = vadd.f32 %v719, %v981
        %v1018 = vadd.f32 %v722, %v984
        %s1019 = scalar_lea.vmem %s193, 24
        %v1020 = vld [vmem:[%s1019] sm:$0xff]
        %v1021 = vld [vmem:[%s1019 + $0x8] sm:$0xff]
        %v1022 = vld [vmem:[%s1019 + $0x18] sm:$0xff]
        %v1023 = vld [vmem:[%s1019 + $0x20] sm:$0xff]
        %v1024 = vld [vmem:[%s1019 + $0x30] sm:$0xff]
        %v1025 = vld [vmem:[%s1019 + $0x38] sm:$0xff]
        %v1026 = vld [vmem:[%s1019 + $0x48] sm:$0xff]
        %v1027 = vld [vmem:[%s1019 + $0x50] sm:$0xff]
        %v1028 = vld [vmem:[%s1019 + $0x60] sm:$0xff]
        %v1029 = vld [vmem:[%s1019 + $0x68] sm:$0xff]
        %v1030 = vld [vmem:[%s1019 + $0x78] sm:$0xff]
        %v1031 = vld [vmem:[%s1019 + $0x80] sm:$0xff]
        %v1032 = vld [vmem:[%s1019 + $0x90] sm:$0xff]
        %v1033 = vld [vmem:[%s1019 + $0x98] sm:$0xff]
        %v1034 = vld [vmem:[%s1019 + $0xa8] sm:$0xff]
        %v1035 = vld [vmem:[%s1019 + $0xb0] sm:$0xff]
        %v1036 = vld [vmem:[%s1019 + $0xc0] sm:$0xff]
        %v1037 = vld [vmem:[%s1019 + $0xc8] sm:$0xff]
        %v1038 = vld [vmem:[%s1019 + $0xd8] sm:$0xff]
        %v1039 = vld [vmem:[%s1019 + $0xe0] sm:$0xff]
        %v1040 = vld [vmem:[%s1019 + $0xf0] sm:$0xff]
        %v1041 = vld [vmem:[%s1019 + $0xf8] sm:$0xff]
        %v1042 = vld [vmem:[%s1019 + $0x108] sm:$0xff]
        %v1043 = vld [vmem:[%s1019 + $0x110] sm:$0xff]
        %v1044 = vld [vmem:[%s1019 + $0x120] sm:$0xff]
        %v1045 = vld [vmem:[%s1019 + $0x128] sm:$0xff]
        %v1046 = vld [vmem:[%s1019 + $0x138] sm:$0xff]
        %v1047 = vld [vmem:[%s1019 + $0x140] sm:$0xff]
        %v1048 = vld [vmem:[%s1019 + $0x150] sm:$0xff]
        %v1049 = vld [vmem:[%s1019 + $0x158] sm:$0xff]
        %v1050 = vld [vmem:[%s1019 + $0x168] sm:$0xff]
        %v1051 = vld [vmem:[%s1019 + $0x170] sm:$0xff]
        %v1052 = vpack.c.bf16 %v1021, %v1020
        %v1053 = vpack.c.bf16 %v1023, %v1022
        %v1054 = vpack.c.bf16 %v1025, %v1024
        %v1055 = vpack.c.bf16 %v1027, %v1026
        %v1056 = vpack.c.bf16 %v1029, %v1028
        %v1057 = vpack.c.bf16 %v1031, %v1030
        %v1058 = vpack.c.bf16 %v1033, %v1032
        %v1059 = vpack.c.bf16 %v1035, %v1034
        %v1060 = vpack.c.bf16 %v1037, %v1036
        %v1061 = vpack.c.bf16 %v1039, %v1038
        %v1062 = vpack.c.bf16 %v1041, %v1040
        %v1063 = vpack.c.bf16 %v1043, %v1042
        %v1064 = vpack.c.bf16 %v1045, %v1044
        %v1065 = vpack.c.bf16 %v1047, %v1046
        %v1066 = vpack.c.bf16 %v1049, %v1048
        %v1067 = vpack.c.bf16 %v1051, %v1050
        %s1068 = scalar_lea.vmem [#allocation2], 12
        %v1069 = vld [vmem:[%s1068] sm:$0xf]
        %v1071 = vsel %vm299, %v1052, 0
        %v1074 = vsel %vm299, %v1053, 0
        %v1077 = vsel %vm299, %v1054, 0
        %v1080 = vsel %vm299, %v1055, 0
        %v1083 = vsel %vm299, %v1056, 0
        %v1086 = vsel %vm299, %v1057, 0
        %v1089 = vsel %vm299, %v1058, 0
        %v1092 = vsel %vm299, %v1059, 0
        %v1095 = vsel %vm299, %v1060, 0
        %v1098 = vsel %vm299, %v1061, 0
        %v1101 = vsel %vm299, %v1062, 0
        %v1104 = vsel %vm299, %v1063, 0
        %v1107 = vsel %vm299, %v1064, 0
        %v1110 = vsel %vm299, %v1065, 0
        %v1113 = vsel %vm299, %v1066, 0
        %v1116 = vsel %vm299, %v1067, 0
        %v1119 = vsel %vm348, %v1069, 0
        %1121 = vmatprep.subr.bf16.mxu0 0
        %1122 = vmatpush1.bf16.msra.mxu0 %v1119
        %1123 = vmatprep.subr.bf16.mxu0 0
        %1124 = vmatpush1.bf16.msra.mxu0 0
        %1125 = vmatprep.subr.bf16.mxu0 0
        %1126 = vmatpush1.bf16.msra.mxu0 0
        %1127 = vmatprep.subr.bf16.mxu0 0
        %1128 = vmatpush1.bf16.msra.mxu0 0
        %1129 = vmatprep.subr.bf16.mxu0 0
        %1130 = vmatpush1.bf16.msra.mxu0 0
        %1131 = vmatprep.subr.bf16.mxu0 0
        %1132 = vmatpush1.bf16.msra.mxu0 0
        %1133 = vmatprep.subr.bf16.mxu0 0
        %1134 = vmatpush1.bf16.msra.mxu0 0
        %1135 = vmatprep.subr.bf16.mxu0 0
        %1136 = vmatpush1.bf16.msra.mxu0 0
        %1137 = vmatprep.subr.bf16.mxu0 0
        %1138 = vmatpush1.bf16.msra.mxu0 0
        %1139 = vmatprep.subr.bf16.mxu0 0
        %1140 = vmatpush1.bf16.msra.mxu0 0
        %1141 = vmatprep.subr.bf16.mxu0 0
        %1142 = vmatpush1.bf16.msra.mxu0 0
        %1143 = vmatprep.subr.bf16.mxu0 0
        %1144 = vmatpush1.bf16.msra.mxu0 0
        %1145 = vmatprep.subr.bf16.mxu0 0
        %1146 = vmatpush1.bf16.msra.mxu0 0
        %1147 = vmatprep.subr.bf16.mxu0 0
        %1148 = vmatpush1.bf16.msra.mxu0 0
        %1149 = vmatprep.subr.bf16.mxu0 0
        %1150 = vmatpush1.bf16.msra.mxu0 0
        %1151 = vmatprep.subr.bf16.mxu0 0
        %1152 = vmatpush1.bf16.msra.mxu0 0
        %1153 = vmatprep.mubr.bf16.mxu0 0
        %1154 = vmatmul.mubr.bf16.gmra.mrb[0].mxu0 %v1071
        %v1155 = vpop.f32.mrb[0].mxu0
        %v1156 = vadd.f32 0.0, %v1155
        %v1157 = vpop.f32.mrb[0].mxu0
        %v1158 = vpop.f32.mrb[0].mxu0
        %v1159 = vadd.f32 0.0, %v1158
        %v1160 = vpop.f32.mrb[0].mxu0
        %1161 = vmatprep.mubr.bf16.mxu0 0
        %1162 = vmatmul.mubr.bf16.gmra.mrb[0].mxu0 %v1074
        %v1163 = vpop.f32.mrb[0].mxu0
        %v1164 = vadd.f32 0.0, %v1163
        %v1165 = vpop.f32.mrb[0].mxu0
        %v1166 = vpop.f32.mrb[0].mxu0
        %v1167 = vadd.f32 0.0, %v1166
        %v1168 = vpop.f32.mrb[0].mxu0
        %1169 = vmatprep.mubr.bf16.mxu0 0
        %1170 = vmatmul.mubr.bf16.gmra.mrb[0].mxu0 %v1077
        %v1171 = vpop.f32.mrb[0].mxu0
        %v1172 = vadd.f32 0.0, %v1171
        %v1173 = vpop.f32.mrb[0].mxu0
        %v1174 = vpop.f32.mrb[0].mxu0
        %v1175 = vadd.f32 0.0, %v1174
        %v1176 = vpop.f32.mrb[0].mxu0
        %1177 = vmatprep.mubr.bf16.mxu0 0
        %1178 = vmatmul.mubr.bf16.gmra.mrb[0].mxu0 %v1080
        %v1179 = vpop.f32.mrb[0].mxu0
        %v1180 = vadd.f32 0.0, %v1179
        %v1181 = vpop.f32.mrb[0].mxu0
        %v1182 = vpop.f32.mrb[0].mxu0
        %v1183 = vadd.f32 0.0, %v1182
        %v1184 = vpop.f32.mrb[0].mxu0
        %1185 = vmatprep.mubr.bf16.mxu0 0
        %1186 = vmatmul.mubr.bf16.gmra.mrb[0].mxu0 %v1083
        %v1187 = vpop.f32.mrb[0].mxu0
        %v1188 = vadd.f32 0.0, %v1187
        %v1189 = vpop.f32.mrb[0].mxu0
        %v1190 = vpop.f32.mrb[0].mxu0
        %v1191 = vadd.f32 0.0, %v1190
        %v1192 = vpop.f32.mrb[0].mxu0
        %1193 = vmatprep.mubr.bf16.mxu0 0
        %1194 = vmatmul.mubr.bf16.gmra.mrb[0].mxu0 %v1086
        %v1195 = vpop.f32.mrb[0].mxu0
        %v1196 = vadd.f32 0.0, %v1195
        %v1197 = vpop.f32.mrb[0].mxu0
        %v1198 = vpop.f32.mrb[0].mxu0
        %v1199 = vadd.f32 0.0, %v1198
        %v1200 = vpop.f32.mrb[0].mxu0
        %1201 = vmatprep.mubr.bf16.mxu0 0
        %1202 = vmatmul.mubr.bf16.gmra.mrb[0].mxu0 %v1089
        %v1203 = vpop.f32.mrb[0].mxu0
        %v1204 = vadd.f32 0.0, %v1203
        %v1205 = vpop.f32.mrb[0].mxu0
        %v1206 = vpop.f32.mrb[0].mxu0
        %v1207 = vadd.f32 0.0, %v1206
        %v1208 = vpop.f32.mrb[0].mxu0
        %1209 = vmatprep.mubr.bf16.mxu0 0
        %1210 = vmatmul.mubr.bf16.gmra.mrb[0].mxu0 %v1092
        %v1211 = vpop.f32.mrb[0].mxu0
        %v1212 = vadd.f32 0.0, %v1211
        %v1213 = vpop.f32.mrb[0].mxu0
        %v1214 = vpop.f32.mrb[0].mxu0
        %v1215 = vadd.f32 0.0, %v1214
        %v1216 = vpop.f32.mrb[0].mxu0
        %1217 = vmatprep.mubr.bf16.mxu0 0
        %1218 = vmatmul.mubr.bf16.gmra.mrb[0].mxu0 %v1095
        %v1219 = vpop.f32.mrb[0].mxu0
        %v1220 = vadd.f32 0.0, %v1219
        %v1221 = vpop.f32.mrb[0].mxu0
        %v1222 = vpop.f32.mrb[0].mxu0
        %v1223 = vadd.f32 0.0, %v1222
        %v1224 = vpop.f32.mrb[0].mxu0
        %1225 = vmatprep.mubr.bf16.mxu0 0
        %1226 = vmatmul.mubr.bf16.gmra.mrb[0].mxu0 %v1098
        %v1227 = vpop.f32.mrb[0].mxu0
        %v1228 = vadd.f32 0.0, %v1227
        %v1229 = vpop.f32.mrb[0].mxu0
        %v1230 = vpop.f32.mrb[0].mxu0
        %v1231 = vadd.f32 0.0, %v1230
        %v1232 = vpop.f32.mrb[0].mxu0
        %1233 = vmatprep.mubr.bf16.mxu0 0
        %1234 = vmatmul.mubr.bf16.gmra.mrb[0].mxu0 %v1101
        %v1235 = vpop.f32.mrb[0].mxu0
        %v1236 = vadd.f32 0.0, %v1235
        %v1237 = vpop.f32.mrb[0].mxu0
        %v1238 = vpop.f32.mrb[0].mxu0
        %v1239 = vadd.f32 0.0, %v1238
        %v1240 = vpop.f32.mrb[0].mxu0
        %1241 = vmatprep.mubr.bf16.mxu0 0
        %1242 = vmatmul.mubr.bf16.gmra.mrb[0].mxu0 %v1104
        %v1243 = vpop.f32.mrb[0].mxu0
        %v1244 = vadd.f32 0.0, %v1243
        %v1245 = vpop.f32.mrb[0].mxu0
        %v1246 = vpop.f32.mrb[0].mxu0
        %v1247 = vadd.f32 0.0, %v1246
        %v1248 = vpop.f32.mrb[0].mxu0
        %1249 = vmatprep.mubr.bf16.mxu0 0
        %1250 = vmatmul.mubr.bf16.gmra.mrb[0].mxu0 %v1107
        %v1251 = vpop.f32.mrb[0].mxu0
        %v1252 = vadd.f32 0.0, %v1251
        %v1253 = vpop.f32.mrb[0].mxu0
        %v1254 = vpop.f32.mrb[0].mxu0
        %v1255 = vadd.f32 0.0, %v1254
        %v1256 = vpop.f32.mrb[0].mxu0
        %1257 = vmatprep.mubr.bf16.mxu0 0
        %1258 = vmatmul.mubr.bf16.gmra.mrb[0].mxu0 %v1110
        %v1259 = vpop.f32.mrb[0].mxu0
        %v1260 = vadd.f32 0.0, %v1259
        %v1261 = vpop.f32.mrb[0].mxu0
        %v1262 = vpop.f32.mrb[0].mxu0
        %v1263 = vadd.f32 0.0, %v1262
        %v1264 = vpop.f32.mrb[0].mxu0
        %1265 = vmatprep.mubr.bf16.mxu0 0
        %1266 = vmatmul.mubr.bf16.gmra.mrb[0].mxu0 %v1113
        %v1267 = vpop.f32.mrb[0].mxu0
        %v1268 = vadd.f32 0.0, %v1267
        %v1269 = vpop.f32.mrb[0].mxu0
        %v1270 = vpop.f32.mrb[0].mxu0
        %v1271 = vadd.f32 0.0, %v1270
        %v1272 = vpop.f32.mrb[0].mxu0
        %1273 = vmatprep.mubr.bf16.mxu0 0
        %1274 = vmatmul.mubr.bf16.gmra.mrb[0].mxu0 %v1116
        %v1275 = vpop.f32.mrb[0].mxu0
        %v1276 = vadd.f32 0.0, %v1275
        %v1277 = vpop.f32.mrb[0].mxu0
        %v1278 = vpop.f32.mrb[0].mxu0
        %v1279 = vadd.f32 0.0, %v1278
        %v1280 = vpop.f32.mrb[0].mxu0
        %1281 = vdwg.mxu0
        %v1282 = vadd.f32 %v987, %v1156
        %v1283 = vadd.f32 %v988, %v1159
        %v1284 = vadd.f32 %v989, %v1164
        %v1285 = vadd.f32 %v990, %v1167
        %v1286 = vadd.f32 %v991, %v1172
        %v1287 = vadd.f32 %v992, %v1175
        %v1288 = vadd.f32 %v993, %v1180
        %v1289 = vadd.f32 %v994, %v1183
        %v1290 = vadd.f32 %v995, %v1188
        %v1291 = vadd.f32 %v996, %v1191
        %v1292 = vadd.f32 %v997, %v1196
        %v1293 = vadd.f32 %v998, %v1199
        %v1294 = vadd.f32 %v999, %v1204
        %v1295 = vadd.f32 %v1000, %v1207
        %v1296 = vadd.f32 %v1001, %v1212
        %v1297 = vadd.f32 %v1002, %v1215
        %v1298 = vadd.f32 %v1003, %v1220
        %v1299 = vadd.f32 %v1004, %v1223
        %v1300 = vadd.f32 %v1005, %v1228
        %v1301 = vadd.f32 %v1006, %v1231
        %v1302 = vadd.f32 %v1007, %v1236
        %v1303 = vadd.f32 %v1008, %v1239
        %v1304 = vadd.f32 %v1009, %v1244
        %v1305 = vadd.f32 %v1010, %v1247
        %v1306 = vadd.f32 %v1011, %v1252
        %v1307 = vadd.f32 %v1012, %v1255
        %v1308 = vadd.f32 %v1013, %v1260
        %v1309 = vadd.f32 %v1014, %v1263
        %v1310 = vadd.f32 %v1015, %v1268
        %v1311 = vadd.f32 %v1016, %v1271
        %v1312 = vadd.f32 %v1017, %v1276
        %v1313 = vadd.f32 %v1018, %v1279
        %v1314 = vld [vmem:[%s1019 + $0x1] sm:$0xff]
        %v1315 = vld [vmem:[%s1019 + $0x9] sm:$0xff]
        %v1316 = vld [vmem:[%s1019 + $0x19] sm:$0xff]
        %v1317 = vld [vmem:[%s1019 + $0x21] sm:$0xff]
        %v1318 = vld [vmem:[%s1019 + $0x31] sm:$0xff]
        %v1319 = vld [vmem:[%s1019 + $0x39] sm:$0xff]
        %v1320 = vld [vmem:[%s1019 + $0x49] sm:$0xff]
        %v1321 = vld [vmem:[%s1019 + $0x51] sm:$0xff]
        %v1322 = vld [vmem:[%s1019 + $0x61] sm:$0xff]
        %v1323 = vld [vmem:[%s1019 + $0x69] sm:$0xff]
        %v1324 = vld [vmem:[%s1019 + $0x79] sm:$0xff]
        %v1325 = vld [vmem:[%s1019 + $0x81] sm:$0xff]
        %v1326 = vld [vmem:[%s1019 + $0x91] sm:$0xff]
        %v1327 = vld [vmem:[%s1019 + $0x99] sm:$0xff]
        %v1328 = vld [vmem:[%s1019 + $0xa9] sm:$0xff]
        %v1329 = vld [vmem:[%s1019 + $0xb1] sm:$0xff]
        %v1330 = vld [vmem:[%s1019 + $0xc1] sm:$0xff]
        %v1331 = vld [vmem:[%s1019 + $0xc9] sm:$0xff]
        %v1332 = vld [vmem:[%s1019 + $0xd9] sm:$0xff]
        %v1333 = vld [vmem:[%s1019 + $0xe1] sm:$0xff]
        %v1334 = vld [vmem:[%s1019 + $0xf1] sm:$0xff]
        %v1335 = vld [vmem:[%s1019 + $0xf9] sm:$0xff]
        %v1336 = vld [vmem:[%s1019 + $0x109] sm:$0xff]
        %v1337 = vld [vmem:[%s1019 + $0x111] sm:$0xff]
        %v1338 = vld [vmem:[%s1019 + $0x121] sm:$0xff]
        %v1339 = vld [vmem:[%s1019 + $0x129] sm:$0xff]
        %v1340 = vld [vmem:[%s1019 + $0x139] sm:$0xff]
        %v1341 = vld [vmem:[%s1019 + $0x141] sm:$0xff]
        %v1342 = vld [vmem:[%s1019 + $0x151] sm:$0xff]
        %v1343 = vld [vmem:[%s1019 + $0x159] sm:$0xff]
        %v1344 = vld [vmem:[%s1019 + $0x169] sm:$0xff]
        %v1345 = vld [vmem:[%s1019 + $0x171] sm:$0xff]
        %v1346 = vpack.c.bf16 %v1315, %v1314
        %v1347 = vpack.c.bf16 %v1317, %v1316
        %v1348 = vpack.c.bf16 %v1319, %v1318
        %v1349 = vpack.c.bf16 %v1321, %v1320
        %v1350 = vpack.c.bf16 %v1323, %v1322
        %v1351 = vpack.c.bf16 %v1325, %v1324
        %v1352 = vpack.c.bf16 %v1327, %v1326
        %v1353 = vpack.c.bf16 %v1329, %v1328
        %v1354 = vpack.c.bf16 %v1331, %v1330
        %v1355 = vpack.c.bf16 %v1333, %v1332
        %v1356 = vpack.c.bf16 %v1335, %v1334
        %v1357 = vpack.c.bf16 %v1337, %v1336
        %v1358 = vpack.c.bf16 %v1339, %v1338
        %v1359 = vpack.c.bf16 %v1341, %v1340
        %v1360 = vpack.c.bf16 %v1343, %v1342
        %v1361 = vpack.c.bf16 %v1345, %v1344
        %s1362 = scalar_lea.vmem [#allocation2], 16
        %v1363 = vld [vmem:[%s1362] sm:$0xf]
        %v1365 = vsel %vm299, %v1346, 0
        %v1368 = vsel %vm299, %v1347, 0
        %v1371 = vsel %vm299, %v1348, 0
        %v1374 = vsel %vm299, %v1349, 0
        %v1377 = vsel %vm299, %v1350, 0
        %v1380 = vsel %vm299, %v1351, 0
        %v1383 = vsel %vm299, %v1352, 0
        %v1386 = vsel %vm299, %v1353, 0
        %v1389 = vsel %vm299, %v1354, 0
        %v1392 = vsel %vm299, %v1355, 0
        %v1395 = vsel %vm299, %v1356, 0
        %v1398 = vsel %vm299, %v1357, 0
        %v1401 = vsel %vm299, %v1358, 0
        %v1404 = vsel %vm299, %v1359, 0
        %v1407 = vsel %vm299, %v1360, 0
        %v1410 = vsel %vm299, %v1361, 0
        %v1413 = vsel %vm348, %v1363, 0
        %1415 = vmatprep.subr.bf16.mxu0 0
        %1416 = vmatpush1.bf16.msra.mxu0 %v1413
        %1417 = vmatprep.subr.bf16.mxu0 0
        %1418 = vmatpush1.bf16.msra.mxu0 0
        %1419 = vmatprep.subr.bf16.mxu0 0
        %1420 = vmatpush1.bf16.msra.mxu0 0
        %1421 = vmatprep.subr.bf16.mxu0 0
        %1422 = vmatpush1.bf16.msra.mxu0 0
        %1423 = vmatprep.subr.bf16.mxu0 0
        %1424 = vmatpush1.bf16.msra.mxu0 0
        %1425 = vmatprep.subr.bf16.mxu0 0
        %1426 = vmatpush1.bf16.msra.mxu0 0
        %1427 = vmatprep.subr.bf16.mxu0 0
        %1428 = vmatpush1.bf16.msra.mxu0 0
        %1429 = vmatprep.subr.bf16.mxu0 0
        %1430 = vmatpush1.bf16.msra.mxu0 0
        %1431 = vmatprep.subr.bf16.mxu0 0
        %1432 = vmatpush1.bf16.msra.mxu0 0
        %1433 = vmatprep.subr.bf16.mxu0 0
        %1434 = vmatpush1.bf16.msra.mxu0 0
        %1435 = vmatprep.subr.bf16.mxu0 0
        %1436 = vmatpush1.bf16.msra.mxu0 0
        %1437 = vmatprep.subr.bf16.mxu0 0
        %1438 = vmatpush1.bf16.msra.mxu0 0
        %1439 = vmatprep.subr.bf16.mxu0 0
        %1440 = vmatpush1.bf16.msra.mxu0 0
        %1441 = vmatprep.subr.bf16.mxu0 0
        %1442 = vmatpush1.bf16.msra.mxu0 0
        %1443 = vmatprep.subr.bf16.mxu0 0
        %1444 = vmatpush1.bf16.msra.mxu0 0
        %1445 = vmatprep.subr.bf16.mxu0 0
        %1446 = vmatpush1.bf16.msra.mxu0 0
        %1447 = vmatprep.mubr.bf16.mxu0 0
        %1448 = vmatmul.mubr.bf16.gmra.mrb[0].mxu0 %v1365
        %v1449 = vpop.f32.mrb[0].mxu0
        %v1450 = vadd.f32 0.0, %v1449
        %v1451 = vpop.f32.mrb[0].mxu0
        %v1452 = vpop.f32.mrb[0].mxu0
        %v1453 = vadd.f32 0.0, %v1452
        %v1454 = vpop.f32.mrb[0].mxu0
        %1455 = vmatprep.mubr.bf16.mxu0 0
        %1456 = vmatmul.mubr.bf16.gmra.mrb[0].mxu0 %v1368
        %v1457 = vpop.f32.mrb[0].mxu0
        %v1458 = vadd.f32 0.0, %v1457
        %v1459 = vpop.f32.mrb[0].mxu0
        %v1460 = vpop.f32.mrb[0].mxu0
        %v1461 = vadd.f32 0.0, %v1460
        %v1462 = vpop.f32.mrb[0].mxu0
        %1463 = vmatprep.mubr.bf16.mxu0 0
        %1464 = vmatmul.mubr.bf16.gmra.mrb[0].mxu0 %v1371
        %v1465 = vpop.f32.mrb[0].mxu0
        %v1466 = vadd.f32 0.0, %v1465
        %v1467 = vpop.f32.mrb[0].mxu0
        %v1468 = vpop.f32.mrb[0].mxu0
        %v1469 = vadd.f32 0.0, %v1468
        %v1470 = vpop.f32.mrb[0].mxu0
        %1471 = vmatprep.mubr.bf16.mxu0 0
        %1472 = vmatmul.mubr.bf16.gmra.mrb[0].mxu0 %v1374
        %v1473 = vpop.f32.mrb[0].mxu0
        %v1474 = vadd.f32 0.0, %v1473
        %v1475 = vpop.f32.mrb[0].mxu0
        %v1476 = vpop.f32.mrb[0].mxu0
        %v1477 = vadd.f32 0.0, %v1476
        %v1478 = vpop.f32.mrb[0].mxu0
        %1479 = vmatprep.mubr.bf16.mxu0 0
        %1480 = vmatmul.mubr.bf16.gmra.mrb[0].mxu0 %v1377
        %v1481 = vpop.f32.mrb[0].mxu0
        %v1482 = vadd.f32 0.0, %v1481
        %v1483 = vpop.f32.mrb[0].mxu0
        %v1484 = vpop.f32.mrb[0].mxu0
        %v1485 = vadd.f32 0.0, %v1484
        %v1486 = vpop.f32.mrb[0].mxu0
        %1487 = vmatprep.mubr.bf16.mxu0 0
        %1488 = vmatmul.mubr.bf16.gmra.mrb[0].mxu0 %v1380
        %v1489 = vpop.f32.mrb[0].mxu0
        %v1490 = vadd.f32 0.0, %v1489
        %v1491 = vpop.f32.mrb[0].mxu0
        %v1492 = vpop.f32.mrb[0].mxu0
        %v1493 = vadd.f32 0.0, %v1492
        %v1494 = vpop.f32.mrb[0].mxu0
        %1495 = vmatprep.mubr.bf16.mxu0 0
        %1496 = vmatmul.mubr.bf16.gmra.mrb[0].mxu0 %v1383
        %v1497 = vpop.f32.mrb[0].mxu0
        %v1498 = vadd.f32 0.0, %v1497
        %v1499 = vpop.f32.mrb[0].mxu0
        %v1500 = vpop.f32.mrb[0].mxu0
        %v1501 = vadd.f32 0.0, %v1500
        %v1502 = vpop.f32.mrb[0].mxu0
        %1503 = vmatprep.mubr.bf16.mxu0 0
        %1504 = vmatmul.mubr.bf16.gmra.mrb[0].mxu0 %v1386
        %v1505 = vpop.f32.mrb[0].mxu0
        %v1506 = vadd.f32 0.0, %v1505
        %v1507 = vpop.f32.mrb[0].mxu0
        %v1508 = vpop.f32.mrb[0].mxu0
        %v1509 = vadd.f32 0.0, %v1508
        %v1510 = vpop.f32.mrb[0].mxu0
        %1511 = vmatprep.mubr.bf16.mxu0 0
        %1512 = vmatmul.mubr.bf16.gmra.mrb[0].mxu0 %v1389
        %v1513 = vpop.f32.mrb[0].mxu0
        %v1514 = vadd.f32 0.0, %v1513
        %v1515 = vpop.f32.mrb[0].mxu0
        %v1516 = vpop.f32.mrb[0].mxu0
        %v1517 = vadd.f32 0.0, %v1516
        %v1518 = vpop.f32.mrb[0].mxu0
        %1519 = vmatprep.mubr.bf16.mxu0 0
        %1520 = vmatmul.mubr.bf16.gmra.mrb[0].mxu0 %v1392
        %v1521 = vpop.f32.mrb[0].mxu0
        %v1522 = vadd.f32 0.0, %v1521
        %v1523 = vpop.f32.mrb[0].mxu0
        %v1524 = vpop.f32.mrb[0].mxu0
        %v1525 = vadd.f32 0.0, %v1524
        %v1526 = vpop.f32.mrb[0].mxu0
        %1527 = vmatprep.mubr.bf16.mxu0 0
        %1528 = vmatmul.mubr.bf16.gmra.mrb[0].mxu0 %v1395
        %v1529 = vpop.f32.mrb[0].mxu0
        %v1530 = vadd.f32 0.0, %v1529
        %v1531 = vpop.f32.mrb[0].mxu0
        %v1532 = vpop.f32.mrb[0].mxu0
        %v1533 = vadd.f32 0.0, %v1532
        %v1534 = vpop.f32.mrb[0].mxu0
        %1535 = vmatprep.mubr.bf16.mxu0 0
        %1536 = vmatmul.mubr.bf16.gmra.mrb[0].mxu0 %v1398
        %v1537 = vpop.f32.mrb[0].mxu0
        %v1538 = vadd.f32 0.0, %v1537
        %v1539 = vpop.f32.mrb[0].mxu0
        %v1540 = vpop.f32.mrb[0].mxu0
        %v1541 = vadd.f32 0.0, %v1540
        %v1542 = vpop.f32.mrb[0].mxu0
        %1543 = vmatprep.mubr.bf16.mxu0 0
        %1544 = vmatmul.mubr.bf16.gmra.mrb[0].mxu0 %v1401
        %v1545 = vpop.f32.mrb[0].mxu0
        %v1546 = vadd.f32 0.0, %v1545
        %v1547 = vpop.f32.mrb[0].mxu0
        %v1548 = vpop.f32.mrb[0].mxu0
        %v1549 = vadd.f32 0.0, %v1548
        %v1550 = vpop.f32.mrb[0].mxu0
        %1551 = vmatprep.mubr.bf16.mxu0 0
        %1552 = vmatmul.mubr.bf16.gmra.mrb[0].mxu0 %v1404
        %v1553 = vpop.f32.mrb[0].mxu0
        %v1554 = vadd.f32 0.0, %v1553
        %v1555 = vpop.f32.mrb[0].mxu0
        %v1556 = vpop.f32.mrb[0].mxu0
        %v1557 = vadd.f32 0.0, %v1556
        %v1558 = vpop.f32.mrb[0].mxu0
        %1559 = vmatprep.mubr.bf16.mxu0 0
        %1560 = vmatmul.mubr.bf16.gmra.mrb[0].mxu0 %v1407
        %v1561 = vpop.f32.mrb[0].mxu0
        %v1562 = vadd.f32 0.0, %v1561
        %v1563 = vpop.f32.mrb[0].mxu0
        %v1564 = vpop.f32.mrb[0].mxu0
        %v1565 = vadd.f32 0.0, %v1564
        %v1566 = vpop.f32.mrb[0].mxu0
        %1567 = vmatprep.mubr.bf16.mxu0 0
        %1568 = vmatmul.mubr.bf16.gmra.mrb[0].mxu0 %v1410
        %v1569 = vpop.f32.mrb[0].mxu0
        %v1570 = vadd.f32 0.0, %v1569
        %v1571 = vpop.f32.mrb[0].mxu0
        %v1572 = vpop.f32.mrb[0].mxu0
        %v1573 = vadd.f32 0.0, %v1572
        %v1574 = vpop.f32.mrb[0].mxu0
        %1575 = vdwg.mxu0
        %v1576 = vadd.f32 %v1282, %v1450
        %v1577 = vadd.f32 %v1283, %v1453
        %v1578 = vadd.f32 %v1284, %v1458
        %v1579 = vadd.f32 %v1285, %v1461
        %v1580 = vadd.f32 %v1286, %v1466
        %v1581 = vadd.f32 %v1287, %v1469
        %v1582 = vadd.f32 %v1288, %v1474
        %v1583 = vadd.f32 %v1289, %v1477
        %v1584 = vadd.f32 %v1290, %v1482
        %v1585 = vadd.f32 %v1291, %v1485
        %v1586 = vadd.f32 %v1292, %v1490
        %v1587 = vadd.f32 %v1293, %v1493
        %v1588 = vadd.f32 %v1294, %v1498
        %v1589 = vadd.f32 %v1295, %v1501
        %v1590 = vadd.f32 %v1296, %v1506
        %v1591 = vadd.f32 %v1297, %v1509
        %v1592 = vadd.f32 %v1298, %v1514
        %v1593 = vadd.f32 %v1299, %v1517
        %v1594 = vadd.f32 %v1300, %v1522
        %v1595 = vadd.f32 %v1301, %v1525
        %v1596 = vadd.f32 %v1302, %v1530
        %v1597 = vadd.f32 %v1303, %v1533
        %v1598 = vadd.f32 %v1304, %v1538
        %v1599 = vadd.f32 %v1305, %v1541
        %v1600 = vadd.f32 %v1306, %v1546
        %v1601 = vadd.f32 %v1307, %v1549
        %v1602 = vadd.f32 %v1308, %v1554
        %v1603 = vadd.f32 %v1309, %v1557
        %v1604 = vadd.f32 %v1310, %v1562
        %v1605 = vadd.f32 %v1311, %v1565
        %v1606 = vadd.f32 %v1312, %v1570
        %v1607 = vadd.f32 %v1313, %v1573
        %v1608 = vld [vmem:[%s1019 + $0x2] sm:$0xff]
        %v1609 = vld [vmem:[%s1019 + $0xa] sm:$0xff]
        %v1610 = vld [vmem:[%s1019 + $0x1a] sm:$0xff]
        %v1611 = vld [vmem:[%s1019 + $0x22] sm:$0xff]
        %v1612 = vld [vmem:[%s1019 + $0x32] sm:$0xff]
        %v1613 = vld [vmem:[%s1019 + $0x3a] sm:$0xff]
        %v1614 = vld [vmem:[%s1019 + $0x4a] sm:$0xff]
        %v1615 = vld [vmem:[%s1019 + $0x52] sm:$0xff]
        %v1616 = vld [vmem:[%s1019 + $0x62] sm:$0xff]
        %v1617 = vld [vmem:[%s1019 + $0x6a] sm:$0xff]
        %v1618 = vld [vmem:[%s1019 + $0x7a] sm:$0xff]
        %v1619 = vld [vmem:[%s1019 + $0x82] sm:$0xff]
        %v1620 = vld [vmem:[%s1019 + $0x92] sm:$0xff]
        %v1621 = vld [vmem:[%s1019 + $0x9a] sm:$0xff]
        %v1622 = vld [vmem:[%s1019 + $0xaa] sm:$0xff]
        %v1623 = vld [vmem:[%s1019 + $0xb2] sm:$0xff]
        %v1624 = vld [vmem:[%s1019 + $0xc2] sm:$0xff]
        %v1625 = vld [vmem:[%s1019 + $0xca] sm:$0xff]
        %v1626 = vld [vmem:[%s1019 + $0xda] sm:$0xff]
        %v1627 = vld [vmem:[%s1019 + $0xe2] sm:$0xff]
        %v1628 = vld [vmem:[%s1019 + $0xf2] sm:$0xff]
        %v1629 = vld [vmem:[%s1019 + $0xfa] sm:$0xff]
        %v1630 = vld [vmem:[%s1019 + $0x10a] sm:$0xff]
        %v1631 = vld [vmem:[%s1019 + $0x112] sm:$0xff]
        %v1632 = vld [vmem:[%s1019 + $0x122] sm:$0xff]
        %v1633 = vld [vmem:[%s1019 + $0x12a] sm:$0xff]
        %v1634 = vld [vmem:[%s1019 + $0x13a] sm:$0xff]
        %v1635 = vld [vmem:[%s1019 + $0x142] sm:$0xff]
        %v1636 = vld [vmem:[%s1019 + $0x152] sm:$0xff]
        %v1637 = vld [vmem:[%s1019 + $0x15a] sm:$0xff]
        %v1638 = vld [vmem:[%s1019 + $0x16a] sm:$0xff]
        %v1639 = vld [vmem:[%s1019 + $0x172] sm:$0xff]
        %v1640 = vpack.c.bf16 %v1609, %v1608
        %v1641 = vpack.c.bf16 %v1611, %v1610
        %v1642 = vpack.c.bf16 %v1613, %v1612
        %v1643 = vpack.c.bf16 %v1615, %v1614
        %v1644 = vpack.c.bf16 %v1617, %v1616
        %v1645 = vpack.c.bf16 %v1619, %v1618
        %v1646 = vpack.c.bf16 %v1621, %v1620
        %v1647 = vpack.c.bf16 %v1623, %v1622
        %v1648 = vpack.c.bf16 %v1625, %v1624
        %v1649 = vpack.c.bf16 %v1627, %v1626
        %v1650 = vpack.c.bf16 %v1629, %v1628
        %v1651 = vpack.c.bf16 %v1631, %v1630
        %v1652 = vpack.c.bf16 %v1633, %v1632
        %v1653 = vpack.c.bf16 %v1635, %v1634
        %v1654 = vpack.c.bf16 %v1637, %v1636
        %v1655 = vpack.c.bf16 %v1639, %v1638
        %s1656 = scalar_lea.vmem [#allocation2], 20
        %v1657 = vld [vmem:[%s1656] sm:$0xf]
        %v1659 = vsel %vm299, %v1640, 0
        %v1662 = vsel %vm299, %v1641, 0
        %v1665 = vsel %vm299, %v1642, 0
        %v1668 = vsel %vm299, %v1643, 0
        %v1671 = vsel %vm299, %v1644, 0
        %v1674 = vsel %vm299, %v1645, 0
        %v1677 = vsel %vm299, %v1646, 0
        %v1680 = vsel %vm299, %v1647, 0
        %v1683 = vsel %vm299, %v1648, 0
        %v1686 = vsel %vm299, %v1649, 0
        %v1689 = vsel %vm299, %v1650, 0
        %v1692 = vsel %vm299, %v1651, 0
        %v1695 = vsel %vm299, %v1652, 0
        %v1698 = vsel %vm299, %v1653, 0
        %v1701 = vsel %vm299, %v1654, 0
        %v1704 = vsel %vm299, %v1655, 0
        %v1707 = vsel %vm348, %v1657, 0
        %1709 = vmatprep.subr.bf16.mxu0 0
        %1710 = vmatpush1.bf16.msra.mxu0 %v1707
        %1711 = vmatprep.subr.bf16.mxu0 0
        %1712 = vmatpush1.bf16.msra.mxu0 0
        %1713 = vmatprep.subr.bf16.mxu0 0
        %1714 = vmatpush1.bf16.msra.mxu0 0
        %1715 = vmatprep.subr.bf16.mxu0 0
        %1716 = vmatpush1.bf16.msra.mxu0 0
        %1717 = vmatprep.subr.bf16.mxu0 0
        %1718 = vmatpush1.bf16.msra.mxu0 0
        %1719 = vmatprep.subr.bf16.mxu0 0
        %1720 = vmatpush1.bf16.msra.mxu0 0
        %1721 = vmatprep.subr.bf16.mxu0 0
        %1722 = vmatpush1.bf16.msra.mxu0 0
        %1723 = vmatprep.subr.bf16.mxu0 0
        %1724 = vmatpush1.bf16.msra.mxu0 0
        %1725 = vmatprep.subr.bf16.mxu0 0
        %1726 = vmatpush1.bf16.msra.mxu0 0
        %1727 = vmatprep.subr.bf16.mxu0 0
        %1728 = vmatpush1.bf16.msra.mxu0 0
        %1729 = vmatprep.subr.bf16.mxu0 0
        %1730 = vmatpush1.bf16.msra.mxu0 0
        %1731 = vmatprep.subr.bf16.mxu0 0
        %1732 = vmatpush1.bf16.msra.mxu0 0
        %1733 = vmatprep.subr.bf16.mxu0 0
        %1734 = vmatpush1.bf16.msra.mxu0 0
        %1735 = vmatprep.subr.bf16.mxu0 0
        %1736 = vmatpush1.bf16.msra.mxu0 0
        %1737 = vmatprep.subr.bf16.mxu0 0
        %1738 = vmatpush1.bf16.msra.mxu0 0
        %1739 = vmatprep.subr.bf16.mxu0 0
        %1740 = vmatpush1.bf16.msra.mxu0 0
        %1741 = vmatprep.mubr.bf16.mxu0 0
        %1742 = vmatmul.mubr.bf16.gmra.mrb[0].mxu0 %v1659
        %v1743 = vpop.f32.mrb[0].mxu0
        %v1744 = vadd.f32 0.0, %v1743
        %v1745 = vpop.f32.mrb[0].mxu0
        %v1746 = vpop.f32.mrb[0].mxu0
        %v1747 = vadd.f32 0.0, %v1746
        %v1748 = vpop.f32.mrb[0].mxu0
        %1749 = vmatprep.mubr.bf16.mxu0 0
        %1750 = vmatmul.mubr.bf16.gmra.mrb[0].mxu0 %v1662
        %v1751 = vpop.f32.mrb[0].mxu0
        %v1752 = vadd.f32 0.0, %v1751
        %v1753 = vpop.f32.mrb[0].mxu0
        %v1754 = vpop.f32.mrb[0].mxu0
        %v1755 = vadd.f32 0.0, %v1754
        %v1756 = vpop.f32.mrb[0].mxu0
        %1757 = vmatprep.mubr.bf16.mxu0 0
        %1758 = vmatmul.mubr.bf16.gmra.mrb[0].mxu0 %v1665
        %v1759 = vpop.f32.mrb[0].mxu0
        %v1760 = vadd.f32 0.0, %v1759
        %v1761 = vpop.f32.mrb[0].mxu0
        %v1762 = vpop.f32.mrb[0].mxu0
        %v1763 = vadd.f32 0.0, %v1762
        %v1764 = vpop.f32.mrb[0].mxu0
        %1765 = vmatprep.mubr.bf16.mxu0 0
        %1766 = vmatmul.mubr.bf16.gmra.mrb[0].mxu0 %v1668
        %v1767 = vpop.f32.mrb[0].mxu0
        %v1768 = vadd.f32 0.0, %v1767
        %v1769 = vpop.f32.mrb[0].mxu0
        %v1770 = vpop.f32.mrb[0].mxu0
        %v1771 = vadd.f32 0.0, %v1770
        %v1772 = vpop.f32.mrb[0].mxu0
        %1773 = vmatprep.mubr.bf16.mxu0 0
        %1774 = vmatmul.mubr.bf16.gmra.mrb[0].mxu0 %v1671
        %v1775 = vpop.f32.mrb[0].mxu0
        %v1776 = vadd.f32 0.0, %v1775
        %v1777 = vpop.f32.mrb[0].mxu0
        %v1778 = vpop.f32.mrb[0].mxu0
        %v1779 = vadd.f32 0.0, %v1778
        %v1780 = vpop.f32.mrb[0].mxu0
        %1781 = vmatprep.mubr.bf16.mxu0 0
        %1782 = vmatmul.mubr.bf16.gmra.mrb[0].mxu0 %v1674
        %v1783 = vpop.f32.mrb[0].mxu0
        %v1784 = vadd.f32 0.0, %v1783
        %v1785 = vpop.f32.mrb[0].mxu0
        %v1786 = vpop.f32.mrb[0].mxu0
        %v1787 = vadd.f32 0.0, %v1786
        %v1788 = vpop.f32.mrb[0].mxu0
        %1789 = vmatprep.mubr.bf16.mxu0 0
        %1790 = vmatmul.mubr.bf16.gmra.mrb[0].mxu0 %v1677
        %v1791 = vpop.f32.mrb[0].mxu0
        %v1792 = vadd.f32 0.0, %v1791
        %v1793 = vpop.f32.mrb[0].mxu0
        %v1794 = vpop.f32.mrb[0].mxu0
        %v1795 = vadd.f32 0.0, %v1794
        %v1796 = vpop.f32.mrb[0].mxu0
        %1797 = vmatprep.mubr.bf16.mxu0 0
        %1798 = vmatmul.mubr.bf16.gmra.mrb[0].mxu0 %v1680
        %v1799 = vpop.f32.mrb[0].mxu0
        %v1800 = vadd.f32 0.0, %v1799
        %v1801 = vpop.f32.mrb[0].mxu0
        %v1802 = vpop.f32.mrb[0].mxu0
        %v1803 = vadd.f32 0.0, %v1802
        %v1804 = vpop.f32.mrb[0].mxu0
        %1805 = vmatprep.mubr.bf16.mxu0 0
        %1806 = vmatmul.mubr.bf16.gmra.mrb[0].mxu0 %v1683
        %v1807 = vpop.f32.mrb[0].mxu0
        %v1808 = vadd.f32 0.0, %v1807
        %v1809 = vpop.f32.mrb[0].mxu0
        %v1810 = vpop.f32.mrb[0].mxu0
        %v1811 = vadd.f32 0.0, %v1810
        %v1812 = vpop.f32.mrb[0].mxu0
        %1813 = vmatprep.mubr.bf16.mxu0 0
        %1814 = vmatmul.mubr.bf16.gmra.mrb[0].mxu0 %v1686
        %v1815 = vpop.f32.mrb[0].mxu0
        %v1816 = vadd.f32 0.0, %v1815
        %v1817 = vpop.f32.mrb[0].mxu0
        %v1818 = vpop.f32.mrb[0].mxu0
        %v1819 = vadd.f32 0.0, %v1818
        %v1820 = vpop.f32.mrb[0].mxu0
        %1821 = vmatprep.mubr.bf16.mxu0 0
        %1822 = vmatmul.mubr.bf16.gmra.mrb[0].mxu0 %v1689
        %v1823 = vpop.f32.mrb[0].mxu0
        %v1824 = vadd.f32 0.0, %v1823
        %v1825 = vpop.f32.mrb[0].mxu0
        %v1826 = vpop.f32.mrb[0].mxu0
        %v1827 = vadd.f32 0.0, %v1826
        %v1828 = vpop.f32.mrb[0].mxu0
        %1829 = vmatprep.mubr.bf16.mxu0 0
        %1830 = vmatmul.mubr.bf16.gmra.mrb[0].mxu0 %v1692
        %v1831 = vpop.f32.mrb[0].mxu0
        %v1832 = vadd.f32 0.0, %v1831
        %v1833 = vpop.f32.mrb[0].mxu0
        %v1834 = vpop.f32.mrb[0].mxu0
        %v1835 = vadd.f32 0.0, %v1834
        %v1836 = vpop.f32.mrb[0].mxu0
        %1837 = vmatprep.mubr.bf16.mxu0 0
        %1838 = vmatmul.mubr.bf16.gmra.mrb[0].mxu0 %v1695
        %v1839 = vpop.f32.mrb[0].mxu0
        %v1840 = vadd.f32 0.0, %v1839
        %v1841 = vpop.f32.mrb[0].mxu0
        %v1842 = vpop.f32.mrb[0].mxu0
        %v1843 = vadd.f32 0.0, %v1842
        %v1844 = vpop.f32.mrb[0].mxu0
        %1845 = vmatprep.mubr.bf16.mxu0 0
        %1846 = vmatmul.mubr.bf16.gmra.mrb[0].mxu0 %v1698
        %v1847 = vpop.f32.mrb[0].mxu0
        %v1848 = vadd.f32 0.0, %v1847
        %v1849 = vpop.f32.mrb[0].mxu0
        %v1850 = vpop.f32.mrb[0].mxu0
        %v1851 = vadd.f32 0.0, %v1850
        %v1852 = vpop.f32.mrb[0].mxu0
        %1853 = vmatprep.mubr.bf16.mxu0 0
        %1854 = vmatmul.mubr.bf16.gmra.mrb[0].mxu0 %v1701
        %v1855 = vpop.f32.mrb[0].mxu0
        %v1856 = vadd.f32 0.0, %v1855
        %v1857 = vpop.f32.mrb[0].mxu0
        %v1858 = vpop.f32.mrb[0].mxu0
        %v1859 = vadd.f32 0.0, %v1858
        %v1860 = vpop.f32.mrb[0].mxu0
        %1861 = vmatprep.mubr.bf16.mxu0 0
        %1862 = vmatmul.mubr.bf16.gmra.mrb[0].mxu0 %v1704
        %v1863 = vpop.f32.mrb[0].mxu0
        %v1864 = vadd.f32 0.0, %v1863
        %v1865 = vpop.f32.mrb[0].mxu0
        %v1866 = vpop.f32.mrb[0].mxu0
        %v1867 = vadd.f32 0.0, %v1866
        %v1868 = vpop.f32.mrb[0].mxu0
        %1869 = vdwg.mxu0
        %v1870 = vadd.f32 %v1576, %v1744
        %v1871 = vadd.f32 %v1577, %v1747
        %v1872 = vadd.f32 %v1578, %v1752
        %v1873 = vadd.f32 %v1579, %v1755
        %v1874 = vadd.f32 %v1580, %v1760
        %v1875 = vadd.f32 %v1581, %v1763
        %v1876 = vadd.f32 %v1582, %v1768
        %v1877 = vadd.f32 %v1583, %v1771
        %v1878 = vadd.f32 %v1584, %v1776
        %v1879 = vadd.f32 %v1585, %v1779
        %v1880 = vadd.f32 %v1586, %v1784
        %v1881 = vadd.f32 %v1587, %v1787
        %v1882 = vadd.f32 %v1588, %v1792
        %v1883 = vadd.f32 %v1589, %v1795
        %v1884 = vadd.f32 %v1590, %v1800
        %v1885 = vadd.f32 %v1591, %v1803
        %v1886 = vadd.f32 %v1592, %v1808
        %v1887 = vadd.f32 %v1593, %v1811
        %v1888 = vadd.f32 %v1594, %v1816
        %v1889 = vadd.f32 %v1595, %v1819
        %v1890 = vadd.f32 %v1596, %v1824
        %v1891 = vadd.f32 %v1597, %v1827
        %v1892 = vadd.f32 %v1598, %v1832
        %v1893 = vadd.f32 %v1599, %v1835
        %v1894 = vadd.f32 %v1600, %v1840
        %v1895 = vadd.f32 %v1601, %v1843
        %v1896 = vadd.f32 %v1602, %v1848
        %v1897 = vadd.f32 %v1603, %v1851
        %v1898 = vadd.f32 %v1604, %v1856
        %v1899 = vadd.f32 %v1605, %v1859
        %v1900 = vadd.f32 %v1606, %v1864
        %v1901 = vadd.f32 %v1607, %v1867
        %s1902 = scalar_lea.vmem %s193, 48
        %v1903 = vld [vmem:[%s1902] sm:$0xff]
        %v1904 = vld [vmem:[%s1902 + $0x8] sm:$0xff]
        %v1905 = vld [vmem:[%s1902 + $0x18] sm:$0xff]
        %v1906 = vld [vmem:[%s1902 + $0x20] sm:$0xff]
        %v1907 = vld [vmem:[%s1902 + $0x30] sm:$0xff]
        %v1908 = vld [vmem:[%s1902 + $0x38] sm:$0xff]
        %v1909 = vld [vmem:[%s1902 + $0x48] sm:$0xff]
        %v1910 = vld [vmem:[%s1902 + $0x50] sm:$0xff]
        %v1911 = vld [vmem:[%s1902 + $0x60] sm:$0xff]
        %v1912 = vld [vmem:[%s1902 + $0x68] sm:$0xff]
        %v1913 = vld [vmem:[%s1902 + $0x78] sm:$0xff]
        %v1914 = vld [vmem:[%s1902 + $0x80] sm:$0xff]
        %v1915 = vld [vmem:[%s1902 + $0x90] sm:$0xff]
        %v1916 = vld [vmem:[%s1902 + $0x98] sm:$0xff]
        %v1917 = vld [vmem:[%s1902 + $0xa8] sm:$0xff]
        %v1918 = vld [vmem:[%s1902 + $0xb0] sm:$0xff]
        %v1919 = vld [vmem:[%s1902 + $0xc0] sm:$0xff]
        %v1920 = vld [vmem:[%s1902 + $0xc8] sm:$0xff]
        %v1921 = vld [vmem:[%s1902 + $0xd8] sm:$0xff]
        %v1922 = vld [vmem:[%s1902 + $0xe0] sm:$0xff]
        %v1923 = vld [vmem:[%s1902 + $0xf0] sm:$0xff]
        %v1924 = vld [vmem:[%s1902 + $0xf8] sm:$0xff]
        %v1925 = vld [vmem:[%s1902 + $0x108] sm:$0xff]
        %v1926 = vld [vmem:[%s1902 + $0x110] sm:$0xff]
        %v1927 = vld [vmem:[%s1902 + $0x120] sm:$0xff]
        %v1928 = vld [vmem:[%s1902 + $0x128] sm:$0xff]
        %v1929 = vld [vmem:[%s1902 + $0x138] sm:$0xff]
        %v1930 = vld [vmem:[%s1902 + $0x140] sm:$0xff]
        %v1931 = vld [vmem:[%s1902 + $0x150] sm:$0xff]
        %v1932 = vld [vmem:[%s1902 + $0x158] sm:$0xff]
        %v1933 = vld [vmem:[%s1902 + $0x168] sm:$0xff]
        %v1934 = vld [vmem:[%s1902 + $0x170] sm:$0xff]
        %v1935 = vpack.c.bf16 %v1904, %v1903
        %v1936 = vpack.c.bf16 %v1906, %v1905
        %v1937 = vpack.c.bf16 %v1908, %v1907
        %v1938 = vpack.c.bf16 %v1910, %v1909
        %v1939 = vpack.c.bf16 %v1912, %v1911
        %v1940 = vpack.c.bf16 %v1914, %v1913
        %v1941 = vpack.c.bf16 %v1916, %v1915
        %v1942 = vpack.c.bf16 %v1918, %v1917
        %v1943 = vpack.c.bf16 %v1920, %v1919
        %v1944 = vpack.c.bf16 %v1922, %v1921
        %v1945 = vpack.c.bf16 %v1924, %v1923
        %v1946 = vpack.c.bf16 %v1926, %v1925
        %v1947 = vpack.c.bf16 %v1928, %v1927
        %v1948 = vpack.c.bf16 %v1930, %v1929
        %v1949 = vpack.c.bf16 %v1932, %v1931
        %v1950 = vpack.c.bf16 %v1934, %v1933
        %s1951 = scalar_lea.vmem [#allocation2], 24
        %v1952 = vld [vmem:[%s1951] sm:$0xf]
        %v1954 = vsel %vm299, %v1935, 0
        %v1957 = vsel %vm299, %v1936, 0
        %v1960 = vsel %vm299, %v1937, 0
        %v1963 = vsel %vm299, %v1938, 0
        %v1966 = vsel %vm299, %v1939, 0
        %v1969 = vsel %vm299, %v1940, 0
        %v1972 = vsel %vm299, %v1941, 0
        %v1975 = vsel %vm299, %v1942, 0
        %v1978 = vsel %vm299, %v1943, 0
        %v1981 = vsel %vm299, %v1944, 0
        %v1984 = vsel %vm299, %v1945, 0
        %v1987 = vsel %vm299, %v1946, 0
        %v1990 = vsel %vm299, %v1947, 0
        %v1993 = vsel %vm299, %v1948, 0
        %v1996 = vsel %vm299, %v1949, 0
        %v1999 = vsel %vm299, %v1950, 0
        %v2002 = vsel %vm348, %v1952, 0
        %2004 = vmatprep.subr.bf16.mxu0 0
        %2005 = vmatpush1.bf16.msra.mxu0 %v2002
        %2006 = vmatprep.subr.bf16.mxu0 0
        %2007 = vmatpush1.bf16.msra.mxu0 0
        %2008 = vmatprep.subr.bf16.mxu0 0
        %2009 = vmatpush1.bf16.msra.mxu0 0
        %2010 = vmatprep.subr.bf16.mxu0 0
        %2011 = vmatpush1.bf16.msra.mxu0 0
        %2012 = vmatprep.subr.bf16.mxu0 0
        %2013 = vmatpush1.bf16.msra.mxu0 0
        %2014 = vmatprep.subr.bf16.mxu0 0
        %2015 = vmatpush1.bf16.msra.mxu0 0
        %2016 = vmatprep.subr.bf16.mxu0 0
        %2017 = vmatpush1.bf16.msra.mxu0 0
        %2018 = vmatprep.subr.bf16.mxu0 0
        %2019 = vmatpush1.bf16.msra.mxu0 0
        %2020 = vmatprep.subr.bf16.mxu0 0
        %2021 = vmatpush1.bf16.msra.mxu0 0
        %2022 = vmatprep.subr.bf16.mxu0 0
        %2023 = vmatpush1.bf16.msra.mxu0 0
        %2024 = vmatprep.subr.bf16.mxu0 0
        %2025 = vmatpush1.bf16.msra.mxu0 0
        %2026 = vmatprep.subr.bf16.mxu0 0
        %2027 = vmatpush1.bf16.msra.mxu0 0
        %2028 = vmatprep.subr.bf16.mxu0 0
        %2029 = vmatpush1.bf16.msra.mxu0 0
        %2030 = vmatprep.subr.bf16.mxu0 0
        %2031 = vmatpush1.bf16.msra.mxu0 0
        %2032 = vmatprep.subr.bf16.mxu0 0
        %2033 = vmatpush1.bf16.msra.mxu0 0
        %2034 = vmatprep.subr.bf16.mxu0 0
        %2035 = vmatpush1.bf16.msra.mxu0 0
        %2036 = vmatprep.mubr.bf16.mxu0 0
        %2037 = vmatmul.mubr.bf16.gmra.mrb[0].mxu0 %v1954
        %v2038 = vpop.f32.mrb[0].mxu0
        %v2039 = vadd.f32 0.0, %v2038
        %v2040 = vpop.f32.mrb[0].mxu0
        %v2041 = vpop.f32.mrb[0].mxu0
        %v2042 = vadd.f32 0.0, %v2041
        %v2043 = vpop.f32.mrb[0].mxu0
        %2044 = vmatprep.mubr.bf16.mxu0 0
        %2045 = vmatmul.mubr.bf16.gmra.mrb[0].mxu0 %v1957
        %v2046 = vpop.f32.mrb[0].mxu0
        %v2047 = vadd.f32 0.0, %v2046
        %v2048 = vpop.f32.mrb[0].mxu0
        %v2049 = vpop.f32.mrb[0].mxu0
        %v2050 = vadd.f32 0.0, %v2049
        %v2051 = vpop.f32.mrb[0].mxu0
        %2052 = vmatprep.mubr.bf16.mxu0 0
        %2053 = vmatmul.mubr.bf16.gmra.mrb[0].mxu0 %v1960
        %v2054 = vpop.f32.mrb[0].mxu0
        %v2055 = vadd.f32 0.0, %v2054
        %v2056 = vpop.f32.mrb[0].mxu0
        %v2057 = vpop.f32.mrb[0].mxu0
        %v2058 = vadd.f32 0.0, %v2057
        %v2059 = vpop.f32.mrb[0].mxu0
        %2060 = vmatprep.mubr.bf16.mxu0 0
        %2061 = vmatmul.mubr.bf16.gmra.mrb[0].mxu0 %v1963
        %v2062 = vpop.f32.mrb[0].mxu0
        %v2063 = vadd.f32 0.0, %v2062
        %v2064 = vpop.f32.mrb[0].mxu0
        %v2065 = vpop.f32.mrb[0].mxu0
        %v2066 = vadd.f32 0.0, %v2065
        %v2067 = vpop.f32.mrb[0].mxu0
        %2068 = vmatprep.mubr.bf16.mxu0 0
        %2069 = vmatmul.mubr.bf16.gmra.mrb[0].mxu0 %v1966
        %v2070 = vpop.f32.mrb[0].mxu0
        %v2071 = vadd.f32 0.0, %v2070
        %v2072 = vpop.f32.mrb[0].mxu0
        %v2073 = vpop.f32.mrb[0].mxu0
        %v2074 = vadd.f32 0.0, %v2073
        %v2075 = vpop.f32.mrb[0].mxu0
        %2076 = vmatprep.mubr.bf16.mxu0 0
        %2077 = vmatmul.mubr.bf16.gmra.mrb[0].mxu0 %v1969
        %v2078 = vpop.f32.mrb[0].mxu0
        %v2079 = vadd.f32 0.0, %v2078
        %v2080 = vpop.f32.mrb[0].mxu0
        %v2081 = vpop.f32.mrb[0].mxu0
        %v2082 = vadd.f32 0.0, %v2081
        %v2083 = vpop.f32.mrb[0].mxu0
        %2084 = vmatprep.mubr.bf16.mxu0 0
        %2085 = vmatmul.mubr.bf16.gmra.mrb[0].mxu0 %v1972
        %v2086 = vpop.f32.mrb[0].mxu0
        %v2087 = vadd.f32 0.0, %v2086
        %v2088 = vpop.f32.mrb[0].mxu0
        %v2089 = vpop.f32.mrb[0].mxu0
        %v2090 = vadd.f32 0.0, %v2089
        %v2091 = vpop.f32.mrb[0].mxu0
        %2092 = vmatprep.mubr.bf16.mxu0 0
        %2093 = vmatmul.mubr.bf16.gmra.mrb[0].mxu0 %v1975
        %v2094 = vpop.f32.mrb[0].mxu0
        %v2095 = vadd.f32 0.0, %v2094
        %v2096 = vpop.f32.mrb[0].mxu0
        %v2097 = vpop.f32.mrb[0].mxu0
        %v2098 = vadd.f32 0.0, %v2097
        %v2099 = vpop.f32.mrb[0].mxu0
        %2100 = vmatprep.mubr.bf16.mxu0 0
        %2101 = vmatmul.mubr.bf16.gmra.mrb[0].mxu0 %v1978
        %v2102 = vpop.f32.mrb[0].mxu0
        %v2103 = vadd.f32 0.0, %v2102
        %v2104 = vpop.f32.mrb[0].mxu0
        %v2105 = vpop.f32.mrb[0].mxu0
        %v2106 = vadd.f32 0.0, %v2105
        %v2107 = vpop.f32.mrb[0].mxu0
        %2108 = vmatprep.mubr.bf16.mxu0 0
        %2109 = vmatmul.mubr.bf16.gmra.mrb[0].mxu0 %v1981
        %v2110 = vpop.f32.mrb[0].mxu0
        %v2111 = vadd.f32 0.0, %v2110
        %v2112 = vpop.f32.mrb[0].mxu0
        %v2113 = vpop.f32.mrb[0].mxu0
        %v2114 = vadd.f32 0.0, %v2113
        %v2115 = vpop.f32.mrb[0].mxu0
        %2116 = vmatprep.mubr.bf16.mxu0 0
        %2117 = vmatmul.mubr.bf16.gmra.mrb[0].mxu0 %v1984
        %v2118 = vpop.f32.mrb[0].mxu0
        %v2119 = vadd.f32 0.0, %v2118
        %v2120 = vpop.f32.mrb[0].mxu0
        %v2121 = vpop.f32.mrb[0].mxu0
        %v2122 = vadd.f32 0.0, %v2121
        %v2123 = vpop.f32.mrb[0].mxu0
        %2124 = vmatprep.mubr.bf16.mxu0 0
        %2125 = vmatmul.mubr.bf16.gmra.mrb[0].mxu0 %v1987
        %v2126 = vpop.f32.mrb[0].mxu0
        %v2127 = vadd.f32 0.0, %v2126
        %v2128 = vpop.f32.mrb[0].mxu0
        %v2129 = vpop.f32.mrb[0].mxu0
        %v2130 = vadd.f32 0.0, %v2129
        %v2131 = vpop.f32.mrb[0].mxu0
        %2132 = vmatprep.mubr.bf16.mxu0 0
        %2133 = vmatmul.mubr.bf16.gmra.mrb[0].mxu0 %v1990
        %v2134 = vpop.f32.mrb[0].mxu0
        %v2135 = vadd.f32 0.0, %v2134
        %v2136 = vpop.f32.mrb[0].mxu0
        %v2137 = vpop.f32.mrb[0].mxu0
        %v2138 = vadd.f32 0.0, %v2137
        %v2139 = vpop.f32.mrb[0].mxu0
        %2140 = vmatprep.mubr.bf16.mxu0 0
        %2141 = vmatmul.mubr.bf16.gmra.mrb[0].mxu0 %v1993
        %v2142 = vpop.f32.mrb[0].mxu0
        %v2143 = vadd.f32 0.0, %v2142
        %v2144 = vpop.f32.mrb[0].mxu0
        %v2145 = vpop.f32.mrb[0].mxu0
        %v2146 = vadd.f32 0.0, %v2145
        %v2147 = vpop.f32.mrb[0].mxu0
        %2148 = vmatprep.mubr.bf16.mxu0 0
        %2149 = vmatmul.mubr.bf16.gmra.mrb[0].mxu0 %v1996
        %v2150 = vpop.f32.mrb[0].mxu0
        %v2151 = vadd.f32 0.0, %v2150
        %v2152 = vpop.f32.mrb[0].mxu0
        %v2153 = vpop.f32.mrb[0].mxu0
        %v2154 = vadd.f32 0.0, %v2153
        %v2155 = vpop.f32.mrb[0].mxu0
        %2156 = vmatprep.mubr.bf16.mxu0 0
        %2157 = vmatmul.mubr.bf16.gmra.mrb[0].mxu0 %v1999
        %v2158 = vpop.f32.mrb[0].mxu0
        %v2159 = vadd.f32 0.0, %v2158
        %v2160 = vpop.f32.mrb[0].mxu0
        %v2161 = vpop.f32.mrb[0].mxu0
        %v2162 = vadd.f32 0.0, %v2161
        %v2163 = vpop.f32.mrb[0].mxu0
        %2164 = vdwg.mxu0
        %v2165 = vadd.f32 %v1870, %v2039
        %v2166 = vadd.f32 %v1871, %v2042
        %v2167 = vadd.f32 %v1872, %v2047
        %v2168 = vadd.f32 %v1873, %v2050
        %v2169 = vadd.f32 %v1874, %v2055
        %v2170 = vadd.f32 %v1875, %v2058
        %v2171 = vadd.f32 %v1876, %v2063
        %v2172 = vadd.f32 %v1877, %v2066
        %v2173 = vadd.f32 %v1878, %v2071
        %v2174 = vadd.f32 %v1879, %v2074
        %v2175 = vadd.f32 %v1880, %v2079
        %v2176 = vadd.f32 %v1881, %v2082
        %v2177 = vadd.f32 %v1882, %v2087
        %v2178 = vadd.f32 %v1883, %v2090
        %v2179 = vadd.f32 %v1884, %v2095
        %v2180 = vadd.f32 %v1885, %v2098
        %v2181 = vadd.f32 %v1886, %v2103
        %v2182 = vadd.f32 %v1887, %v2106
        %v2183 = vadd.f32 %v1888, %v2111
        %v2184 = vadd.f32 %v1889, %v2114
        %v2185 = vadd.f32 %v1890, %v2119
        %v2186 = vadd.f32 %v1891, %v2122
        %v2187 = vadd.f32 %v1892, %v2127
        %v2188 = vadd.f32 %v1893, %v2130
        %v2189 = vadd.f32 %v1894, %v2135
        %v2190 = vadd.f32 %v1895, %v2138
        %v2191 = vadd.f32 %v1896, %v2143
        %v2192 = vadd.f32 %v1897, %v2146
        %v2193 = vadd.f32 %v1898, %v2151
        %v2194 = vadd.f32 %v1899, %v2154
        %v2195 = vadd.f32 %v1900, %v2159
        %v2196 = vadd.f32 %v1901, %v2162
        %v2197 = vld [vmem:[%s1902 + $0x1] sm:$0xff]
        %v2198 = vld [vmem:[%s1902 + $0x9] sm:$0xff]
        %v2199 = vld [vmem:[%s1902 + $0x19] sm:$0xff]
        %v2200 = vld [vmem:[%s1902 + $0x21] sm:$0xff]
        %v2201 = vld [vmem:[%s1902 + $0x31] sm:$0xff]
        %v2202 = vld [vmem:[%s1902 + $0x39] sm:$0xff]
        %v2203 = vld [vmem:[%s1902 + $0x49] sm:$0xff]
        %v2204 = vld [vmem:[%s1902 + $0x51] sm:$0xff]
        %v2205 = vld [vmem:[%s1902 + $0x61] sm:$0xff]
        %v2206 = vld [vmem:[%s1902 + $0x69] sm:$0xff]
        %v2207 = vld [vmem:[%s1902 + $0x79] sm:$0xff]
        %v2208 = vld [vmem:[%s1902 + $0x81] sm:$0xff]
        %v2209 = vld [vmem:[%s1902 + $0x91] sm:$0xff]
        %v2210 = vld [vmem:[%s1902 + $0x99] sm:$0xff]
        %v2211 = vld [vmem:[%s1902 + $0xa9] sm:$0xff]
        %v2212 = vld [vmem:[%s1902 + $0xb1] sm:$0xff]
        %v2213 = vld [vmem:[%s1902 + $0xc1] sm:$0xff]
        %v2214 = vld [vmem:[%s1902 + $0xc9] sm:$0xff]
        %v2215 = vld [vmem:[%s1902 + $0xd9] sm:$0xff]
        %v2216 = vld [vmem:[%s1902 + $0xe1] sm:$0xff]
        %v2217 = vld [vmem:[%s1902 + $0xf1] sm:$0xff]
        %v2218 = vld [vmem:[%s1902 + $0xf9] sm:$0xff]
        %v2219 = vld [vmem:[%s1902 + $0x109] sm:$0xff]
        %v2220 = vld [vmem:[%s1902 + $0x111] sm:$0xff]
        %v2221 = vld [vmem:[%s1902 + $0x121] sm:$0xff]
        %v2222 = vld [vmem:[%s1902 + $0x129] sm:$0xff]
        %v2223 = vld [vmem:[%s1902 + $0x139] sm:$0xff]
        %v2224 = vld [vmem:[%s1902 + $0x141] sm:$0xff]
        %v2225 = vld [vmem:[%s1902 + $0x151] sm:$0xff]
        %v2226 = vld [vmem:[%s1902 + $0x159] sm:$0xff]
        %v2227 = vld [vmem:[%s1902 + $0x169] sm:$0xff]
        %v2228 = vld [vmem:[%s1902 + $0x171] sm:$0xff]
        %v2229 = vpack.c.bf16 %v2198, %v2197
        %v2230 = vpack.c.bf16 %v2200, %v2199
        %v2231 = vpack.c.bf16 %v2202, %v2201
        %v2232 = vpack.c.bf16 %v2204, %v2203
        %v2233 = vpack.c.bf16 %v2206, %v2205
        %v2234 = vpack.c.bf16 %v2208, %v2207
        %v2235 = vpack.c.bf16 %v2210, %v2209
        %v2236 = vpack.c.bf16 %v2212, %v2211
        %v2237 = vpack.c.bf16 %v2214, %v2213
        %v2238 = vpack.c.bf16 %v2216, %v2215
        %v2239 = vpack.c.bf16 %v2218, %v2217
        %v2240 = vpack.c.bf16 %v2220, %v2219
        %v2241 = vpack.c.bf16 %v2222, %v2221
        %v2242 = vpack.c.bf16 %v2224, %v2223
        %v2243 = vpack.c.bf16 %v2226, %v2225
        %v2244 = vpack.c.bf16 %v2228, %v2227
        %s2245 = scalar_lea.vmem [#allocation2], 28
        %v2246 = vld [vmem:[%s2245] sm:$0xf]
        %v2248 = vsel %vm299, %v2229, 0
        %v2251 = vsel %vm299, %v2230, 0
        %v2254 = vsel %vm299, %v2231, 0
        %v2257 = vsel %vm299, %v2232, 0
        %v2260 = vsel %vm299, %v2233, 0
        %v2263 = vsel %vm299, %v2234, 0
        %v2266 = vsel %vm299, %v2235, 0
        %v2269 = vsel %vm299, %v2236, 0
        %v2272 = vsel %vm299, %v2237, 0
        %v2275 = vsel %vm299, %v2238, 0
        %v2278 = vsel %vm299, %v2239, 0
        %v2281 = vsel %vm299, %v2240, 0
        %v2284 = vsel %vm299, %v2241, 0
        %v2287 = vsel %vm299, %v2242, 0
        %v2290 = vsel %vm299, %v2243, 0
        %v2293 = vsel %vm299, %v2244, 0
        %v2296 = vsel %vm348, %v2246, 0
        %2298 = vmatprep.subr.bf16.mxu0 0
        %2299 = vmatpush1.bf16.msra.mxu0 %v2296
        %2300 = vmatprep.subr.bf16.mxu0 0
        %2301 = vmatpush1.bf16.msra.mxu0 0
        %2302 = vmatprep.subr.bf16.mxu0 0
        %2303 = vmatpush1.bf16.msra.mxu0 0
        %2304 = vmatprep.subr.bf16.mxu0 0
        %2305 = vmatpush1.bf16.msra.mxu0 0
        %2306 = vmatprep.subr.bf16.mxu0 0
        %2307 = vmatpush1.bf16.msra.mxu0 0
        %2308 = vmatprep.subr.bf16.mxu0 0
        %2309 = vmatpush1.bf16.msra.mxu0 0
        %2310 = vmatprep.subr.bf16.mxu0 0
        %2311 = vmatpush1.bf16.msra.mxu0 0
        %2312 = vmatprep.subr.bf16.mxu0 0
        %2313 = vmatpush1.bf16.msra.mxu0 0
        %2314 = vmatprep.subr.bf16.mxu0 0
        %2315 = vmatpush1.bf16.msra.mxu0 0
        %2316 = vmatprep.subr.bf16.mxu0 0
        %2317 = vmatpush1.bf16.msra.mxu0 0
        %2318 = vmatprep.subr.bf16.mxu0 0
        %2319 = vmatpush1.bf16.msra.mxu0 0
        %2320 = vmatprep.subr.bf16.mxu0 0
        %2321 = vmatpush1.bf16.msra.mxu0 0
        %2322 = vmatprep.subr.bf16.mxu0 0
        %2323 = vmatpush1.bf16.msra.mxu0 0
        %2324 = vmatprep.subr.bf16.mxu0 0
        %2325 = vmatpush1.bf16.msra.mxu0 0
        %2326 = vmatprep.subr.bf16.mxu0 0
        %2327 = vmatpush1.bf16.msra.mxu0 0
        %2328 = vmatprep.subr.bf16.mxu0 0
        %2329 = vmatpush1.bf16.msra.mxu0 0
        %2330 = vmatprep.mubr.bf16.mxu0 0
        %2331 = vmatmul.mubr.bf16.gmra.mrb[0].mxu0 %v2248
        %v2332 = vpop.f32.mrb[0].mxu0
        %v2333 = vadd.f32 0.0, %v2332
        %v2334 = vpop.f32.mrb[0].mxu0
        %v2335 = vpop.f32.mrb[0].mxu0
        %v2336 = vadd.f32 0.0, %v2335
        %v2337 = vpop.f32.mrb[0].mxu0
        %2338 = vmatprep.mubr.bf16.mxu0 0
        %2339 = vmatmul.mubr.bf16.gmra.mrb[0].mxu0 %v2251
        %v2340 = vpop.f32.mrb[0].mxu0
        %v2341 = vadd.f32 0.0, %v2340
        %v2342 = vpop.f32.mrb[0].mxu0
        %v2343 = vpop.f32.mrb[0].mxu0
        %v2344 = vadd.f32 0.0, %v2343
        %v2345 = vpop.f32.mrb[0].mxu0
        %2346 = vmatprep.mubr.bf16.mxu0 0
        %2347 = vmatmul.mubr.bf16.gmra.mrb[0].mxu0 %v2254
        %v2348 = vpop.f32.mrb[0].mxu0
        %v2349 = vadd.f32 0.0, %v2348
        %v2350 = vpop.f32.mrb[0].mxu0
        %v2351 = vpop.f32.mrb[0].mxu0
        %v2352 = vadd.f32 0.0, %v2351
        %v2353 = vpop.f32.mrb[0].mxu0
        %2354 = vmatprep.mubr.bf16.mxu0 0
        %2355 = vmatmul.mubr.bf16.gmra.mrb[0].mxu0 %v2257
        %v2356 = vpop.f32.mrb[0].mxu0
        %v2357 = vadd.f32 0.0, %v2356
        %v2358 = vpop.f32.mrb[0].mxu0
        %v2359 = vpop.f32.mrb[0].mxu0
        %v2360 = vadd.f32 0.0, %v2359
        %v2361 = vpop.f32.mrb[0].mxu0
        %2362 = vmatprep.mubr.bf16.mxu0 0
        %2363 = vmatmul.mubr.bf16.gmra.mrb[0].mxu0 %v2260
        %v2364 = vpop.f32.mrb[0].mxu0
        %v2365 = vadd.f32 0.0, %v2364
        %v2366 = vpop.f32.mrb[0].mxu0
        %v2367 = vpop.f32.mrb[0].mxu0
        %v2368 = vadd.f32 0.0, %v2367
        %v2369 = vpop.f32.mrb[0].mxu0
        %2370 = vmatprep.mubr.bf16.mxu0 0
        %2371 = vmatmul.mubr.bf16.gmra.mrb[0].mxu0 %v2263
        %v2372 = vpop.f32.mrb[0].mxu0
        %v2373 = vadd.f32 0.0, %v2372
        %v2374 = vpop.f32.mrb[0].mxu0
        %v2375 = vpop.f32.mrb[0].mxu0
        %v2376 = vadd.f32 0.0, %v2375
        %v2377 = vpop.f32.mrb[0].mxu0
        %2378 = vmatprep.mubr.bf16.mxu0 0
        %2379 = vmatmul.mubr.bf16.gmra.mrb[0].mxu0 %v2266
        %v2380 = vpop.f32.mrb[0].mxu0
        %v2381 = vadd.f32 0.0, %v2380
        %v2382 = vpop.f32.mrb[0].mxu0
        %v2383 = vpop.f32.mrb[0].mxu0
        %v2384 = vadd.f32 0.0, %v2383
        %v2385 = vpop.f32.mrb[0].mxu0
        %2386 = vmatprep.mubr.bf16.mxu0 0
        %2387 = vmatmul.mubr.bf16.gmra.mrb[0].mxu0 %v2269
        %v2388 = vpop.f32.mrb[0].mxu0
        %v2389 = vadd.f32 0.0, %v2388
        %v2390 = vpop.f32.mrb[0].mxu0
        %v2391 = vpop.f32.mrb[0].mxu0
        %v2392 = vadd.f32 0.0, %v2391
        %v2393 = vpop.f32.mrb[0].mxu0
        %2394 = vmatprep.mubr.bf16.mxu0 0
        %2395 = vmatmul.mubr.bf16.gmra.mrb[0].mxu0 %v2272
        %v2396 = vpop.f32.mrb[0].mxu0
        %v2397 = vadd.f32 0.0, %v2396
        %v2398 = vpop.f32.mrb[0].mxu0
        %v2399 = vpop.f32.mrb[0].mxu0
        %v2400 = vadd.f32 0.0, %v2399
        %v2401 = vpop.f32.mrb[0].mxu0
        %2402 = vmatprep.mubr.bf16.mxu0 0
        %2403 = vmatmul.mubr.bf16.gmra.mrb[0].mxu0 %v2275
        %v2404 = vpop.f32.mrb[0].mxu0
        %v2405 = vadd.f32 0.0, %v2404
        %v2406 = vpop.f32.mrb[0].mxu0
        %v2407 = vpop.f32.mrb[0].mxu0
        %v2408 = vadd.f32 0.0, %v2407
        %v2409 = vpop.f32.mrb[0].mxu0
        %2410 = vmatprep.mubr.bf16.mxu0 0
        %2411 = vmatmul.mubr.bf16.gmra.mrb[0].mxu0 %v2278
        %v2412 = vpop.f32.mrb[0].mxu0
        %v2413 = vadd.f32 0.0, %v2412
        %v2414 = vpop.f32.mrb[0].mxu0
        %v2415 = vpop.f32.mrb[0].mxu0
        %v2416 = vadd.f32 0.0, %v2415
        %v2417 = vpop.f32.mrb[0].mxu0
        %2418 = vmatprep.mubr.bf16.mxu0 0
        %2419 = vmatmul.mubr.bf16.gmra.mrb[0].mxu0 %v2281
        %v2420 = vpop.f32.mrb[0].mxu0
        %v2421 = vadd.f32 0.0, %v2420
        %v2422 = vpop.f32.mrb[0].mxu0
        %v2423 = vpop.f32.mrb[0].mxu0
        %v2424 = vadd.f32 0.0, %v2423
        %v2425 = vpop.f32.mrb[0].mxu0
        %2426 = vmatprep.mubr.bf16.mxu0 0
        %2427 = vmatmul.mubr.bf16.gmra.mrb[0].mxu0 %v2284
        %v2428 = vpop.f32.mrb[0].mxu0
        %v2429 = vadd.f32 0.0, %v2428
        %v2430 = vpop.f32.mrb[0].mxu0
        %v2431 = vpop.f32.mrb[0].mxu0
        %v2432 = vadd.f32 0.0, %v2431
        %v2433 = vpop.f32.mrb[0].mxu0
        %2434 = vmatprep.mubr.bf16.mxu0 0
        %2435 = vmatmul.mubr.bf16.gmra.mrb[0].mxu0 %v2287
        %v2436 = vpop.f32.mrb[0].mxu0
        %v2437 = vadd.f32 0.0, %v2436
        %v2438 = vpop.f32.mrb[0].mxu0
        %v2439 = vpop.f32.mrb[0].mxu0
        %v2440 = vadd.f32 0.0, %v2439
        %v2441 = vpop.f32.mrb[0].mxu0
        %2442 = vmatprep.mubr.bf16.mxu0 0
        %2443 = vmatmul.mubr.bf16.gmra.mrb[0].mxu0 %v2290
        %v2444 = vpop.f32.mrb[0].mxu0
        %v2445 = vadd.f32 0.0, %v2444
        %v2446 = vpop.f32.mrb[0].mxu0
        %v2447 = vpop.f32.mrb[0].mxu0
        %v2448 = vadd.f32 0.0, %v2447
        %v2449 = vpop.f32.mrb[0].mxu0
        %2450 = vmatprep.mubr.bf16.mxu0 0
        %2451 = vmatmul.mubr.bf16.gmra.mrb[0].mxu0 %v2293
        %v2452 = vpop.f32.mrb[0].mxu0
        %v2453 = vadd.f32 0.0, %v2452
        %v2454 = vpop.f32.mrb[0].mxu0
        %v2455 = vpop.f32.mrb[0].mxu0
        %v2456 = vadd.f32 0.0, %v2455
        %v2457 = vpop.f32.mrb[0].mxu0
        %2458 = vdwg.mxu0
        %v2459 = vadd.f32 %v2165, %v2333
        %v2460 = vadd.f32 %v2166, %v2336
        %v2461 = vadd.f32 %v2167, %v2341
        %v2462 = vadd.f32 %v2168, %v2344
        %v2463 = vadd.f32 %v2169, %v2349
        %v2464 = vadd.f32 %v2170, %v2352
        %v2465 = vadd.f32 %v2171, %v2357
        %v2466 = vadd.f32 %v2172, %v2360
        %v2467 = vadd.f32 %v2173, %v2365
        %v2468 = vadd.f32 %v2174, %v2368
        %v2469 = vadd.f32 %v2175, %v2373
        %v2470 = vadd.f32 %v2176, %v2376
        %v2471 = vadd.f32 %v2177, %v2381
        %v2472 = vadd.f32 %v2178, %v2384
        %v2473 = vadd.f32 %v2179, %v2389
        %v2474 = vadd.f32 %v2180, %v2392
        %v2475 = vadd.f32 %v2181, %v2397
        %v2476 = vadd.f32 %v2182, %v2400
        %v2477 = vadd.f32 %v2183, %v2405
        %v2478 = vadd.f32 %v2184, %v2408
        %v2479 = vadd.f32 %v2185, %v2413
        %v2480 = vadd.f32 %v2186, %v2416
        %v2481 = vadd.f32 %v2187, %v2421
        %v2482 = vadd.f32 %v2188, %v2424
        %v2483 = vadd.f32 %v2189, %v2429
        %v2484 = vadd.f32 %v2190, %v2432
        %v2485 = vadd.f32 %v2191, %v2437
        %v2486 = vadd.f32 %v2192, %v2440
        %v2487 = vadd.f32 %v2193, %v2445
        %v2488 = vadd.f32 %v2194, %v2448
        %v2489 = vadd.f32 %v2195, %v2453
        %v2490 = vadd.f32 %v2196, %v2456
        %v2491 = vld [vmem:[%s1902 + $0x2] sm:$0xff]
        %v2492 = vld [vmem:[%s1902 + $0xa] sm:$0xff]
        %v2493 = vld [vmem:[%s1902 + $0x1a] sm:$0xff]
        %v2494 = vld [vmem:[%s1902 + $0x22] sm:$0xff]
        %v2495 = vld [vmem:[%s1902 + $0x32] sm:$0xff]
        %v2496 = vld [vmem:[%s1902 + $0x3a] sm:$0xff]
        %v2497 = vld [vmem:[%s1902 + $0x4a] sm:$0xff]
        %v2498 = vld [vmem:[%s1902 + $0x52] sm:$0xff]
        %v2499 = vld [vmem:[%s1902 + $0x62] sm:$0xff]
        %v2500 = vld [vmem:[%s1902 + $0x6a] sm:$0xff]
        %v2501 = vld [vmem:[%s1902 + $0x7a] sm:$0xff]
        %v2502 = vld [vmem:[%s1902 + $0x82] sm:$0xff]
        %v2503 = vld [vmem:[%s1902 + $0x92] sm:$0xff]
        %v2504 = vld [vmem:[%s1902 + $0x9a] sm:$0xff]
        %v2505 = vld [vmem:[%s1902 + $0xaa] sm:$0xff]
        %v2506 = vld [vmem:[%s1902 + $0xb2] sm:$0xff]
        %v2507 = vld [vmem:[%s1902 + $0xc2] sm:$0xff]
        %v2508 = vld [vmem:[%s1902 + $0xca] sm:$0xff]
        %v2509 = vld [vmem:[%s1902 + $0xda] sm:$0xff]
        %v2510 = vld [vmem:[%s1902 + $0xe2] sm:$0xff]
        %v2511 = vld [vmem:[%s1902 + $0xf2] sm:$0xff]
        %v2512 = vld [vmem:[%s1902 + $0xfa] sm:$0xff]
        %v2513 = vld [vmem:[%s1902 + $0x10a] sm:$0xff]
        %v2514 = vld [vmem:[%s1902 + $0x112] sm:$0xff]
        %v2515 = vld [vmem:[%s1902 + $0x122] sm:$0xff]
        %v2516 = vld [vmem:[%s1902 + $0x12a] sm:$0xff]
        %v2517 = vld [vmem:[%s1902 + $0x13a] sm:$0xff]
        %v2518 = vld [vmem:[%s1902 + $0x142] sm:$0xff]
        %v2519 = vld [vmem:[%s1902 + $0x152] sm:$0xff]
        %v2520 = vld [vmem:[%s1902 + $0x15a] sm:$0xff]
        %v2521 = vld [vmem:[%s1902 + $0x16a] sm:$0xff]
        %v2522 = vld [vmem:[%s1902 + $0x172] sm:$0xff]
        %v2523 = vpack.c.bf16 %v2492, %v2491
        %v2524 = vpack.c.bf16 %v2494, %v2493
        %v2525 = vpack.c.bf16 %v2496, %v2495
        %v2526 = vpack.c.bf16 %v2498, %v2497
        %v2527 = vpack.c.bf16 %v2500, %v2499
        %v2528 = vpack.c.bf16 %v2502, %v2501
        %v2529 = vpack.c.bf16 %v2504, %v2503
        %v2530 = vpack.c.bf16 %v2506, %v2505
        %v2531 = vpack.c.bf16 %v2508, %v2507
        %v2532 = vpack.c.bf16 %v2510, %v2509
        %v2533 = vpack.c.bf16 %v2512, %v2511
        %v2534 = vpack.c.bf16 %v2514, %v2513
        %v2535 = vpack.c.bf16 %v2516, %v2515
        %v2536 = vpack.c.bf16 %v2518, %v2517
        %v2537 = vpack.c.bf16 %v2520, %v2519
        %v2538 = vpack.c.bf16 %v2522, %v2521
        %s2539 = scalar_lea.vmem [#allocation2], 32
        %v2540 = vld [vmem:[%s2539] sm:$0xf]
        %v2542 = vsel %vm299, %v2523, 0
        %v2545 = vsel %vm299, %v2524, 0
        %v2548 = vsel %vm299, %v2525, 0
        %v2551 = vsel %vm299, %v2526, 0
        %v2554 = vsel %vm299, %v2527, 0
        %v2557 = vsel %vm299, %v2528, 0
        %v2560 = vsel %vm299, %v2529, 0
        %v2563 = vsel %vm299, %v2530, 0
        %v2566 = vsel %vm299, %v2531, 0
        %v2569 = vsel %vm299, %v2532, 0
        %v2572 = vsel %vm299, %v2533, 0
        %v2575 = vsel %vm299, %v2534, 0
        %v2578 = vsel %vm299, %v2535, 0
        %v2581 = vsel %vm299, %v2536, 0
        %v2584 = vsel %vm299, %v2537, 0
        %v2587 = vsel %vm299, %v2538, 0
        %v2590 = vsel %vm348, %v2540, 0
        %2592 = vmatprep.subr.bf16.mxu0 0
        %2593 = vmatpush1.bf16.msra.mxu0 %v2590
        %2594 = vmatprep.subr.bf16.mxu0 0
        %2595 = vmatpush1.bf16.msra.mxu0 0
        %2596 = vmatprep.subr.bf16.mxu0 0
        %2597 = vmatpush1.bf16.msra.mxu0 0
        %2598 = vmatprep.subr.bf16.mxu0 0
        %2599 = vmatpush1.bf16.msra.mxu0 0
        %2600 = vmatprep.subr.bf16.mxu0 0
        %2601 = vmatpush1.bf16.msra.mxu0 0
        %2602 = vmatprep.subr.bf16.mxu0 0
        %2603 = vmatpush1.bf16.msra.mxu0 0
        %2604 = vmatprep.subr.bf16.mxu0 0
        %2605 = vmatpush1.bf16.msra.mxu0 0
        %2606 = vmatprep.subr.bf16.mxu0 0
        %2607 = vmatpush1.bf16.msra.mxu0 0
        %2608 = vmatprep.subr.bf16.mxu0 0
        %2609 = vmatpush1.bf16.msra.mxu0 0
        %2610 = vmatprep.subr.bf16.mxu0 0
        %2611 = vmatpush1.bf16.msra.mxu0 0
        %2612 = vmatprep.subr.bf16.mxu0 0
        %2613 = vmatpush1.bf16.msra.mxu0 0
        %2614 = vmatprep.subr.bf16.mxu0 0
        %2615 = vmatpush1.bf16.msra.mxu0 0
        %2616 = vmatprep.subr.bf16.mxu0 0
        %2617 = vmatpush1.bf16.msra.mxu0 0
        %2618 = vmatprep.subr.bf16.mxu0 0
        %2619 = vmatpush1.bf16.msra.mxu0 0
        %2620 = vmatprep.subr.bf16.mxu0 0
        %2621 = vmatpush1.bf16.msra.mxu0 0
        %2622 = vmatprep.subr.bf16.mxu0 0
        %2623 = vmatpush1.bf16.msra.mxu0 0
        %2624 = vmatprep.mubr.bf16.mxu0 0
        %2625 = vmatmul.mubr.bf16.gmra.mrb[0].mxu0 %v2542
        %v2626 = vpop.f32.mrb[0].mxu0
        %v2627 = vadd.f32 0.0, %v2626
        %v2628 = vpop.f32.mrb[0].mxu0
        %v2629 = vpop.f32.mrb[0].mxu0
        %v2630 = vadd.f32 0.0, %v2629
        %v2631 = vpop.f32.mrb[0].mxu0
        %2632 = vmatprep.mubr.bf16.mxu0 0
        %2633 = vmatmul.mubr.bf16.gmra.mrb[0].mxu0 %v2545
        %v2634 = vpop.f32.mrb[0].mxu0
        %v2635 = vadd.f32 0.0, %v2634
        %v2636 = vpop.f32.mrb[0].mxu0
        %v2637 = vpop.f32.mrb[0].mxu0
        %v2638 = vadd.f32 0.0, %v2637
        %v2639 = vpop.f32.mrb[0].mxu0
        %2640 = vmatprep.mubr.bf16.mxu0 0
        %2641 = vmatmul.mubr.bf16.gmra.mrb[0].mxu0 %v2548
        %v2642 = vpop.f32.mrb[0].mxu0
        %v2643 = vadd.f32 0.0, %v2642
        %v2644 = vpop.f32.mrb[0].mxu0
        %v2645 = vpop.f32.mrb[0].mxu0
        %v2646 = vadd.f32 0.0, %v2645
        %v2647 = vpop.f32.mrb[0].mxu0
        %2648 = vmatprep.mubr.bf16.mxu0 0
        %2649 = vmatmul.mubr.bf16.gmra.mrb[0].mxu0 %v2551
        %v2650 = vpop.f32.mrb[0].mxu0
        %v2651 = vadd.f32 0.0, %v2650
        %v2652 = vpop.f32.mrb[0].mxu0
        %v2653 = vpop.f32.mrb[0].mxu0
        %v2654 = vadd.f32 0.0, %v2653
        %v2655 = vpop.f32.mrb[0].mxu0
        %2656 = vmatprep.mubr.bf16.mxu0 0
        %2657 = vmatmul.mubr.bf16.gmra.mrb[0].mxu0 %v2554
        %v2658 = vpop.f32.mrb[0].mxu0
        %v2659 = vadd.f32 0.0, %v2658
        %v2660 = vpop.f32.mrb[0].mxu0
        %v2661 = vpop.f32.mrb[0].mxu0
        %v2662 = vadd.f32 0.0, %v2661
        %v2663 = vpop.f32.mrb[0].mxu0
        %2664 = vmatprep.mubr.bf16.mxu0 0
        %2665 = vmatmul.mubr.bf16.gmra.mrb[0].mxu0 %v2557
        %v2666 = vpop.f32.mrb[0].mxu0
        %v2667 = vadd.f32 0.0, %v2666
        %v2668 = vpop.f32.mrb[0].mxu0
        %v2669 = vpop.f32.mrb[0].mxu0
        %v2670 = vadd.f32 0.0, %v2669
        %v2671 = vpop.f32.mrb[0].mxu0
        %2672 = vmatprep.mubr.bf16.mxu0 0
        %2673 = vmatmul.mubr.bf16.gmra.mrb[0].mxu0 %v2560
        %v2674 = vpop.f32.mrb[0].mxu0
        %v2675 = vadd.f32 0.0, %v2674
        %v2676 = vpop.f32.mrb[0].mxu0
        %v2677 = vpop.f32.mrb[0].mxu0
        %v2678 = vadd.f32 0.0, %v2677
        %v2679 = vpop.f32.mrb[0].mxu0
        %2680 = vmatprep.mubr.bf16.mxu0 0
        %2681 = vmatmul.mubr.bf16.gmra.mrb[0].mxu0 %v2563
        %v2682 = vpop.f32.mrb[0].mxu0
        %v2683 = vadd.f32 0.0, %v2682
        %v2684 = vpop.f32.mrb[0].mxu0
        %v2685 = vpop.f32.mrb[0].mxu0
        %v2686 = vadd.f32 0.0, %v2685
        %v2687 = vpop.f32.mrb[0].mxu0
        %2688 = vmatprep.mubr.bf16.mxu0 0
        %2689 = vmatmul.mubr.bf16.gmra.mrb[0].mxu0 %v2566
        %v2690 = vpop.f32.mrb[0].mxu0
        %v2691 = vadd.f32 0.0, %v2690
        %v2692 = vpop.f32.mrb[0].mxu0
        %v2693 = vpop.f32.mrb[0].mxu0
        %v2694 = vadd.f32 0.0, %v2693
        %v2695 = vpop.f32.mrb[0].mxu0
        %2696 = vmatprep.mubr.bf16.mxu0 0
        %2697 = vmatmul.mubr.bf16.gmra.mrb[0].mxu0 %v2569
        %v2698 = vpop.f32.mrb[0].mxu0
        %v2699 = vadd.f32 0.0, %v2698
        %v2700 = vpop.f32.mrb[0].mxu0
        %v2701 = vpop.f32.mrb[0].mxu0
        %v2702 = vadd.f32 0.0, %v2701
        %v2703 = vpop.f32.mrb[0].mxu0
        %2704 = vmatprep.mubr.bf16.mxu0 0
        %2705 = vmatmul.mubr.bf16.gmra.mrb[0].mxu0 %v2572
        %v2706 = vpop.f32.mrb[0].mxu0
        %v2707 = vadd.f32 0.0, %v2706
        %v2708 = vpop.f32.mrb[0].mxu0
        %v2709 = vpop.f32.mrb[0].mxu0
        %v2710 = vadd.f32 0.0, %v2709
        %v2711 = vpop.f32.mrb[0].mxu0
        %2712 = vmatprep.mubr.bf16.mxu0 0
        %2713 = vmatmul.mubr.bf16.gmra.mrb[0].mxu0 %v2575
        %v2714 = vpop.f32.mrb[0].mxu0
        %v2715 = vadd.f32 0.0, %v2714
        %v2716 = vpop.f32.mrb[0].mxu0
        %v2717 = vpop.f32.mrb[0].mxu0
        %v2718 = vadd.f32 0.0, %v2717
        %v2719 = vpop.f32.mrb[0].mxu0
        %2720 = vmatprep.mubr.bf16.mxu0 0
        %2721 = vmatmul.mubr.bf16.gmra.mrb[0].mxu0 %v2578
        %v2722 = vpop.f32.mrb[0].mxu0
        %v2723 = vadd.f32 0.0, %v2722
        %v2724 = vpop.f32.mrb[0].mxu0
        %v2725 = vpop.f32.mrb[0].mxu0
        %v2726 = vadd.f32 0.0, %v2725
        %v2727 = vpop.f32.mrb[0].mxu0
        %2728 = vmatprep.mubr.bf16.mxu0 0
        %2729 = vmatmul.mubr.bf16.gmra.mrb[0].mxu0 %v2581
        %v2730 = vpop.f32.mrb[0].mxu0
        %v2731 = vadd.f32 0.0, %v2730
        %v2732 = vpop.f32.mrb[0].mxu0
        %v2733 = vpop.f32.mrb[0].mxu0
        %v2734 = vadd.f32 0.0, %v2733
        %v2735 = vpop.f32.mrb[0].mxu0
        %2736 = vmatprep.mubr.bf16.mxu0 0
        %2737 = vmatmul.mubr.bf16.gmra.mrb[0].mxu0 %v2584
        %v2738 = vpop.f32.mrb[0].mxu0
        %v2739 = vadd.f32 0.0, %v2738
        %v2740 = vpop.f32.mrb[0].mxu0
        %v2741 = vpop.f32.mrb[0].mxu0
        %v2742 = vadd.f32 0.0, %v2741
        %v2743 = vpop.f32.mrb[0].mxu0
        %2744 = vmatprep.mubr.bf16.mxu0 0
        %2745 = vmatmul.mubr.bf16.gmra.mrb[0].mxu0 %v2587
        %v2746 = vpop.f32.mrb[0].mxu0
        %v2747 = vadd.f32 0.0, %v2746
        %v2748 = vpop.f32.mrb[0].mxu0
        %v2749 = vpop.f32.mrb[0].mxu0
        %v2750 = vadd.f32 0.0, %v2749
        %v2751 = vpop.f32.mrb[0].mxu0
        %2752 = vdwg.mxu0
        %v2753 = vadd.f32 %v2459, %v2627
        %v2754 = vadd.f32 %v2460, %v2630
        %v2755 = vadd.f32 %v2461, %v2635
        %v2756 = vadd.f32 %v2462, %v2638
        %v2757 = vadd.f32 %v2463, %v2643
        %v2758 = vadd.f32 %v2464, %v2646
        %v2759 = vadd.f32 %v2465, %v2651
        %v2760 = vadd.f32 %v2466, %v2654
        %v2761 = vadd.f32 %v2467, %v2659
        %v2762 = vadd.f32 %v2468, %v2662
        %v2763 = vadd.f32 %v2469, %v2667
        %v2764 = vadd.f32 %v2470, %v2670
        %v2765 = vadd.f32 %v2471, %v2675
        %v2766 = vadd.f32 %v2472, %v2678
        %v2767 = vadd.f32 %v2473, %v2683
        %v2768 = vadd.f32 %v2474, %v2686
        %v2769 = vadd.f32 %v2475, %v2691
        %v2770 = vadd.f32 %v2476, %v2694
        %v2771 = vadd.f32 %v2477, %v2699
        %v2772 = vadd.f32 %v2478, %v2702
        %v2773 = vadd.f32 %v2479, %v2707
        %v2774 = vadd.f32 %v2480, %v2710
        %v2775 = vadd.f32 %v2481, %v2715
        %v2776 = vadd.f32 %v2482, %v2718
        %v2777 = vadd.f32 %v2483, %v2723
        %v2778 = vadd.f32 %v2484, %v2726
        %v2779 = vadd.f32 %v2485, %v2731
        %v2780 = vadd.f32 %v2486, %v2734
        %v2781 = vadd.f32 %v2487, %v2739
        %v2782 = vadd.f32 %v2488, %v2742
        %v2783 = vadd.f32 %v2489, %v2747
        %v2784 = vadd.f32 %v2490, %v2750
        %v2785 = vld [vmem:[#allocation4] sm:$0x1]
        %v2787 = vlaneseq
        %v2788 = vshrl.u32 %v2787, 7
        %v2789 = vsub.s32 0, %v2788
        %v2790 = vrot.slane %v2785, %v2789
        %v2792 = vadd.f32 %v2753, %v2790
        %v2793 = vadd.f32 %v2754, %v2790
        %v2794 = vadd.f32 %v2755, %v2790
        %v2795 = vadd.f32 %v2756, %v2790
        %v2796 = vadd.f32 %v2757, %v2790
        %v2797 = vadd.f32 %v2758, %v2790
        %v2798 = vadd.f32 %v2759, %v2790
        %v2799 = vadd.f32 %v2760, %v2790
        %v2800 = vadd.f32 %v2761, %v2790
        %v2801 = vadd.f32 %v2762, %v2790
        %v2802 = vadd.f32 %v2763, %v2790
        %v2803 = vadd.f32 %v2764, %v2790
        %v2804 = vadd.f32 %v2765, %v2790
        %v2805 = vadd.f32 %v2766, %v2790
        %v2806 = vadd.f32 %v2767, %v2790
        %v2807 = vadd.f32 %v2768, %v2790
        %v2808 = vadd.f32 %v2769, %v2790
        %v2809 = vadd.f32 %v2770, %v2790
        %v2810 = vadd.f32 %v2771, %v2790
        %v2811 = vadd.f32 %v2772, %v2790
        %v2812 = vadd.f32 %v2773, %v2790
        %v2813 = vadd.f32 %v2774, %v2790
        %v2814 = vadd.f32 %v2775, %v2790
        %v2815 = vadd.f32 %v2776, %v2790
        %v2816 = vadd.f32 %v2777, %v2790
        %v2817 = vadd.f32 %v2778, %v2790
        %v2818 = vadd.f32 %v2779, %v2790
        %v2819 = vadd.f32 %v2780, %v2790
        %v2820 = vadd.f32 %v2781, %v2790
        %v2821 = vadd.f32 %v2782, %v2790
        %v2822 = vadd.f32 %v2783, %v2790
        %v2823 = vadd.f32 %v2784, %v2790
        %v2824 = vmax.f32 %v2792, 0.0
        %v2825 = vmax.f32 %v2793, 0.0
        %v2826 = vmax.f32 %v2794, 0.0
        %v2827 = vmax.f32 %v2795, 0.0
        %v2828 = vmax.f32 %v2796, 0.0
        %v2829 = vmax.f32 %v2797, 0.0
        %v2830 = vmax.f32 %v2798, 0.0
        %v2831 = vmax.f32 %v2799, 0.0
        %v2832 = vmax.f32 %v2800, 0.0
        %v2833 = vmax.f32 %v2801, 0.0
        %v2834 = vmax.f32 %v2802, 0.0
        %v2835 = vmax.f32 %v2803, 0.0
        %v2836 = vmax.f32 %v2804, 0.0
        %v2837 = vmax.f32 %v2805, 0.0
        %v2838 = vmax.f32 %v2806, 0.0
        %v2839 = vmax.f32 %v2807, 0.0
        %v2840 = vmax.f32 %v2808, 0.0
        %v2841 = vmax.f32 %v2809, 0.0
        %v2842 = vmax.f32 %v2810, 0.0
        %v2843 = vmax.f32 %v2811, 0.0
        %v2844 = vmax.f32 %v2812, 0.0
        %v2845 = vmax.f32 %v2813, 0.0
        %v2846 = vmax.f32 %v2814, 0.0
        %v2847 = vmax.f32 %v2815, 0.0
        %v2848 = vmax.f32 %v2816, 0.0
        %v2849 = vmax.f32 %v2817, 0.0
        %v2850 = vmax.f32 %v2818, 0.0
        %v2851 = vmax.f32 %v2819, 0.0
        %v2852 = vmax.f32 %v2820, 0.0
        %v2853 = vmax.f32 %v2821, 0.0
        %v2854 = vmax.f32 %v2822, 0.0
        %v2855 = vmax.f32 %v2823, 0.0
        %2856 = vst [vmem:[%s198] sm:$0xff] %v2824
        %2857 = vst [vmem:[%s198 + $0x8] sm:$0xff] %v2825
        %2858 = vst [vmem:[%s198 + $0x10] sm:$0xff] %v2826
        %2859 = vst [vmem:[%s198 + $0x18] sm:$0xff] %v2827
        %2860 = vst [vmem:[%s198 + $0x20] sm:$0xff] %v2828
        %2861 = vst [vmem:[%s198 + $0x28] sm:$0xff] %v2829
        %2862 = vst [vmem:[%s198 + $0x30] sm:$0xff] %v2830
        %2863 = vst [vmem:[%s198 + $0x38] sm:$0xff] %v2831
        %2864 = vst [vmem:[%s198 + $0x40] sm:$0xff] %v2832
        %2865 = vst [vmem:[%s198 + $0x48] sm:$0xff] %v2833
        %2866 = vst [vmem:[%s198 + $0x50] sm:$0xff] %v2834
        %2867 = vst [vmem:[%s198 + $0x58] sm:$0xff] %v2835
        %2868 = vst [vmem:[%s198 + $0x60] sm:$0xff] %v2836
        %2869 = vst [vmem:[%s198 + $0x68] sm:$0xff] %v2837
        %2870 = vst [vmem:[%s198 + $0x70] sm:$0xff] %v2838
        %2871 = vst [vmem:[%s198 + $0x78] sm:$0xff] %v2839
        %2872 = vst [vmem:[%s198 + $0x80] sm:$0xff] %v2840
        %2873 = vst [vmem:[%s198 + $0x88] sm:$0xff] %v2841
        %2874 = vst [vmem:[%s198 + $0x90] sm:$0xff] %v2842
        %2875 = vst [vmem:[%s198 + $0x98] sm:$0xff] %v2843
        %2876 = vst [vmem:[%s198 + $0xa0] sm:$0xff] %v2844
        %2877 = vst [vmem:[%s198 + $0xa8] sm:$0xff] %v2845
        %2878 = vst [vmem:[%s198 + $0xb0] sm:$0xff] %v2846
        %2879 = vst [vmem:[%s198 + $0xb8] sm:$0xff] %v2847
        %2880 = vst [vmem:[%s198 + $0xc0] sm:$0xff] %v2848
        %2881 = vst [vmem:[%s198 + $0xc8] sm:$0xff] %v2849
        %2882 = vst [vmem:[%s198 + $0xd0] sm:$0xff] %v2850
        %2883 = vst [vmem:[%s198 + $0xd8] sm:$0xff] %v2851
        %2884 = vst [vmem:[%s198 + $0xe0] sm:$0xff] %v2852
        %2885 = vst [vmem:[%s198 + $0xe8] sm:$0xff] %v2853
        %2886 = vst [vmem:[%s198 + $0xf0] sm:$0xff] %v2854
        %2887 = vst [vmem:[%s198 + $0xf8] sm:$0xff] %v2855
        %p2888 = scmp.lt.s32.totalorder %s16, 1
        %s2889 = scalar_select %p2888, %s16, 1
        %s2890 = smul.addr %s2889, 32
        %s2891 = smul.addr %s2890, 8
        %s2892 = scalar_lea.vmem %s3, %s2891
        // Predicated region
        $region41: #{custom_cnn_forward.3} parent=31 // pred_check
          %p2893 = pneg %p102
        $region42: #{custom_cnn_forward.3} parent=31 // pred_check_branch
          %2895 = sbr.rel (%p2893) target = $region44
        $region43: #{custom_cnn_forward.3} parent=31 // pred_region
          _
        $region44: #{custom_cnn_forward.3} parent=31 // pred_fallthru
          _
      $region32: #{custom_cnn_forward.3} parent=5 // pred_fallthru
        _
      %p2896 = scmp.le.s32.totalorder 2, %s11
      // Predicated region
      $region45: #{custom_cnn_forward.3} parent=5 // pred_check
        %p2897 = pneg %p2896
      $region46: #{custom_cnn_forward.3} parent=5 // pred_check_branch
        %2899 = sbr.rel (%p2897) target = $region48
      $region47: #{custom_cnn_forward.3} parent=5 // pred_region
        %s2900 = ssub.s32 %s11, 2
        // Predicated region
        $region49: #{custom_cnn_forward.3} parent=47 // pred_check
          %p2901 = pneg %p108
        $region50: #{custom_cnn_forward.3} parent=47 // pred_check_branch
          %2903 = sbr.rel (%p2901) target = $region52
        $region51: #{custom_cnn_forward.3} parent=47 // pred_region
          %p2904 = scmp.lt.s32.totalorder %s17, 1
          %s2905 = scalar_select %p2904, %s17, 1
          %s2906 = smul.addr %s2905, 32
          %s2907 = smul.addr %s2906, 8
          %s2908 = scalar_lea.vmem %s3, %s2907
        $region52: #{custom_cnn_forward.3} parent=47 // pred_fallthru
          _
      $region48: #{custom_cnn_forward.3} parent=5 // pred_fallthru
        _
    $region6: #{custom_cnn_forward.3} parent=1 // loop_footer
      %s15 = sadd.s32 1, %s11
    $region7: #{custom_cnn_forward.3} parent=1 // loop_footer_branch
      %10 = sbr.rel target = $region3
    $region8: #{custom_cnn_forward.3} parent=1 // loop_exit
      _
    %2909 = vsyncpa [#allocation3], 1
    %s2910 = scalar_lea.sflag [#allocation3], 1
    %2911 = vsyncpa %s2910, 1
    %2912 = vsyncpa [#allocation5], 1

// kernel: custom_cnn_forward.5
$region0: #{custom_cnn_forward.5}
  #allocation0 [shape = 'u32[]', space=smem, size = 0x4, offset = 0x4, fixed_abs, tag = 'smem constant byte address 0x4 - core index']
  #allocation1 [shape = 'u32[144,128]{1,0:T(1,128)}', space=vmem, size = 0x12000, scoped, tag = 'internal scratch']
  #allocation2 [shape = 'f32[2,512]{1,0:T(2,128)}', space=vmem, size = 0x1000, scoped, tag = 'scratch operand']
  %s0 = inlined_call_operand.vmem [shape: bf16[2,8192], index: 0, kind: input, shape index: {}]
  %s1 = inlined_call_operand.hbm [shape: bf16[8192,512], index: 1, kind: input, shape index: {}]
  %s2 = inlined_call_operand.hbm [shape: f32[1,512], index: 2, kind: input, shape index: {}]
  %s3 = inlined_call_operand.hbm [shape: bf16[512,256], index: 3, kind: input, shape index: {}]
  %s4 = inlined_call_operand.hbm [shape: f32[1,256], index: 4, kind: input, shape index: {}]
  %s5 = inlined_call_operand.hbm [shape: f32[2,256], index: 5, kind: output, shape index: {}]
  %s6 = sld [smem:[#allocation0]]
  $region77: #{custom_cnn_forward.5} parent=0
    _
  %s8 = ssub.s32 1, %s6
  %s9 = scalar_select 0, %s8, %s6
  $region1: #{custom_cnn_forward.5} parent=0
    #allocation3 [shape = 'u8[4194304]{0}', space=vmem, size = 0x400000, scoped, tag = 'input window, operand 1']
    #allocation4 [shape = 's32[2]{0}', space=sflag, size = 0x8, scoped, tag = 'scoped memory for custom_cnn_forward.5']
    #allocation5 [shape = 's32[2]{0}', space=sflag, size = 0x8, scoped, tag = 'scoped memory for custom_cnn_forward.5']
    #allocation6 [shape = 'u8[2048]{0}', space=vmem, size = 0x800, scoped, tag = 'input window, operand 2, single buffered']
    #allocation7 [shape = 's32[1]{0}', space=sflag, size = 0x4, scoped, tag = 'scoped memory for custom_cnn_forward.5']
    #allocation8 [shape = 'u8[262144]{0}', space=vmem, size = 0x40000, scoped, tag = 'input window, operand 3, single buffered']
    #allocation9 [shape = 'u8[1024]{0}', space=vmem, size = 0x400, scoped, tag = 'input window, operand 4, single buffered']
    #allocation10 [shape = 's32[1]{0}', space=sflag, size = 0x4, scoped, tag = 'scoped memory for custom_cnn_forward.5']
    #allocation11 [shape = 'u8[2048]{0}', space=vmem, size = 0x800, scoped, tag = 'output window, operand 0, single buffered']
    %10 = vsyncpa [#allocation4], 0
    %s11 = scalar_lea.sflag [#allocation4], 1
    %12 = vsyncpa %s11, 0
    %13 = vsyncpa [#allocation7], 0
    %14 = vsyncpa [#allocation10], 0
    %15 = vsyncpa [#allocation5], 0
    loop: start=0, step=1, limit=6
    $region2: #{custom_cnn_forward.5} parent=1 // loop_pre_header
      _
    $region3: #{custom_cnn_forward.5} parent=1 // loop_header
      %s17 = sphi 0, %s21
      %p18 = scmp.ge.s32.totalorder %s17, 6
      %s27 = sphi 0, %s29
      %s30 = sphi 0, %s27
      %s31 = sphi 0, %s30
      %s47 = sphi 0, %s31
      %s53 = sphi 0, %s55
      %s56 = sphi 0, %s53
      %s57 = sphi 0, %s56
      %s73 = sphi 0, %s57
      %s77 = sphi 0, %s77
      %s79 = sphi 0, %s77
      %s80 = sphi 0, %s79
      %s94 = sphi 0, %s80
      %s98 = sphi 0, %s98
      %s100 = sphi 0, %s98
      %s101 = sphi 0, %s100
      %s115 = sphi 0, %s101
      %s119 = sphi 0, %s119
      %s121 = sphi 0, %s119
      %s122 = sphi 0, %s121
      %s136 = sphi 0, %s122
      %s140 = sphi 0, %s140
      %s142 = sphi 0, %s140
      %s143 = sphi 0, %s142
      %s157 = sphi 0, %s143
    $region4: #{custom_cnn_forward.5} parent=1 // loop_header_branch
      %20 = sbr.rel (%p18) target = $region8
    $region5: #{custom_cnn_forward.5} parent=1 // loop_body
      %s22 = ssub.s32 %s17, 1
      %s23 = ssub.s32 %s17, 2
      %s24 = sadd.s32 %s17, 1
      %s25 = ssub.s32 %s17, %s24
      %p26 = scmp.eq.s32.totalorder %s25, 0
      %s28 = sadd.s32 %s27, 1
      %s29 = scalar_select %p26, %s27, %s28
      %p32 = pneg %p26
      %p33 = scmp.eq.s32.totalorder %s17, 3
      %p34 = por %p32, %p33
      %p35 = scmp.ne.s32.totalorder %s27, %s30
      %p36 = scmp.eq.s32.totalorder %s17, 0
      %p37 = por %p35, %p36
      %p38 = scmp.ne.s32.totalorder %s27, %s30
      %p39 = scmp.eq.s32.totalorder %s22, 3
      %p40 = por %p38, %p39
      %p41 = scmp.ne.s32.totalorder %s30, %s31
      %p42 = scmp.eq.s32.totalorder %s22, 0
      %p43 = por %p41, %p42
      %p44 = scmp.ne.s32.totalorder %s30, %s31
      %p45 = scmp.eq.s32.totalorder %s23, 3
      %p46 = por %p44, %p45
      %p48 = scmp.ne.s32.totalorder %s31, %s47
      %p49 = scmp.eq.s32.totalorder %s23, 0
      %p50 = por %p48, %p49
      %s51 = ssub.s32 %s17, %s24
      %p52 = scmp.eq.s32.totalorder %s51, 0
      %s54 = sadd.s32 %s53, 1
      %s55 = scalar_select %p52, %s53, %s54
      %p58 = pneg %p52
      %p59 = scmp.eq.s32.totalorder %s17, 3
      %p60 = por %p58, %p59
      %p61 = scmp.ne.s32.totalorder %s53, %s56
      %p62 = scmp.eq.s32.totalorder %s17, 0
      %p63 = por %p61, %p62
      %p64 = scmp.ne.s32.totalorder %s53, %s56
      %p65 = scmp.eq.s32.totalorder %s22, 3
      %p66 = por %p64, %p65
      %p67 = scmp.ne.s32.totalorder %s56, %s57
      %p68 = scmp.eq.s32.totalorder %s22, 0
      %p69 = por %p67, %p68
      %p70 = scmp.ne.s32.totalorder %s56, %s57
      %p71 = scmp.eq.s32.totalorder %s23, 3
      %p72 = por %p70, %p71
      %p74 = scmp.ne.s32.totalorder %s57, %s73
      %p75 = scmp.eq.s32.totalorder %s23, 0
      %p76 = por %p74, %p75
      %s78 = sadd.s32 %s77, 1
      %p81 = scmp.eq.s32.totalorder %s17, 3
      %p82 = scmp.ne.s32.totalorder %s77, %s79
      %p83 = scmp.eq.s32.totalorder %s17, 0
      %p84 = por %p82, %p83
      %p85 = scmp.ne.s32.totalorder %s77, %s79
      %p86 = scmp.eq.s32.totalorder %s22, 3
      %p87 = por %p85, %p86
      %p88 = scmp.ne.s32.totalorder %s79, %s80
      %p89 = scmp.eq.s32.totalorder %s22, 0
      %p90 = por %p88, %p89
      %p91 = scmp.ne.s32.totalorder %s79, %s80
      %p92 = scmp.eq.s32.totalorder %s23, 3
      %p93 = por %p91, %p92
      %p95 = scmp.ne.s32.totalorder %s80, %s94
      %p96 = scmp.eq.s32.totalorder %s23, 0
      %p97 = por %p95, %p96
      %s99 = sadd.s32 %s98, 1
      %p102 = scmp.eq.s32.totalorder %s17, 3
      %p103 = scmp.ne.s32.totalorder %s98, %s100
      %p104 = scmp.eq.s32.totalorder %s17, 0
      %p105 = por %p103, %p104
      %p106 = scmp.ne.s32.totalorder %s98, %s100
      %p107 = scmp.eq.s32.totalorder %s22, 3
      %p108 = por %p106, %p107
      %p109 = scmp.ne.s32.totalorder %s100, %s101
      %p110 = scmp.eq.s32.totalorder %s22, 0
      %p111 = por %p109, %p110
      %p112 = scmp.ne.s32.totalorder %s100, %s101
      %p113 = scmp.eq.s32.totalorder %s23, 3
      %p114 = por %p112, %p113
      %p116 = scmp.ne.s32.totalorder %s101, %s115
      %p117 = scmp.eq.s32.totalorder %s23, 0
      %p118 = por %p116, %p117
      %s120 = sadd.s32 %s119, 1
      %p123 = scmp.eq.s32.totalorder %s17, 3
      %p124 = scmp.ne.s32.totalorder %s119, %s121
      %p125 = scmp.eq.s32.totalorder %s17, 0
      %p126 = por %p124, %p125
      %p127 = scmp.ne.s32.totalorder %s119, %s121
      %p128 = scmp.eq.s32.totalorder %s22, 3
      %p129 = por %p127, %p128
      %p130 = scmp.ne.s32.totalorder %s121, %s122
      %p131 = scmp.eq.s32.totalorder %s22, 0
      %p132 = por %p130, %p131
      %p133 = scmp.ne.s32.totalorder %s121, %s122
      %p134 = scmp.eq.s32.totalorder %s23, 3
      %p135 = por %p133, %p134
      %p137 = scmp.ne.s32.totalorder %s122, %s136
      %p138 = scmp.eq.s32.totalorder %s23, 0
      %p139 = por %p137, %p138
      %s141 = sadd.s32 %s140, 1
      %p144 = scmp.eq.s32.totalorder %s17, 3
      %p145 = scmp.ne.s32.totalorder %s140, %s142
      %p146 = scmp.eq.s32.totalorder %s17, 0
      %p147 = por %p145, %p146
      %p148 = scmp.ne.s32.totalorder %s140, %s142
      %p149 = scmp.eq.s32.totalorder %s22, 3
      %p150 = por %p148, %p149
      %p151 = scmp.ne.s32.totalorder %s142, %s143
      %p152 = scmp.eq.s32.totalorder %s22, 0
      %p153 = por %p151, %p152
      %p154 = scmp.ne.s32.totalorder %s142, %s143
      %p155 = scmp.eq.s32.totalorder %s23, 3
      %p156 = por %p154, %p155
      %p158 = scmp.ne.s32.totalorder %s143, %s157
      %p159 = scmp.eq.s32.totalorder %s23, 0
      %p160 = por %p158, %p159
      %p161 = scmp.le.s32.totalorder 1, %s17
      %p162 = scmp.lt.s32.totalorder %s17, 5
      %p163 = pnand %p161, %p162
      %p164 = pneg %p163
      // Predicated region
      $region9: #{custom_cnn_forward.5} parent=5 // pred_check
        _
      $region10: #{custom_cnn_forward.5} parent=5 // pred_check_branch
        %166 = sbr.rel (%p163) target = $region12
      $region11: #{custom_cnn_forward.5} parent=5 // pred_region
        %s167 = ssub.s32 %s17, 1
        // Predicated region
        $region13: #{custom_cnn_forward.5} parent=11 // pred_check
          %p168 = pneg %p90
        $region14: #{custom_cnn_forward.5} parent=11 // pred_check_branch
          %170 = sbr.rel (%p168) target = $region16
        $region15: #{custom_cnn_forward.5} parent=11 // pred_region
          %s172 = ssub.s32 64, 64
          %173 = vsyncadd [#allocation7], %s172
          %s175 = sshll.u32 [#allocation6], 4
          %s176 = int_to_ptr.vmem [resolvable:$true] %s175
          %178 = dma.hbm_to_vmem [thread:$0]  %s2, 64, %s176, [#allocation7]
        $region16: #{custom_cnn_forward.5} parent=11 // pred_fallthru
          _
        // Predicated region
        $region17: #{custom_cnn_forward.5} parent=11 // pred_check
          %p179 = pneg %p111
        $region18: #{custom_cnn_forward.5} parent=11 // pred_check_branch
          %181 = sbr.rel (%p179) target = $region20
        $region19: #{custom_cnn_forward.5} parent=11 // pred_region
          %s183 = ssub.s32 8192, 8192
          %184 = vsyncadd [#allocation7], %s183
          %s185 = sshll.u32 [#allocation8], 4
          %s186 = int_to_ptr.vmem [resolvable:$true] %s185
          %191 = dma.hbm_to_vmem [thread:$0]  %s3, 8192, %s186, [#allocation7], 128, 128, 8
        $region20: #{custom_cnn_forward.5} parent=11 // pred_fallthru
          _
        // Predicated region
        $region21: #{custom_cnn_forward.5} parent=11 // pred_check
          %p192 = pneg %p132
        $region22: #{custom_cnn_forward.5} parent=11 // pred_check_branch
          %194 = sbr.rel (%p192) target = $region24
        $region23: #{custom_cnn_forward.5} parent=11 // pred_region
          %s196 = ssub.s32 32, 32
          %197 = vsyncadd [#allocation10], %s196
          %s199 = sshll.u32 [#allocation9], 4
          %s200 = int_to_ptr.vmem [resolvable:$true] %s199
          %202 = dma.hbm_to_vmem [thread:$0]  %s4, 32, %s200, [#allocation10]
        $region24: #{custom_cnn_forward.5} parent=11 // pred_fallthru
          _
      $region12: #{custom_cnn_forward.5} parent=5 // pred_fallthru
        _
      %p203 = scmp.lt.s32.totalorder %s17, 4
      // Predicated region
      $region25: #{custom_cnn_forward.5} parent=5 // pred_check
        %p204 = pneg %p203
      $region26: #{custom_cnn_forward.5} parent=5 // pred_check_branch
        %206 = sbr.rel (%p204) target = $region28
      $region27: #{custom_cnn_forward.5} parent=5 // pred_region
        // Predicated region
        $region29: #{custom_cnn_forward.5} parent=27 // pred_check
          %p207 = pneg %p37
        $region30: #{custom_cnn_forward.5} parent=27 // pred_check_branch
          %209 = sbr.rel (%p207) target = $region32
        $region31: #{custom_cnn_forward.5} parent=27 // pred_region
          %s210 = smul.u32 16, %s17
          %p211 = scmp.lt.s32.totalorder %s210, 63
          %s212 = scalar_select %p211, %s210, 63
          %s213 = scalar_lea.vmem %s0, %s212
          %s214 = smul.u32 16, %s17
        $region32: #{custom_cnn_forward.5} parent=27 // pred_fallthru
          _
        // Predicated region
        $region33: #{custom_cnn_forward.5} parent=27 // pred_check
          %p215 = pneg %p63
        $region34: #{custom_cnn_forward.5} parent=27 // pred_check_branch
          %217 = sbr.rel (%p215) target = $region36
        $region35: #{custom_cnn_forward.5} parent=27 // pred_region
          %s218 = sand.u32 %s53, 1
          %s219 = scalar_lea.sflag [#allocation4], %s218
          %s220 = sand.u32 %s53, 1
          %s221 = smul.addr %s220, 4096
          %s222 = scalar_lea.vmem [#allocation3], %s221
          %s223 = smul.u32 256, %s17
          %s225 = ssub.s32 65536, 65536
          %226 = vsyncadd %s219, %s225
          %s227 = smul.addr %s223, 4
          %s228 = smul.addr %s227, 64
          %s229 = scalar_lea.hbm %s1, %s228
          %s230 = sshll.u32 %s222, 4
          %s231 = int_to_ptr.vmem [resolvable:$true] %s230
          %236 = dma.hbm_to_vmem [thread:$0]  %s229, 65536, %s231, %s219, 256, 256, 16
        $region36: #{custom_cnn_forward.5} parent=27 // pred_fallthru
          _
      $region28: #{custom_cnn_forward.5} parent=5 // pred_fallthru
        _
      %p237 = scmp.le.s32.totalorder 1, %s17
      %p238 = scmp.lt.s32.totalorder %s17, 5
      %p239 = pnand %p237, %p238
      %p240 = pneg %p239
      // Predicated region
      $region37: #{custom_cnn_forward.5} parent=5 // pred_check
        _
      $region38: #{custom_cnn_forward.5} parent=5 // pred_check_branch
        %242 = sbr.rel (%p239) target = $region40
      $region39: #{custom_cnn_forward.5} parent=5 // pred_region
        %s243 = ssub.s32 %s17, 1
        %s244 = sand.u32 %s56, 1
        %s245 = scalar_lea.sflag [#allocation4], %s244
        %s246 = sand.u32 %s56, 1
        %s247 = smul.addr %s246, 4096
        %s248 = scalar_lea.vmem [#allocation3], %s247
        // Predicated region
        $region41: #{custom_cnn_forward.5} parent=39 // pred_check
          %p249 = pneg %p69
        $region42: #{custom_cnn_forward.5} parent=39 // pred_check_branch
          %251 = sbr.rel (%p249) target = $region44
        $region43: #{custom_cnn_forward.5} parent=39 // pred_region
          %252 = dma.done %s245, 65536
        $region44: #{custom_cnn_forward.5} parent=39 // pred_fallthru
          _
        // Predicated region
        $region45: #{custom_cnn_forward.5} parent=39 // pred_check
          %p253 = pneg %p90
        $region46: #{custom_cnn_forward.5} parent=39 // pred_check_branch
          %255 = sbr.rel (%p253) target = $region48
        $region47: #{custom_cnn_forward.5} parent=39 // pred_region
          %256 = dma.done [#allocation7], 64
        $region48: #{custom_cnn_forward.5} parent=39 // pred_fallthru
          _
        // Predicated region
        $region49: #{custom_cnn_forward.5} parent=39 // pred_check
          %p257 = pneg %p111
        $region50: #{custom_cnn_forward.5} parent=39 // pred_check_branch
          %259 = sbr.rel (%p257) target = $region52
        $region51: #{custom_cnn_forward.5} parent=39 // pred_region
          %260 = dma.done [#allocation7], 8192
        $region52: #{custom_cnn_forward.5} parent=39 // pred_fallthru
          _
        // Predicated region
        $region53: #{custom_cnn_forward.5} parent=39 // pred_check
          %p261 = pneg %p132
        $region54: #{custom_cnn_forward.5} parent=39 // pred_check_branch
          %263 = sbr.rel (%p261) target = $region56
        $region55: #{custom_cnn_forward.5} parent=39 // pred_region
          %264 = dma.done [#allocation10], 32
        $region56: #{custom_cnn_forward.5} parent=39 // pred_fallthru
          _
        %s265 = smul.u32 16, %s22
        %p266 = scmp.lt.s32.totalorder %s265, 63
        %s267 = scalar_select %p266, %s265, 63
        %s268 = scalar_lea.vmem %s0, %s267
        %p269 = pneg %p43
        %p270 = pneg %p40
        %s271 = sand.u32 %s56, 1
        %s272 = scalar_lea.sflag [#allocation4], %s271
        %s273 = sand.u32 %s56, 1
        %s274 = smul.addr %s273, 4096
        %s275 = scalar_lea.vmem [#allocation3], %s274
        %p276 = pneg %p69
        %p277 = pneg %p66
        %p278 = pneg %p90
        %p279 = pneg %p87
        %p280 = pneg %p111
        %p281 = pneg %p108
        %p282 = pneg %p132
        %p283 = pneg %p129
        %p284 = pneg %p153
        %p285 = pneg %p150
        %s286 = smul.u32 16, %s22
        %p287 = scmp.lt.s32.totalorder %s286, 63
        %s288 = scalar_select %p287, %s286, 63
        %s289 = scalar_lea.vmem %s0, %s288
        %s290 = smul.u32 16, %s22
        %s291 = smul.u32 256, %s22
        %p292 = scmp.eq.s32.totalorder %s22, 0
        // Predicated region
        $region57: #{custom_cnn_forward.5} parent=39 // pred_check
          %p293 = pneg %p292
        $region58: #{custom_cnn_forward.5} parent=39 // pred_check_branch
          %295 = sbr.rel (%p293) target = $region60
        $region59: #{custom_cnn_forward.5} parent=39 // pred_region
          %296 = vst [vmem:[#allocation2] sm:$0xff] 0.0
        $region60: #{custom_cnn_forward.5} parent=39 // pred_fallthru
          _
        %v297 = vld [vmem:[#allocation2] sm:$0xff]
        %v298 = vld [vmem:[%s289] sm:$0xff]
        %v299 = vld [vmem:[%s289 + $0x8] sm:$0xff]
        %v300 = vld [vmem:[%s248] sm:$0xff]
        %v301 = vld [vmem:[%s248 + $0x8] sm:$0xff]
        %v302 = vld [vmem:[%s248 + $0x10] sm:$0xff]
        %v303 = vld [vmem:[%s248 + $0x18] sm:$0xff]
        %v304 = vld [vmem:[%s248 + $0x20] sm:$0xff]
        %v305 = vld [vmem:[%s248 + $0x28] sm:$0xff]
        %v306 = vld [vmem:[%s248 + $0x30] sm:$0xff]
        %v307 = vld [vmem:[%s248 + $0x38] sm:$0xff]
        %v308 = vld [vmem:[%s248 + $0x40] sm:$0xff]
        %v309 = vld [vmem:[%s248 + $0x48] sm:$0xff]
        %v310 = vld [vmem:[%s248 + $0x50] sm:$0xff]
        %v311 = vld [vmem:[%s248 + $0x58] sm:$0xff]
        %v312 = vld [vmem:[%s248 + $0x60] sm:$0xff]
        %v313 = vld [vmem:[%s248 + $0x68] sm:$0xff]
        %v314 = vld [vmem:[%s248 + $0x70] sm:$0xff]
        %v315 = vld [vmem:[%s248 + $0x78] sm:$0xff]
        %v316 = vld [vmem:[%s248 + $0x80] sm:$0xff]
        %v317 = vld [vmem:[%s248 + $0x88] sm:$0xff]
        %v318 = vld [vmem:[%s248 + $0x90] sm:$0xff]
        %v319 = vld [vmem:[%s248 + $0x98] sm:$0xff]
        %v320 = vld [vmem:[%s248 + $0xa0] sm:$0xff]
        %v321 = vld [vmem:[%s248 + $0xa8] sm:$0xff]
        %v322 = vld [vmem:[%s248 + $0xb0] sm:$0xff]
        %v323 = vld [vmem:[%s248 + $0xb8] sm:$0xff]
        %v324 = vld [vmem:[%s248 + $0xc0] sm:$0xff]
        %v325 = vld [vmem:[%s248 + $0xc8] sm:$0xff]
        %v326 = vld [vmem:[%s248 + $0xd0] sm:$0xff]
        %v327 = vld [vmem:[%s248 + $0xd8] sm:$0xff]
        %v328 = vld [vmem:[%s248 + $0xe0] sm:$0xff]
        %v329 = vld [vmem:[%s248 + $0xe8] sm:$0xff]
        %v330 = vld [vmem:[%s248 + $0xf0] sm:$0xff]
        %v331 = vld [vmem:[%s248 + $0xf8] sm:$0xff]
        %v332 = vld [vmem:[%s248 + $0x100] sm:$0xff]
        %v333 = vld [vmem:[%s248 + $0x108] sm:$0xff]
        %v334 = vld [vmem:[%s248 + $0x110] sm:$0xff]
        %v335 = vld [vmem:[%s248 + $0x118] sm:$0xff]
        %v336 = vld [vmem:[%s248 + $0x120] sm:$0xff]
        %v337 = vld [vmem:[%s248 + $0x128] sm:$0xff]
        %v338 = vld [vmem:[%s248 + $0x130] sm:$0xff]
        %v339 = vld [vmem:[%s248 + $0x138] sm:$0xff]
        %v340 = vld [vmem:[%s248 + $0x140] sm:$0xff]
        %v341 = vld [vmem:[%s248 + $0x148] sm:$0xff]
        %v342 = vld [vmem:[%s248 + $0x150] sm:$0xff]
        %v343 = vld [vmem:[%s248 + $0x158] sm:$0xff]
        %v344 = vld [vmem:[%s248 + $0x160] sm:$0xff]
        %v345 = vld [vmem:[%s248 + $0x168] sm:$0xff]
        %v346 = vld [vmem:[%s248 + $0x170] sm:$0xff]
        %v347 = vld [vmem:[%s248 + $0x178] sm:$0xff]
        %v348 = vld [vmem:[%s248 + $0x180] sm:$0xff]
        %v349 = vld [vmem:[%s248 + $0x188] sm:$0xff]
        %v350 = vld [vmem:[%s248 + $0x190] sm:$0xff]
        %v351 = vld [vmem:[%s248 + $0x198] sm:$0xff]
        %v352 = vld [vmem:[%s248 + $0x1a0] sm:$0xff]
        %v353 = vld [vmem:[%s248 + $0x1a8] sm:$0xff]
        %v354 = vld [vmem:[%s248 + $0x1b0] sm:$0xff]
        %v355 = vld [vmem:[%s248 + $0x1b8] sm:$0xff]
        %v356 = vld [vmem:[%s248 + $0x1c0] sm:$0xff]
        %v357 = vld [vmem:[%s248 + $0x1c8] sm:$0xff]
        %v358 = vld [vmem:[%s248 + $0x1d0] sm:$0xff]
        %v359 = vld [vmem:[%s248 + $0x1d8] sm:$0xff]
        %v360 = vld [vmem:[%s248 + $0x1e0] sm:$0xff]
        %v361 = vld [vmem:[%s248 + $0x1e8] sm:$0xff]
        %v362 = vld [vmem:[%s248 + $0x1f0] sm:$0xff]
        %v363 = vld [vmem:[%s248 + $0x1f8] sm:$0xff]
        %v364 = vld [vmem:[%s248 + $0x200] sm:$0xff]
        %v365 = vld [vmem:[%s248 + $0x208] sm:$0xff]
        %v366 = vld [vmem:[%s248 + $0x210] sm:$0xff]
        %v367 = vld [vmem:[%s248 + $0x218] sm:$0xff]
        %v368 = vld [vmem:[%s248 + $0x220] sm:$0xff]
        %v369 = vld [vmem:[%s248 + $0x228] sm:$0xff]
        %v370 = vld [vmem:[%s248 + $0x230] sm:$0xff]
        %v371 = vld [vmem:[%s248 + $0x238] sm:$0xff]
        %v372 = vld [vmem:[%s248 + $0x240] sm:$0xff]
        %v373 = vld [vmem:[%s248 + $0x248] sm:$0xff]
        %v374 = vld [vmem:[%s248 + $0x250] sm:$0xff]
        %v375 = vld [vmem:[%s248 + $0x258] sm:$0xff]
        %v376 = vld [vmem:[%s248 + $0x260] sm:$0xff]
        %v377 = vld [vmem:[%s248 + $0x268] sm:$0xff]
        %v378 = vld [vmem:[%s248 + $0x270] sm:$0xff]
        %v379 = vld [vmem:[%s248 + $0x278] sm:$0xff]
        %v380 = vld [vmem:[%s248 + $0x280] sm:$0xff]
        %v381 = vld [vmem:[%s248 + $0x288] sm:$0xff]
        %v382 = vld [vmem:[%s248 + $0x290] sm:$0xff]
        %v383 = vld [vmem:[%s248 + $0x298] sm:$0xff]
        %v384 = vld [vmem:[%s248 + $0x2a0] sm:$0xff]
        %v385 = vld [vmem:[%s248 + $0x2a8] sm:$0xff]
        %v386 = vld [vmem:[%s248 + $0x2b0] sm:$0xff]
        %v387 = vld [vmem:[%s248 + $0x2b8] sm:$0xff]
        %v388 = vld [vmem:[%s248 + $0x2c0] sm:$0xff]
        %v389 = vld [vmem:[%s248 + $0x2c8] sm:$0xff]
        %v390 = vld [vmem:[%s248 + $0x2d0] sm:$0xff]
        %v391 = vld [vmem:[%s248 + $0x2d8] sm:$0xff]
        %v392 = vld [vmem:[%s248 + $0x2e0] sm:$0xff]
        %v393 = vld [vmem:[%s248 + $0x2e8] sm:$0xff]
        %v394 = vld [vmem:[%s248 + $0x2f0] sm:$0xff]
        %v395 = vld [vmem:[%s248 + $0x2f8] sm:$0xff]
        %v396 = vld [vmem:[%s248 + $0x300] sm:$0xff]
        %v397 = vld [vmem:[%s248 + $0x308] sm:$0xff]
        %v398 = vld [vmem:[%s248 + $0x310] sm:$0xff]
        %v399 = vld [vmem:[%s248 + $0x318] sm:$0xff]
        %v400 = vld [vmem:[%s248 + $0x320] sm:$0xff]
        %v401 = vld [vmem:[%s248 + $0x328] sm:$0xff]
        %v402 = vld [vmem:[%s248 + $0x330] sm:$0xff]
        %v403 = vld [vmem:[%s248 + $0x338] sm:$0xff]
        %v404 = vld [vmem:[%s248 + $0x340] sm:$0xff]
        %v405 = vld [vmem:[%s248 + $0x348] sm:$0xff]
        %v406 = vld [vmem:[%s248 + $0x350] sm:$0xff]
        %v407 = vld [vmem:[%s248 + $0x358] sm:$0xff]
        %v408 = vld [vmem:[%s248 + $0x360] sm:$0xff]
        %v409 = vld [vmem:[%s248 + $0x368] sm:$0xff]
        %v410 = vld [vmem:[%s248 + $0x370] sm:$0xff]
        %v411 = vld [vmem:[%s248 + $0x378] sm:$0xff]
        %v412 = vld [vmem:[%s248 + $0x380] sm:$0xff]
        %v413 = vld [vmem:[%s248 + $0x388] sm:$0xff]
        %v414 = vld [vmem:[%s248 + $0x390] sm:$0xff]
        %v415 = vld [vmem:[%s248 + $0x398] sm:$0xff]
        %v416 = vld [vmem:[%s248 + $0x3a0] sm:$0xff]
        %v417 = vld [vmem:[%s248 + $0x3a8] sm:$0xff]
        %v418 = vld [vmem:[%s248 + $0x3b0] sm:$0xff]
        %v419 = vld [vmem:[%s248 + $0x3b8] sm:$0xff]
        %v420 = vld [vmem:[%s248 + $0x3c0] sm:$0xff]
        %v421 = vld [vmem:[%s248 + $0x3c8] sm:$0xff]
        %v422 = vld [vmem:[%s248 + $0x3d0] sm:$0xff]
        %v423 = vld [vmem:[%s248 + $0x3d8] sm:$0xff]
        %v424 = vld [vmem:[%s248 + $0x3e0] sm:$0xff]
        %v425 = vld [vmem:[%s248 + $0x3e8] sm:$0xff]
        %v426 = vld [vmem:[%s248 + $0x3f0] sm:$0xff]
        %v427 = vld [vmem:[%s248 + $0x3f8] sm:$0xff]
        %v428 = vld [vmem:[%s248 + $0x400] sm:$0xff]
        %v429 = vld [vmem:[%s248 + $0x408] sm:$0xff]
        %v430 = vld [vmem:[%s248 + $0x410] sm:$0xff]
        %v431 = vld [vmem:[%s248 + $0x418] sm:$0xff]
        %v432 = vld [vmem:[%s248 + $0x420] sm:$0xff]
        %v433 = vld [vmem:[%s248 + $0x428] sm:$0xff]
        %v434 = vld [vmem:[%s248 + $0x430] sm:$0xff]
        %v435 = vld [vmem:[%s248 + $0x438] sm:$0xff]
        %v436 = vld [vmem:[%s248 + $0x440] sm:$0xff]
        %v437 = vld [vmem:[%s248 + $0x448] sm:$0xff]
        %v438 = vld [vmem:[%s248 + $0x450] sm:$0xff]
        %v439 = vld [vmem:[%s248 + $0x458] sm:$0xff]
        %v440 = vld [vmem:[%s248 + $0x460] sm:$0xff]
        %v441 = vld [vmem:[%s248 + $0x468] sm:$0xff]
        %v442 = vld [vmem:[%s248 + $0x470] sm:$0xff]
        %v443 = vld [vmem:[%s248 + $0x478] sm:$0xff]
        %v444 = vld [vmem:[%s248 + $0x480] sm:$0xff]
        %v445 = vld [vmem:[%s248 + $0x488] sm:$0xff]
        %v446 = vld [vmem:[%s248 + $0x490] sm:$0xff]
        %v447 = vld [vmem:[%s248 + $0x498] sm:$0xff]
        %v448 = vld [vmem:[%s248 + $0x4a0] sm:$0xff]
        %v449 = vld [vmem:[%s248 + $0x4a8] sm:$0xff]
        %v450 = vld [vmem:[%s248 + $0x4b0] sm:$0xff]
        %v451 = vld [vmem:[%s248 + $0x4b8] sm:$0xff]
        %v452 = vld [vmem:[%s248 + $0x4c0] sm:$0xff]
        %v453 = vld [vmem:[%s248 + $0x4c8] sm:$0xff]
        %v454 = vld [vmem:[%s248 + $0x4d0] sm:$0xff]
        %v455 = vld [vmem:[%s248 + $0x4d8] sm:$0xff]
        %v456 = vld [vmem:[%s248 + $0x4e0] sm:$0xff]
        %v457 = vld [vmem:[%s248 + $0x4e8] sm:$0xff]
        %v458 = vld [vmem:[%s248 + $0x4f0] sm:$0xff]
        %v459 = vld [vmem:[%s248 + $0x4f8] sm:$0xff]
        %v460 = vld [vmem:[%s248 + $0x500] sm:$0xff]
        %v461 = vld [vmem:[%s248 + $0x508] sm:$0xff]
        %v462 = vld [vmem:[%s248 + $0x510] sm:$0xff]
        %v463 = vld [vmem:[%s248 + $0x518] sm:$0xff]
        %v464 = vld [vmem:[%s248 + $0x520] sm:$0xff]
        %v465 = vld [vmem:[%s248 + $0x528] sm:$0xff]
        %v466 = vld [vmem:[%s248 + $0x530] sm:$0xff]
        %v467 = vld [vmem:[%s248 + $0x538] sm:$0xff]
        %v468 = vld [vmem:[%s248 + $0x540] sm:$0xff]
        %v469 = vld [vmem:[%s248 + $0x548] sm:$0xff]
        %v470 = vld [vmem:[%s248 + $0x550] sm:$0xff]
        %v471 = vld [vmem:[%s248 + $0x558] sm:$0xff]
        %v472 = vld [vmem:[%s248 + $0x560] sm:$0xff]
        %v473 = vld [vmem:[%s248 + $0x568] sm:$0xff]
        %v474 = vld [vmem:[%s248 + $0x570] sm:$0xff]
        %v475 = vld [vmem:[%s248 + $0x578] sm:$0xff]
        %v476 = vld [vmem:[%s248 + $0x580] sm:$0xff]
        %v477 = vld [vmem:[%s248 + $0x588] sm:$0xff]
        %v478 = vld [vmem:[%s248 + $0x590] sm:$0xff]
        %v479 = vld [vmem:[%s248 + $0x598] sm:$0xff]
        %v480 = vld [vmem:[%s248 + $0x5a0] sm:$0xff]
        %v481 = vld [vmem:[%s248 + $0x5a8] sm:$0xff]
        %v482 = vld [vmem:[%s248 + $0x5b0] sm:$0xff]
        %v483 = vld [vmem:[%s248 + $0x5b8] sm:$0xff]
        %v484 = vld [vmem:[%s248 + $0x5c0] sm:$0xff]
        %v485 = vld [vmem:[%s248 + $0x5c8] sm:$0xff]
        %v486 = vld [vmem:[%s248 + $0x5d0] sm:$0xff]
        %v487 = vld [vmem:[%s248 + $0x5d8] sm:$0xff]
        %v488 = vld [vmem:[%s248 + $0x5e0] sm:$0xff]
        %v489 = vld [vmem:[%s248 + $0x5e8] sm:$0xff]
        %v490 = vld [vmem:[%s248 + $0x5f0] sm:$0xff]
        %v491 = vld [vmem:[%s248 + $0x5f8] sm:$0xff]
        %v492 = vld [vmem:[%s248 + $0x600] sm:$0xff]
        %v493 = vld [vmem:[%s248 + $0x608] sm:$0xff]
        %v494 = vld [vmem:[%s248 + $0x610] sm:$0xff]
        %v495 = vld [vmem:[%s248 + $0x618] sm:$0xff]
        %v496 = vld [vmem:[%s248 + $0x620] sm:$0xff]
        %v497 = vld [vmem:[%s248 + $0x628] sm:$0xff]
        %v498 = vld [vmem:[%s248 + $0x630] sm:$0xff]
        %v499 = vld [vmem:[%s248 + $0x638] sm:$0xff]
        %v500 = vld [vmem:[%s248 + $0x640] sm:$0xff]
        %v501 = vld [vmem:[%s248 + $0x648] sm:$0xff]
        %v502 = vld [vmem:[%s248 + $0x650] sm:$0xff]
        %v503 = vld [vmem:[%s248 + $0x658] sm:$0xff]
        %v504 = vld [vmem:[%s248 + $0x660] sm:$0xff]
        %v505 = vld [vmem:[%s248 + $0x668] sm:$0xff]
        %v506 = vld [vmem:[%s248 + $0x670] sm:$0xff]
        %v507 = vld [vmem:[%s248 + $0x678] sm:$0xff]
        %v508 = vld [vmem:[%s248 + $0x680] sm:$0xff]
        %v509 = vld [vmem:[%s248 + $0x688] sm:$0xff]
        %v510 = vld [vmem:[%s248 + $0x690] sm:$0xff]
        %v511 = vld [vmem:[%s248 + $0x698] sm:$0xff]
        %v512 = vld [vmem:[%s248 + $0x6a0] sm:$0xff]
        %v513 = vld [vmem:[%s248 + $0x6a8] sm:$0xff]
        %v514 = vld [vmem:[%s248 + $0x6b0] sm:$0xff]
        %v515 = vld [vmem:[%s248 + $0x6b8] sm:$0xff]
        %v516 = vld [vmem:[%s248 + $0x6c0] sm:$0xff]
        %v517 = vld [vmem:[%s248 + $0x6c8] sm:$0xff]
        %v518 = vld [vmem:[%s248 + $0x6d0] sm:$0xff]
        %v519 = vld [vmem:[%s248 + $0x6d8] sm:$0xff]
        %v520 = vld [vmem:[%s248 + $0x6e0] sm:$0xff]
        %v521 = vld [vmem:[%s248 + $0x6e8] sm:$0xff]
        %v522 = vld [vmem:[%s248 + $0x6f0] sm:$0xff]
        %v523 = vld [vmem:[%s248 + $0x6f8] sm:$0xff]
        %v524 = vld [vmem:[%s248 + $0x700] sm:$0xff]
        %v525 = vld [vmem:[%s248 + $0x708] sm:$0xff]
        %v526 = vld [vmem:[%s248 + $0x710] sm:$0xff]
        %v527 = vld [vmem:[%s248 + $0x718] sm:$0xff]
        %v528 = vld [vmem:[%s248 + $0x720] sm:$0xff]
        %v529 = vld [vmem:[%s248 + $0x728] sm:$0xff]
        %v530 = vld [vmem:[%s248 + $0x730] sm:$0xff]
        %v531 = vld [vmem:[%s248 + $0x738] sm:$0xff]
        %v532 = vld [vmem:[%s248 + $0x740] sm:$0xff]
        %v533 = vld [vmem:[%s248 + $0x748] sm:$0xff]
        %v534 = vld [vmem:[%s248 + $0x750] sm:$0xff]
        %v535 = vld [vmem:[%s248 + $0x758] sm:$0xff]
        %v536 = vld [vmem:[%s248 + $0x760] sm:$0xff]
        %v537 = vld [vmem:[%s248 + $0x768] sm:$0xff]
        %v538 = vld [vmem:[%s248 + $0x770] sm:$0xff]
        %v539 = vld [vmem:[%s248 + $0x778] sm:$0xff]
        %v540 = vld [vmem:[%s248 + $0x780] sm:$0xff]
        %v541 = vld [vmem:[%s248 + $0x788] sm:$0xff]
        %v542 = vld [vmem:[%s248 + $0x790] sm:$0xff]
        %v543 = vld [vmem:[%s248 + $0x798] sm:$0xff]
        %v544 = vld [vmem:[%s248 + $0x7a0] sm:$0xff]
        %v545 = vld [vmem:[%s248 + $0x7a8] sm:$0xff]
        %v546 = vld [vmem:[%s248 + $0x7b0] sm:$0xff]
        %v547 = vld [vmem:[%s248 + $0x7b8] sm:$0xff]
        %v548 = vld [vmem:[%s248 + $0x7c0] sm:$0xff]
        %v549 = vld [vmem:[%s248 + $0x7c8] sm:$0xff]
        %v550 = vld [vmem:[%s248 + $0x7d0] sm:$0xff]
        %v551 = vld [vmem:[%s248 + $0x7d8] sm:$0xff]
        %v552 = vld [vmem:[%s248 + $0x7e0] sm:$0xff]
        %v553 = vld [vmem:[%s248 + $0x7e8] sm:$0xff]
        %v554 = vld [vmem:[%s248 + $0x7f0] sm:$0xff]
        %v555 = vld [vmem:[%s248 + $0x7f8] sm:$0xff]
        %v556 = vld [vmem:[%s248 + $0x800] sm:$0xff]
        %v557 = vld [vmem:[%s248 + $0x808] sm:$0xff]
        %v558 = vld [vmem:[%s248 + $0x810] sm:$0xff]
        %v559 = vld [vmem:[%s248 + $0x818] sm:$0xff]
        %v560 = vld [vmem:[%s248 + $0x820] sm:$0xff]
        %v561 = vld [vmem:[%s248 + $0x828] sm:$0xff]
        %v562 = vld [vmem:[%s248 + $0x830] sm:$0xff]
        %v563 = vld [vmem:[%s248 + $0x838] sm:$0xff]
        %v564 = vld [vmem:[%s248 + $0x840] sm:$0xff]
        %v565 = vld [vmem:[%s248 + $0x848] sm:$0xff]
        %v566 = vld [vmem:[%s248 + $0x850] sm:$0xff]
        %v567 = vld [vmem:[%s248 + $0x858] sm:$0xff]
        %v568 = vld [vmem:[%s248 + $0x860] sm:$0xff]
        %v569 = vld [vmem:[%s248 + $0x868] sm:$0xff]
        %v570 = vld [vmem:[%s248 + $0x870] sm:$0xff]
        %v571 = vld [vmem:[%s248 + $0x878] sm:$0xff]
        %v572 = vld [vmem:[%s248 + $0x880] sm:$0xff]
        %v573 = vld [vmem:[%s248 + $0x888] sm:$0xff]
        %v574 = vld [vmem:[%s248 + $0x890] sm:$0xff]
        %v575 = vld [vmem:[%s248 + $0x898] sm:$0xff]
        %v576 = vld [vmem:[%s248 + $0x8a0] sm:$0xff]
        %v577 = vld [vmem:[%s248 + $0x8a8] sm:$0xff]
        %v578 = vld [vmem:[%s248 + $0x8b0] sm:$0xff]
        %v579 = vld [vmem:[%s248 + $0x8b8] sm:$0xff]
        %v580 = vld [vmem:[%s248 + $0x8c0] sm:$0xff]
        %v581 = vld [vmem:[%s248 + $0x8c8] sm:$0xff]
        %v582 = vld [vmem:[%s248 + $0x8d0] sm:$0xff]
        %v583 = vld [vmem:[%s248 + $0x8d8] sm:$0xff]
        %v584 = vld [vmem:[%s248 + $0x8e0] sm:$0xff]
        %v585 = vld [vmem:[%s248 + $0x8e8] sm:$0xff]
        %v586 = vld [vmem:[%s248 + $0x8f0] sm:$0xff]
        %v587 = vld [vmem:[%s248 + $0x8f8] sm:$0xff]
        %v588 = vld [vmem:[%s248 + $0x900] sm:$0xff]
        %v589 = vld [vmem:[%s248 + $0x908] sm:$0xff]
        %v590 = vld [vmem:[%s248 + $0x910] sm:$0xff]
        %v591 = vld [vmem:[%s248 + $0x918] sm:$0xff]
        %v592 = vld [vmem:[%s248 + $0x920] sm:$0xff]
        %v593 = vld [vmem:[%s248 + $0x928] sm:$0xff]
        %v594 = vld [vmem:[%s248 + $0x930] sm:$0xff]
        %v595 = vld [vmem:[%s248 + $0x938] sm:$0xff]
        %v596 = vld [vmem:[%s248 + $0x940] sm:$0xff]
        %v597 = vld [vmem:[%s248 + $0x948] sm:$0xff]
        %v598 = vld [vmem:[%s248 + $0x950] sm:$0xff]
        %v599 = vld [vmem:[%s248 + $0x958] sm:$0xff]
        %v600 = vld [vmem:[%s248 + $0x960] sm:$0xff]
        %v601 = vld [vmem:[%s248 + $0x968] sm:$0xff]
        %v602 = vld [vmem:[%s248 + $0x970] sm:$0xff]
        %v603 = vld [vmem:[%s248 + $0x978] sm:$0xff]
        %v604 = vld [vmem:[%s248 + $0x980] sm:$0xff]
        %v605 = vld [vmem:[%s248 + $0x988] sm:$0xff]
        %v606 = vld [vmem:[%s248 + $0x990] sm:$0xff]
        %v607 = vld [vmem:[%s248 + $0x998] sm:$0xff]
        %v608 = vld [vmem:[%s248 + $0x9a0] sm:$0xff]
        %v609 = vld [vmem:[%s248 + $0x9a8] sm:$0xff]
        %v610 = vld [vmem:[%s248 + $0x9b0] sm:$0xff]
        %v611 = vld [vmem:[%s248 + $0x9b8] sm:$0xff]
        %v612 = vld [vmem:[%s248 + $0x9c0] sm:$0xff]
        %v613 = vld [vmem:[%s248 + $0x9c8] sm:$0xff]
        %v614 = vld [vmem:[%s248 + $0x9d0] sm:$0xff]
        %v615 = vld [vmem:[%s248 + $0x9d8] sm:$0xff]
        %v616 = vld [vmem:[%s248 + $0x9e0] sm:$0xff]
        %v617 = vld [vmem:[%s248 + $0x9e8] sm:$0xff]
        %v618 = vld [vmem:[%s248 + $0x9f0] sm:$0xff]
        %v619 = vld [vmem:[%s248 + $0x9f8] sm:$0xff]
        %v620 = vld [vmem:[%s248 + $0xa00] sm:$0xff]
        %v621 = vld [vmem:[%s248 + $0xa08] sm:$0xff]
        %v622 = vld [vmem:[%s248 + $0xa10] sm:$0xff]
        %v623 = vld [vmem:[%s248 + $0xa18] sm:$0xff]
        %v624 = vld [vmem:[%s248 + $0xa20] sm:$0xff]
        %v625 = vld [vmem:[%s248 + $0xa28] sm:$0xff]
        %v626 = vld [vmem:[%s248 + $0xa30] sm:$0xff]
        %v627 = vld [vmem:[%s248 + $0xa38] sm:$0xff]
        %v628 = vld [vmem:[%s248 + $0xa40] sm:$0xff]
        %v629 = vld [vmem:[%s248 + $0xa48] sm:$0xff]
        %v630 = vld [vmem:[%s248 + $0xa50] sm:$0xff]
        %v631 = vld [vmem:[%s248 + $0xa58] sm:$0xff]
        %v632 = vld [vmem:[%s248 + $0xa60] sm:$0xff]
        %v633 = vld [vmem:[%s248 + $0xa68] sm:$0xff]
        %v634 = vld [vmem:[%s248 + $0xa70] sm:$0xff]
        %v635 = vld [vmem:[%s248 + $0xa78] sm:$0xff]
        %v636 = vld [vmem:[%s248 + $0xa80] sm:$0xff]
        %v637 = vld [vmem:[%s248 + $0xa88] sm:$0xff]
        %v638 = vld [vmem:[%s248 + $0xa90] sm:$0xff]
        %v639 = vld [vmem:[%s248 + $0xa98] sm:$0xff]
        %v640 = vld [vmem:[%s248 + $0xaa0] sm:$0xff]
        %v641 = vld [vmem:[%s248 + $0xaa8] sm:$0xff]
        %v642 = vld [vmem:[%s248 + $0xab0] sm:$0xff]
        %v643 = vld [vmem:[%s248 + $0xab8] sm:$0xff]
        %v644 = vld [vmem:[%s248 + $0xac0] sm:$0xff]
        %v645 = vld [vmem:[%s248 + $0xac8] sm:$0xff]
        %v646 = vld [vmem:[%s248 + $0xad0] sm:$0xff]
        %v647 = vld [vmem:[%s248 + $0xad8] sm:$0xff]
        %v648 = vld [vmem:[%s248 + $0xae0] sm:$0xff]
        %v649 = vld [vmem:[%s248 + $0xae8] sm:$0xff]
        %v650 = vld [vmem:[%s248 + $0xaf0] sm:$0xff]
        %v651 = vld [vmem:[%s248 + $0xaf8] sm:$0xff]
        %v652 = vld [vmem:[%s248 + $0xb00] sm:$0xff]
        %v653 = vld [vmem:[%s248 + $0xb08] sm:$0xff]
        %v654 = vld [vmem:[%s248 + $0xb10] sm:$0xff]
        %v655 = vld [vmem:[%s248 + $0xb18] sm:$0xff]
        %v656 = vld [vmem:[%s248 + $0xb20] sm:$0xff]
        %v657 = vld [vmem:[%s248 + $0xb28] sm:$0xff]
        %v658 = vld [vmem:[%s248 + $0xb30] sm:$0xff]
        %v659 = vld [vmem:[%s248 + $0xb38] sm:$0xff]
        %v660 = vld [vmem:[%s248 + $0xb40] sm:$0xff]
        %v661 = vld [vmem:[%s248 + $0xb48] sm:$0xff]
        %v662 = vld [vmem:[%s248 + $0xb50] sm:$0xff]
        %v663 = vld [vmem:[%s248 + $0xb58] sm:$0xff]
        %v664 = vld [vmem:[%s248 + $0xb60] sm:$0xff]
        %v665 = vld [vmem:[%s248 + $0xb68] sm:$0xff]
        %v666 = vld [vmem:[%s248 + $0xb70] sm:$0xff]
        %v667 = vld [vmem:[%s248 + $0xb78] sm:$0xff]
        %v668 = vld [vmem:[%s248 + $0xb80] sm:$0xff]
        %v669 = vld [vmem:[%s248 + $0xb88] sm:$0xff]
        %v670 = vld [vmem:[%s248 + $0xb90] sm:$0xff]
        %v671 = vld [vmem:[%s248 + $0xb98] sm:$0xff]
        %v672 = vld [vmem:[%s248 + $0xba0] sm:$0xff]
        %v673 = vld [vmem:[%s248 + $0xba8] sm:$0xff]
        %v674 = vld [vmem:[%s248 + $0xbb0] sm:$0xff]
        %v675 = vld [vmem:[%s248 + $0xbb8] sm:$0xff]
        %v676 = vld [vmem:[%s248 + $0xbc0] sm:$0xff]
        %v677 = vld [vmem:[%s248 + $0xbc8] sm:$0xff]
        %v678 = vld [vmem:[%s248 + $0xbd0] sm:$0xff]
        %v679 = vld [vmem:[%s248 + $0xbd8] sm:$0xff]
        %v680 = vld [vmem:[%s248 + $0xbe0] sm:$0xff]
        %v681 = vld [vmem:[%s248 + $0xbe8] sm:$0xff]
        %v682 = vld [vmem:[%s248 + $0xbf0] sm:$0xff]
        %v683 = vld [vmem:[%s248 + $0xbf8] sm:$0xff]
        %v684 = vld [vmem:[%s248 + $0xc00] sm:$0xff]
        %v685 = vld [vmem:[%s248 + $0xc08] sm:$0xff]
        %v686 = vld [vmem:[%s248 + $0xc10] sm:$0xff]
        %v687 = vld [vmem:[%s248 + $0xc18] sm:$0xff]
        %v688 = vld [vmem:[%s248 + $0xc20] sm:$0xff]
        %v689 = vld [vmem:[%s248 + $0xc28] sm:$0xff]
        %v690 = vld [vmem:[%s248 + $0xc30] sm:$0xff]
        %v691 = vld [vmem:[%s248 + $0xc38] sm:$0xff]
        %v692 = vld [vmem:[%s248 + $0xc40] sm:$0xff]
        %v693 = vld [vmem:[%s248 + $0xc48] sm:$0xff]
        %v694 = vld [vmem:[%s248 + $0xc50] sm:$0xff]
        %v695 = vld [vmem:[%s248 + $0xc58] sm:$0xff]
        %v696 = vld [vmem:[%s248 + $0xc60] sm:$0xff]
        %v697 = vld [vmem:[%s248 + $0xc68] sm:$0xff]
        %v698 = vld [vmem:[%s248 + $0xc70] sm:$0xff]
        %v699 = vld [vmem:[%s248 + $0xc78] sm:$0xff]
        %v700 = vld [vmem:[%s248 + $0xc80] sm:$0xff]
        %v701 = vld [vmem:[%s248 + $0xc88] sm:$0xff]
        %v702 = vld [vmem:[%s248 + $0xc90] sm:$0xff]
        %v703 = vld [vmem:[%s248 + $0xc98] sm:$0xff]
        %v704 = vld [vmem:[%s248 + $0xca0] sm:$0xff]
        %v705 = vld [vmem:[%s248 + $0xca8] sm:$0xff]
        %v706 = vld [vmem:[%s248 + $0xcb0] sm:$0xff]
        %v707 = vld [vmem:[%s248 + $0xcb8] sm:$0xff]
        %v708 = vld [vmem:[%s248 + $0xcc0] sm:$0xff]
        %v709 = vld [vmem:[%s248 + $0xcc8] sm:$0xff]
        %v710 = vld [vmem:[%s248 + $0xcd0] sm:$0xff]
        %v711 = vld [vmem:[%s248 + $0xcd8] sm:$0xff]
        %v712 = vld [vmem:[%s248 + $0xce0] sm:$0xff]
        %v713 = vld [vmem:[%s248 + $0xce8] sm:$0xff]
        %v714 = vld [vmem:[%s248 + $0xcf0] sm:$0xff]
        %v715 = vld [vmem:[%s248 + $0xcf8] sm:$0xff]
        %v716 = vld [vmem:[%s248 + $0xd00] sm:$0xff]
        %v717 = vld [vmem:[%s248 + $0xd08] sm:$0xff]
        %v718 = vld [vmem:[%s248 + $0xd10] sm:$0xff]
        %v719 = vld [vmem:[%s248 + $0xd18] sm:$0xff]
        %v720 = vld [vmem:[%s248 + $0xd20] sm:$0xff]
        %v721 = vld [vmem:[%s248 + $0xd28] sm:$0xff]
        %v722 = vld [vmem:[%s248 + $0xd30] sm:$0xff]
        %v723 = vld [vmem:[%s248 + $0xd38] sm:$0xff]
        %v724 = vld [vmem:[%s248 + $0xd40] sm:$0xff]
        %v725 = vld [vmem:[%s248 + $0xd48] sm:$0xff]
        %v726 = vld [vmem:[%s248 + $0xd50] sm:$0xff]
        %v727 = vld [vmem:[%s248 + $0xd58] sm:$0xff]
        %v728 = vld [vmem:[%s248 + $0xd60] sm:$0xff]
        %v729 = vld [vmem:[%s248 + $0xd68] sm:$0xff]
        %v730 = vld [vmem:[%s248 + $0xd70] sm:$0xff]
        %v731 = vld [vmem:[%s248 + $0xd78] sm:$0xff]
        %v732 = vld [vmem:[%s248 + $0xd80] sm:$0xff]
        %v733 = vld [vmem:[%s248 + $0xd88] sm:$0xff]
        %v734 = vld [vmem:[%s248 + $0xd90] sm:$0xff]
        %v735 = vld [vmem:[%s248 + $0xd98] sm:$0xff]
        %v736 = vld [vmem:[%s248 + $0xda0] sm:$0xff]
        %v737 = vld [vmem:[%s248 + $0xda8] sm:$0xff]
        %v738 = vld [vmem:[%s248 + $0xdb0] sm:$0xff]
        %v739 = vld [vmem:[%s248 + $0xdb8] sm:$0xff]
        %v740 = vld [vmem:[%s248 + $0xdc0] sm:$0xff]
        %v741 = vld [vmem:[%s248 + $0xdc8] sm:$0xff]
        %v742 = vld [vmem:[%s248 + $0xdd0] sm:$0xff]
        %v743 = vld [vmem:[%s248 + $0xdd8] sm:$0xff]
        %v744 = vld [vmem:[%s248 + $0xde0] sm:$0xff]
        %v745 = vld [vmem:[%s248 + $0xde8] sm:$0xff]
        %v746 = vld [vmem:[%s248 + $0xdf0] sm:$0xff]
        %v747 = vld [vmem:[%s248 + $0xdf8] sm:$0xff]
        %v748 = vld [vmem:[%s248 + $0xe00] sm:$0xff]
        %v749 = vld [vmem:[%s248 + $0xe08] sm:$0xff]
        %v750 = vld [vmem:[%s248 + $0xe10] sm:$0xff]
        %v751 = vld [vmem:[%s248 + $0xe18] sm:$0xff]
        %v752 = vld [vmem:[%s248 + $0xe20] sm:$0xff]
        %v753 = vld [vmem:[%s248 + $0xe28] sm:$0xff]
        %v754 = vld [vmem:[%s248 + $0xe30] sm:$0xff]
        %v755 = vld [vmem:[%s248 + $0xe38] sm:$0xff]
        %v756 = vld [vmem:[%s248 + $0xe40] sm:$0xff]
        %v757 = vld [vmem:[%s248 + $0xe48] sm:$0xff]
        %v758 = vld [vmem:[%s248 + $0xe50] sm:$0xff]
        %v759 = vld [vmem:[%s248 + $0xe58] sm:$0xff]
        %v760 = vld [vmem:[%s248 + $0xe60] sm:$0xff]
        %v761 = vld [vmem:[%s248 + $0xe68] sm:$0xff]
        %v762 = vld [vmem:[%s248 + $0xe70] sm:$0xff]
        %v763 = vld [vmem:[%s248 + $0xe78] sm:$0xff]
        %v764 = vld [vmem:[%s248 + $0xe80] sm:$0xff]
        %v765 = vld [vmem:[%s248 + $0xe88] sm:$0xff]
        %v766 = vld [vmem:[%s248 + $0xe90] sm:$0xff]
        %v767 = vld [vmem:[%s248 + $0xe98] sm:$0xff]
        %v768 = vld [vmem:[%s248 + $0xea0] sm:$0xff]
        %v769 = vld [vmem:[%s248 + $0xea8] sm:$0xff]
        %v770 = vld [vmem:[%s248 + $0xeb0] sm:$0xff]
        %v771 = vld [vmem:[%s248 + $0xeb8] sm:$0xff]
        %v772 = vld [vmem:[%s248 + $0xec0] sm:$0xff]
        %v773 = vld [vmem:[%s248 + $0xec8] sm:$0xff]
        %v774 = vld [vmem:[%s248 + $0xed0] sm:$0xff]
        %v775 = vld [vmem:[%s248 + $0xed8] sm:$0xff]
        %v776 = vld [vmem:[%s248 + $0xee0] sm:$0xff]
        %v777 = vld [vmem:[%s248 + $0xee8] sm:$0xff]
        %v778 = vld [vmem:[%s248 + $0xef0] sm:$0xff]
        %v779 = vld [vmem:[%s248 + $0xef8] sm:$0xff]
        %v780 = vld [vmem:[%s248 + $0xf00] sm:$0xff]
        %v781 = vld [vmem:[%s248 + $0xf08] sm:$0xff]
        %v782 = vld [vmem:[%s248 + $0xf10] sm:$0xff]
        %v783 = vld [vmem:[%s248 + $0xf18] sm:$0xff]
        %v784 = vld [vmem:[%s248 + $0xf20] sm:$0xff]
        %v785 = vld [vmem:[%s248 + $0xf28] sm:$0xff]
        %v786 = vld [vmem:[%s248 + $0xf30] sm:$0xff]
        %v787 = vld [vmem:[%s248 + $0xf38] sm:$0xff]
        %v788 = vld [vmem:[%s248 + $0xf40] sm:$0xff]
        %v789 = vld [vmem:[%s248 + $0xf48] sm:$0xff]
        %v790 = vld [vmem:[%s248 + $0xf50] sm:$0xff]
        %v791 = vld [vmem:[%s248 + $0xf58] sm:$0xff]
        %v792 = vld [vmem:[%s248 + $0xf60] sm:$0xff]
        %v793 = vld [vmem:[%s248 + $0xf68] sm:$0xff]
        %v794 = vld [vmem:[%s248 + $0xf70] sm:$0xff]
        %v795 = vld [vmem:[%s248 + $0xf78] sm:$0xff]
        %v796 = vld [vmem:[%s248 + $0xf80] sm:$0xff]
        %v797 = vld [vmem:[%s248 + $0xf88] sm:$0xff]
        %v798 = vld [vmem:[%s248 + $0xf90] sm:$0xff]
        %v799 = vld [vmem:[%s248 + $0xf98] sm:$0xff]
        %v800 = vld [vmem:[%s248 + $0xfa0] sm:$0xff]
        %v801 = vld [vmem:[%s248 + $0xfa8] sm:$0xff]
        %v802 = vld [vmem:[%s248 + $0xfb0] sm:$0xff]
        %v803 = vld [vmem:[%s248 + $0xfb8] sm:$0xff]
        %v804 = vld [vmem:[%s248 + $0xfc0] sm:$0xff]
        %v805 = vld [vmem:[%s248 + $0xfc8] sm:$0xff]
        %v806 = vld [vmem:[%s248 + $0xfd0] sm:$0xff]
        %v807 = vld [vmem:[%s248 + $0xfd8] sm:$0xff]
        %v808 = vld [vmem:[%s248 + $0xfe0] sm:$0xff]
        %v809 = vld [vmem:[%s248 + $0xfe8] sm:$0xff]
        %v810 = vld [vmem:[%s248 + $0xff0] sm:$0xff]
        %v811 = vld [vmem:[%s248 + $0xff8] sm:$0xff]
        %v814 = vcombine.high %v298, %v298
        %v816 = vunpack.c.l.s4 1966171168
        %v817 = vunpack.c.0.s8 %v816
        %v818 = vlaneseq
        %v819 = vshrl.u32 %v818, 7
        %v820 = vsub.s32 %v817, %v819
        %v821 = vrot.slane %v298, %v820
        %v823 = vunpack.c.l.s4 1966171168
        %v824 = vunpack.c.0.s8 %v823
        %v825 = vlaneseq
        %v826 = vshrl.u32 %v825, 7
        %v827 = vsub.s32 %v824, %v826
        %v828 = vrot.slane %v814, %v827
        %v829 = vcombine.high %v821, %v821
        %v830 = vcombine.high %v828, %v828
        %v832 = vunpack.c.l.s4 1966171168
        %v833 = vunpack.c.0.s8 %v832
        %v834 = vlaneseq
        %v835 = vshrl.u32 %v834, 7
        %v836 = vsub.s32 %v833, %v835
        %v837 = vrot.slane %v821, %v836
        %v839 = vunpack.c.l.s4 1966171168
        %v840 = vunpack.c.0.s8 %v839
        %v841 = vlaneseq
        %v842 = vshrl.u32 %v841, 7
        %v843 = vsub.s32 %v840, %v842
        %v844 = vrot.slane %v828, %v843
        %v846 = vunpack.c.l.s4 1966171168
        %v847 = vunpack.c.0.s8 %v846
        %v848 = vlaneseq
        %v849 = vshrl.u32 %v848, 7
        %v850 = vsub.s32 %v847, %v849
        %v851 = vrot.slane %v829, %v850
        %v853 = vunpack.c.l.s4 1966171168
        %v854 = vunpack.c.0.s8 %v853
        %v855 = vlaneseq
        %v856 = vshrl.u32 %v855, 7
        %v857 = vsub.s32 %v854, %v856
        %v858 = vrot.slane %v830, %v857
        %v859 = vcombine.high %v837, %v837
        %v860 = vcombine.high %v844, %v844
        %v861 = vcombine.high %v851, %v851
        %v862 = vcombine.high %v858, %v858
        %v863 = vcombine.high %v299, %v299
        %v865 = vunpack.c.l.s4 1966171168
        %v866 = vunpack.c.0.s8 %v865
        %v867 = vlaneseq
        %v868 = vshrl.u32 %v867, 7
        %v869 = vsub.s32 %v866, %v868
        %v870 = vrot.slane %v299, %v869
        %v872 = vunpack.c.l.s4 1966171168
        %v873 = vunpack.c.0.s8 %v872
        %v874 = vlaneseq
        %v875 = vshrl.u32 %v874, 7
        %v876 = vsub.s32 %v873, %v875
        %v877 = vrot.slane %v863, %v876
        %v878 = vcombine.high %v870, %v870
        %v879 = vcombine.high %v877, %v877
        %v881 = vunpack.c.l.s4 1966171168
        %v882 = vunpack.c.0.s8 %v881
        %v883 = vlaneseq
        %v884 = vshrl.u32 %v883, 7
        %v885 = vsub.s32 %v882, %v884
        %v886 = vrot.slane %v870, %v885
        %v888 = vunpack.c.l.s4 1966171168
        %v889 = vunpack.c.0.s8 %v888
        %v890 = vlaneseq
        %v891 = vshrl.u32 %v890, 7
        %v892 = vsub.s32 %v889, %v891
        %v893 = vrot.slane %v877, %v892
        %v895 = vunpack.c.l.s4 1966171168
        %v896 = vunpack.c.0.s8 %v895
        %v897 = vlaneseq
        %v898 = vshrl.u32 %v897, 7
        %v899 = vsub.s32 %v896, %v898
        %v900 = vrot.slane %v878, %v899
        %v902 = vunpack.c.l.s4 1966171168
        %v903 = vunpack.c.0.s8 %v902
        %v904 = vlaneseq
        %v905 = vshrl.u32 %v904, 7
        %v906 = vsub.s32 %v903, %v905
        %v907 = vrot.slane %v879, %v906
        %v908 = vcombine.high %v886, %v886
        %v909 = vcombine.high %v893, %v893
        %v910 = vcombine.high %v900, %v900
        %v911 = vcombine.high %v907, %v907
        %v1440 = vunpack.c.l.b16 %v300
        %v1441 = vunpack.c.h.b16 %v300
        %v1442 = vunpack.c.l.b16 %v301
        %v1443 = vunpack.c.h.b16 %v301
        %v1444 = vunpack.c.l.b16 %v302
        %v1445 = vunpack.c.h.b16 %v302
        %v1446 = vunpack.c.l.b16 %v303
        %v1447 = vunpack.c.h.b16 %v303
        %v1448 = vunpack.c.l.b16 %v304
        %v1449 = vunpack.c.h.b16 %v304
        %v1450 = vunpack.c.l.b16 %v305
        %v1451 = vunpack.c.h.b16 %v305
        %v1452 = vunpack.c.l.b16 %v306
        %v1453 = vunpack.c.h.b16 %v306
        %v1454 = vunpack.c.l.b16 %v307
        %v1455 = vunpack.c.h.b16 %v307
        %v1456 = vunpack.c.l.b16 %v308
        %v1457 = vunpack.c.h.b16 %v308
        %v1458 = vunpack.c.l.b16 %v309
        %v1459 = vunpack.c.h.b16 %v309
        %v1460 = vunpack.c.l.b16 %v310
        %v1461 = vunpack.c.h.b16 %v310
        %v1462 = vunpack.c.l.b16 %v311
        %v1463 = vunpack.c.h.b16 %v311
        %v1464 = vunpack.c.l.b16 %v312
        %v1465 = vunpack.c.h.b16 %v312
        %v1466 = vunpack.c.l.b16 %v313
        %v1467 = vunpack.c.h.b16 %v313
        %v1468 = vunpack.c.l.b16 %v314
        %v1469 = vunpack.c.h.b16 %v314
        %v1470 = vunpack.c.l.b16 %v315
        %v1471 = vunpack.c.h.b16 %v315
        %v1472 = vunpack.c.l.b16 %v316
        %v1473 = vunpack.c.h.b16 %v316
        %v1474 = vunpack.c.l.b16 %v317
        %v1475 = vunpack.c.h.b16 %v317
        %v1476 = vunpack.c.l.b16 %v318
        %v1477 = vunpack.c.h.b16 %v318
        %v1478 = vunpack.c.l.b16 %v319
        %v1479 = vunpack.c.h.b16 %v319
        %v1480 = vunpack.c.l.b16 %v320
        %v1481 = vunpack.c.h.b16 %v320
        %v1482 = vunpack.c.l.b16 %v321
        %v1483 = vunpack.c.h.b16 %v321
        %v1484 = vunpack.c.l.b16 %v322
        %v1485 = vunpack.c.h.b16 %v322
        %v1486 = vunpack.c.l.b16 %v323
        %v1487 = vunpack.c.h.b16 %v323
        %v1488 = vunpack.c.l.b16 %v324
        %v1489 = vunpack.c.h.b16 %v324
        %v1490 = vunpack.c.l.b16 %v325
        %v1491 = vunpack.c.h.b16 %v325
        %v1492 = vunpack.c.l.b16 %v326
        %v1493 = vunpack.c.h.b16 %v326
        %v1494 = vunpack.c.l.b16 %v327
        %v1495 = vunpack.c.h.b16 %v327
        %v1496 = vunpack.c.l.b16 %v328
        %v1497 = vunpack.c.h.b16 %v328
        %v1498 = vunpack.c.l.b16 %v329
        %v1499 = vunpack.c.h.b16 %v329
        %v1500 = vunpack.c.l.b16 %v330
        %v1501 = vunpack.c.h.b16 %v330
        %v1502 = vunpack.c.l.b16 %v331
        %v1503 = vunpack.c.h.b16 %v331
        %v1504 = vunpack.c.l.b16 %v332
        %v1505 = vunpack.c.h.b16 %v332
        %v1506 = vunpack.c.l.b16 %v333
        %v1507 = vunpack.c.h.b16 %v333
        %v1508 = vunpack.c.l.b16 %v334
        %v1509 = vunpack.c.h.b16 %v334
        %v1510 = vunpack.c.l.b16 %v335
        %v1511 = vunpack.c.h.b16 %v335
        %v1512 = vunpack.c.l.b16 %v336
        %v1513 = vunpack.c.h.b16 %v336
        %v1514 = vunpack.c.l.b16 %v337
        %v1515 = vunpack.c.h.b16 %v337
        %v1516 = vunpack.c.l.b16 %v338
        %v1517 = vunpack.c.h.b16 %v338
        %v1518 = vunpack.c.l.b16 %v339
        %v1519 = vunpack.c.h.b16 %v339
        %v1520 = vunpack.c.l.b16 %v340
        %v1521 = vunpack.c.h.b16 %v340
        %v1522 = vunpack.c.l.b16 %v341
        %v1523 = vunpack.c.h.b16 %v341
        %v1524 = vunpack.c.l.b16 %v342
        %v1525 = vunpack.c.h.b16 %v342
        %v1526 = vunpack.c.l.b16 %v343
        %v1527 = vunpack.c.h.b16 %v343
        %v1528 = vunpack.c.l.b16 %v344
        %v1529 = vunpack.c.h.b16 %v344
        %v1530 = vunpack.c.l.b16 %v345
        %v1531 = vunpack.c.h.b16 %v345
        %v1532 = vunpack.c.l.b16 %v346
        %v1533 = vunpack.c.h.b16 %v346
        %v1534 = vunpack.c.l.b16 %v347
        %v1535 = vunpack.c.h.b16 %v347
        %v1536 = vunpack.c.l.b16 %v348
        %v1537 = vunpack.c.h.b16 %v348
        %v1538 = vunpack.c.l.b16 %v349
        %v1539 = vunpack.c.h.b16 %v349
        %v1540 = vunpack.c.l.b16 %v350
        %v1541 = vunpack.c.h.b16 %v350
        %v1542 = vunpack.c.l.b16 %v351
        %v1543 = vunpack.c.h.b16 %v351
        %v1544 = vunpack.c.l.b16 %v352
        %v1545 = vunpack.c.h.b16 %v352
        %v1546 = vunpack.c.l.b16 %v353
        %v1547 = vunpack.c.h.b16 %v353
        %v1548 = vunpack.c.l.b16 %v354
        %v1549 = vunpack.c.h.b16 %v354
        %v1550 = vunpack.c.l.b16 %v355
        %v1551 = vunpack.c.h.b16 %v355
        %v1552 = vunpack.c.l.b16 %v356
        %v1553 = vunpack.c.h.b16 %v356
        %v1554 = vunpack.c.l.b16 %v357
        %v1555 = vunpack.c.h.b16 %v357
        %v1556 = vunpack.c.l.b16 %v358
        %v1557 = vunpack.c.h.b16 %v358
        %v1558 = vunpack.c.l.b16 %v359
        %v1559 = vunpack.c.h.b16 %v359
        %v1560 = vunpack.c.l.b16 %v360
        %v1561 = vunpack.c.h.b16 %v360
        %v1562 = vunpack.c.l.b16 %v361
        %v1563 = vunpack.c.h.b16 %v361
        %v1564 = vunpack.c.l.b16 %v362
        %v1565 = vunpack.c.h.b16 %v362
        %v1566 = vunpack.c.l.b16 %v363
        %v1567 = vunpack.c.h.b16 %v363
        %v1568 = vunpack.c.l.b16 %v364
        %v1569 = vunpack.c.h.b16 %v364
        %v1570 = vunpack.c.l.b16 %v365
        %v1571 = vunpack.c.h.b16 %v365
        %v1572 = vunpack.c.l.b16 %v366
        %v1573 = vunpack.c.h.b16 %v366
        %v1574 = vunpack.c.l.b16 %v367
        %v1575 = vunpack.c.h.b16 %v367
        %v1576 = vunpack.c.l.b16 %v368
        %v1577 = vunpack.c.h.b16 %v368
        %v1578 = vunpack.c.l.b16 %v369
        %v1579 = vunpack.c.h.b16 %v369
        %v1580 = vunpack.c.l.b16 %v370
        %v1581 = vunpack.c.h.b16 %v370
        %v1582 = vunpack.c.l.b16 %v371
        %v1583 = vunpack.c.h.b16 %v371
        %v1584 = vunpack.c.l.b16 %v372
        %v1585 = vunpack.c.h.b16 %v372
        %v1586 = vunpack.c.l.b16 %v373
        %v1587 = vunpack.c.h.b16 %v373
        %v1588 = vunpack.c.l.b16 %v374
        %v1589 = vunpack.c.h.b16 %v374
        %v1590 = vunpack.c.l.b16 %v375
        %v1591 = vunpack.c.h.b16 %v375
        %v1592 = vunpack.c.l.b16 %v376
        %v1593 = vunpack.c.h.b16 %v376
        %v1594 = vunpack.c.l.b16 %v377
        %v1595 = vunpack.c.h.b16 %v377
        %v1596 = vunpack.c.l.b16 %v378
        %v1597 = vunpack.c.h.b16 %v378
        %v1598 = vunpack.c.l.b16 %v379
        %v1599 = vunpack.c.h.b16 %v379
        %v1600 = vunpack.c.l.b16 %v380
        %v1601 = vunpack.c.h.b16 %v380
        %v1602 = vunpack.c.l.b16 %v381
        %v1603 = vunpack.c.h.b16 %v381
        %v1604 = vunpack.c.l.b16 %v382
        %v1605 = vunpack.c.h.b16 %v382
        %v1606 = vunpack.c.l.b16 %v383
        %v1607 = vunpack.c.h.b16 %v383
        %v1608 = vunpack.c.l.b16 %v384
        %v1609 = vunpack.c.h.b16 %v384
        %v1610 = vunpack.c.l.b16 %v385
        %v1611 = vunpack.c.h.b16 %v385
        %v1612 = vunpack.c.l.b16 %v386
        %v1613 = vunpack.c.h.b16 %v386
        %v1614 = vunpack.c.l.b16 %v387
        %v1615 = vunpack.c.h.b16 %v387
        %v1616 = vunpack.c.l.b16 %v388
        %v1617 = vunpack.c.h.b16 %v388
        %v1618 = vunpack.c.l.b16 %v389
        %v1619 = vunpack.c.h.b16 %v389
        %v1620 = vunpack.c.l.b16 %v390
        %v1621 = vunpack.c.h.b16 %v390
        %v1622 = vunpack.c.l.b16 %v391
        %v1623 = vunpack.c.h.b16 %v391
        %v1624 = vunpack.c.l.b16 %v392
        %v1625 = vunpack.c.h.b16 %v392
        %v1626 = vunpack.c.l.b16 %v393
        %v1627 = vunpack.c.h.b16 %v393
        %v1628 = vunpack.c.l.b16 %v394
        %v1629 = vunpack.c.h.b16 %v394
        %v1630 = vunpack.c.l.b16 %v395
        %v1631 = vunpack.c.h.b16 %v395
        %v1632 = vunpack.c.l.b16 %v396
        %v1633 = vunpack.c.h.b16 %v396
        %v1634 = vunpack.c.l.b16 %v397
        %v1635 = vunpack.c.h.b16 %v397
        %v1636 = vunpack.c.l.b16 %v398
        %v1637 = vunpack.c.h.b16 %v398
        %v1638 = vunpack.c.l.b16 %v399
        %v1639 = vunpack.c.h.b16 %v399
        %v1640 = vunpack.c.l.b16 %v400
        %v1641 = vunpack.c.h.b16 %v400
        %v1642 = vunpack.c.l.b16 %v401
        %v1643 = vunpack.c.h.b16 %v401
        %v1644 = vunpack.c.l.b16 %v402
        %v1645 = vunpack.c.h.b16 %v402
        %v1646 = vunpack.c.l.b16 %v403
        %v1647 = vunpack.c.h.b16 %v403
        %v1648 = vunpack.c.l.b16 %v404
        %v1649 = vunpack.c.h.b16 %v404
        %v1650 = vunpack.c.l.b16 %v405
        %v1651 = vunpack.c.h.b16 %v405
        %v1652 = vunpack.c.l.b16 %v406
        %v1653 = vunpack.c.h.b16 %v406
        %v1654 = vunpack.c.l.b16 %v407
        %v1655 = vunpack.c.h.b16 %v407
        %v1656 = vunpack.c.l.b16 %v408
        %v1657 = vunpack.c.h.b16 %v408
        %v1658 = vunpack.c.l.b16 %v409
        %v1659 = vunpack.c.h.b16 %v409
        %v1660 = vunpack.c.l.b16 %v410
        %v1661 = vunpack.c.h.b16 %v410
        %v1662 = vunpack.c.l.b16 %v411
        %v1663 = vunpack.c.h.b16 %v411
        %v1664 = vunpack.c.l.b16 %v412
        %v1665 = vunpack.c.h.b16 %v412
        %v1666 = vunpack.c.l.b16 %v413
        %v1667 = vunpack.c.h.b16 %v413
        %v1668 = vunpack.c.l.b16 %v414
        %v1669 = vunpack.c.h.b16 %v414
        %v1670 = vunpack.c.l.b16 %v415
        %v1671 = vunpack.c.h.b16 %v415
        %v1672 = vunpack.c.l.b16 %v416
        %v1673 = vunpack.c.h.b16 %v416
        %v1674 = vunpack.c.l.b16 %v417
        %v1675 = vunpack.c.h.b16 %v417
        %v1676 = vunpack.c.l.b16 %v418
        %v1677 = vunpack.c.h.b16 %v418
        %v1678 = vunpack.c.l.b16 %v419
        %v1679 = vunpack.c.h.b16 %v419
        %v1680 = vunpack.c.l.b16 %v420
        %v1681 = vunpack.c.h.b16 %v420
        %v1682 = vunpack.c.l.b16 %v421
        %v1683 = vunpack.c.h.b16 %v421
        %v1684 = vunpack.c.l.b16 %v422
        %v1685 = vunpack.c.h.b16 %v422
        %v1686 = vunpack.c.l.b16 %v423
        %v1687 = vunpack.c.h.b16 %v423
        %v1688 = vunpack.c.l.b16 %v424
        %v1689 = vunpack.c.h.b16 %v424
        %v1690 = vunpack.c.l.b16 %v425
        %v1691 = vunpack.c.h.b16 %v425
        %v1692 = vunpack.c.l.b16 %v426
        %v1693 = vunpack.c.h.b16 %v426
        %v1694 = vunpack.c.l.b16 %v427
        %v1695 = vunpack.c.h.b16 %v427
        %v1696 = vunpack.c.l.b16 %v428
        %v1697 = vunpack.c.h.b16 %v428
        %v1698 = vunpack.c.l.b16 %v429
        %v1699 = vunpack.c.h.b16 %v429
        %v1700 = vunpack.c.l.b16 %v430
        %v1701 = vunpack.c.h.b16 %v430
        %v1702 = vunpack.c.l.b16 %v431
        %v1703 = vunpack.c.h.b16 %v431
        %v1704 = vunpack.c.l.b16 %v432
        %v1705 = vunpack.c.h.b16 %v432
        %v1706 = vunpack.c.l.b16 %v433
        %v1707 = vunpack.c.h.b16 %v433
        %v1708 = vunpack.c.l.b16 %v434
        %v1709 = vunpack.c.h.b16 %v434
        %v1710 = vunpack.c.l.b16 %v435
        %v1711 = vunpack.c.h.b16 %v435
        %v1712 = vunpack.c.l.b16 %v436
        %v1713 = vunpack.c.h.b16 %v436
        %v1714 = vunpack.c.l.b16 %v437
        %v1715 = vunpack.c.h.b16 %v437
        %v1716 = vunpack.c.l.b16 %v438
        %v1717 = vunpack.c.h.b16 %v438
        %v1718 = vunpack.c.l.b16 %v439
        %v1719 = vunpack.c.h.b16 %v439
        %v1720 = vunpack.c.l.b16 %v440
        %v1721 = vunpack.c.h.b16 %v440
        %v1722 = vunpack.c.l.b16 %v441
        %v1723 = vunpack.c.h.b16 %v441
        %v1724 = vunpack.c.l.b16 %v442
        %v1725 = vunpack.c.h.b16 %v442
        %v1726 = vunpack.c.l.b16 %v443
        %v1727 = vunpack.c.h.b16 %v443
        %v1728 = vunpack.c.l.b16 %v444
        %v1729 = vunpack.c.h.b16 %v444
        %v1730 = vunpack.c.l.b16 %v445
        %v1731 = vunpack.c.h.b16 %v445
        %v1732 = vunpack.c.l.b16 %v446
        %v1733 = vunpack.c.h.b16 %v446
        %v1734 = vunpack.c.l.b16 %v447
        %v1735 = vunpack.c.h.b16 %v447
        %v1736 = vunpack.c.l.b16 %v448
        %v1737 = vunpack.c.h.b16 %v448
        %v1738 = vunpack.c.l.b16 %v449
        %v1739 = vunpack.c.h.b16 %v449
        %v1740 = vunpack.c.l.b16 %v450
        %v1741 = vunpack.c.h.b16 %v450
        %v1742 = vunpack.c.l.b16 %v451
        %v1743 = vunpack.c.h.b16 %v451
        %v1744 = vunpack.c.l.b16 %v452
        %v1745 = vunpack.c.h.b16 %v452
        %v1746 = vunpack.c.l.b16 %v453
        %v1747 = vunpack.c.h.b16 %v453
        %v1748 = vunpack.c.l.b16 %v454
        %v1749 = vunpack.c.h.b16 %v454
        %v1750 = vunpack.c.l.b16 %v455
        %v1751 = vunpack.c.h.b16 %v455
        %v1752 = vunpack.c.l.b16 %v456
        %v1753 = vunpack.c.h.b16 %v456
        %v1754 = vunpack.c.l.b16 %v457
        %v1755 = vunpack.c.h.b16 %v457
        %v1756 = vunpack.c.l.b16 %v458
        %v1757 = vunpack.c.h.b16 %v458
        %v1758 = vunpack.c.l.b16 %v459
        %v1759 = vunpack.c.h.b16 %v459
        %v1760 = vunpack.c.l.b16 %v460
        %v1761 = vunpack.c.h.b16 %v460
        %v1762 = vunpack.c.l.b16 %v461
        %v1763 = vunpack.c.h.b16 %v461
        %v1764 = vunpack.c.l.b16 %v462
        %v1765 = vunpack.c.h.b16 %v462
        %v1766 = vunpack.c.l.b16 %v463
        %v1767 = vunpack.c.h.b16 %v463
        %v1768 = vunpack.c.l.b16 %v464
        %v1769 = vunpack.c.h.b16 %v464
        %v1770 = vunpack.c.l.b16 %v465
        %v1771 = vunpack.c.h.b16 %v465
        %v1772 = vunpack.c.l.b16 %v466
        %v1773 = vunpack.c.h.b16 %v466
        %v1774 = vunpack.c.l.b16 %v467
        %v1775 = vunpack.c.h.b16 %v467
        %v1776 = vunpack.c.l.b16 %v468
        %v1777 = vunpack.c.h.b16 %v468
        %v1778 = vunpack.c.l.b16 %v469
        %v1779 = vunpack.c.h.b16 %v469
        %v1780 = vunpack.c.l.b16 %v470
        %v1781 = vunpack.c.h.b16 %v470
        %v1782 = vunpack.c.l.b16 %v471
        %v1783 = vunpack.c.h.b16 %v471
        %v1784 = vunpack.c.l.b16 %v472
        %v1785 = vunpack.c.h.b16 %v472
        %v1786 = vunpack.c.l.b16 %v473
        %v1787 = vunpack.c.h.b16 %v473
        %v1788 = vunpack.c.l.b16 %v474
        %v1789 = vunpack.c.h.b16 %v474
        %v1790 = vunpack.c.l.b16 %v475
        %v1791 = vunpack.c.h.b16 %v475
        %v1792 = vunpack.c.l.b16 %v476
        %v1793 = vunpack.c.h.b16 %v476
        %v1794 = vunpack.c.l.b16 %v477
        %v1795 = vunpack.c.h.b16 %v477
        %v1796 = vunpack.c.l.b16 %v478
        %v1797 = vunpack.c.h.b16 %v478
        %v1798 = vunpack.c.l.b16 %v479
        %v1799 = vunpack.c.h.b16 %v479
        %v1800 = vunpack.c.l.b16 %v480
        %v1801 = vunpack.c.h.b16 %v480
        %v1802 = vunpack.c.l.b16 %v481
        %v1803 = vunpack.c.h.b16 %v481
        %v1804 = vunpack.c.l.b16 %v482
        %v1805 = vunpack.c.h.b16 %v482
        %v1806 = vunpack.c.l.b16 %v483
        %v1807 = vunpack.c.h.b16 %v483
        %v1808 = vunpack.c.l.b16 %v484
        %v1809 = vunpack.c.h.b16 %v484
        %v1810 = vunpack.c.l.b16 %v485
        %v1811 = vunpack.c.h.b16 %v485
        %v1812 = vunpack.c.l.b16 %v486
        %v1813 = vunpack.c.h.b16 %v486
        %v1814 = vunpack.c.l.b16 %v487
        %v1815 = vunpack.c.h.b16 %v487
        %v1816 = vunpack.c.l.b16 %v488
        %v1817 = vunpack.c.h.b16 %v488
        %v1818 = vunpack.c.l.b16 %v489
        %v1819 = vunpack.c.h.b16 %v489
        %v1820 = vunpack.c.l.b16 %v490
        %v1821 = vunpack.c.h.b16 %v490
        %v1822 = vunpack.c.l.b16 %v491
        %v1823 = vunpack.c.h.b16 %v491
        %v1824 = vunpack.c.l.b16 %v492
        %v1825 = vunpack.c.h.b16 %v492
        %v1826 = vunpack.c.l.b16 %v493
        %v1827 = vunpack.c.h.b16 %v493
        %v1828 = vunpack.c.l.b16 %v494
        %v1829 = vunpack.c.h.b16 %v494
        %v1830 = vunpack.c.l.b16 %v495
        %v1831 = vunpack.c.h.b16 %v495
        %v1832 = vunpack.c.l.b16 %v496
        %v1833 = vunpack.c.h.b16 %v496
        %v1834 = vunpack.c.l.b16 %v497
        %v1835 = vunpack.c.h.b16 %v497
        %v1836 = vunpack.c.l.b16 %v498
        %v1837 = vunpack.c.h.b16 %v498
        %v1838 = vunpack.c.l.b16 %v499
        %v1839 = vunpack.c.h.b16 %v499
        %v1840 = vunpack.c.l.b16 %v500
        %v1841 = vunpack.c.h.b16 %v500
        %v1842 = vunpack.c.l.b16 %v501
        %v1843 = vunpack.c.h.b16 %v501
        %v1844 = vunpack.c.l.b16 %v502
        %v1845 = vunpack.c.h.b16 %v502
        %v1846 = vunpack.c.l.b16 %v503
        %v1847 = vunpack.c.h.b16 %v503
        %v1848 = vunpack.c.l.b16 %v504
        %v1849 = vunpack.c.h.b16 %v504
        %v1850 = vunpack.c.l.b16 %v505
        %v1851 = vunpack.c.h.b16 %v505
        %v1852 = vunpack.c.l.b16 %v506
        %v1853 = vunpack.c.h.b16 %v506
        %v1854 = vunpack.c.l.b16 %v507
        %v1855 = vunpack.c.h.b16 %v507
        %v1856 = vunpack.c.l.b16 %v508
        %v1857 = vunpack.c.h.b16 %v508
        %v1858 = vunpack.c.l.b16 %v509
        %v1859 = vunpack.c.h.b16 %v509
        %v1860 = vunpack.c.l.b16 %v510
        %v1861 = vunpack.c.h.b16 %v510
        %v1862 = vunpack.c.l.b16 %v511
        %v1863 = vunpack.c.h.b16 %v511
        %v1864 = vunpack.c.l.b16 %v512
        %v1865 = vunpack.c.h.b16 %v512
        %v1866 = vunpack.c.l.b16 %v513
        %v1867 = vunpack.c.h.b16 %v513
        %v1868 = vunpack.c.l.b16 %v514
        %v1869 = vunpack.c.h.b16 %v514
        %v1870 = vunpack.c.l.b16 %v515
        %v1871 = vunpack.c.h.b16 %v515
        %v1872 = vunpack.c.l.b16 %v516
        %v1873 = vunpack.c.h.b16 %v516
        %v1874 = vunpack.c.l.b16 %v517
        %v1875 = vunpack.c.h.b16 %v517
        %v1876 = vunpack.c.l.b16 %v518
        %v1877 = vunpack.c.h.b16 %v518
        %v1878 = vunpack.c.l.b16 %v519
        %v1879 = vunpack.c.h.b16 %v519
        %v1880 = vunpack.c.l.b16 %v520
        %v1881 = vunpack.c.h.b16 %v520
        %v1882 = vunpack.c.l.b16 %v521
        %v1883 = vunpack.c.h.b16 %v521
        %v1884 = vunpack.c.l.b16 %v522
        %v1885 = vunpack.c.h.b16 %v522
        %v1886 = vunpack.c.l.b16 %v523
        %v1887 = vunpack.c.h.b16 %v523
        %v1888 = vunpack.c.l.b16 %v524
        %v1889 = vunpack.c.h.b16 %v524
        %v1890 = vunpack.c.l.b16 %v525
        %v1891 = vunpack.c.h.b16 %v525
        %v1892 = vunpack.c.l.b16 %v526
        %v1893 = vunpack.c.h.b16 %v526
        %v1894 = vunpack.c.l.b16 %v527
        %v1895 = vunpack.c.h.b16 %v527
        %v1896 = vunpack.c.l.b16 %v528
        %v1897 = vunpack.c.h.b16 %v528
        %v1898 = vunpack.c.l.b16 %v529
        %v1899 = vunpack.c.h.b16 %v529
        %v1900 = vunpack.c.l.b16 %v530
        %v1901 = vunpack.c.h.b16 %v530
        %v1902 = vunpack.c.l.b16 %v531
        %v1903 = vunpack.c.h.b16 %v531
        %v1904 = vunpack.c.l.b16 %v532
        %v1905 = vunpack.c.h.b16 %v532
        %v1906 = vunpack.c.l.b16 %v533
        %v1907 = vunpack.c.h.b16 %v533
        %v1908 = vunpack.c.l.b16 %v534
        %v1909 = vunpack.c.h.b16 %v534
        %v1910 = vunpack.c.l.b16 %v535
        %v1911 = vunpack.c.h.b16 %v535
        %v1912 = vunpack.c.l.b16 %v536
        %v1913 = vunpack.c.h.b16 %v536
        %v1914 = vunpack.c.l.b16 %v537
        %v1915 = vunpack.c.h.b16 %v537
        %v1916 = vunpack.c.l.b16 %v538
        %v1917 = vunpack.c.h.b16 %v538
        %v1918 = vunpack.c.l.b16 %v539
        %v1919 = vunpack.c.h.b16 %v539
        %v1920 = vunpack.c.l.b16 %v540
        %v1921 = vunpack.c.h.b16 %v540
        %v1922 = vunpack.c.l.b16 %v541
        %v1923 = vunpack.c.h.b16 %v541
        %v1924 = vunpack.c.l.b16 %v542
        %v1925 = vunpack.c.h.b16 %v542
        %v1926 = vunpack.c.l.b16 %v543
        %v1927 = vunpack.c.h.b16 %v543
        %v1928 = vunpack.c.l.b16 %v544
        %v1929 = vunpack.c.h.b16 %v544
        %v1930 = vunpack.c.l.b16 %v545
        %v1931 = vunpack.c.h.b16 %v545
        %v1932 = vunpack.c.l.b16 %v546
        %v1933 = vunpack.c.h.b16 %v546
        %v1934 = vunpack.c.l.b16 %v547
        %v1935 = vunpack.c.h.b16 %v547
        %v1936 = vunpack.c.l.b16 %v548
        %v1937 = vunpack.c.h.b16 %v548
        %v1938 = vunpack.c.l.b16 %v549
        %v1939 = vunpack.c.h.b16 %v549
        %v1940 = vunpack.c.l.b16 %v550
        %v1941 = vunpack.c.h.b16 %v550
        %v1942 = vunpack.c.l.b16 %v551
        %v1943 = vunpack.c.h.b16 %v551
        %v1944 = vunpack.c.l.b16 %v552
        %v1945 = vunpack.c.h.b16 %v552
        %v1946 = vunpack.c.l.b16 %v553
        %v1947 = vunpack.c.h.b16 %v553
        %v1948 = vunpack.c.l.b16 %v554
        %v1949 = vunpack.c.h.b16 %v554
        %v1950 = vunpack.c.l.b16 %v555
        %v1951 = vunpack.c.h.b16 %v555
        %v1952 = vunpack.c.l.b16 %v556
        %v1953 = vunpack.c.h.b16 %v556
        %v1954 = vunpack.c.l.b16 %v557
        %v1955 = vunpack.c.h.b16 %v557
        %v1956 = vunpack.c.l.b16 %v558
        %v1957 = vunpack.c.h.b16 %v558
        %v1958 = vunpack.c.l.b16 %v559
        %v1959 = vunpack.c.h.b16 %v559
        %v1960 = vunpack.c.l.b16 %v560
        %v1961 = vunpack.c.h.b16 %v560
        %v1962 = vunpack.c.l.b16 %v561
        %v1963 = vunpack.c.h.b16 %v561
        %v1964 = vunpack.c.l.b16 %v562
        %v1965 = vunpack.c.h.b16 %v562
        %v1966 = vunpack.c.l.b16 %v563
        %v1967 = vunpack.c.h.b16 %v563
        %v1968 = vunpack.c.l.b16 %v564
        %v1969 = vunpack.c.h.b16 %v564
        %v1970 = vunpack.c.l.b16 %v565
        %v1971 = vunpack.c.h.b16 %v565
        %v1972 = vunpack.c.l.b16 %v566
        %v1973 = vunpack.c.h.b16 %v566
        %v1974 = vunpack.c.l.b16 %v567
        %v1975 = vunpack.c.h.b16 %v567
        %v1976 = vunpack.c.l.b16 %v568
        %v1977 = vunpack.c.h.b16 %v568
        %v1978 = vunpack.c.l.b16 %v569
        %v1979 = vunpack.c.h.b16 %v569
        %v1980 = vunpack.c.l.b16 %v570
        %v1981 = vunpack.c.h.b16 %v570
        %v1982 = vunpack.c.l.b16 %v571
        %v1983 = vunpack.c.h.b16 %v571
        %v1984 = vunpack.c.l.b16 %v572
        %v1985 = vunpack.c.h.b16 %v572
        %v1986 = vunpack.c.l.b16 %v573
        %v1987 = vunpack.c.h.b16 %v573
        %v1988 = vunpack.c.l.b16 %v574
        %v1989 = vunpack.c.h.b16 %v574
        %v1990 = vunpack.c.l.b16 %v575
        %v1991 = vunpack.c.h.b16 %v575
        %v1992 = vunpack.c.l.b16 %v576
        %v1993 = vunpack.c.h.b16 %v576
        %v1994 = vunpack.c.l.b16 %v577
        %v1995 = vunpack.c.h.b16 %v577
        %v1996 = vunpack.c.l.b16 %v578
        %v1997 = vunpack.c.h.b16 %v578
        %v1998 = vunpack.c.l.b16 %v579
        %v1999 = vunpack.c.h.b16 %v579
        %v2000 = vunpack.c.l.b16 %v580
        %v2001 = vunpack.c.h.b16 %v580
        %v2002 = vunpack.c.l.b16 %v581
        %v2003 = vunpack.c.h.b16 %v581
        %v2004 = vunpack.c.l.b16 %v582
        %v2005 = vunpack.c.h.b16 %v582
        %v2006 = vunpack.c.l.b16 %v583
        %v2007 = vunpack.c.h.b16 %v583
        %v2008 = vunpack.c.l.b16 %v584
        %v2009 = vunpack.c.h.b16 %v584
        %v2010 = vunpack.c.l.b16 %v585
        %v2011 = vunpack.c.h.b16 %v585
        %v2012 = vunpack.c.l.b16 %v586
        %v2013 = vunpack.c.h.b16 %v586
        %v2014 = vunpack.c.l.b16 %v587
        %v2015 = vunpack.c.h.b16 %v587
        %v2016 = vunpack.c.l.b16 %v588
        %v2017 = vunpack.c.h.b16 %v588
        %v2018 = vunpack.c.l.b16 %v589
        %v2019 = vunpack.c.h.b16 %v589
        %v2020 = vunpack.c.l.b16 %v590
        %v2021 = vunpack.c.h.b16 %v590
        %v2022 = vunpack.c.l.b16 %v591
        %v2023 = vunpack.c.h.b16 %v591
        %v2024 = vunpack.c.l.b16 %v592
        %v2025 = vunpack.c.h.b16 %v592
        %v2026 = vunpack.c.l.b16 %v593
        %v2027 = vunpack.c.h.b16 %v593
        %v2028 = vunpack.c.l.b16 %v594
        %v2029 = vunpack.c.h.b16 %v594
        %v2030 = vunpack.c.l.b16 %v595
        %v2031 = vunpack.c.h.b16 %v595
        %v2032 = vunpack.c.l.b16 %v596
        %v2033 = vunpack.c.h.b16 %v596
        %v2034 = vunpack.c.l.b16 %v597
        %v2035 = vunpack.c.h.b16 %v597
        %v2036 = vunpack.c.l.b16 %v598
        %v2037 = vunpack.c.h.b16 %v598
        %v2038 = vunpack.c.l.b16 %v599
        %v2039 = vunpack.c.h.b16 %v599
        %v2040 = vunpack.c.l.b16 %v600
        %v2041 = vunpack.c.h.b16 %v600
        %v2042 = vunpack.c.l.b16 %v601
        %v2043 = vunpack.c.h.b16 %v601
        %v2044 = vunpack.c.l.b16 %v602
        %v2045 = vunpack.c.h.b16 %v602
        %v2046 = vunpack.c.l.b16 %v603
        %v2047 = vunpack.c.h.b16 %v603
        %v2048 = vunpack.c.l.b16 %v604
        %v2049 = vunpack.c.h.b16 %v604
        %v2050 = vunpack.c.l.b16 %v605
        %v2051 = vunpack.c.h.b16 %v605
        %v2052 = vunpack.c.l.b16 %v606
        %v2053 = vunpack.c.h.b16 %v606
        %v2054 = vunpack.c.l.b16 %v607
        %v2055 = vunpack.c.h.b16 %v607
        %v2056 = vunpack.c.l.b16 %v608
        %v2057 = vunpack.c.h.b16 %v608
        %v2058 = vunpack.c.l.b16 %v609
        %v2059 = vunpack.c.h.b16 %v609
        %v2060 = vunpack.c.l.b16 %v610
        %v2061 = vunpack.c.h.b16 %v610
        %v2062 = vunpack.c.l.b16 %v611
        %v2063 = vunpack.c.h.b16 %v611
        %v2064 = vunpack.c.l.b16 %v612
        %v2065 = vunpack.c.h.b16 %v612
        %v2066 = vunpack.c.l.b16 %v613
        %v2067 = vunpack.c.h.b16 %v613
        %v2068 = vunpack.c.l.b16 %v614
        %v2069 = vunpack.c.h.b16 %v614
        %v2070 = vunpack.c.l.b16 %v615
        %v2071 = vunpack.c.h.b16 %v615
        %v2072 = vunpack.c.l.b16 %v616
        %v2073 = vunpack.c.h.b16 %v616
        %v2074 = vunpack.c.l.b16 %v617
        %v2075 = vunpack.c.h.b16 %v617
        %v2076 = vunpack.c.l.b16 %v618
        %v2077 = vunpack.c.h.b16 %v618
        %v2078 = vunpack.c.l.b16 %v619
        %v2079 = vunpack.c.h.b16 %v619
        %v2080 = vunpack.c.l.b16 %v620
        %v2081 = vunpack.c.h.b16 %v620
        %v2082 = vunpack.c.l.b16 %v621
        %v2083 = vunpack.c.h.b16 %v621
        %v2084 = vunpack.c.l.b16 %v622
        %v2085 = vunpack.c.h.b16 %v622
        %v2086 = vunpack.c.l.b16 %v623
        %v2087 = vunpack.c.h.b16 %v623
        %v2088 = vunpack.c.l.b16 %v624
        %v2089 = vunpack.c.h.b16 %v624
        %v2090 = vunpack.c.l.b16 %v625
        %v2091 = vunpack.c.h.b16 %v625
        %v2092 = vunpack.c.l.b16 %v626
        %v2093 = vunpack.c.h.b16 %v626
        %v2094 = vunpack.c.l.b16 %v627
        %v2095 = vunpack.c.h.b16 %v627
        %v2096 = vunpack.c.l.b16 %v628
        %v2097 = vunpack.c.h.b16 %v628
        %v2098 = vunpack.c.l.b16 %v629
        %v2099 = vunpack.c.h.b16 %v629
        %v2100 = vunpack.c.l.b16 %v630
        %v2101 = vunpack.c.h.b16 %v630
        %v2102 = vunpack.c.l.b16 %v631
        %v2103 = vunpack.c.h.b16 %v631
        %v2104 = vunpack.c.l.b16 %v632
        %v2105 = vunpack.c.h.b16 %v632
        %v2106 = vunpack.c.l.b16 %v633
        %v2107 = vunpack.c.h.b16 %v633
        %v2108 = vunpack.c.l.b16 %v634
        %v2109 = vunpack.c.h.b16 %v634
        %v2110 = vunpack.c.l.b16 %v635
        %v2111 = vunpack.c.h.b16 %v635
        %v2112 = vunpack.c.l.b16 %v636
        %v2113 = vunpack.c.h.b16 %v636
        %v2114 = vunpack.c.l.b16 %v637
        %v2115 = vunpack.c.h.b16 %v637
        %v2116 = vunpack.c.l.b16 %v638
        %v2117 = vunpack.c.h.b16 %v638
        %v2118 = vunpack.c.l.b16 %v639
        %v2119 = vunpack.c.h.b16 %v639
        %v2120 = vunpack.c.l.b16 %v640
        %v2121 = vunpack.c.h.b16 %v640
        %v2122 = vunpack.c.l.b16 %v641
        %v2123 = vunpack.c.h.b16 %v641
        %v2124 = vunpack.c.l.b16 %v642
        %v2125 = vunpack.c.h.b16 %v642
        %v2126 = vunpack.c.l.b16 %v643
        %v2127 = vunpack.c.h.b16 %v643
        %v2128 = vunpack.c.l.b16 %v644
        %v2129 = vunpack.c.h.b16 %v644
        %v2130 = vunpack.c.l.b16 %v645
        %v2131 = vunpack.c.h.b16 %v645
        %v2132 = vunpack.c.l.b16 %v646
        %v2133 = vunpack.c.h.b16 %v646
        %v2134 = vunpack.c.l.b16 %v647
        %v2135 = vunpack.c.h.b16 %v647
        %v2136 = vunpack.c.l.b16 %v648
        %v2137 = vunpack.c.h.b16 %v648
        %v2138 = vunpack.c.l.b16 %v649
        %v2139 = vunpack.c.h.b16 %v649
        %v2140 = vunpack.c.l.b16 %v650
        %v2141 = vunpack.c.h.b16 %v650
        %v2142 = vunpack.c.l.b16 %v651
        %v2143 = vunpack.c.h.b16 %v651
        %v2144 = vunpack.c.l.b16 %v652
        %v2145 = vunpack.c.h.b16 %v652
        %v2146 = vunpack.c.l.b16 %v653
        %v2147 = vunpack.c.h.b16 %v653
        %v2148 = vunpack.c.l.b16 %v654
        %v2149 = vunpack.c.h.b16 %v654
        %v2150 = vunpack.c.l.b16 %v655
        %v2151 = vunpack.c.h.b16 %v655
        %v2152 = vunpack.c.l.b16 %v656
        %v2153 = vunpack.c.h.b16 %v656
        %v2154 = vunpack.c.l.b16 %v657
        %v2155 = vunpack.c.h.b16 %v657
        %v2156 = vunpack.c.l.b16 %v658
        %v2157 = vunpack.c.h.b16 %v658
        %v2158 = vunpack.c.l.b16 %v659
        %v2159 = vunpack.c.h.b16 %v659
        %v2160 = vunpack.c.l.b16 %v660
        %v2161 = vunpack.c.h.b16 %v660
        %v2162 = vunpack.c.l.b16 %v661
        %v2163 = vunpack.c.h.b16 %v661
        %v2164 = vunpack.c.l.b16 %v662
        %v2165 = vunpack.c.h.b16 %v662
        %v2166 = vunpack.c.l.b16 %v663
        %v2167 = vunpack.c.h.b16 %v663
        %v2168 = vunpack.c.l.b16 %v664
        %v2169 = vunpack.c.h.b16 %v664
        %v2170 = vunpack.c.l.b16 %v665
        %v2171 = vunpack.c.h.b16 %v665
        %v2172 = vunpack.c.l.b16 %v666
        %v2173 = vunpack.c.h.b16 %v666
        %v2174 = vunpack.c.l.b16 %v667
        %v2175 = vunpack.c.h.b16 %v667
        %v2176 = vunpack.c.l.b16 %v668
        %v2177 = vunpack.c.h.b16 %v668
        %v2178 = vunpack.c.l.b16 %v669
        %v2179 = vunpack.c.h.b16 %v669
        %v2180 = vunpack.c.l.b16 %v670
        %v2181 = vunpack.c.h.b16 %v670
        %v2182 = vunpack.c.l.b16 %v671
        %v2183 = vunpack.c.h.b16 %v671
        %v2184 = vunpack.c.l.b16 %v672
        %v2185 = vunpack.c.h.b16 %v672
        %v2186 = vunpack.c.l.b16 %v673
        %v2187 = vunpack.c.h.b16 %v673
        %v2188 = vunpack.c.l.b16 %v674
        %v2189 = vunpack.c.h.b16 %v674
        %v2190 = vunpack.c.l.b16 %v675
        %v2191 = vunpack.c.h.b16 %v675
        %v2192 = vunpack.c.l.b16 %v676
        %v2193 = vunpack.c.h.b16 %v676
        %v2194 = vunpack.c.l.b16 %v677
        %v2195 = vunpack.c.h.b16 %v677
        %v2196 = vunpack.c.l.b16 %v678
        %v2197 = vunpack.c.h.b16 %v678
        %v2198 = vunpack.c.l.b16 %v679
        %v2199 = vunpack.c.h.b16 %v679
        %v2200 = vunpack.c.l.b16 %v680
        %v2201 = vunpack.c.h.b16 %v680
        %v2202 = vunpack.c.l.b16 %v681
        %v2203 = vunpack.c.h.b16 %v681
        %v2204 = vunpack.c.l.b16 %v682
        %v2205 = vunpack.c.h.b16 %v682
        %v2206 = vunpack.c.l.b16 %v683
        %v2207 = vunpack.c.h.b16 %v683
        %v2208 = vunpack.c.l.b16 %v684
        %v2209 = vunpack.c.h.b16 %v684
        %v2210 = vunpack.c.l.b16 %v685
        %v2211 = vunpack.c.h.b16 %v685
        %v2212 = vunpack.c.l.b16 %v686
        %v2213 = vunpack.c.h.b16 %v686
        %v2214 = vunpack.c.l.b16 %v687
        %v2215 = vunpack.c.h.b16 %v687
        %v2216 = vunpack.c.l.b16 %v688
        %v2217 = vunpack.c.h.b16 %v688
        %v2218 = vunpack.c.l.b16 %v689
        %v2219 = vunpack.c.h.b16 %v689
        %v2220 = vunpack.c.l.b16 %v690
        %v2221 = vunpack.c.h.b16 %v690
        %v2222 = vunpack.c.l.b16 %v691
        %v2223 = vunpack.c.h.b16 %v691
        %v2224 = vunpack.c.l.b16 %v692
        %v2225 = vunpack.c.h.b16 %v692
        %v2226 = vunpack.c.l.b16 %v693
        %v2227 = vunpack.c.h.b16 %v693
        %v2228 = vunpack.c.l.b16 %v694
        %v2229 = vunpack.c.h.b16 %v694
        %v2230 = vunpack.c.l.b16 %v695
        %v2231 = vunpack.c.h.b16 %v695
        %v2232 = vunpack.c.l.b16 %v696
        %v2233 = vunpack.c.h.b16 %v696
        %v2234 = vunpack.c.l.b16 %v697
        %v2235 = vunpack.c.h.b16 %v697
        %v2236 = vunpack.c.l.b16 %v698
        %v2237 = vunpack.c.h.b16 %v698
        %v2238 = vunpack.c.l.b16 %v699
        %v2239 = vunpack.c.h.b16 %v699
        %v2240 = vunpack.c.l.b16 %v700
        %v2241 = vunpack.c.h.b16 %v700
        %v2242 = vunpack.c.l.b16 %v701
        %v2243 = vunpack.c.h.b16 %v701
        %v2244 = vunpack.c.l.b16 %v702
        %v2245 = vunpack.c.h.b16 %v702
        %v2246 = vunpack.c.l.b16 %v703
        %v2247 = vunpack.c.h.b16 %v703
        %v2248 = vunpack.c.l.b16 %v704
        %v2249 = vunpack.c.h.b16 %v704
        %v2250 = vunpack.c.l.b16 %v705
        %v2251 = vunpack.c.h.b16 %v705
        %v2252 = vunpack.c.l.b16 %v706
        %v2253 = vunpack.c.h.b16 %v706
        %v2254 = vunpack.c.l.b16 %v707
        %v2255 = vunpack.c.h.b16 %v707
        %v2256 = vunpack.c.l.b16 %v708
        %v2257 = vunpack.c.h.b16 %v708
        %v2258 = vunpack.c.l.b16 %v709
        %v2259 = vunpack.c.h.b16 %v709
        %v2260 = vunpack.c.l.b16 %v710
        %v2261 = vunpack.c.h.b16 %v710
        %v2262 = vunpack.c.l.b16 %v711
        %v2263 = vunpack.c.h.b16 %v711
        %v2264 = vunpack.c.l.b16 %v712
        %v2265 = vunpack.c.h.b16 %v712
        %v2266 = vunpack.c.l.b16 %v713
        %v2267 = vunpack.c.h.b16 %v713
        %v2268 = vunpack.c.l.b16 %v714
        %v2269 = vunpack.c.h.b16 %v714
        %v2270 = vunpack.c.l.b16 %v715
        %v2271 = vunpack.c.h.b16 %v715
        %v2272 = vunpack.c.l.b16 %v716
        %v2273 = vunpack.c.h.b16 %v716
        %v2274 = vunpack.c.l.b16 %v717
        %v2275 = vunpack.c.h.b16 %v717
        %v2276 = vunpack.c.l.b16 %v718
        %v2277 = vunpack.c.h.b16 %v718
        %v2278 = vunpack.c.l.b16 %v719
        %v2279 = vunpack.c.h.b16 %v719
        %v2280 = vunpack.c.l.b16 %v720
        %v2281 = vunpack.c.h.b16 %v720
        %v2282 = vunpack.c.l.b16 %v721
        %v2283 = vunpack.c.h.b16 %v721
        %v2284 = vunpack.c.l.b16 %v722
        %v2285 = vunpack.c.h.b16 %v722
        %v2286 = vunpack.c.l.b16 %v723
        %v2287 = vunpack.c.h.b16 %v723
        %v2288 = vunpack.c.l.b16 %v724
        %v2289 = vunpack.c.h.b16 %v724
        %v2290 = vunpack.c.l.b16 %v725
        %v2291 = vunpack.c.h.b16 %v725
        %v2292 = vunpack.c.l.b16 %v726
        %v2293 = vunpack.c.h.b16 %v726
        %v2294 = vunpack.c.l.b16 %v727
        %v2295 = vunpack.c.h.b16 %v727
        %v2296 = vunpack.c.l.b16 %v728
        %v2297 = vunpack.c.h.b16 %v728
        %v2298 = vunpack.c.l.b16 %v729
        %v2299 = vunpack.c.h.b16 %v729
        %v2300 = vunpack.c.l.b16 %v730
        %v2301 = vunpack.c.h.b16 %v730
        %v2302 = vunpack.c.l.b16 %v731
        %v2303 = vunpack.c.h.b16 %v731
        %v2304 = vunpack.c.l.b16 %v732
        %v2305 = vunpack.c.h.b16 %v732
        %v2306 = vunpack.c.l.b16 %v733
        %v2307 = vunpack.c.h.b16 %v733
        %v2308 = vunpack.c.l.b16 %v734
        %v2309 = vunpack.c.h.b16 %v734
        %v2310 = vunpack.c.l.b16 %v735
        %v2311 = vunpack.c.h.b16 %v735
        %v2312 = vunpack.c.l.b16 %v736
        %v2313 = vunpack.c.h.b16 %v736
        %v2314 = vunpack.c.l.b16 %v737
        %v2315 = vunpack.c.h.b16 %v737
        %v2316 = vunpack.c.l.b16 %v738
        %v2317 = vunpack.c.h.b16 %v738
        %v2318 = vunpack.c.l.b16 %v739
        %v2319 = vunpack.c.h.b16 %v739
        %v2320 = vunpack.c.l.b16 %v740
        %v2321 = vunpack.c.h.b16 %v740
        %v2322 = vunpack.c.l.b16 %v741
        %v2323 = vunpack.c.h.b16 %v741
        %v2324 = vunpack.c.l.b16 %v742
        %v2325 = vunpack.c.h.b16 %v742
        %v2326 = vunpack.c.l.b16 %v743
        %v2327 = vunpack.c.h.b16 %v743
        %v2328 = vunpack.c.l.b16 %v744
        %v2329 = vunpack.c.h.b16 %v744
        %v2330 = vunpack.c.l.b16 %v745
        %v2331 = vunpack.c.h.b16 %v745
        %v2332 = vunpack.c.l.b16 %v746
        %v2333 = vunpack.c.h.b16 %v746
        %v2334 = vunpack.c.l.b16 %v747
        %v2335 = vunpack.c.h.b16 %v747
        %v2336 = vunpack.c.l.b16 %v748
        %v2337 = vunpack.c.h.b16 %v748
        %v2338 = vunpack.c.l.b16 %v749
        %v2339 = vunpack.c.h.b16 %v749
        %v2340 = vunpack.c.l.b16 %v750
        %v2341 = vunpack.c.h.b16 %v750
        %v2342 = vunpack.c.l.b16 %v751
        %v2343 = vunpack.c.h.b16 %v751
        %v2344 = vunpack.c.l.b16 %v752
        %v2345 = vunpack.c.h.b16 %v752
        %v2346 = vunpack.c.l.b16 %v753
        %v2347 = vunpack.c.h.b16 %v753
        %v2348 = vunpack.c.l.b16 %v754
        %v2349 = vunpack.c.h.b16 %v754
        %v2350 = vunpack.c.l.b16 %v755
        %v2351 = vunpack.c.h.b16 %v755
        %v2352 = vunpack.c.l.b16 %v756
        %v2353 = vunpack.c.h.b16 %v756
        %v2354 = vunpack.c.l.b16 %v757
        %v2355 = vunpack.c.h.b16 %v757
        %v2356 = vunpack.c.l.b16 %v758
        %v2357 = vunpack.c.h.b16 %v758
        %v2358 = vunpack.c.l.b16 %v759
        %v2359 = vunpack.c.h.b16 %v759
        %v2360 = vunpack.c.l.b16 %v760
        %v2361 = vunpack.c.h.b16 %v760
        %v2362 = vunpack.c.l.b16 %v761
        %v2363 = vunpack.c.h.b16 %v761
        %v2364 = vunpack.c.l.b16 %v762
        %v2365 = vunpack.c.h.b16 %v762
        %v2366 = vunpack.c.l.b16 %v763
        %v2367 = vunpack.c.h.b16 %v763
        %v2368 = vunpack.c.l.b16 %v764
        %v2369 = vunpack.c.h.b16 %v764
        %v2370 = vunpack.c.l.b16 %v765
        %v2371 = vunpack.c.h.b16 %v765
        %v2372 = vunpack.c.l.b16 %v766
        %v2373 = vunpack.c.h.b16 %v766
        %v2374 = vunpack.c.l.b16 %v767
        %v2375 = vunpack.c.h.b16 %v767
        %v2376 = vunpack.c.l.b16 %v768
        %v2377 = vunpack.c.h.b16 %v768
        %v2378 = vunpack.c.l.b16 %v769
        %v2379 = vunpack.c.h.b16 %v769
        %v2380 = vunpack.c.l.b16 %v770
        %v2381 = vunpack.c.h.b16 %v770
        %v2382 = vunpack.c.l.b16 %v771
        %v2383 = vunpack.c.h.b16 %v771
        %v2384 = vunpack.c.l.b16 %v772
        %v2385 = vunpack.c.h.b16 %v772
        %v2386 = vunpack.c.l.b16 %v773
        %v2387 = vunpack.c.h.b16 %v773
        %v2388 = vunpack.c.l.b16 %v774
        %v2389 = vunpack.c.h.b16 %v774
        %v2390 = vunpack.c.l.b16 %v775
        %v2391 = vunpack.c.h.b16 %v775
        %v2392 = vunpack.c.l.b16 %v776
        %v2393 = vunpack.c.h.b16 %v776
        %v2394 = vunpack.c.l.b16 %v777
        %v2395 = vunpack.c.h.b16 %v777
        %v2396 = vunpack.c.l.b16 %v778
        %v2397 = vunpack.c.h.b16 %v778
        %v2398 = vunpack.c.l.b16 %v779
        %v2399 = vunpack.c.h.b16 %v779
        %v2400 = vunpack.c.l.b16 %v780
        %v2401 = vunpack.c.h.b16 %v780
        %v2402 = vunpack.c.l.b16 %v781
        %v2403 = vunpack.c.h.b16 %v781
        %v2404 = vunpack.c.l.b16 %v782
        %v2405 = vunpack.c.h.b16 %v782
        %v2406 = vunpack.c.l.b16 %v783
        %v2407 = vunpack.c.h.b16 %v783
        %v2408 = vunpack.c.l.b16 %v784
        %v2409 = vunpack.c.h.b16 %v784
        %v2410 = vunpack.c.l.b16 %v785
        %v2411 = vunpack.c.h.b16 %v785
        %v2412 = vunpack.c.l.b16 %v786
        %v2413 = vunpack.c.h.b16 %v786
        %v2414 = vunpack.c.l.b16 %v787
        %v2415 = vunpack.c.h.b16 %v787
        %v2416 = vunpack.c.l.b16 %v788
        %v2417 = vunpack.c.h.b16 %v788
        %v2418 = vunpack.c.l.b16 %v789
        %v2419 = vunpack.c.h.b16 %v789
        %v2420 = vunpack.c.l.b16 %v790
        %v2421 = vunpack.c.h.b16 %v790
        %v2422 = vunpack.c.l.b16 %v791
        %v2423 = vunpack.c.h.b16 %v791
        %v2424 = vunpack.c.l.b16 %v792
        %v2425 = vunpack.c.h.b16 %v792
        %v2426 = vunpack.c.l.b16 %v793
        %v2427 = vunpack.c.h.b16 %v793
        %v2428 = vunpack.c.l.b16 %v794
        %v2429 = vunpack.c.h.b16 %v794
        %v2430 = vunpack.c.l.b16 %v795
        %v2431 = vunpack.c.h.b16 %v795
        %v2432 = vunpack.c.l.b16 %v796
        %v2433 = vunpack.c.h.b16 %v796
        %v2434 = vunpack.c.l.b16 %v797
        %v2435 = vunpack.c.h.b16 %v797
        %v2436 = vunpack.c.l.b16 %v798
        %v2437 = vunpack.c.h.b16 %v798
        %v2438 = vunpack.c.l.b16 %v799
        %v2439 = vunpack.c.h.b16 %v799
        %v2440 = vunpack.c.l.b16 %v800
        %v2441 = vunpack.c.h.b16 %v800
        %v2442 = vunpack.c.l.b16 %v801
        %v2443 = vunpack.c.h.b16 %v801
        %v2444 = vunpack.c.l.b16 %v802
        %v2445 = vunpack.c.h.b16 %v802
        %v2446 = vunpack.c.l.b16 %v803
        %v2447 = vunpack.c.h.b16 %v803
        %v2448 = vunpack.c.l.b16 %v804
        %v2449 = vunpack.c.h.b16 %v804
        %v2450 = vunpack.c.l.b16 %v805
        %v2451 = vunpack.c.h.b16 %v805
        %v2452 = vunpack.c.l.b16 %v806
        %v2453 = vunpack.c.h.b16 %v806
        %v2454 = vunpack.c.l.b16 %v807
        %v2455 = vunpack.c.h.b16 %v807
        %v2456 = vunpack.c.l.b16 %v808
        %v2457 = vunpack.c.h.b16 %v808
        %v2458 = vunpack.c.l.b16 %v809
        %v2459 = vunpack.c.h.b16 %v809
        %v2460 = vunpack.c.l.b16 %v810
        %v2461 = vunpack.c.h.b16 %v810
        %v2462 = vunpack.c.l.b16 %v811
        %v2463 = vunpack.c.h.b16 %v811
        %v2464 = vpack.c.b16 %v1444, %v1440
        %v2465 = vpack.c.b16 %v1445, %v1441
        %v2466 = vpack.c.b16 %v1446, %v1442
        %v2467 = vpack.c.b16 %v1447, %v1443
        %v2468 = vpack.c.b16 %v1452, %v1448
        %v2469 = vpack.c.b16 %v1453, %v1449
        %v2470 = vpack.c.b16 %v1454, %v1450
        %v2471 = vpack.c.b16 %v1455, %v1451
        %v2472 = vpack.c.b16 %v1460, %v1456
        %v2473 = vpack.c.b16 %v1461, %v1457
        %v2474 = vpack.c.b16 %v1462, %v1458
        %v2475 = vpack.c.b16 %v1463, %v1459
        %v2476 = vpack.c.b16 %v1468, %v1464
        %v2477 = vpack.c.b16 %v1469, %v1465
        %v2478 = vpack.c.b16 %v1470, %v1466
        %v2479 = vpack.c.b16 %v1471, %v1467
        %v2480 = vpack.c.b16 %v1476, %v1472
        %v2481 = vpack.c.b16 %v1477, %v1473
        %v2482 = vpack.c.b16 %v1478, %v1474
        %v2483 = vpack.c.b16 %v1479, %v1475
        %v2484 = vpack.c.b16 %v1484, %v1480
        %v2485 = vpack.c.b16 %v1485, %v1481
        %v2486 = vpack.c.b16 %v1486, %v1482
        %v2487 = vpack.c.b16 %v1487, %v1483
        %v2488 = vpack.c.b16 %v1492, %v1488
        %v2489 = vpack.c.b16 %v1493, %v1489
        %v2490 = vpack.c.b16 %v1494, %v1490
        %v2491 = vpack.c.b16 %v1495, %v1491
        %v2492 = vpack.c.b16 %v1500, %v1496
        %v2493 = vpack.c.b16 %v1501, %v1497
        %v2494 = vpack.c.b16 %v1502, %v1498
        %v2495 = vpack.c.b16 %v1503, %v1499
        %v2496 = vpack.c.b16 %v1508, %v1504
        %v2497 = vpack.c.b16 %v1509, %v1505
        %v2498 = vpack.c.b16 %v1510, %v1506
        %v2499 = vpack.c.b16 %v1511, %v1507
        %v2500 = vpack.c.b16 %v1516, %v1512
        %v2501 = vpack.c.b16 %v1517, %v1513
        %v2502 = vpack.c.b16 %v1518, %v1514
        %v2503 = vpack.c.b16 %v1519, %v1515
        %v2504 = vpack.c.b16 %v1524, %v1520
        %v2505 = vpack.c.b16 %v1525, %v1521
        %v2506 = vpack.c.b16 %v1526, %v1522
        %v2507 = vpack.c.b16 %v1527, %v1523
        %v2508 = vpack.c.b16 %v1532, %v1528
        %v2509 = vpack.c.b16 %v1533, %v1529
        %v2510 = vpack.c.b16 %v1534, %v1530
        %v2511 = vpack.c.b16 %v1535, %v1531
        %v2512 = vpack.c.b16 %v1540, %v1536
        %v2513 = vpack.c.b16 %v1541, %v1537
        %v2514 = vpack.c.b16 %v1542, %v1538
        %v2515 = vpack.c.b16 %v1543, %v1539
        %v2516 = vpack.c.b16 %v1548, %v1544
        %v2517 = vpack.c.b16 %v1549, %v1545
        %v2518 = vpack.c.b16 %v1550, %v1546
        %v2519 = vpack.c.b16 %v1551, %v1547
        %v2520 = vpack.c.b16 %v1556, %v1552
        %v2521 = vpack.c.b16 %v1557, %v1553
        %v2522 = vpack.c.b16 %v1558, %v1554
        %v2523 = vpack.c.b16 %v1559, %v1555
        %v2524 = vpack.c.b16 %v1564, %v1560
        %v2525 = vpack.c.b16 %v1565, %v1561
        %v2526 = vpack.c.b16 %v1566, %v1562
        %v2527 = vpack.c.b16 %v1567, %v1563
        %v2528 = vpack.c.b16 %v1572, %v1568
        %v2529 = vpack.c.b16 %v1573, %v1569
        %v2530 = vpack.c.b16 %v1574, %v1570
        %v2531 = vpack.c.b16 %v1575, %v1571
        %v2532 = vpack.c.b16 %v1580, %v1576
        %v2533 = vpack.c.b16 %v1581, %v1577
        %v2534 = vpack.c.b16 %v1582, %v1578
        %v2535 = vpack.c.b16 %v1583, %v1579
        %v2536 = vpack.c.b16 %v1588, %v1584
        %v2537 = vpack.c.b16 %v1589, %v1585
        %v2538 = vpack.c.b16 %v1590, %v1586
        %v2539 = vpack.c.b16 %v1591, %v1587
        %v2540 = vpack.c.b16 %v1596, %v1592
        %v2541 = vpack.c.b16 %v1597, %v1593
        %v2542 = vpack.c.b16 %v1598, %v1594
        %v2543 = vpack.c.b16 %v1599, %v1595
        %v2544 = vpack.c.b16 %v1604, %v1600
        %v2545 = vpack.c.b16 %v1605, %v1601
        %v2546 = vpack.c.b16 %v1606, %v1602
        %v2547 = vpack.c.b16 %v1607, %v1603
        %v2548 = vpack.c.b16 %v1612, %v1608
        %v2549 = vpack.c.b16 %v1613, %v1609
        %v2550 = vpack.c.b16 %v1614, %v1610
        %v2551 = vpack.c.b16 %v1615, %v1611
        %v2552 = vpack.c.b16 %v1620, %v1616
        %v2553 = vpack.c.b16 %v1621, %v1617
        %v2554 = vpack.c.b16 %v1622, %v1618
        %v2555 = vpack.c.b16 %v1623, %v1619
        %v2556 = vpack.c.b16 %v1628, %v1624
        %v2557 = vpack.c.b16 %v1629, %v1625
        %v2558 = vpack.c.b16 %v1630, %v1626
        %v2559 = vpack.c.b16 %v1631, %v1627
        %v2560 = vpack.c.b16 %v1636, %v1632
        %v2561 = vpack.c.b16 %v1637, %v1633
        %v2562 = vpack.c.b16 %v1638, %v1634
        %v2563 = vpack.c.b16 %v1639, %v1635
        %v2564 = vpack.c.b16 %v1644, %v1640
        %v2565 = vpack.c.b16 %v1645, %v1641
        %v2566 = vpack.c.b16 %v1646, %v1642
        %v2567 = vpack.c.b16 %v1647, %v1643
        %v2568 = vpack.c.b16 %v1652, %v1648
        %v2569 = vpack.c.b16 %v1653, %v1649
        %v2570 = vpack.c.b16 %v1654, %v1650
        %v2571 = vpack.c.b16 %v1655, %v1651
        %v2572 = vpack.c.b16 %v1660, %v1656
        %v2573 = vpack.c.b16 %v1661, %v1657
        %v2574 = vpack.c.b16 %v1662, %v1658
        %v2575 = vpack.c.b16 %v1663, %v1659
        %v2576 = vpack.c.b16 %v1668, %v1664
        %v2577 = vpack.c.b16 %v1669, %v1665
        %v2578 = vpack.c.b16 %v1670, %v1666
        %v2579 = vpack.c.b16 %v1671, %v1667
        %v2580 = vpack.c.b16 %v1676, %v1672
        %v2581 = vpack.c.b16 %v1677, %v1673
        %v2582 = vpack.c.b16 %v1678, %v1674
        %v2583 = vpack.c.b16 %v1679, %v1675
        %v2584 = vpack.c.b16 %v1684, %v1680
        %v2585 = vpack.c.b16 %v1685, %v1681
        %v2586 = vpack.c.b16 %v1686, %v1682
        %v2587 = vpack.c.b16 %v1687, %v1683
        %v2588 = vpack.c.b16 %v1692, %v1688
        %v2589 = vpack.c.b16 %v1693, %v1689
        %v2590 = vpack.c.b16 %v1694, %v1690
        %v2591 = vpack.c.b16 %v1695, %v1691
        %v2592 = vpack.c.b16 %v1700, %v1696
        %v2593 = vpack.c.b16 %v1701, %v1697
        %v2594 = vpack.c.b16 %v1702, %v1698
        %v2595 = vpack.c.b16 %v1703, %v1699
        %v2596 = vpack.c.b16 %v1708, %v1704
        %v2597 = vpack.c.b16 %v1709, %v1705
        %v2598 = vpack.c.b16 %v1710, %v1706
        %v2599 = vpack.c.b16 %v1711, %v1707
        %v2600 = vpack.c.b16 %v1716, %v1712
        %v2601 = vpack.c.b16 %v1717, %v1713
        %v2602 = vpack.c.b16 %v1718, %v1714
        %v2603 = vpack.c.b16 %v1719, %v1715
        %v2604 = vpack.c.b16 %v1724, %v1720
        %v2605 = vpack.c.b16 %v1725, %v1721
        %v2606 = vpack.c.b16 %v1726, %v1722
        %v2607 = vpack.c.b16 %v1727, %v1723
        %v2608 = vpack.c.b16 %v1732, %v1728
        %v2609 = vpack.c.b16 %v1733, %v1729
        %v2610 = vpack.c.b16 %v1734, %v1730
        %v2611 = vpack.c.b16 %v1735, %v1731
        %v2612 = vpack.c.b16 %v1740, %v1736
        %v2613 = vpack.c.b16 %v1741, %v1737
        %v2614 = vpack.c.b16 %v1742, %v1738
        %v2615 = vpack.c.b16 %v1743, %v1739
        %v2616 = vpack.c.b16 %v1748, %v1744
        %v2617 = vpack.c.b16 %v1749, %v1745
        %v2618 = vpack.c.b16 %v1750, %v1746
        %v2619 = vpack.c.b16 %v1751, %v1747
        %v2620 = vpack.c.b16 %v1756, %v1752
        %v2621 = vpack.c.b16 %v1757, %v1753
        %v2622 = vpack.c.b16 %v1758, %v1754
        %v2623 = vpack.c.b16 %v1759, %v1755
        %v2624 = vpack.c.b16 %v1764, %v1760
        %v2625 = vpack.c.b16 %v1765, %v1761
        %v2626 = vpack.c.b16 %v1766, %v1762
        %v2627 = vpack.c.b16 %v1767, %v1763
        %v2628 = vpack.c.b16 %v1772, %v1768
        %v2629 = vpack.c.b16 %v1773, %v1769
        %v2630 = vpack.c.b16 %v1774, %v1770
        %v2631 = vpack.c.b16 %v1775, %v1771
        %v2632 = vpack.c.b16 %v1780, %v1776
        %v2633 = vpack.c.b16 %v1781, %v1777
        %v2634 = vpack.c.b16 %v1782, %v1778
        %v2635 = vpack.c.b16 %v1783, %v1779
        %v2636 = vpack.c.b16 %v1788, %v1784
        %v2637 = vpack.c.b16 %v1789, %v1785
        %v2638 = vpack.c.b16 %v1790, %v1786
        %v2639 = vpack.c.b16 %v1791, %v1787
        %v2640 = vpack.c.b16 %v1796, %v1792
        %v2641 = vpack.c.b16 %v1797, %v1793
        %v2642 = vpack.c.b16 %v1798, %v1794
        %v2643 = vpack.c.b16 %v1799, %v1795
        %v2644 = vpack.c.b16 %v1804, %v1800
        %v2645 = vpack.c.b16 %v1805, %v1801
        %v2646 = vpack.c.b16 %v1806, %v1802
        %v2647 = vpack.c.b16 %v1807, %v1803
        %v2648 = vpack.c.b16 %v1812, %v1808
        %v2649 = vpack.c.b16 %v1813, %v1809
        %v2650 = vpack.c.b16 %v1814, %v1810
        %v2651 = vpack.c.b16 %v1815, %v1811
        %v2652 = vpack.c.b16 %v1820, %v1816
        %v2653 = vpack.c.b16 %v1821, %v1817
        %v2654 = vpack.c.b16 %v1822, %v1818
        %v2655 = vpack.c.b16 %v1823, %v1819
        %v2656 = vpack.c.b16 %v1828, %v1824
        %v2657 = vpack.c.b16 %v1829, %v1825
        %v2658 = vpack.c.b16 %v1830, %v1826
        %v2659 = vpack.c.b16 %v1831, %v1827
        %v2660 = vpack.c.b16 %v1836, %v1832
        %v2661 = vpack.c.b16 %v1837, %v1833
        %v2662 = vpack.c.b16 %v1838, %v1834
        %v2663 = vpack.c.b16 %v1839, %v1835
        %v2664 = vpack.c.b16 %v1844, %v1840
        %v2665 = vpack.c.b16 %v1845, %v1841
        %v2666 = vpack.c.b16 %v1846, %v1842
        %v2667 = vpack.c.b16 %v1847, %v1843
        %v2668 = vpack.c.b16 %v1852, %v1848
        %v2669 = vpack.c.b16 %v1853, %v1849
        %v2670 = vpack.c.b16 %v1854, %v1850
        %v2671 = vpack.c.b16 %v1855, %v1851
        %v2672 = vpack.c.b16 %v1860, %v1856
        %v2673 = vpack.c.b16 %v1861, %v1857
        %v2674 = vpack.c.b16 %v1862, %v1858
        %v2675 = vpack.c.b16 %v1863, %v1859
        %v2676 = vpack.c.b16 %v1868, %v1864
        %v2677 = vpack.c.b16 %v1869, %v1865
        %v2678 = vpack.c.b16 %v1870, %v1866
        %v2679 = vpack.c.b16 %v1871, %v1867
        %v2680 = vpack.c.b16 %v1876, %v1872
        %v2681 = vpack.c.b16 %v1877, %v1873
        %v2682 = vpack.c.b16 %v1878, %v1874
        %v2683 = vpack.c.b16 %v1879, %v1875
        %v2684 = vpack.c.b16 %v1884, %v1880
        %v2685 = vpack.c.b16 %v1885, %v1881
        %v2686 = vpack.c.b16 %v1886, %v1882
        %v2687 = vpack.c.b16 %v1887, %v1883
        %v2688 = vpack.c.b16 %v1892, %v1888
        %v2689 = vpack.c.b16 %v1893, %v1889
        %v2690 = vpack.c.b16 %v1894, %v1890
        %v2691 = vpack.c.b16 %v1895, %v1891
        %v2692 = vpack.c.b16 %v1900, %v1896
        %v2693 = vpack.c.b16 %v1901, %v1897
        %v2694 = vpack.c.b16 %v1902, %v1898
        %v2695 = vpack.c.b16 %v1903, %v1899
        %v2696 = vpack.c.b16 %v1908, %v1904
        %v2697 = vpack.c.b16 %v1909, %v1905
        %v2698 = vpack.c.b16 %v1910, %v1906
        %v2699 = vpack.c.b16 %v1911, %v1907
        %v2700 = vpack.c.b16 %v1916, %v1912
        %v2701 = vpack.c.b16 %v1917, %v1913
        %v2702 = vpack.c.b16 %v1918, %v1914
        %v2703 = vpack.c.b16 %v1919, %v1915
        %v2704 = vpack.c.b16 %v1924, %v1920
        %v2705 = vpack.c.b16 %v1925, %v1921
        %v2706 = vpack.c.b16 %v1926, %v1922
        %v2707 = vpack.c.b16 %v1927, %v1923
        %v2708 = vpack.c.b16 %v1932, %v1928
        %v2709 = vpack.c.b16 %v1933, %v1929
        %v2710 = vpack.c.b16 %v1934, %v1930
        %v2711 = vpack.c.b16 %v1935, %v1931
        %v2712 = vpack.c.b16 %v1940, %v1936
        %v2713 = vpack.c.b16 %v1941, %v1937
        %v2714 = vpack.c.b16 %v1942, %v1938
        %v2715 = vpack.c.b16 %v1943, %v1939
        %v2716 = vpack.c.b16 %v1948, %v1944
        %v2717 = vpack.c.b16 %v1949, %v1945
        %v2718 = vpack.c.b16 %v1950, %v1946
        %v2719 = vpack.c.b16 %v1951, %v1947
        %v2720 = vpack.c.b16 %v1956, %v1952
        %v2721 = vpack.c.b16 %v1957, %v1953
        %v2722 = vpack.c.b16 %v1958, %v1954
        %v2723 = vpack.c.b16 %v1959, %v1955
        %v2724 = vpack.c.b16 %v1964, %v1960
        %v2725 = vpack.c.b16 %v1965, %v1961
        %v2726 = vpack.c.b16 %v1966, %v1962
        %v2727 = vpack.c.b16 %v1967, %v1963
        %v2728 = vpack.c.b16 %v1972, %v1968
        %v2729 = vpack.c.b16 %v1973, %v1969
        %v2730 = vpack.c.b16 %v1974, %v1970
        %v2731 = vpack.c.b16 %v1975, %v1971
        %v2732 = vpack.c.b16 %v1980, %v1976
        %v2733 = vpack.c.b16 %v1981, %v1977
        %v2734 = vpack.c.b16 %v1982, %v1978
        %v2735 = vpack.c.b16 %v1983, %v1979
        %v2736 = vpack.c.b16 %v1988, %v1984
        %v2737 = vpack.c.b16 %v1989, %v1985
        %v2738 = vpack.c.b16 %v1990, %v1986
        %v2739 = vpack.c.b16 %v1991, %v1987
        %v2740 = vpack.c.b16 %v1996, %v1992
        %v2741 = vpack.c.b16 %v1997, %v1993
        %v2742 = vpack.c.b16 %v1998, %v1994
        %v2743 = vpack.c.b16 %v1999, %v1995
        %v2744 = vpack.c.b16 %v2004, %v2000
        %v2745 = vpack.c.b16 %v2005, %v2001
        %v2746 = vpack.c.b16 %v2006, %v2002
        %v2747 = vpack.c.b16 %v2007, %v2003
        %v2748 = vpack.c.b16 %v2012, %v2008
        %v2749 = vpack.c.b16 %v2013, %v2009
        %v2750 = vpack.c.b16 %v2014, %v2010
        %v2751 = vpack.c.b16 %v2015, %v2011
        %v2752 = vpack.c.b16 %v2020, %v2016
        %v2753 = vpack.c.b16 %v2021, %v2017
        %v2754 = vpack.c.b16 %v2022, %v2018
        %v2755 = vpack.c.b16 %v2023, %v2019
        %v2756 = vpack.c.b16 %v2028, %v2024
        %v2757 = vpack.c.b16 %v2029, %v2025
        %v2758 = vpack.c.b16 %v2030, %v2026
        %v2759 = vpack.c.b16 %v2031, %v2027
        %v2760 = vpack.c.b16 %v2036, %v2032
        %v2761 = vpack.c.b16 %v2037, %v2033
        %v2762 = vpack.c.b16 %v2038, %v2034
        %v2763 = vpack.c.b16 %v2039, %v2035
        %v2764 = vpack.c.b16 %v2044, %v2040
        %v2765 = vpack.c.b16 %v2045, %v2041
        %v2766 = vpack.c.b16 %v2046, %v2042
        %v2767 = vpack.c.b16 %v2047, %v2043
        %v2768 = vpack.c.b16 %v2052, %v2048
        %v2769 = vpack.c.b16 %v2053, %v2049
        %v2770 = vpack.c.b16 %v2054, %v2050
        %v2771 = vpack.c.b16 %v2055, %v2051
        %v2772 = vpack.c.b16 %v2060, %v2056
        %v2773 = vpack.c.b16 %v2061, %v2057
        %v2774 = vpack.c.b16 %v2062, %v2058
        %v2775 = vpack.c.b16 %v2063, %v2059
        %v2776 = vpack.c.b16 %v2068, %v2064
        %v2777 = vpack.c.b16 %v2069, %v2065
        %v2778 = vpack.c.b16 %v2070, %v2066
        %v2779 = vpack.c.b16 %v2071, %v2067
        %v2780 = vpack.c.b16 %v2076, %v2072
        %v2781 = vpack.c.b16 %v2077, %v2073
        %v2782 = vpack.c.b16 %v2078, %v2074
        %v2783 = vpack.c.b16 %v2079, %v2075
        %v2784 = vpack.c.b16 %v2084, %v2080
        %v2785 = vpack.c.b16 %v2085, %v2081
        %v2786 = vpack.c.b16 %v2086, %v2082
        %v2787 = vpack.c.b16 %v2087, %v2083
        %v2788 = vpack.c.b16 %v2092, %v2088
        %v2789 = vpack.c.b16 %v2093, %v2089
        %v2790 = vpack.c.b16 %v2094, %v2090
        %v2791 = vpack.c.b16 %v2095, %v2091
        %v2792 = vpack.c.b16 %v2100, %v2096
        %v2793 = vpack.c.b16 %v2101, %v2097
        %v2794 = vpack.c.b16 %v2102, %v2098
        %v2795 = vpack.c.b16 %v2103, %v2099
        %v2796 = vpack.c.b16 %v2108, %v2104
        %v2797 = vpack.c.b16 %v2109, %v2105
        %v2798 = vpack.c.b16 %v2110, %v2106
        %v2799 = vpack.c.b16 %v2111, %v2107
        %v2800 = vpack.c.b16 %v2116, %v2112
        %v2801 = vpack.c.b16 %v2117, %v2113
        %v2802 = vpack.c.b16 %v2118, %v2114
        %v2803 = vpack.c.b16 %v2119, %v2115
        %v2804 = vpack.c.b16 %v2124, %v2120
        %v2805 = vpack.c.b16 %v2125, %v2121
        %v2806 = vpack.c.b16 %v2126, %v2122
        %v2807 = vpack.c.b16 %v2127, %v2123
        %v2808 = vpack.c.b16 %v2132, %v2128
        %v2809 = vpack.c.b16 %v2133, %v2129
        %v2810 = vpack.c.b16 %v2134, %v2130
        %v2811 = vpack.c.b16 %v2135, %v2131
        %v2812 = vpack.c.b16 %v2140, %v2136
        %v2813 = vpack.c.b16 %v2141, %v2137
        %v2814 = vpack.c.b16 %v2142, %v2138
        %v2815 = vpack.c.b16 %v2143, %v2139
        %v2816 = vpack.c.b16 %v2148, %v2144
        %v2817 = vpack.c.b16 %v2149, %v2145
        %v2818 = vpack.c.b16 %v2150, %v2146
        %v2819 = vpack.c.b16 %v2151, %v2147
        %v2820 = vpack.c.b16 %v2156, %v2152
        %v2821 = vpack.c.b16 %v2157, %v2153
        %v2822 = vpack.c.b16 %v2158, %v2154
        %v2823 = vpack.c.b16 %v2159, %v2155
        %v2824 = vpack.c.b16 %v2164, %v2160
        %v2825 = vpack.c.b16 %v2165, %v2161
        %v2826 = vpack.c.b16 %v2166, %v2162
        %v2827 = vpack.c.b16 %v2167, %v2163
        %v2828 = vpack.c.b16 %v2172, %v2168
        %v2829 = vpack.c.b16 %v2173, %v2169
        %v2830 = vpack.c.b16 %v2174, %v2170
        %v2831 = vpack.c.b16 %v2175, %v2171
        %v2832 = vpack.c.b16 %v2180, %v2176
        %v2833 = vpack.c.b16 %v2181, %v2177
        %v2834 = vpack.c.b16 %v2182, %v2178
        %v2835 = vpack.c.b16 %v2183, %v2179
        %v2836 = vpack.c.b16 %v2188, %v2184
        %v2837 = vpack.c.b16 %v2189, %v2185
        %v2838 = vpack.c.b16 %v2190, %v2186
        %v2839 = vpack.c.b16 %v2191, %v2187
        %v2840 = vpack.c.b16 %v2196, %v2192
        %v2841 = vpack.c.b16 %v2197, %v2193
        %v2842 = vpack.c.b16 %v2198, %v2194
        %v2843 = vpack.c.b16 %v2199, %v2195
        %v2844 = vpack.c.b16 %v2204, %v2200
        %v2845 = vpack.c.b16 %v2205, %v2201
        %v2846 = vpack.c.b16 %v2206, %v2202
        %v2847 = vpack.c.b16 %v2207, %v2203
        %v2848 = vpack.c.b16 %v2212, %v2208
        %v2849 = vpack.c.b16 %v2213, %v2209
        %v2850 = vpack.c.b16 %v2214, %v2210
        %v2851 = vpack.c.b16 %v2215, %v2211
        %v2852 = vpack.c.b16 %v2220, %v2216
        %v2853 = vpack.c.b16 %v2221, %v2217
        %v2854 = vpack.c.b16 %v2222, %v2218
        %v2855 = vpack.c.b16 %v2223, %v2219
        %v2856 = vpack.c.b16 %v2228, %v2224
        %v2857 = vpack.c.b16 %v2229, %v2225
        %v2858 = vpack.c.b16 %v2230, %v2226
        %v2859 = vpack.c.b16 %v2231, %v2227
        %v2860 = vpack.c.b16 %v2236, %v2232
        %v2861 = vpack.c.b16 %v2237, %v2233
        %v2862 = vpack.c.b16 %v2238, %v2234
        %v2863 = vpack.c.b16 %v2239, %v2235
        %v2864 = vpack.c.b16 %v2244, %v2240
        %v2865 = vpack.c.b16 %v2245, %v2241
        %v2866 = vpack.c.b16 %v2246, %v2242
        %v2867 = vpack.c.b16 %v2247, %v2243
        %v2868 = vpack.c.b16 %v2252, %v2248
        %v2869 = vpack.c.b16 %v2253, %v2249
        %v2870 = vpack.c.b16 %v2254, %v2250
        %v2871 = vpack.c.b16 %v2255, %v2251
        %v2872 = vpack.c.b16 %v2260, %v2256
        %v2873 = vpack.c.b16 %v2261, %v2257
        %v2874 = vpack.c.b16 %v2262, %v2258
        %v2875 = vpack.c.b16 %v2263, %v2259
        %v2876 = vpack.c.b16 %v2268, %v2264
        %v2877 = vpack.c.b16 %v2269, %v2265
        %v2878 = vpack.c.b16 %v2270, %v2266
        %v2879 = vpack.c.b16 %v2271, %v2267
        %v2880 = vpack.c.b16 %v2276, %v2272
        %v2881 = vpack.c.b16 %v2277, %v2273
        %v2882 = vpack.c.b16 %v2278, %v2274
        %v2883 = vpack.c.b16 %v2279, %v2275
        %v2884 = vpack.c.b16 %v2284, %v2280
        %v2885 = vpack.c.b16 %v2285, %v2281
        %v2886 = vpack.c.b16 %v2286, %v2282
        %v2887 = vpack.c.b16 %v2287, %v2283
        %v2888 = vpack.c.b16 %v2292, %v2288
        %v2889 = vpack.c.b16 %v2293, %v2289
        %v2890 = vpack.c.b16 %v2294, %v2290
        %v2891 = vpack.c.b16 %v2295, %v2291
        %v2892 = vpack.c.b16 %v2300, %v2296
        %v2893 = vpack.c.b16 %v2301, %v2297
        %v2894 = vpack.c.b16 %v2302, %v2298
        %v2895 = vpack.c.b16 %v2303, %v2299
        %v2896 = vpack.c.b16 %v2308, %v2304
        %v2897 = vpack.c.b16 %v2309, %v2305
        %v2898 = vpack.c.b16 %v2310, %v2306
        %v2899 = vpack.c.b16 %v2311, %v2307
        %v2900 = vpack.c.b16 %v2316, %v2312
        %v2901 = vpack.c.b16 %v2317, %v2313
        %v2902 = vpack.c.b16 %v2318, %v2314
        %v2903 = vpack.c.b16 %v2319, %v2315
        %v2904 = vpack.c.b16 %v2324, %v2320
        %v2905 = vpack.c.b16 %v2325, %v2321
        %v2906 = vpack.c.b16 %v2326, %v2322
        %v2907 = vpack.c.b16 %v2327, %v2323
        %v2908 = vpack.c.b16 %v2332, %v2328
        %v2909 = vpack.c.b16 %v2333, %v2329
        %v2910 = vpack.c.b16 %v2334, %v2330
        %v2911 = vpack.c.b16 %v2335, %v2331
        %v2912 = vpack.c.b16 %v2340, %v2336
        %v2913 = vpack.c.b16 %v2341, %v2337
        %v2914 = vpack.c.b16 %v2342, %v2338
        %v2915 = vpack.c.b16 %v2343, %v2339
        %v2916 = vpack.c.b16 %v2348, %v2344
        %v2917 = vpack.c.b16 %v2349, %v2345
        %v2918 = vpack.c.b16 %v2350, %v2346
        %v2919 = vpack.c.b16 %v2351, %v2347
        %v2920 = vpack.c.b16 %v2356, %v2352
        %v2921 = vpack.c.b16 %v2357, %v2353
        %v2922 = vpack.c.b16 %v2358, %v2354
        %v2923 = vpack.c.b16 %v2359, %v2355
        %v2924 = vpack.c.b16 %v2364, %v2360
        %v2925 = vpack.c.b16 %v2365, %v2361
        %v2926 = vpack.c.b16 %v2366, %v2362
        %v2927 = vpack.c.b16 %v2367, %v2363
        %v2928 = vpack.c.b16 %v2372, %v2368
        %v2929 = vpack.c.b16 %v2373, %v2369
        %v2930 = vpack.c.b16 %v2374, %v2370
        %v2931 = vpack.c.b16 %v2375, %v2371
        %v2932 = vpack.c.b16 %v2380, %v2376
        %v2933 = vpack.c.b16 %v2381, %v2377
        %v2934 = vpack.c.b16 %v2382, %v2378
        %v2935 = vpack.c.b16 %v2383, %v2379
        %v2936 = vpack.c.b16 %v2388, %v2384
        %v2937 = vpack.c.b16 %v2389, %v2385
        %v2938 = vpack.c.b16 %v2390, %v2386
        %v2939 = vpack.c.b16 %v2391, %v2387
        %v2940 = vpack.c.b16 %v2396, %v2392
        %v2941 = vpack.c.b16 %v2397, %v2393
        %v2942 = vpack.c.b16 %v2398, %v2394
        %v2943 = vpack.c.b16 %v2399, %v2395
        %v2944 = vpack.c.b16 %v2404, %v2400
        %v2945 = vpack.c.b16 %v2405, %v2401
        %v2946 = vpack.c.b16 %v2406, %v2402
        %v2947 = vpack.c.b16 %v2407, %v2403
        %v2948 = vpack.c.b16 %v2412, %v2408
        %v2949 = vpack.c.b16 %v2413, %v2409
        %v2950 = vpack.c.b16 %v2414, %v2410
        %v2951 = vpack.c.b16 %v2415, %v2411
        %v2952 = vpack.c.b16 %v2420, %v2416
        %v2953 = vpack.c.b16 %v2421, %v2417
        %v2954 = vpack.c.b16 %v2422, %v2418
        %v2955 = vpack.c.b16 %v2423, %v2419
        %v2956 = vpack.c.b16 %v2428, %v2424
        %v2957 = vpack.c.b16 %v2429, %v2425
        %v2958 = vpack.c.b16 %v2430, %v2426
        %v2959 = vpack.c.b16 %v2431, %v2427
        %v2960 = vpack.c.b16 %v2436, %v2432
        %v2961 = vpack.c.b16 %v2437, %v2433
        %v2962 = vpack.c.b16 %v2438, %v2434
        %v2963 = vpack.c.b16 %v2439, %v2435
        %v2964 = vpack.c.b16 %v2444, %v2440
        %v2965 = vpack.c.b16 %v2445, %v2441
        %v2966 = vpack.c.b16 %v2446, %v2442
        %v2967 = vpack.c.b16 %v2447, %v2443
        %v2968 = vpack.c.b16 %v2452, %v2448
        %v2969 = vpack.c.b16 %v2453, %v2449
        %v2970 = vpack.c.b16 %v2454, %v2450
        %v2971 = vpack.c.b16 %v2455, %v2451
        %v2972 = vpack.c.b16 %v2460, %v2456
        %v2973 = vpack.c.b16 %v2461, %v2457
        %v2974 = vpack.c.b16 %v2462, %v2458
        %v2975 = vpack.c.b16 %v2463, %v2459
        %3488 = vmatprep.subr.bf16.mxu0 %v2465
        %3489 = vmatpush1.bf16.msra.mxu0 %v2464
        %3490 = vmatprep.subr.bf16.mxu0 %v2469
        %3491 = vmatpush1.bf16.msra.mxu0 %v2468
        %3492 = vmatprep.subr.bf16.mxu0 %v2473
        %3493 = vmatpush1.bf16.msra.mxu0 %v2472
        %3494 = vmatprep.subr.bf16.mxu0 %v2477
        %3495 = vmatpush1.bf16.msra.mxu0 %v2476
        %3496 = vmatprep.subr.bf16.mxu0 %v2481
        %3497 = vmatpush1.bf16.msra.mxu0 %v2480
        %3498 = vmatprep.subr.bf16.mxu0 %v2485
        %3499 = vmatpush1.bf16.msra.mxu0 %v2484
        %3500 = vmatprep.subr.bf16.mxu0 %v2489
        %3501 = vmatpush1.bf16.msra.mxu0 %v2488
        %3502 = vmatprep.subr.bf16.mxu0 %v2493
        %3503 = vmatpush1.bf16.msra.mxu0 %v2492
        %3504 = vmatprep.subr.bf16.mxu0 %v2497
        %3505 = vmatpush1.bf16.msra.mxu0 %v2496
        %3506 = vmatprep.subr.bf16.mxu0 %v2501
        %3507 = vmatpush1.bf16.msra.mxu0 %v2500
        %3508 = vmatprep.subr.bf16.mxu0 %v2505
        %3509 = vmatpush1.bf16.msra.mxu0 %v2504
        %3510 = vmatprep.subr.bf16.mxu0 %v2509
        %3511 = vmatpush1.bf16.msra.mxu0 %v2508
        %3512 = vmatprep.subr.bf16.mxu0 %v2513
        %3513 = vmatpush1.bf16.msra.mxu0 %v2512
        %3514 = vmatprep.subr.bf16.mxu0 %v2517
        %3515 = vmatpush1.bf16.msra.mxu0 %v2516
        %3516 = vmatprep.subr.bf16.mxu0 %v2521
        %3517 = vmatpush1.bf16.msra.mxu0 %v2520
        %3518 = vmatprep.subr.bf16.mxu0 %v2525
        %3519 = vmatpush1.bf16.msra.mxu0 %v2524
        %3520 = vmatprep.mubr.bf16.mxu0 %v851
        %3521 = vmatmul.mubr.bf16.gmra.mrb[0].mxu0 %v837
        %v3522 = vpop.f32.mrb[0].mxu0
        %v3523 = vadd.f32 0.0, %v3522
        %v3524 = vpop.f32.mrb[0].mxu0
        %v3525 = vadd.f32 0.0, %v3524
        %v3526 = vpop.f32.mrb[0].mxu0
        %v3527 = vpop.f32.mrb[0].mxu0
        %3528 = vdwg.mxu0
        %3529 = vmatprep.subr.bf16.mxu0 %v2529
        %3530 = vmatpush1.bf16.msra.mxu0 %v2528
        %3531 = vmatprep.subr.bf16.mxu0 %v2533
        %3532 = vmatpush1.bf16.msra.mxu0 %v2532
        %3533 = vmatprep.subr.bf16.mxu0 %v2537
        %3534 = vmatpush1.bf16.msra.mxu0 %v2536
        %3535 = vmatprep.subr.bf16.mxu0 %v2541
        %3536 = vmatpush1.bf16.msra.mxu0 %v2540
        %3537 = vmatprep.subr.bf16.mxu0 %v2545
        %3538 = vmatpush1.bf16.msra.mxu0 %v2544
        %3539 = vmatprep.subr.bf16.mxu0 %v2549
        %3540 = vmatpush1.bf16.msra.mxu0 %v2548
        %3541 = vmatprep.subr.bf16.mxu0 %v2553
        %3542 = vmatpush1.bf16.msra.mxu0 %v2552
        %3543 = vmatprep.subr.bf16.mxu0 %v2557
        %3544 = vmatpush1.bf16.msra.mxu0 %v2556
        %3545 = vmatprep.subr.bf16.mxu0 %v2561
        %3546 = vmatpush1.bf16.msra.mxu0 %v2560
        %3547 = vmatprep.subr.bf16.mxu0 %v2565
        %3548 = vmatpush1.bf16.msra.mxu0 %v2564
        %3549 = vmatprep.subr.bf16.mxu0 %v2569
        %3550 = vmatpush1.bf16.msra.mxu0 %v2568
        %3551 = vmatprep.subr.bf16.mxu0 %v2573
        %3552 = vmatpush1.bf16.msra.mxu0 %v2572
        %3553 = vmatprep.subr.bf16.mxu0 %v2577
        %3554 = vmatpush1.bf16.msra.mxu0 %v2576
        %3555 = vmatprep.subr.bf16.mxu0 %v2581
        %3556 = vmatpush1.bf16.msra.mxu0 %v2580
        %3557 = vmatprep.subr.bf16.mxu0 %v2585
        %3558 = vmatpush1.bf16.msra.mxu0 %v2584
        %3559 = vmatprep.subr.bf16.mxu0 %v2589
        %3560 = vmatpush1.bf16.msra.mxu0 %v2588
        %3561 = vmatprep.mubr.bf16.mxu0 %v861
        %3562 = vmatmul.mubr.bf16.gmra.mrb[0].mxu0 %v859
        %v3563 = vpop.f32.mrb[0].mxu0
        %v3564 = vadd.f32 %v3523, %v3563
        %v3565 = vpop.f32.mrb[0].mxu0
        %v3566 = vadd.f32 %v3525, %v3565
        %v3567 = vpop.f32.mrb[0].mxu0
        %v3568 = vpop.f32.mrb[0].mxu0
        %3569 = vdwg.mxu0
        %3570 = vmatprep.subr.bf16.mxu0 %v2593
        %3571 = vmatpush1.bf16.msra.mxu0 %v2592
        %3572 = vmatprep.subr.bf16.mxu0 %v2597
        %3573 = vmatpush1.bf16.msra.mxu0 %v2596
        %3574 = vmatprep.subr.bf16.mxu0 %v2601
        %3575 = vmatpush1.bf16.msra.mxu0 %v2600
        %3576 = vmatprep.subr.bf16.mxu0 %v2605
        %3577 = vmatpush1.bf16.msra.mxu0 %v2604
        %3578 = vmatprep.subr.bf16.mxu0 %v2609
        %3579 = vmatpush1.bf16.msra.mxu0 %v2608
        %3580 = vmatprep.subr.bf16.mxu0 %v2613
        %3581 = vmatpush1.bf16.msra.mxu0 %v2612
        %3582 = vmatprep.subr.bf16.mxu0 %v2617
        %3583 = vmatpush1.bf16.msra.mxu0 %v2616
        %3584 = vmatprep.subr.bf16.mxu0 %v2621
        %3585 = vmatpush1.bf16.msra.mxu0 %v2620
        %3586 = vmatprep.subr.bf16.mxu0 %v2625
        %3587 = vmatpush1.bf16.msra.mxu0 %v2624
        %3588 = vmatprep.subr.bf16.mxu0 %v2629
        %3589 = vmatpush1.bf16.msra.mxu0 %v2628
        %3590 = vmatprep.subr.bf16.mxu0 %v2633
        %3591 = vmatpush1.bf16.msra.mxu0 %v2632
        %3592 = vmatprep.subr.bf16.mxu0 %v2637
        %3593 = vmatpush1.bf16.msra.mxu0 %v2636
        %3594 = vmatprep.subr.bf16.mxu0 %v2641
        %3595 = vmatpush1.bf16.msra.mxu0 %v2640
        %3596 = vmatprep.subr.bf16.mxu0 %v2645
        %3597 = vmatpush1.bf16.msra.mxu0 %v2644
        %3598 = vmatprep.subr.bf16.mxu0 %v2649
        %3599 = vmatpush1.bf16.msra.mxu0 %v2648
        %3600 = vmatprep.subr.bf16.mxu0 %v2653
        %3601 = vmatpush1.bf16.msra.mxu0 %v2652
        %3602 = vmatprep.mubr.bf16.mxu0 %v858
        %3603 = vmatmul.mubr.bf16.gmra.mrb[0].mxu0 %v844
        %v3604 = vpop.f32.mrb[0].mxu0
        %v3605 = vadd.f32 %v3564, %v3604
        %v3606 = vpop.f32.mrb[0].mxu0
        %v3607 = vadd.f32 %v3566, %v3606
        %v3608 = vpop.f32.mrb[0].mxu0
        %v3609 = vpop.f32.mrb[0].mxu0
        %3610 = vdwg.mxu0
        %3611 = vmatprep.subr.bf16.mxu0 %v2657
        %3612 = vmatpush1.bf16.msra.mxu0 %v2656
        %3613 = vmatprep.subr.bf16.mxu0 %v2661
        %3614 = vmatpush1.bf16.msra.mxu0 %v2660
        %3615 = vmatprep.subr.bf16.mxu0 %v2665
        %3616 = vmatpush1.bf16.msra.mxu0 %v2664
        %3617 = vmatprep.subr.bf16.mxu0 %v2669
        %3618 = vmatpush1.bf16.msra.mxu0 %v2668
        %3619 = vmatprep.subr.bf16.mxu0 %v2673
        %3620 = vmatpush1.bf16.msra.mxu0 %v2672
        %3621 = vmatprep.subr.bf16.mxu0 %v2677
        %3622 = vmatpush1.bf16.msra.mxu0 %v2676
        %3623 = vmatprep.subr.bf16.mxu0 %v2681
        %3624 = vmatpush1.bf16.msra.mxu0 %v2680
        %3625 = vmatprep.subr.bf16.mxu0 %v2685
        %3626 = vmatpush1.bf16.msra.mxu0 %v2684
        %3627 = vmatprep.subr.bf16.mxu0 %v2689
        %3628 = vmatpush1.bf16.msra.mxu0 %v2688
        %3629 = vmatprep.subr.bf16.mxu0 %v2693
        %3630 = vmatpush1.bf16.msra.mxu0 %v2692
        %3631 = vmatprep.subr.bf16.mxu0 %v2697
        %3632 = vmatpush1.bf16.msra.mxu0 %v2696
        %3633 = vmatprep.subr.bf16.mxu0 %v2701
        %3634 = vmatpush1.bf16.msra.mxu0 %v2700
        %3635 = vmatprep.subr.bf16.mxu0 %v2705
        %3636 = vmatpush1.bf16.msra.mxu0 %v2704
        %3637 = vmatprep.subr.bf16.mxu0 %v2709
        %3638 = vmatpush1.bf16.msra.mxu0 %v2708
        %3639 = vmatprep.subr.bf16.mxu0 %v2713
        %3640 = vmatpush1.bf16.msra.mxu0 %v2712
        %3641 = vmatprep.subr.bf16.mxu0 %v2717
        %3642 = vmatpush1.bf16.msra.mxu0 %v2716
        %3643 = vmatprep.mubr.bf16.mxu0 %v862
        %3644 = vmatmul.mubr.bf16.gmra.mrb[0].mxu0 %v860
        %v3645 = vpop.f32.mrb[0].mxu0
        %v3646 = vadd.f32 %v3605, %v3645
        %v3647 = vpop.f32.mrb[0].mxu0
        %v3648 = vadd.f32 %v3607, %v3647
        %v3649 = vpop.f32.mrb[0].mxu0
        %v3650 = vpop.f32.mrb[0].mxu0
        %3651 = vdwg.mxu0
        %3652 = vmatprep.subr.bf16.mxu0 %v2721
        %3653 = vmatpush1.bf16.msra.mxu0 %v2720
        %3654 = vmatprep.subr.bf16.mxu0 %v2725
        %3655 = vmatpush1.bf16.msra.mxu0 %v2724
        %3656 = vmatprep.subr.bf16.mxu0 %v2729
        %3657 = vmatpush1.bf16.msra.mxu0 %v2728
        %3658 = vmatprep.subr.bf16.mxu0 %v2733
        %3659 = vmatpush1.bf16.msra.mxu0 %v2732
        %3660 = vmatprep.subr.bf16.mxu0 %v2737
        %3661 = vmatpush1.bf16.msra.mxu0 %v2736
        %3662 = vmatprep.subr.bf16.mxu0 %v2741
        %3663 = vmatpush1.bf16.msra.mxu0 %v2740
        %3664 = vmatprep.subr.bf16.mxu0 %v2745
        %3665 = vmatpush1.bf16.msra.mxu0 %v2744
        %3666 = vmatprep.subr.bf16.mxu0 %v2749
        %3667 = vmatpush1.bf16.msra.mxu0 %v2748
        %3668 = vmatprep.subr.bf16.mxu0 %v2753
        %3669 = vmatpush1.bf16.msra.mxu0 %v2752
        %3670 = vmatprep.subr.bf16.mxu0 %v2757
        %3671 = vmatpush1.bf16.msra.mxu0 %v2756
        %3672 = vmatprep.subr.bf16.mxu0 %v2761
        %3673 = vmatpush1.bf16.msra.mxu0 %v2760
        %3674 = vmatprep.subr.bf16.mxu0 %v2765
        %3675 = vmatpush1.bf16.msra.mxu0 %v2764
        %3676 = vmatprep.subr.bf16.mxu0 %v2769
        %3677 = vmatpush1.bf16.msra.mxu0 %v2768
        %3678 = vmatprep.subr.bf16.mxu0 %v2773
        %3679 = vmatpush1.bf16.msra.mxu0 %v2772
        %3680 = vmatprep.subr.bf16.mxu0 %v2777
        %3681 = vmatpush1.bf16.msra.mxu0 %v2776
        %3682 = vmatprep.subr.bf16.mxu0 %v2781
        %3683 = vmatpush1.bf16.msra.mxu0 %v2780
        %3684 = vmatprep.mubr.bf16.mxu0 %v900
        %3685 = vmatmul.mubr.bf16.gmra.mrb[0].mxu0 %v886
        %v3686 = vpop.f32.mrb[0].mxu0
        %v3687 = vadd.f32 %v3646, %v3686
        %v3688 = vpop.f32.mrb[0].mxu0
        %v3689 = vadd.f32 %v3648, %v3688
        %v3690 = vpop.f32.mrb[0].mxu0
        %v3691 = vpop.f32.mrb[0].mxu0
        %3692 = vdwg.mxu0
        %3693 = vmatprep.subr.bf16.mxu0 %v2785
        %3694 = vmatpush1.bf16.msra.mxu0 %v2784
        %3695 = vmatprep.subr.bf16.mxu0 %v2789
        %3696 = vmatpush1.bf16.msra.mxu0 %v2788
        %3697 = vmatprep.subr.bf16.mxu0 %v2793
        %3698 = vmatpush1.bf16.msra.mxu0 %v2792
        %3699 = vmatprep.subr.bf16.mxu0 %v2797
        %3700 = vmatpush1.bf16.msra.mxu0 %v2796
        %3701 = vmatprep.subr.bf16.mxu0 %v2801
        %3702 = vmatpush1.bf16.msra.mxu0 %v2800
        %3703 = vmatprep.subr.bf16.mxu0 %v2805
        %3704 = vmatpush1.bf16.msra.mxu0 %v2804
        %3705 = vmatprep.subr.bf16.mxu0 %v2809
        %3706 = vmatpush1.bf16.msra.mxu0 %v2808
        %3707 = vmatprep.subr.bf16.mxu0 %v2813
        %3708 = vmatpush1.bf16.msra.mxu0 %v2812
        %3709 = vmatprep.subr.bf16.mxu0 %v2817
        %3710 = vmatpush1.bf16.msra.mxu0 %v2816
        %3711 = vmatprep.subr.bf16.mxu0 %v2821
        %3712 = vmatpush1.bf16.msra.mxu0 %v2820
        %3713 = vmatprep.subr.bf16.mxu0 %v2825
        %3714 = vmatpush1.bf16.msra.mxu0 %v2824
        %3715 = vmatprep.subr.bf16.mxu0 %v2829
        %3716 = vmatpush1.bf16.msra.mxu0 %v2828
        %3717 = vmatprep.subr.bf16.mxu0 %v2833
        %3718 = vmatpush1.bf16.msra.mxu0 %v2832
        %3719 = vmatprep.subr.bf16.mxu0 %v2837
        %3720 = vmatpush1.bf16.msra.mxu0 %v2836
        %3721 = vmatprep.subr.bf16.mxu0 %v2841
        %3722 = vmatpush1.bf16.msra.mxu0 %v2840
        %3723 = vmatprep.subr.bf16.mxu0 %v2845
        %3724 = vmatpush1.bf16.msra.mxu0 %v2844
        %3725 = vmatprep.mubr.bf16.mxu0 %v910
        %3726 = vmatmul.mubr.bf16.gmra.mrb[0].mxu0 %v908
        %v3727 = vpop.f32.mrb[0].mxu0
        %v3728 = vadd.f32 %v3687, %v3727
        %v3729 = vpop.f32.mrb[0].mxu0
        %v3730 = vadd.f32 %v3689, %v3729
        %v3731 = vpop.f32.mrb[0].mxu0
        %v3732 = vpop.f32.mrb[0].mxu0
        %3733 = vdwg.mxu0
        %3734 = vmatprep.subr.bf16.mxu0 %v2849
        %3735 = vmatpush1.bf16.msra.mxu0 %v2848
        %3736 = vmatprep.subr.bf16.mxu0 %v2853
        %3737 = vmatpush1.bf16.msra.mxu0 %v2852
        %3738 = vmatprep.subr.bf16.mxu0 %v2857
        %3739 = vmatpush1.bf16.msra.mxu0 %v2856
        %3740 = vmatprep.subr.bf16.mxu0 %v2861
        %3741 = vmatpush1.bf16.msra.mxu0 %v2860
        %3742 = vmatprep.subr.bf16.mxu0 %v2865
        %3743 = vmatpush1.bf16.msra.mxu0 %v2864
        %3744 = vmatprep.subr.bf16.mxu0 %v2869
        %3745 = vmatpush1.bf16.msra.mxu0 %v2868
        %3746 = vmatprep.subr.bf16.mxu0 %v2873
        %3747 = vmatpush1.bf16.msra.mxu0 %v2872
        %3748 = vmatprep.subr.bf16.mxu0 %v2877
        %3749 = vmatpush1.bf16.msra.mxu0 %v2876
        %3750 = vmatprep.subr.bf16.mxu0 %v2881
        %3751 = vmatpush1.bf16.msra.mxu0 %v2880
        %3752 = vmatprep.subr.bf16.mxu0 %v2885
        %3753 = vmatpush1.bf16.msra.mxu0 %v2884
        %3754 = vmatprep.subr.bf16.mxu0 %v2889
        %3755 = vmatpush1.bf16.msra.mxu0 %v2888
        %3756 = vmatprep.subr.bf16.mxu0 %v2893
        %3757 = vmatpush1.bf16.msra.mxu0 %v2892
        %3758 = vmatprep.subr.bf16.mxu0 %v2897
        %3759 = vmatpush1.bf16.msra.mxu0 %v2896
        %3760 = vmatprep.subr.bf16.mxu0 %v2901
        %3761 = vmatpush1.bf16.msra.mxu0 %v2900
        %3762 = vmatprep.subr.bf16.mxu0 %v2905
        %3763 = vmatpush1.bf16.msra.mxu0 %v2904
        %3764 = vmatprep.subr.bf16.mxu0 %v2909
        %3765 = vmatpush1.bf16.msra.mxu0 %v2908
        %3766 = vmatprep.mubr.bf16.mxu0 %v907
        %3767 = vmatmul.mubr.bf16.gmra.mrb[0].mxu0 %v893
        %v3768 = vpop.f32.mrb[0].mxu0
        %v3769 = vadd.f32 %v3728, %v3768
        %v3770 = vpop.f32.mrb[0].mxu0
        %v3771 = vadd.f32 %v3730, %v3770
        %v3772 = vpop.f32.mrb[0].mxu0
        %v3773 = vpop.f32.mrb[0].mxu0
        %3774 = vdwg.mxu0
        %3775 = vmatprep.subr.bf16.mxu0 %v2913
        %3776 = vmatpush1.bf16.msra.mxu0 %v2912
        %3777 = vmatprep.subr.bf16.mxu0 %v2917
        %3778 = vmatpush1.bf16.msra.mxu0 %v2916
        %3779 = vmatprep.subr.bf16.mxu0 %v2921
        %3780 = vmatpush1.bf16.msra.mxu0 %v2920
        %3781 = vmatprep.subr.bf16.mxu0 %v2925
        %3782 = vmatpush1.bf16.msra.mxu0 %v2924
        %3783 = vmatprep.subr.bf16.mxu0 %v2929
        %3784 = vmatpush1.bf16.msra.mxu0 %v2928
        %3785 = vmatprep.subr.bf16.mxu0 %v2933
        %3786 = vmatpush1.bf16.msra.mxu0 %v2932
        %3787 = vmatprep.subr.bf16.mxu0 %v2937
        %3788 = vmatpush1.bf16.msra.mxu0 %v2936
        %3789 = vmatprep.subr.bf16.mxu0 %v2941
        %3790 = vmatpush1.bf16.msra.mxu0 %v2940
        %3791 = vmatprep.subr.bf16.mxu0 %v2945
        %3792 = vmatpush1.bf16.msra.mxu0 %v2944
        %3793 = vmatprep.subr.bf16.mxu0 %v2949
        %3794 = vmatpush1.bf16.msra.mxu0 %v2948
        %3795 = vmatprep.subr.bf16.mxu0 %v2953
        %3796 = vmatpush1.bf16.msra.mxu0 %v2952
        %3797 = vmatprep.subr.bf16.mxu0 %v2957
        %3798 = vmatpush1.bf16.msra.mxu0 %v2956
        %3799 = vmatprep.subr.bf16.mxu0 %v2961
        %3800 = vmatpush1.bf16.msra.mxu0 %v2960
        %3801 = vmatprep.subr.bf16.mxu0 %v2965
        %3802 = vmatpush1.bf16.msra.mxu0 %v2964
        %3803 = vmatprep.subr.bf16.mxu0 %v2969
        %3804 = vmatpush1.bf16.msra.mxu0 %v2968
        %3805 = vmatprep.subr.bf16.mxu0 %v2973
        %3806 = vmatpush1.bf16.msra.mxu0 %v2972
        %3807 = vmatprep.mubr.bf16.mxu0 %v911
        %3808 = vmatmul.mubr.bf16.gmra.mrb[0].mxu0 %v909
        %v3809 = vpop.f32.mrb[0].mxu0
        %v3810 = vadd.f32 %v3769, %v3809
        %v3811 = vpop.f32.mrb[0].mxu0
        %v3812 = vadd.f32 %v3771, %v3811
        %v3813 = vpop.f32.mrb[0].mxu0
        %v3814 = vpop.f32.mrb[0].mxu0
        %3815 = vdwg.mxu0
        %3816 = vmatprep.subr.bf16.mxu0 %v2467
        %3817 = vmatpush1.bf16.msra.mxu0 %v2466
        %3818 = vmatprep.subr.bf16.mxu0 %v2471
        %3819 = vmatpush1.bf16.msra.mxu0 %v2470
        %3820 = vmatprep.subr.bf16.mxu0 %v2475
        %3821 = vmatpush1.bf16.msra.mxu0 %v2474
        %3822 = vmatprep.subr.bf16.mxu0 %v2479
        %3823 = vmatpush1.bf16.msra.mxu0 %v2478
        %3824 = vmatprep.subr.bf16.mxu0 %v2483
        %3825 = vmatpush1.bf16.msra.mxu0 %v2482
        %3826 = vmatprep.subr.bf16.mxu0 %v2487
        %3827 = vmatpush1.bf16.msra.mxu0 %v2486
        %3828 = vmatprep.subr.bf16.mxu0 %v2491
        %3829 = vmatpush1.bf16.msra.mxu0 %v2490
        %3830 = vmatprep.subr.bf16.mxu0 %v2495
        %3831 = vmatpush1.bf16.msra.mxu0 %v2494
        %3832 = vmatprep.subr.bf16.mxu0 %v2499
        %3833 = vmatpush1.bf16.msra.mxu0 %v2498
        %3834 = vmatprep.subr.bf16.mxu0 %v2503
        %3835 = vmatpush1.bf16.msra.mxu0 %v2502
        %3836 = vmatprep.subr.bf16.mxu0 %v2507
        %3837 = vmatpush1.bf16.msra.mxu0 %v2506
        %3838 = vmatprep.subr.bf16.mxu0 %v2511
        %3839 = vmatpush1.bf16.msra.mxu0 %v2510
        %3840 = vmatprep.subr.bf16.mxu0 %v2515
        %3841 = vmatpush1.bf16.msra.mxu0 %v2514
        %3842 = vmatprep.subr.bf16.mxu0 %v2519
        %3843 = vmatpush1.bf16.msra.mxu0 %v2518
        %3844 = vmatprep.subr.bf16.mxu0 %v2523
        %3845 = vmatpush1.bf16.msra.mxu0 %v2522
        %3846 = vmatprep.subr.bf16.mxu0 %v2527
        %3847 = vmatpush1.bf16.msra.mxu0 %v2526
        %3848 = vmatprep.mubr.bf16.mxu0 %v851
        %3849 = vmatmul.mubr.bf16.gmra.mrb[0].mxu0 %v837
        %v3850 = vpop.f32.mrb[0].mxu0
        %v3851 = vadd.f32 0.0, %v3850
        %v3852 = vpop.f32.mrb[0].mxu0
        %v3853 = vadd.f32 0.0, %v3852
        %v3854 = vpop.f32.mrb[0].mxu0
        %v3855 = vpop.f32.mrb[0].mxu0
        %3856 = vdwg.mxu0
        %3857 = vmatprep.subr.bf16.mxu0 %v2531
        %3858 = vmatpush1.bf16.msra.mxu0 %v2530
        %3859 = vmatprep.subr.bf16.mxu0 %v2535
        %3860 = vmatpush1.bf16.msra.mxu0 %v2534
        %3861 = vmatprep.subr.bf16.mxu0 %v2539
        %3862 = vmatpush1.bf16.msra.mxu0 %v2538
        %3863 = vmatprep.subr.bf16.mxu0 %v2543
        %3864 = vmatpush1.bf16.msra.mxu0 %v2542
        %3865 = vmatprep.subr.bf16.mxu0 %v2547
        %3866 = vmatpush1.bf16.msra.mxu0 %v2546
        %3867 = vmatprep.subr.bf16.mxu0 %v2551
        %3868 = vmatpush1.bf16.msra.mxu0 %v2550
        %3869 = vmatprep.subr.bf16.mxu0 %v2555
        %3870 = vmatpush1.bf16.msra.mxu0 %v2554
        %3871 = vmatprep.subr.bf16.mxu0 %v2559
        %3872 = vmatpush1.bf16.msra.mxu0 %v2558
        %3873 = vmatprep.subr.bf16.mxu0 %v2563
        %3874 = vmatpush1.bf16.msra.mxu0 %v2562
        %3875 = vmatprep.subr.bf16.mxu0 %v2567
        %3876 = vmatpush1.bf16.msra.mxu0 %v2566
        %3877 = vmatprep.subr.bf16.mxu0 %v2571
        %3878 = vmatpush1.bf16.msra.mxu0 %v2570
        %3879 = vmatprep.subr.bf16.mxu0 %v2575
        %3880 = vmatpush1.bf16.msra.mxu0 %v2574
        %3881 = vmatprep.subr.bf16.mxu0 %v2579
        %3882 = vmatpush1.bf16.msra.mxu0 %v2578
        %3883 = vmatprep.subr.bf16.mxu0 %v2583
        %3884 = vmatpush1.bf16.msra.mxu0 %v2582
        %3885 = vmatprep.subr.bf16.mxu0 %v2587
        %3886 = vmatpush1.bf16.msra.mxu0 %v2586
        %3887 = vmatprep.subr.bf16.mxu0 %v2591
        %3888 = vmatpush1.bf16.msra.mxu0 %v2590
        %3889 = vmatprep.mubr.bf16.mxu0 %v861
        %3890 = vmatmul.mubr.bf16.gmra.mrb[0].mxu0 %v859
        %v3891 = vpop.f32.mrb[0].mxu0
        %v3892 = vadd.f32 %v3851, %v3891
        %v3893 = vpop.f32.mrb[0].mxu0
        %v3894 = vadd.f32 %v3853, %v3893
        %v3895 = vpop.f32.mrb[0].mxu0
        %v3896 = vpop.f32.mrb[0].mxu0
        %3897 = vdwg.mxu0
        %3898 = vmatprep.subr.bf16.mxu0 %v2595
        %3899 = vmatpush1.bf16.msra.mxu0 %v2594
        %3900 = vmatprep.subr.bf16.mxu0 %v2599
        %3901 = vmatpush1.bf16.msra.mxu0 %v2598
        %3902 = vmatprep.subr.bf16.mxu0 %v2603
        %3903 = vmatpush1.bf16.msra.mxu0 %v2602
        %3904 = vmatprep.subr.bf16.mxu0 %v2607
        %3905 = vmatpush1.bf16.msra.mxu0 %v2606
        %3906 = vmatprep.subr.bf16.mxu0 %v2611
        %3907 = vmatpush1.bf16.msra.mxu0 %v2610
        %3908 = vmatprep.subr.bf16.mxu0 %v2615
        %3909 = vmatpush1.bf16.msra.mxu0 %v2614
        %3910 = vmatprep.subr.bf16.mxu0 %v2619
        %3911 = vmatpush1.bf16.msra.mxu0 %v2618
        %3912 = vmatprep.subr.bf16.mxu0 %v2623
        %3913 = vmatpush1.bf16.msra.mxu0 %v2622
        %3914 = vmatprep.subr.bf16.mxu0 %v2627
        %3915 = vmatpush1.bf16.msra.mxu0 %v2626
        %3916 = vmatprep.subr.bf16.mxu0 %v2631
        %3917 = vmatpush1.bf16.msra.mxu0 %v2630
        %3918 = vmatprep.subr.bf16.mxu0 %v2635
        %3919 = vmatpush1.bf16.msra.mxu0 %v2634
        %3920 = vmatprep.subr.bf16.mxu0 %v2639
        %3921 = vmatpush1.bf16.msra.mxu0 %v2638
        %3922 = vmatprep.subr.bf16.mxu0 %v2643
        %3923 = vmatpush1.bf16.msra.mxu0 %v2642
        %3924 = vmatprep.subr.bf16.mxu0 %v2647
        %3925 = vmatpush1.bf16.msra.mxu0 %v2646
        %3926 = vmatprep.subr.bf16.mxu0 %v2651
        %3927 = vmatpush1.bf16.msra.mxu0 %v2650
        %3928 = vmatprep.subr.bf16.mxu0 %v2655
        %3929 = vmatpush1.bf16.msra.mxu0 %v2654
        %3930 = vmatprep.mubr.bf16.mxu0 %v858
        %3931 = vmatmul.mubr.bf16.gmra.mrb[0].mxu0 %v844
        %v3932 = vpop.f32.mrb[0].mxu0
        %v3933 = vadd.f32 %v3892, %v3932
        %v3934 = vpop.f32.mrb[0].mxu0
        %v3935 = vadd.f32 %v3894, %v3934
        %v3936 = vpop.f32.mrb[0].mxu0
        %v3937 = vpop.f32.mrb[0].mxu0
        %3938 = vdwg.mxu0
        %3939 = vmatprep.subr.bf16.mxu0 %v2659
        %3940 = vmatpush1.bf16.msra.mxu0 %v2658
        %3941 = vmatprep.subr.bf16.mxu0 %v2663
        %3942 = vmatpush1.bf16.msra.mxu0 %v2662
        %3943 = vmatprep.subr.bf16.mxu0 %v2667
        %3944 = vmatpush1.bf16.msra.mxu0 %v2666
        %3945 = vmatprep.subr.bf16.mxu0 %v2671
        %3946 = vmatpush1.bf16.msra.mxu0 %v2670
        %3947 = vmatprep.subr.bf16.mxu0 %v2675
        %3948 = vmatpush1.bf16.msra.mxu0 %v2674
        %3949 = vmatprep.subr.bf16.mxu0 %v2679
        %3950 = vmatpush1.bf16.msra.mxu0 %v2678
        %3951 = vmatprep.subr.bf16.mxu0 %v2683
        %3952 = vmatpush1.bf16.msra.mxu0 %v2682
        %3953 = vmatprep.subr.bf16.mxu0 %v2687
        %3954 = vmatpush1.bf16.msra.mxu0 %v2686
        %3955 = vmatprep.subr.bf16.mxu0 %v2691
        %3956 = vmatpush1.bf16.msra.mxu0 %v2690
        %3957 = vmatprep.subr.bf16.mxu0 %v2695
        %3958 = vmatpush1.bf16.msra.mxu0 %v2694
        %3959 = vmatprep.subr.bf16.mxu0 %v2699
        %3960 = vmatpush1.bf16.msra.mxu0 %v2698
        %3961 = vmatprep.subr.bf16.mxu0 %v2703
        %3962 = vmatpush1.bf16.msra.mxu0 %v2702
        %3963 = vmatprep.subr.bf16.mxu0 %v2707
        %3964 = vmatpush1.bf16.msra.mxu0 %v2706
        %3965 = vmatprep.subr.bf16.mxu0 %v2711
        %3966 = vmatpush1.bf16.msra.mxu0 %v2710
        %3967 = vmatprep.subr.bf16.mxu0 %v2715
        %3968 = vmatpush1.bf16.msra.mxu0 %v2714
        %3969 = vmatprep.subr.bf16.mxu0 %v2719
        %3970 = vmatpush1.bf16.msra.mxu0 %v2718
        %3971 = vmatprep.mubr.bf16.mxu0 %v862
        %3972 = vmatmul.mubr.bf16.gmra.mrb[0].mxu0 %v860
        %v3973 = vpop.f32.mrb[0].mxu0
        %v3974 = vadd.f32 %v3933, %v3973
        %v3975 = vpop.f32.mrb[0].mxu0
        %v3976 = vadd.f32 %v3935, %v3975
        %v3977 = vpop.f32.mrb[0].mxu0
        %v3978 = vpop.f32.mrb[0].mxu0
        %3979 = vdwg.mxu0
        %3980 = vmatprep.subr.bf16.mxu0 %v2723
        %3981 = vmatpush1.bf16.msra.mxu0 %v2722
        %3982 = vmatprep.subr.bf16.mxu0 %v2727
        %3983 = vmatpush1.bf16.msra.mxu0 %v2726
        %3984 = vmatprep.subr.bf16.mxu0 %v2731
        %3985 = vmatpush1.bf16.msra.mxu0 %v2730
        %3986 = vmatprep.subr.bf16.mxu0 %v2735
        %3987 = vmatpush1.bf16.msra.mxu0 %v2734
        %3988 = vmatprep.subr.bf16.mxu0 %v2739
        %3989 = vmatpush1.bf16.msra.mxu0 %v2738
        %3990 = vmatprep.subr.bf16.mxu0 %v2743
        %3991 = vmatpush1.bf16.msra.mxu0 %v2742
        %3992 = vmatprep.subr.bf16.mxu0 %v2747
        %3993 = vmatpush1.bf16.msra.mxu0 %v2746
        %3994 = vmatprep.subr.bf16.mxu0 %v2751
        %3995 = vmatpush1.bf16.msra.mxu0 %v2750
        %3996 = vmatprep.subr.bf16.mxu0 %v2755
        %3997 = vmatpush1.bf16.msra.mxu0 %v2754
        %3998 = vmatprep.subr.bf16.mxu0 %v2759
        %3999 = vmatpush1.bf16.msra.mxu0 %v2758
        %4000 = vmatprep.subr.bf16.mxu0 %v2763
        %4001 = vmatpush1.bf16.msra.mxu0 %v2762
        %4002 = vmatprep.subr.bf16.mxu0 %v2767
        %4003 = vmatpush1.bf16.msra.mxu0 %v2766
        %4004 = vmatprep.subr.bf16.mxu0 %v2771
        %4005 = vmatpush1.bf16.msra.mxu0 %v2770
        %4006 = vmatprep.subr.bf16.mxu0 %v2775
        %4007 = vmatpush1.bf16.msra.mxu0 %v2774
        %4008 = vmatprep.subr.bf16.mxu0 %v2779
        %4009 = vmatpush1.bf16.msra.mxu0 %v2778
        %4010 = vmatprep.subr.bf16.mxu0 %v2783
        %4011 = vmatpush1.bf16.msra.mxu0 %v2782
        %4012 = vmatprep.mubr.bf16.mxu0 %v900
        %4013 = vmatmul.mubr.bf16.gmra.mrb[0].mxu0 %v886
        %v4014 = vpop.f32.mrb[0].mxu0
        %v4015 = vadd.f32 %v3974, %v4014
        %v4016 = vpop.f32.mrb[0].mxu0
        %v4017 = vadd.f32 %v3976, %v4016
        %v4018 = vpop.f32.mrb[0].mxu0
        %v4019 = vpop.f32.mrb[0].mxu0
        %4020 = vdwg.mxu0
        %4021 = vmatprep.subr.bf16.mxu0 %v2787
        %4022 = vmatpush1.bf16.msra.mxu0 %v2786
        %4023 = vmatprep.subr.bf16.mxu0 %v2791
        %4024 = vmatpush1.bf16.msra.mxu0 %v2790
        %4025 = vmatprep.subr.bf16.mxu0 %v2795
        %4026 = vmatpush1.bf16.msra.mxu0 %v2794
        %4027 = vmatprep.subr.bf16.mxu0 %v2799
        %4028 = vmatpush1.bf16.msra.mxu0 %v2798
        %4029 = vmatprep.subr.bf16.mxu0 %v2803
        %4030 = vmatpush1.bf16.msra.mxu0 %v2802
        %4031 = vmatprep.subr.bf16.mxu0 %v2807
        %4032 = vmatpush1.bf16.msra.mxu0 %v2806
        %4033 = vmatprep.subr.bf16.mxu0 %v2811
        %4034 = vmatpush1.bf16.msra.mxu0 %v2810
        %4035 = vmatprep.subr.bf16.mxu0 %v2815
        %4036 = vmatpush1.bf16.msra.mxu0 %v2814
        %4037 = vmatprep.subr.bf16.mxu0 %v2819
        %4038 = vmatpush1.bf16.msra.mxu0 %v2818
        %4039 = vmatprep.subr.bf16.mxu0 %v2823
        %4040 = vmatpush1.bf16.msra.mxu0 %v2822
        %4041 = vmatprep.subr.bf16.mxu0 %v2827
        %4042 = vmatpush1.bf16.msra.mxu0 %v2826
        %4043 = vmatprep.subr.bf16.mxu0 %v2831
        %4044 = vmatpush1.bf16.msra.mxu0 %v2830
        %4045 = vmatprep.subr.bf16.mxu0 %v2835
        %4046 = vmatpush1.bf16.msra.mxu0 %v2834
        %4047 = vmatprep.subr.bf16.mxu0 %v2839
        %4048 = vmatpush1.bf16.msra.mxu0 %v2838
        %4049 = vmatprep.subr.bf16.mxu0 %v2843
        %4050 = vmatpush1.bf16.msra.mxu0 %v2842
        %4051 = vmatprep.subr.bf16.mxu0 %v2847
        %4052 = vmatpush1.bf16.msra.mxu0 %v2846
        %4053 = vmatprep.mubr.bf16.mxu0 %v910
        %4054 = vmatmul.mubr.bf16.gmra.mrb[0].mxu0 %v908
        %v4055 = vpop.f32.mrb[0].mxu0
        %v4056 = vadd.f32 %v4015, %v4055
        %v4057 = vpop.f32.mrb[0].mxu0
        %v4058 = vadd.f32 %v4017, %v4057
        %v4059 = vpop.f32.mrb[0].mxu0
        %v4060 = vpop.f32.mrb[0].mxu0
        %4061 = vdwg.mxu0
        %4062 = vmatprep.subr.bf16.mxu0 %v2851
        %4063 = vmatpush1.bf16.msra.mxu0 %v2850
        %4064 = vmatprep.subr.bf16.mxu0 %v2855
        %4065 = vmatpush1.bf16.msra.mxu0 %v2854
        %4066 = vmatprep.subr.bf16.mxu0 %v2859
        %4067 = vmatpush1.bf16.msra.mxu0 %v2858
        %4068 = vmatprep.subr.bf16.mxu0 %v2863
        %4069 = vmatpush1.bf16.msra.mxu0 %v2862
        %4070 = vmatprep.subr.bf16.mxu0 %v2867
        %4071 = vmatpush1.bf16.msra.mxu0 %v2866
        %4072 = vmatprep.subr.bf16.mxu0 %v2871
        %4073 = vmatpush1.bf16.msra.mxu0 %v2870
        %4074 = vmatprep.subr.bf16.mxu0 %v2875
        %4075 = vmatpush1.bf16.msra.mxu0 %v2874
        %4076 = vmatprep.subr.bf16.mxu0 %v2879
        %4077 = vmatpush1.bf16.msra.mxu0 %v2878
        %4078 = vmatprep.subr.bf16.mxu0 %v2883
        %4079 = vmatpush1.bf16.msra.mxu0 %v2882
        %4080 = vmatprep.subr.bf16.mxu0 %v2887
        %4081 = vmatpush1.bf16.msra.mxu0 %v2886
        %4082 = vmatprep.subr.bf16.mxu0 %v2891
        %4083 = vmatpush1.bf16.msra.mxu0 %v2890
        %4084 = vmatprep.subr.bf16.mxu0 %v2895
        %4085 = vmatpush1.bf16.msra.mxu0 %v2894
        %4086 = vmatprep.subr.bf16.mxu0 %v2899
        %4087 = vmatpush1.bf16.msra.mxu0 %v2898
        %4088 = vmatprep.subr.bf16.mxu0 %v2903
        %4089 = vmatpush1.bf16.msra.mxu0 %v2902
        %4090 = vmatprep.subr.bf16.mxu0 %v2907
        %4091 = vmatpush1.bf16.msra.mxu0 %v2906
        %4092 = vmatprep.subr.bf16.mxu0 %v2911
        %4093 = vmatpush1.bf16.msra.mxu0 %v2910
        %4094 = vmatprep.mubr.bf16.mxu0 %v907
        %4095 = vmatmul.mubr.bf16.gmra.mrb[0].mxu0 %v893
        %v4096 = vpop.f32.mrb[0].mxu0
        %v4097 = vadd.f32 %v4056, %v4096
        %v4098 = vpop.f32.mrb[0].mxu0
        %v4099 = vadd.f32 %v4058, %v4098
        %v4100 = vpop.f32.mrb[0].mxu0
        %v4101 = vpop.f32.mrb[0].mxu0
        %4102 = vdwg.mxu0
        %4103 = vmatprep.subr.bf16.mxu0 %v2915
        %4104 = vmatpush1.bf16.msra.mxu0 %v2914
        %4105 = vmatprep.subr.bf16.mxu0 %v2919
        %4106 = vmatpush1.bf16.msra.mxu0 %v2918
        %4107 = vmatprep.subr.bf16.mxu0 %v2923
        %4108 = vmatpush1.bf16.msra.mxu0 %v2922
        %4109 = vmatprep.subr.bf16.mxu0 %v2927
        %4110 = vmatpush1.bf16.msra.mxu0 %v2926
        %4111 = vmatprep.subr.bf16.mxu0 %v2931
        %4112 = vmatpush1.bf16.msra.mxu0 %v2930
        %4113 = vmatprep.subr.bf16.mxu0 %v2935
        %4114 = vmatpush1.bf16.msra.mxu0 %v2934
        %4115 = vmatprep.subr.bf16.mxu0 %v2939
        %4116 = vmatpush1.bf16.msra.mxu0 %v2938
        %4117 = vmatprep.subr.bf16.mxu0 %v2943
        %4118 = vmatpush1.bf16.msra.mxu0 %v2942
        %4119 = vmatprep.subr.bf16.mxu0 %v2947
        %4120 = vmatpush1.bf16.msra.mxu0 %v2946
        %4121 = vmatprep.subr.bf16.mxu0 %v2951
        %4122 = vmatpush1.bf16.msra.mxu0 %v2950
        %4123 = vmatprep.subr.bf16.mxu0 %v2955
        %4124 = vmatpush1.bf16.msra.mxu0 %v2954
        %4125 = vmatprep.subr.bf16.mxu0 %v2959
        %4126 = vmatpush1.bf16.msra.mxu0 %v2958
        %4127 = vmatprep.subr.bf16.mxu0 %v2963
        %4128 = vmatpush1.bf16.msra.mxu0 %v2962
        %4129 = vmatprep.subr.bf16.mxu0 %v2967
        %4130 = vmatpush1.bf16.msra.mxu0 %v2966
        %4131 = vmatprep.subr.bf16.mxu0 %v2971
        %4132 = vmatpush1.bf16.msra.mxu0 %v2970
        %4133 = vmatprep.subr.bf16.mxu0 %v2975
        %4134 = vmatpush1.bf16.msra.mxu0 %v2974
        %4135 = vmatprep.mubr.bf16.mxu0 %v911
        %4136 = vmatmul.mubr.bf16.gmra.mrb[0].mxu0 %v909
        %v4137 = vpop.f32.mrb[0].mxu0
        %v4138 = vadd.f32 %v4097, %v4137
        %v4139 = vpop.f32.mrb[0].mxu0
        %v4140 = vadd.f32 %v4099, %v4139
        %v4141 = vpop.f32.mrb[0].mxu0
        %v4142 = vpop.f32.mrb[0].mxu0
        %4143 = vdwg.mxu0
        %v4148 = vcombine.low %v3810, %v3812
        %v4149 = vcombine.low %v4138, %v4140
        %v4151 = vunpack.c.l.s4 1983009808
        %v4152 = vunpack.c.0.s8 %v4151
        %v4153 = vlaneseq
        %v4154 = vshrl.u32 %v4153, 7
        %v4155 = vsub.s32 %v4152, %v4154
        %v4156 = vrot.slane %v4148, %v4155
        %v4158 = vunpack.c.l.s4 1983009808
        %v4159 = vunpack.c.0.s8 %v4158
        %v4160 = vlaneseq
        %v4161 = vshrl.u32 %v4160, 7
        %v4162 = vsub.s32 %v4159, %v4161
        %v4163 = vrot.slane %v4149, %v4162
        %v4164 = vcombine.low %v4156, %v4163
        %v4166 = vadd.f32 %v297, %v4164
        %4167 = vst [vmem:[#allocation2] sm:$0xff] %v4166
        %p4168 = scmp.eq.s32.totalorder %s22, 3
        // Predicated region
        $region61: #{custom_cnn_forward.5} parent=39 // pred_check
          %p4169 = pneg %p4168
        $region62: #{custom_cnn_forward.5} parent=39 // pred_check_branch
          %4171 = sbr.rel (%p4169) target = $region64
        $region63: #{custom_cnn_forward.5} parent=39 // pred_region
          %v4172 = vld [vmem:[#allocation2] sm:$0xff]
          %v4173 = vld [vmem:[#allocation6] sm:$0xf]
          %v4175 = vlaneseq
          %v4176 = vshrl.u32 %v4175, 7
          %v4177 = vsub.s32 0, %v4176
          %v4178 = vrot.slane %v4173, %v4177
          %v4179 = vlaneseq
          %v4180 = vshrl.u32 %v4179, 7
          %v4181 = vsub.s32 1, %v4180
          %v4182 = vrot.slane %v4173, %v4181
          %v4183 = vlaneseq
          %v4184 = vshrl.u32 %v4183, 7
          %v4185 = vsub.s32 2, %v4184
          %v4186 = vrot.slane %v4173, %v4185
          %v4187 = vlaneseq
          %v4188 = vshrl.u32 %v4187, 7
          %v4189 = vsub.s32 3, %v4188
          %v4190 = vrot.slane %v4173, %v4189
          %v4191 = vcombine.low %v4178, %v4182
          %v4192 = vcombine.low %v4186, %v4190
          %v4194 = vunpack.c.l.s4 1983009808
          %v4195 = vunpack.c.0.s8 %v4194
          %v4196 = vlaneseq
          %v4197 = vshrl.u32 %v4196, 7
          %v4198 = vsub.s32 %v4195, %v4197
          %v4199 = vrot.slane %v4191, %v4198
          %v4201 = vunpack.c.l.s4 1983009808
          %v4202 = vunpack.c.0.s8 %v4201
          %v4203 = vlaneseq
          %v4204 = vshrl.u32 %v4203, 7
          %v4205 = vsub.s32 %v4202, %v4204
          %v4206 = vrot.slane %v4192, %v4205
          %v4207 = vcombine.low %v4199, %v4206
          %v4209 = vadd.f32 %v4172, %v4207
          %v4210 = vmax.f32 %v4209, 0.0
          %v4212 = vcombine.high %v4210, %v4210
          %v4214 = vunpack.c.l.s4 1983009808
          %v4215 = vunpack.c.0.s8 %v4214
          %v4216 = vlaneseq
          %v4217 = vshrl.u32 %v4216, 7
          %v4218 = vsub.s32 %v4215, %v4217
          %v4219 = vrot.slane %v4210, %v4218
          %v4221 = vunpack.c.l.s4 1983009808
          %v4222 = vunpack.c.0.s8 %v4221
          %v4223 = vlaneseq
          %v4224 = vshrl.u32 %v4223, 7
          %v4225 = vsub.s32 %v4222, %v4224
          %v4226 = vrot.slane %v4212, %v4225
          %v4227 = vcombine.high %v4219, %v4219
          %v4228 = vcombine.high %v4226, %v4226
          %v4233 = vpack.c.bf16 %v4219, %v4219
          %v4234 = vpack.c.bf16 %v4227, %v4227
          %v4235 = vpack.c.bf16 %v4226, %v4226
          %v4236 = vpack.c.bf16 %v4228, %v4228
          %v4237 = vld [vmem:[#allocation8] sm:$0xff]
          %v4238 = vld [vmem:[#allocation8 + $0x8] sm:$0xff]
          %v4239 = vld [vmem:[#allocation8 + $0x10] sm:$0xff]
          %v4240 = vld [vmem:[#allocation8 + $0x18] sm:$0xff]
          %v4241 = vld [vmem:[#allocation8 + $0x20] sm:$0xff]
          %v4242 = vld [vmem:[#allocation8 + $0x28] sm:$0xff]
          %v4243 = vld [vmem:[#allocation8 + $0x30] sm:$0xff]
          %v4244 = vld [vmem:[#allocation8 + $0x38] sm:$0xff]
          %v4245 = vld [vmem:[#allocation8 + $0x40] sm:$0xff]
          %v4246 = vld [vmem:[#allocation8 + $0x48] sm:$0xff]
          %v4247 = vld [vmem:[#allocation8 + $0x50] sm:$0xff]
          %v4248 = vld [vmem:[#allocation8 + $0x58] sm:$0xff]
          %v4249 = vld [vmem:[#allocation8 + $0x60] sm:$0xff]
          %v4250 = vld [vmem:[#allocation8 + $0x68] sm:$0xff]
          %v4251 = vld [vmem:[#allocation8 + $0x70] sm:$0xff]
          %v4252 = vld [vmem:[#allocation8 + $0x78] sm:$0xff]
          %v4253 = vld [vmem:[#allocation8 + $0x80] sm:$0xff]
          %v4254 = vld [vmem:[#allocation8 + $0x88] sm:$0xff]
          %v4255 = vld [vmem:[#allocation8 + $0x90] sm:$0xff]
          %v4256 = vld [vmem:[#allocation8 + $0x98] sm:$0xff]
          %v4257 = vld [vmem:[#allocation8 + $0xa0] sm:$0xff]
          %v4258 = vld [vmem:[#allocation8 + $0xa8] sm:$0xff]
          %v4259 = vld [vmem:[#allocation8 + $0xb0] sm:$0xff]
          %v4260 = vld [vmem:[#allocation8 + $0xb8] sm:$0xff]
          %v4261 = vld [vmem:[#allocation8 + $0xc0] sm:$0xff]
          %v4262 = vld [vmem:[#allocation8 + $0xc8] sm:$0xff]
          %v4263 = vld [vmem:[#allocation8 + $0xd0] sm:$0xff]
          %v4264 = vld [vmem:[#allocation8 + $0xd8] sm:$0xff]
          %v4265 = vld [vmem:[#allocation8 + $0xe0] sm:$0xff]
          %v4266 = vld [vmem:[#allocation8 + $0xe8] sm:$0xff]
          %v4267 = vld [vmem:[#allocation8 + $0xf0] sm:$0xff]
          %v4268 = vld [vmem:[#allocation8 + $0xf8] sm:$0xff]
          %v4269 = vld [vmem:[#allocation8 + $0x100] sm:$0xff]
          %v4270 = vld [vmem:[#allocation8 + $0x108] sm:$0xff]
          %v4271 = vld [vmem:[#allocation8 + $0x110] sm:$0xff]
          %v4272 = vld [vmem:[#allocation8 + $0x118] sm:$0xff]
          %v4273 = vld [vmem:[#allocation8 + $0x120] sm:$0xff]
          %v4274 = vld [vmem:[#allocation8 + $0x128] sm:$0xff]
          %v4275 = vld [vmem:[#allocation8 + $0x130] sm:$0xff]
          %v4276 = vld [vmem:[#allocation8 + $0x138] sm:$0xff]
          %v4277 = vld [vmem:[#allocation8 + $0x140] sm:$0xff]
          %v4278 = vld [vmem:[#allocation8 + $0x148] sm:$0xff]
          %v4279 = vld [vmem:[#allocation8 + $0x150] sm:$0xff]
          %v4280 = vld [vmem:[#allocation8 + $0x158] sm:$0xff]
          %v4281 = vld [vmem:[#allocation8 + $0x160] sm:$0xff]
          %v4282 = vld [vmem:[#allocation8 + $0x168] sm:$0xff]
          %v4283 = vld [vmem:[#allocation8 + $0x170] sm:$0xff]
          %v4284 = vld [vmem:[#allocation8 + $0x178] sm:$0xff]
          %v4285 = vld [vmem:[#allocation8 + $0x180] sm:$0xff]
          %v4286 = vld [vmem:[#allocation8 + $0x188] sm:$0xff]
          %v4287 = vld [vmem:[#allocation8 + $0x190] sm:$0xff]
          %v4288 = vld [vmem:[#allocation8 + $0x198] sm:$0xff]
          %v4289 = vld [vmem:[#allocation8 + $0x1a0] sm:$0xff]
          %v4290 = vld [vmem:[#allocation8 + $0x1a8] sm:$0xff]
          %v4291 = vld [vmem:[#allocation8 + $0x1b0] sm:$0xff]
          %v4292 = vld [vmem:[#allocation8 + $0x1b8] sm:$0xff]
          %v4293 = vld [vmem:[#allocation8 + $0x1c0] sm:$0xff]
          %v4294 = vld [vmem:[#allocation8 + $0x1c8] sm:$0xff]
          %v4295 = vld [vmem:[#allocation8 + $0x1d0] sm:$0xff]
          %v4296 = vld [vmem:[#allocation8 + $0x1d8] sm:$0xff]
          %v4297 = vld [vmem:[#allocation8 + $0x1e0] sm:$0xff]
          %v4298 = vld [vmem:[#allocation8 + $0x1e8] sm:$0xff]
          %v4299 = vld [vmem:[#allocation8 + $0x1f0] sm:$0xff]
          %v4300 = vld [vmem:[#allocation8 + $0x1f8] sm:$0xff]
          %v4301 = vld [vmem:[#allocation9] sm:$0x3]
          %v4303 = vlaneseq
          %v4304 = vshrl.u32 %v4303, 7
          %v4305 = vsub.s32 0, %v4304
          %v4306 = vrot.slane %v4301, %v4305
          %v4307 = vlaneseq
          %v4308 = vshrl.u32 %v4307, 7
          %v4309 = vsub.s32 1, %v4308
          %v4310 = vrot.slane %v4301, %v4309
          %v4377 = vunpack.c.l.b16 %v4237
          %v4378 = vunpack.c.h.b16 %v4237
          %v4379 = vunpack.c.l.b16 %v4238
          %v4380 = vunpack.c.h.b16 %v4238
          %v4381 = vunpack.c.l.b16 %v4239
          %v4382 = vunpack.c.h.b16 %v4239
          %v4383 = vunpack.c.l.b16 %v4240
          %v4384 = vunpack.c.h.b16 %v4240
          %v4385 = vunpack.c.l.b16 %v4241
          %v4386 = vunpack.c.h.b16 %v4241
          %v4387 = vunpack.c.l.b16 %v4242
          %v4388 = vunpack.c.h.b16 %v4242
          %v4389 = vunpack.c.l.b16 %v4243
          %v4390 = vunpack.c.h.b16 %v4243
          %v4391 = vunpack.c.l.b16 %v4244
          %v4392 = vunpack.c.h.b16 %v4244
          %v4393 = vunpack.c.l.b16 %v4245
          %v4394 = vunpack.c.h.b16 %v4245
          %v4395 = vunpack.c.l.b16 %v4246
          %v4396 = vunpack.c.h.b16 %v4246
          %v4397 = vunpack.c.l.b16 %v4247
          %v4398 = vunpack.c.h.b16 %v4247
          %v4399 = vunpack.c.l.b16 %v4248
          %v4400 = vunpack.c.h.b16 %v4248
          %v4401 = vunpack.c.l.b16 %v4249
          %v4402 = vunpack.c.h.b16 %v4249
          %v4403 = vunpack.c.l.b16 %v4250
          %v4404 = vunpack.c.h.b16 %v4250
          %v4405 = vunpack.c.l.b16 %v4251
          %v4406 = vunpack.c.h.b16 %v4251
          %v4407 = vunpack.c.l.b16 %v4252
          %v4408 = vunpack.c.h.b16 %v4252
          %v4409 = vunpack.c.l.b16 %v4253
          %v4410 = vunpack.c.h.b16 %v4253
          %v4411 = vunpack.c.l.b16 %v4254
          %v4412 = vunpack.c.h.b16 %v4254
          %v4413 = vunpack.c.l.b16 %v4255
          %v4414 = vunpack.c.h.b16 %v4255
          %v4415 = vunpack.c.l.b16 %v4256
          %v4416 = vunpack.c.h.b16 %v4256
          %v4417 = vunpack.c.l.b16 %v4257
          %v4418 = vunpack.c.h.b16 %v4257
          %v4419 = vunpack.c.l.b16 %v4258
          %v4420 = vunpack.c.h.b16 %v4258
          %v4421 = vunpack.c.l.b16 %v4259
          %v4422 = vunpack.c.h.b16 %v4259
          %v4423 = vunpack.c.l.b16 %v4260
          %v4424 = vunpack.c.h.b16 %v4260
          %v4425 = vunpack.c.l.b16 %v4261
          %v4426 = vunpack.c.h.b16 %v4261
          %v4427 = vunpack.c.l.b16 %v4262
          %v4428 = vunpack.c.h.b16 %v4262
          %v4429 = vunpack.c.l.b16 %v4263
          %v4430 = vunpack.c.h.b16 %v4263
          %v4431 = vunpack.c.l.b16 %v4264
          %v4432 = vunpack.c.h.b16 %v4264
          %v4433 = vunpack.c.l.b16 %v4265
          %v4434 = vunpack.c.h.b16 %v4265
          %v4435 = vunpack.c.l.b16 %v4266
          %v4436 = vunpack.c.h.b16 %v4266
          %v4437 = vunpack.c.l.b16 %v4267
          %v4438 = vunpack.c.h.b16 %v4267
          %v4439 = vunpack.c.l.b16 %v4268
          %v4440 = vunpack.c.h.b16 %v4268
          %v4441 = vunpack.c.l.b16 %v4269
          %v4442 = vunpack.c.h.b16 %v4269
          %v4443 = vunpack.c.l.b16 %v4270
          %v4444 = vunpack.c.h.b16 %v4270
          %v4445 = vunpack.c.l.b16 %v4271
          %v4446 = vunpack.c.h.b16 %v4271
          %v4447 = vunpack.c.l.b16 %v4272
          %v4448 = vunpack.c.h.b16 %v4272
          %v4449 = vunpack.c.l.b16 %v4273
          %v4450 = vunpack.c.h.b16 %v4273
          %v4451 = vunpack.c.l.b16 %v4274
          %v4452 = vunpack.c.h.b16 %v4274
          %v4453 = vunpack.c.l.b16 %v4275
          %v4454 = vunpack.c.h.b16 %v4275
          %v4455 = vunpack.c.l.b16 %v4276
          %v4456 = vunpack.c.h.b16 %v4276
          %v4457 = vunpack.c.l.b16 %v4277
          %v4458 = vunpack.c.h.b16 %v4277
          %v4459 = vunpack.c.l.b16 %v4278
          %v4460 = vunpack.c.h.b16 %v4278
          %v4461 = vunpack.c.l.b16 %v4279
          %v4462 = vunpack.c.h.b16 %v4279
          %v4463 = vunpack.c.l.b16 %v4280
          %v4464 = vunpack.c.h.b16 %v4280
          %v4465 = vunpack.c.l.b16 %v4281
          %v4466 = vunpack.c.h.b16 %v4281
          %v4467 = vunpack.c.l.b16 %v4282
          %v4468 = vunpack.c.h.b16 %v4282
          %v4469 = vunpack.c.l.b16 %v4283
          %v4470 = vunpack.c.h.b16 %v4283
          %v4471 = vunpack.c.l.b16 %v4284
          %v4472 = vunpack.c.h.b16 %v4284
          %v4473 = vunpack.c.l.b16 %v4285
          %v4474 = vunpack.c.h.b16 %v4285
          %v4475 = vunpack.c.l.b16 %v4286
          %v4476 = vunpack.c.h.b16 %v4286
          %v4477 = vunpack.c.l.b16 %v4287
          %v4478 = vunpack.c.h.b16 %v4287
          %v4479 = vunpack.c.l.b16 %v4288
          %v4480 = vunpack.c.h.b16 %v4288
          %v4481 = vunpack.c.l.b16 %v4289
          %v4482 = vunpack.c.h.b16 %v4289
          %v4483 = vunpack.c.l.b16 %v4290
          %v4484 = vunpack.c.h.b16 %v4290
          %v4485 = vunpack.c.l.b16 %v4291
          %v4486 = vunpack.c.h.b16 %v4291
          %v4487 = vunpack.c.l.b16 %v4292
          %v4488 = vunpack.c.h.b16 %v4292
          %v4489 = vunpack.c.l.b16 %v4293
          %v4490 = vunpack.c.h.b16 %v4293
          %v4491 = vunpack.c.l.b16 %v4294
          %v4492 = vunpack.c.h.b16 %v4294
          %v4493 = vunpack.c.l.b16 %v4295
          %v4494 = vunpack.c.h.b16 %v4295
          %v4495 = vunpack.c.l.b16 %v4296
          %v4496 = vunpack.c.h.b16 %v4296
          %v4497 = vunpack.c.l.b16 %v4297
          %v4498 = vunpack.c.h.b16 %v4297
          %v4499 = vunpack.c.l.b16 %v4298
          %v4500 = vunpack.c.h.b16 %v4298
          %v4501 = vunpack.c.l.b16 %v4299
          %v4502 = vunpack.c.h.b16 %v4299
          %v4503 = vunpack.c.l.b16 %v4300
          %v4504 = vunpack.c.h.b16 %v4300
          %v4505 = vpack.c.b16 %v4379, %v4377
          %v4506 = vpack.c.b16 %v4380, %v4378
          %v4507 = vpack.c.b16 %v4383, %v4381
          %v4508 = vpack.c.b16 %v4384, %v4382
          %v4509 = vpack.c.b16 %v4387, %v4385
          %v4510 = vpack.c.b16 %v4388, %v4386
          %v4511 = vpack.c.b16 %v4391, %v4389
          %v4512 = vpack.c.b16 %v4392, %v4390
          %v4513 = vpack.c.b16 %v4395, %v4393
          %v4514 = vpack.c.b16 %v4396, %v4394
          %v4515 = vpack.c.b16 %v4399, %v4397
          %v4516 = vpack.c.b16 %v4400, %v4398
          %v4517 = vpack.c.b16 %v4403, %v4401
          %v4518 = vpack.c.b16 %v4404, %v4402
          %v4519 = vpack.c.b16 %v4407, %v4405
          %v4520 = vpack.c.b16 %v4408, %v4406
          %v4521 = vpack.c.b16 %v4411, %v4409
          %v4522 = vpack.c.b16 %v4412, %v4410
          %v4523 = vpack.c.b16 %v4415, %v4413
          %v4524 = vpack.c.b16 %v4416, %v4414
          %v4525 = vpack.c.b16 %v4419, %v4417
          %v4526 = vpack.c.b16 %v4420, %v4418
          %v4527 = vpack.c.b16 %v4423, %v4421
          %v4528 = vpack.c.b16 %v4424, %v4422
          %v4529 = vpack.c.b16 %v4427, %v4425
          %v4530 = vpack.c.b16 %v4428, %v4426
          %v4531 = vpack.c.b16 %v4431, %v4429
          %v4532 = vpack.c.b16 %v4432, %v4430
          %v4533 = vpack.c.b16 %v4435, %v4433
          %v4534 = vpack.c.b16 %v4436, %v4434
          %v4535 = vpack.c.b16 %v4439, %v4437
          %v4536 = vpack.c.b16 %v4440, %v4438
          %v4537 = vpack.c.b16 %v4443, %v4441
          %v4538 = vpack.c.b16 %v4444, %v4442
          %v4539 = vpack.c.b16 %v4447, %v4445
          %v4540 = vpack.c.b16 %v4448, %v4446
          %v4541 = vpack.c.b16 %v4451, %v4449
          %v4542 = vpack.c.b16 %v4452, %v4450
          %v4543 = vpack.c.b16 %v4455, %v4453
          %v4544 = vpack.c.b16 %v4456, %v4454
          %v4545 = vpack.c.b16 %v4459, %v4457
          %v4546 = vpack.c.b16 %v4460, %v4458
          %v4547 = vpack.c.b16 %v4463, %v4461
          %v4548 = vpack.c.b16 %v4464, %v4462
          %v4549 = vpack.c.b16 %v4467, %v4465
          %v4550 = vpack.c.b16 %v4468, %v4466
          %v4551 = vpack.c.b16 %v4471, %v4469
          %v4552 = vpack.c.b16 %v4472, %v4470
          %v4553 = vpack.c.b16 %v4475, %v4473
          %v4554 = vpack.c.b16 %v4476, %v4474
          %v4555 = vpack.c.b16 %v4479, %v4477
          %v4556 = vpack.c.b16 %v4480, %v4478
          %v4557 = vpack.c.b16 %v4483, %v4481
          %v4558 = vpack.c.b16 %v4484, %v4482
          %v4559 = vpack.c.b16 %v4487, %v4485
          %v4560 = vpack.c.b16 %v4488, %v4486
          %v4561 = vpack.c.b16 %v4491, %v4489
          %v4562 = vpack.c.b16 %v4492, %v4490
          %v4563 = vpack.c.b16 %v4495, %v4493
          %v4564 = vpack.c.b16 %v4496, %v4494
          %v4565 = vpack.c.b16 %v4499, %v4497
          %v4566 = vpack.c.b16 %v4500, %v4498
          %v4567 = vpack.c.b16 %v4503, %v4501
          %v4568 = vpack.c.b16 %v4504, %v4502
          %4633 = vmatprep.subr.bf16.mxu0 %v4506
          %4634 = vmatpush1.bf16.msra.mxu0 %v4505
          %4635 = vmatprep.subr.bf16.mxu0 %v4508
          %4636 = vmatpush1.bf16.msra.mxu0 %v4507
          %4637 = vmatprep.subr.bf16.mxu0 %v4510
          %4638 = vmatpush1.bf16.msra.mxu0 %v4509
          %4639 = vmatprep.subr.bf16.mxu0 %v4512
          %4640 = vmatpush1.bf16.msra.mxu0 %v4511
          %4641 = vmatprep.subr.bf16.mxu0 %v4514
          %4642 = vmatpush1.bf16.msra.mxu0 %v4513
          %4643 = vmatprep.subr.bf16.mxu0 %v4516
          %4644 = vmatpush1.bf16.msra.mxu0 %v4515
          %4645 = vmatprep.subr.bf16.mxu0 %v4518
          %4646 = vmatpush1.bf16.msra.mxu0 %v4517
          %4647 = vmatprep.subr.bf16.mxu0 %v4520
          %4648 = vmatpush1.bf16.msra.mxu0 %v4519
          %4649 = vmatprep.subr.bf16.mxu0 %v4522
          %4650 = vmatpush1.bf16.msra.mxu0 %v4521
          %4651 = vmatprep.subr.bf16.mxu0 %v4524
          %4652 = vmatpush1.bf16.msra.mxu0 %v4523
          %4653 = vmatprep.subr.bf16.mxu0 %v4526
          %4654 = vmatpush1.bf16.msra.mxu0 %v4525
          %4655 = vmatprep.subr.bf16.mxu0 %v4528
          %4656 = vmatpush1.bf16.msra.mxu0 %v4527
          %4657 = vmatprep.subr.bf16.mxu0 %v4530
          %4658 = vmatpush1.bf16.msra.mxu0 %v4529
          %4659 = vmatprep.subr.bf16.mxu0 %v4532
          %4660 = vmatpush1.bf16.msra.mxu0 %v4531
          %4661 = vmatprep.subr.bf16.mxu0 %v4534
          %4662 = vmatpush1.bf16.msra.mxu0 %v4533
          %4663 = vmatprep.subr.bf16.mxu0 %v4536
          %4664 = vmatpush1.bf16.msra.mxu0 %v4535
          %4665 = vmatprep.mubr.bf16.mxu0 %v4234
          %4666 = vmatmul.mubr.bf16.gmra.mrb[0].mxu0 %v4233
          %v4667 = vpop.f32.mrb[0].mxu0
          %v4668 = vadd.f32 %v4306, %v4667
          %v4669 = vpop.f32.mrb[0].mxu0
          %v4670 = vadd.f32 %v4310, %v4669
          %v4671 = vpop.f32.mrb[0].mxu0
          %v4672 = vpop.f32.mrb[0].mxu0
          %4673 = vdwg.mxu0
          %4674 = vmatprep.subr.bf16.mxu0 %v4538
          %4675 = vmatpush1.bf16.msra.mxu0 %v4537
          %4676 = vmatprep.subr.bf16.mxu0 %v4540
          %4677 = vmatpush1.bf16.msra.mxu0 %v4539
          %4678 = vmatprep.subr.bf16.mxu0 %v4542
          %4679 = vmatpush1.bf16.msra.mxu0 %v4541
          %4680 = vmatprep.subr.bf16.mxu0 %v4544
          %4681 = vmatpush1.bf16.msra.mxu0 %v4543
          %4682 = vmatprep.subr.bf16.mxu0 %v4546
          %4683 = vmatpush1.bf16.msra.mxu0 %v4545
          %4684 = vmatprep.subr.bf16.mxu0 %v4548
          %4685 = vmatpush1.bf16.msra.mxu0 %v4547
          %4686 = vmatprep.subr.bf16.mxu0 %v4550
          %4687 = vmatpush1.bf16.msra.mxu0 %v4549
          %4688 = vmatprep.subr.bf16.mxu0 %v4552
          %4689 = vmatpush1.bf16.msra.mxu0 %v4551
          %4690 = vmatprep.subr.bf16.mxu0 %v4554
          %4691 = vmatpush1.bf16.msra.mxu0 %v4553
          %4692 = vmatprep.subr.bf16.mxu0 %v4556
          %4693 = vmatpush1.bf16.msra.mxu0 %v4555
          %4694 = vmatprep.subr.bf16.mxu0 %v4558
          %4695 = vmatpush1.bf16.msra.mxu0 %v4557
          %4696 = vmatprep.subr.bf16.mxu0 %v4560
          %4697 = vmatpush1.bf16.msra.mxu0 %v4559
          %4698 = vmatprep.subr.bf16.mxu0 %v4562
          %4699 = vmatpush1.bf16.msra.mxu0 %v4561
          %4700 = vmatprep.subr.bf16.mxu0 %v4564
          %4701 = vmatpush1.bf16.msra.mxu0 %v4563
          %4702 = vmatprep.subr.bf16.mxu0 %v4566
          %4703 = vmatpush1.bf16.msra.mxu0 %v4565
          %4704 = vmatprep.subr.bf16.mxu0 %v4568
          %4705 = vmatpush1.bf16.msra.mxu0 %v4567
          %4706 = vmatprep.mubr.bf16.mxu0 %v4236
          %4707 = vmatmul.mubr.bf16.gmra.mrb[0].mxu0 %v4235
          %v4708 = vpop.f32.mrb[0].mxu0
          %v4709 = vadd.f32 %v4668, %v4708
          %v4710 = vpop.f32.mrb[0].mxu0
          %v4711 = vadd.f32 %v4670, %v4710
          %v4712 = vpop.f32.mrb[0].mxu0
          %v4713 = vpop.f32.mrb[0].mxu0
          %4714 = vdwg.mxu0
          %v4715 = vmax.f32 %v4709, 0.0
          %v4716 = vmax.f32 %v4711, 0.0
          %v4719 = vcombine.low %v4715, %v4716
          %v4721 = vunpack.c.l.s4 1983009808
          %v4722 = vunpack.c.0.s8 %v4721
          %v4723 = vlaneseq
          %v4724 = vshrl.u32 %v4723, 7
          %v4725 = vsub.s32 %v4722, %v4724
          %v4726 = vrot.slane %v4719, %v4725
          %4728 = vst [vmem:[#allocation11] sm:$0xf] %v4726
        $region64: #{custom_cnn_forward.5} parent=39 // pred_fallthru
          _
        // Predicated region
        $region65: #{custom_cnn_forward.5} parent=39 // pred_check
          %p4729 = pneg %p150
        $region66: #{custom_cnn_forward.5} parent=39 // pred_check_branch
          %4731 = sbr.rel (%p4729) target = $region68
        $region67: #{custom_cnn_forward.5} parent=39 // pred_region
          %s4733 = ssub.s32 64, 64
          %4734 = vsyncadd [#allocation5], %s4733
          %s4736 = sshll.u32 [#allocation11], 4
          %s4737 = int_to_ptr.vmem [resolvable:$true] %s4736
          %4739 = dma.vmem_to_hbm [thread:$0]  %s4737, 64, %s5, [#allocation5]
        $region68: #{custom_cnn_forward.5} parent=39 // pred_fallthru
          _
        // Predicated region
        $region69: #{custom_cnn_forward.5} parent=39 // pred_check
          %p4740 = pneg %p150
        $region70: #{custom_cnn_forward.5} parent=39 // pred_check_branch
          %4742 = sbr.rel (%p4740) target = $region72
        $region71: #{custom_cnn_forward.5} parent=39 // pred_region
          %4743 = dma.done [#allocation5], 64
        $region72: #{custom_cnn_forward.5} parent=39 // pred_fallthru
          _
      $region40: #{custom_cnn_forward.5} parent=5 // pred_fallthru
        _
      %p4744 = scmp.le.s32.totalorder 2, %s17
      // Predicated region
      $region73: #{custom_cnn_forward.5} parent=5 // pred_check
        %p4745 = pneg %p4744
      $region74: #{custom_cnn_forward.5} parent=5 // pred_check_branch
        %4747 = sbr.rel (%p4745) target = $region76
      $region75: #{custom_cnn_forward.5} parent=5 // pred_region
        %s4748 = ssub.s32 %s17, 2
      $region76: #{custom_cnn_forward.5} parent=5 // pred_fallthru
        _
    $region6: #{custom_cnn_forward.5} parent=1 // loop_footer
      %s21 = sadd.s32 1, %s17
    $region7: #{custom_cnn_forward.5} parent=1 // loop_footer_branch
      %16 = sbr.rel target = $region3
    $region8: #{custom_cnn_forward.5} parent=1 // loop_exit
      _
    %4749 = vsyncpa [#allocation4], 1
    %s4750 = scalar_lea.sflag [#allocation4], 1
    %4751 = vsyncpa %s4750, 1
    %4752 = vsyncpa [#allocation7], 1
    %4753 = vsyncpa [#allocation10], 1
    %4754 = vsyncpa [#allocation5], 1
    %s4755 = scalar_lea.sflag [#allocation5], 1
    %4756 = vsyncpa %s4755, 1

</llo_original>
